<compile_context>
chip_gen: v7x
topology: tpu7x:2x2x1
jax: 0.10.0
libtpu: 0.0.40
codegen_flags: <defaults>
</compile_context>

<pallas_src>
import functools

import jax
import jax.numpy as jnp
from jax.experimental import pallas as pl
from jax.experimental.pallas import tpu as pltpu

LEAKY_SLOPE = 0.01  # PyTorch nn.LeakyReLU default negative_slope


def _round_up(x, m):
    return (x + m - 1) // m * m


# ---------------------------------------------------------------------------
# Pallas kernel: 9-tap stride-1 3x3 conv (+ bias + LeakyReLU) on zero-padded
# images whose spatial dims are flattened into the lane axis.
#   w_ref : (9, Ceff, Cinp)  bf16   tap-major packed weights (resident)
#   b_ref : (Ceff, 1)        f32
#   x_ref : (G, Cinp, Mp)    bf16   G samples, padded+flattened image each
#   o_ref : (G, Ceff, Mp)    bf16/f32
#   acc   : (Ceff, Mp)       f32    VMEM scratch accumulator
# Valid outputs land at lane p = i*Wp + j (i < H, j < W).  Tap (r, c) is a
# full-width matmul followed by a static lane shift of s = r*Wp + c; the
# padding / round-up lanes absorb the shifted tails and are sliced off
# outside the kernel (never read back).
# ---------------------------------------------------------------------------
def _conv9_kernel(w_ref, b_ref, x_ref, o_ref, acc_ref, *, G, Mp, shifts):
    for g in range(G):                                   # static unroll
        xg = x_ref[g]                                    # (Cinp, Mp) bf16
        acc_ref[...] = jnp.zeros_like(acc_ref)
        for t, s in enumerate(shifts):                   # 9 static taps
            prod = jnp.dot(w_ref[t], xg, preferred_element_type=jnp.float32)
            if s == 0:
                acc_ref[...] += prod
            else:
                acc_ref[:, 0:Mp - s] += prod[:, s:Mp]
        z = acc_ref[...] + b_ref[...]                    # (Ceff, Mp) f32
        o_ref[g] = jnp.where(z > 0, z, LEAKY_SLOPE * z).astype(o_ref.dtype)


def _pick_group(N, step_lane_bytes, cap_bytes=4 << 20, max_unroll=8):
    """Largest divisor of N (<= max_unroll) keeping per-step bytes under cap."""
    best = 1
    for g in range(1, N + 1):
        if N % g or g > max_unroll:
            continue
        if g * step_lane_bytes <= cap_bytes:
            best = g
    return best


def _conv9_bias_lrelu(xf, w9, b_vec, Wp, out_dtype):
    """xf: (N, Cinp, Mp) bf16 padded+flattened image; w9: (9, Ceff, Cinp);
    b_vec: (Ceff,).  Returns (N, Ceff, Mp); valid outputs at lane i*Wp + j."""
    N, Cinp, Mp = xf.shape
    Ceff = w9.shape[1]
    out_bytes = jnp.dtype(out_dtype).itemsize
    G = _pick_group(N, Mp * (Cinp * 2 + Ceff * out_bytes))
    shifts = tuple(r * Wp + c for r in range(3) for c in range(3))

    w = w9.astype(jnp.bfloat16)
    b = b_vec.reshape(Ceff, 1).astype(jnp.float32)

    # Generation-aware VMEM budget from the actual block sizes (double-buffered
    # ins/outs + resident weights/bias + f32 accumulator + margin).
    vmem_need = (2 * (G * Cinp * Mp * 2 + G * Ceff * Mp * out_bytes
                      + 9 * Ceff * Cinp * 2 + Ceff * 4)
                 + Ceff * Mp * 4 + (2 << 20))
    vmem_limit = int(min(max(vmem_need, 32 << 20), 100 << 20))

    kernel = functools.partial(_conv9_kernel, G=G, Mp=Mp, shifts=shifts)
    return pl.pallas_call(
        kernel,
        out_shape=jax.ShapeDtypeStruct((N, Ceff, Mp), out_dtype),
        grid=(N // G,),
        in_specs=[
            pl.BlockSpec((9, Ceff, Cinp), lambda i: (0, 0, 0)),   # resident
            pl.BlockSpec((Ceff, 1), lambda i: (0, 0)),            # resident
            pl.BlockSpec((G, Cinp, Mp), lambda i: (i, 0, 0)),     # streamed
        ],
        out_specs=pl.BlockSpec((G, Ceff, Mp), lambda i: (i, 0, 0)),
        scratch_shapes=[pltpu.VMEM((Ceff, Mp), jnp.float32)],
        compiler_params=pltpu.CompilerParams(
            dimension_semantics=("parallel",),
            vmem_limit_bytes=vmem_limit),
    )(w, b, xf)


# ---------------------------------------------------------------------------
# JAX-side layout glue (cheap, fused copies)
# ---------------------------------------------------------------------------
def _pad_flatten(x, Cinp, Mp):
    """(N, C, H, W) -> (N, Cinp, Mp) bf16: 1-px spatial zero-pad + channel pad,
    flatten (H+2)*(W+2) into lanes, round lanes up to a multiple of 128."""
    N, C, H, W = x.shape
    xp = jnp.pad(x, ((0, 0), (0, Cinp - C), (1, 1), (1, 1)))
    xf = xp.reshape(N, Cinp, (H + 2) * (W + 2))
    xf = jnp.pad(xf, ((0, 0), (0, 0), (0, Mp - (H + 2) * (W + 2))))
    return xf.astype(jnp.bfloat16)


def _pack_w_s1_k3(w_t, Cinp):
    """ConvTranspose2d(k=3,s=1,p=1) weights (Cin,Cout,3,3) -> forward-conv tap
    form (9, Cout, Cinp): tap (r, c) uses the spatially flipped kernel."""
    Cin, Cout = w_t.shape[0], w_t.shape[1]
    w9 = jnp.zeros((9, Cout, Cinp), jnp.float32)
    for r in range(3):
        for c in range(3):
            w9 = w9.at[r * 3 + c, :, :Cin].set(w_t[:, :, 2 - r, 2 - c].T)
    return w9


def _pack_w_s2_k4(w_t, b, Cinp):
    """ConvTranspose2d(k=4,s=2,p=1) weights (Cin,Cout,4,4) -> sub-pixel tap
    form (9, 4*Cout, Cinp) acting on 3x3 windows of the pad-1 ORIGINAL input.
    Row block ph = 2*dr + dc is the output phase (oh%2, ow%2); window offset
    (r, c) maps to tap (kh, kw) = (dr+3-2r, dc+3-2c) when in range, else 0."""
    Cin, Cout = w_t.shape[0], w_t.shape[1]
    w9 = jnp.zeros((9, 4 * Cout, Cinp), jnp.float32)
    for dr in range(2):
        for dc in range(2):
            ph = 2 * dr + dc
            for r in range(3):
                kh = dr + 3 - 2 * r
                if not 0 <= kh < 4:
                    continue
                for c in range(3):
                    kw = dc + 3 - 2 * c
                    if not 0 <= kw < 4:
                        continue
                    w9 = w9.at[r * 3 + c, ph * Cout:(ph + 1) * Cout, :Cin].set(
                        w_t[:, :, kh, kw].T)
    return w9, jnp.tile(b, 4)


def conv_t2d_s2_k4_lrelu(x, w_t, b, out_dtype=jnp.float32):
    """ConvTranspose2d(k=4, s=2, p=1) + LeakyReLU, NCHW in/out (sub-pixel)."""
    N, Cin, H, W = x.shape
    assert w_t.shape[0] == Cin and w_t.shape[2:] == (4, 4)
    Cout = w_t.shape[1]
    Hp, Wp = H + 2, W + 2
    Mp = _round_up(Hp * Wp, 128)
    Cinp = _round_up(Cin, 8)
    xf = _pad_flatten(x, Cinp, Mp)
    w9, b4 = _pack_w_s2_k4(w_t, b, Cinp)
    y = _conv9_bias_lrelu(xf, w9, b4, Wp, out_dtype)      # (N, 4*Cout, Mp)
    # unpad + pixel-shuffle the 4 phases: [(dr,dc,co), i, j] -> [co, 2i+dr, 2j+dc]
    y = y[:, :, :Hp * Wp].reshape(N, 2, 2, Cout, Hp, Wp)[:, :, :, :, :H, :W]
    y = jnp.transpose(y, (0, 3, 4, 1, 5, 2)).reshape(N, Cout, 2 * H, 2 * W)
    return y


def conv_t2d_s1_k3_lrelu(x, w_t, b, out_dtype=jnp.float32):
    """ConvTranspose2d(k=3, s=1, p=1) + LeakyReLU, NCHW in/out."""
    N, Cin, H, W = x.shape
    assert w_t.shape[0] == Cin and w_t.shape[2:] == (3, 3)
    Cout = w_t.shape[1]
    Hp, Wp = H + 2, W + 2
    Mp = _round_up(Hp * Wp, 128)
    Cinp = _round_up(Cin, 8)
    xf = _pad_flatten(x, Cinp, Mp)
    w9 = _pack_w_s1_k3(w_t, Cinp)
    y = _conv9_bias_lrelu(xf, w9, b, Wp, out_dtype)       # (N, Cout, Mp)
    return y[:, :, :Hp * Wp].reshape(N, Cout, Hp, Wp)[:, :, :H, :W]


# ---------------------------------------------------------------------------
# ConvBlock2dT: ConvT(k=4,s=2,p=1)+LeakyReLU, then (num_convs-1) x
# [ConvT(k=3,s=1,p=1)+LeakyReLU].  Params: list of (w, b, stride, padding).
# ---------------------------------------------------------------------------
def init_conv_block_2dT(key, in_channels, out_channels, num_convs):
    params = []
    specs = [(in_channels, out_channels, 4, 2, 1)]
    for _ in range(num_convs - 1):
        specs.append((out_channels, out_channels, 3, 1, 1))
    for (cin, cout, k, s, p) in specs:
        key, kw_, kb_ = jax.random.split(key, 3)
        bound = float(1.0 / (cout * k * k) ** 0.5)
        w = jax.random.uniform(kw_, (cin, cout, k, k), jnp.float32, -bound, bound)
        b = jax.random.uniform(kb_, (cout,), jnp.float32, -bound, bound)
        params.append((w, b, s, p))
    return params


def conv_block_2dT(x_nchw, params):
    y = x_nchw
    last = len(params) - 1
    for li, (w, b, s, p) in enumerate(params):
        # bf16 writeback for intermediate layers (next layer re-casts anyway),
        # f32 only for the final layer.
        out_dtype = jnp.float32 if li == last else jnp.bfloat16
        if s == 2:
            y = conv_t2d_s2_k4_lrelu(y, w, b, out_dtype)
        else:
            y = conv_t2d_s1_k3_lrelu(y, w, b, out_dtype)
    return y


# ---------------------------------------------------------------------------
# Pure-JAX reference (ConvTranspose via lhs-dilated conv), same bf16-operand /
# f32-accumulate precision as the kernel so only summation order differs.
# ---------------------------------------------------------------------------
def _ref_block(x_nchw, params):
    y = x_nchw
    for (w_t, b, s, p) in params:
        k = w_t.shape[-1]
        w_conv = jnp.transpose(w_t[:, :, ::-1, ::-1], (1, 0, 2, 3))   # OIHW
        z = jax.lax.conv_general_dilated(
            y.astype(jnp.bfloat16), w_conv.astype(jnp.bfloat16),
            window_strides=(1, 1),
            padding=[(k - 1 - p, k - 1 - p)] * 2,
            lhs_dilation=(s, s),
            dimension_numbers=('NCHW', 'OIHW', 'NCHW'),
            preferred_element_type=jnp.float32)
        z = z + b[None, :, None, None]
        y = jnp.where(z > 0, z, LEAKY_SLOPE * z)
    return y


if __name__ == "__main__":
    key = jax.random.PRNGKey(0)
    k_x, k_p = jax.random.split(key)

    # Small shapes: batch=2, in_channels=4, out_channels=8, spatial=16, num_convs=2
    N, Cin, Cout, H, W, num_convs = 2, 4, 8, 16, 16, 2
    x = jax.random.normal(k_x, (N, Cin, H, W), jnp.float32)   # NCHW, like PyTorch
    params = init_conv_block_2dT(k_p, Cin, Cout, num_convs)

    fwd = jax.jit(lambda xx: conv_block_2dT(xx, params))
    out = jax.block_until_ready(fwd(x))
    assert out.shape == (N, Cout, 2 * H, 2 * W), out.shape

    ref = jax.block_until_ready(_ref_block(x, params))
    err = float(jnp.max(jnp.abs(out - ref)))
    assert jnp.allclose(out, ref, atol=1e-2, rtol=1e-2), err

    print("KERNEL_OK")
</pallas_src>

<mosaic_0001>
module attributes {stable_mosaic.version = 11 : i64} {
  func.func @_conv9_kernel(%arg0: i32, %arg1: memref<9x32x8xbf16, #tpu.memory_space<vmem>>, %arg2: memref<32x1xf32, #tpu.memory_space<vmem>>, %arg3: memref<2x8x384xbf16, #tpu.memory_space<vmem>>, %arg4: memref<2x32x384xbf16, #tpu.memory_space<vmem>>, %arg5: memref<32x384xf32, #tpu.memory_space<vmem>>) attributes {dimension_semantics = [#tpu.dimension_semantics<parallel>], iteration_bounds = array<i64: 1>, scalar_prefetch = 0 : i64, scratch_operands = 1 : i64, tpu.core_type = #tpu.core_type<tc>, window_params = [{pipeline_mode = #tpu.pipeline_mode<synchronous>, transform_indices = @transform_0, window_bounds = array<i64: 9, 32, 8>}, {pipeline_mode = #tpu.pipeline_mode<synchronous>, transform_indices = @transform_1, window_bounds = array<i64: 32, 1>}, {transform_indices = @transform_2, window_bounds = array<i64: 2, 8, 384>}, {transform_indices = @transform_3, window_bounds = array<i64: 2, 32, 384>}]} {
    %c0 = arith.constant 0 : index
    %c0_0 = arith.constant 0 : index
    %c0_1 = arith.constant 0 : index
    %0 = vector.load %arg3[%c0, %c0_0, %c0_1] : memref<2x8x384xbf16, #tpu.memory_space<vmem>>, vector<1x8x384xbf16>
    %1 = vector.shape_cast %0 : vector<1x8x384xbf16> to vector<8x384xbf16>
    %cst = arith.constant 0.000000e+00 : f32
    %2 = vector.broadcast %cst : f32 to vector<32x384xf32>
    %c0_2 = arith.constant 0 : index
    %c0_3 = arith.constant 0 : index
    %3 = vector.load %arg5[%c0_2, %c0_3] : memref<32x384xf32, #tpu.memory_space<vmem>>, vector<32x384xf32>
    tpu.vector_store %arg5[%c0_2, %c0_3], %2 {strides = array<i32>} : memref<32x384xf32, #tpu.memory_space<vmem>>, vector<32x384xf32>,
    %c0_4 = arith.constant 0 : index
    %c0_5 = arith.constant 0 : index
    %c0_6 = arith.constant 0 : index
    %4 = vector.load %arg1[%c0_4, %c0_5, %c0_6] : memref<9x32x8xbf16, #tpu.memory_space<vmem>>, vector<1x32x8xbf16>
    %5 = vector.shape_cast %4 : vector<1x32x8xbf16> to vector<32x8xbf16>
    %cst_7 = arith.constant dense<0.000000e+00> : vector<32x384xf32>
    %6 = tpu.matmul %5, %1, %cst_7 {dimension_numbers = #tpu.dot_dimension_numbers<[1], [0], [0], [1], [0, 0, 1, 1], [], []>} : vector<32x8xbf16>, vector<8x384xbf16>, vector<32x384xf32> -> vector<32x384xf32>
    %c0_8 = arith.constant 0 : index
    %c0_9 = arith.constant 0 : index
    %7 = vector.load %arg5[%c0_8, %c0_9] : memref<32x384xf32, #tpu.memory_space<vmem>>, vector<32x384xf32>
    %8 = arith.addf %7, %6 : vector<32x384xf32>
    %c0_10 = arith.constant 0 : index
    %c0_11 = arith.constant 0 : index
    %9 = vector.load %arg5[%c0_10, %c0_11] : memref<32x384xf32, #tpu.memory_space<vmem>>, vector<32x384xf32>
    tpu.vector_store %arg5[%c0_10, %c0_11], %8 {strides = array<i32>} : memref<32x384xf32, #tpu.memory_space<vmem>>, vector<32x384xf32>,
    %c1 = arith.constant 1 : index
    %c0_12 = arith.constant 0 : index
    %c0_13 = arith.constant 0 : index
    %10 = vector.load %arg1[%c1, %c0_12, %c0_13] : memref<9x32x8xbf16, #tpu.memory_space<vmem>>, vector<1x32x8xbf16>
    %11 = vector.shape_cast %10 : vector<1x32x8xbf16> to vector<32x8xbf16>
    %cst_14 = arith.constant dense<0.000000e+00> : vector<32x384xf32>
    %12 = tpu.matmul %11, %1, %cst_14 {dimension_numbers = #tpu.dot_dimension_numbers<[1], [0], [0], [1], [0, 0, 1, 1], [], []>} : vector<32x8xbf16>, vector<8x384xbf16>, vector<32x384xf32> -> vector<32x384xf32>
    %c0_15 = arith.constant 0 : index
    %c0_16 = arith.constant 0 : index
    %13 = vector.load %arg5[%c0_15, %c0_16] : memref<32x384xf32, #tpu.memory_space<vmem>>, vector<32x383xf32>
    %14 = vector.extract_strided_slice %12 {offsets = [0, 1], sizes = [32, 383], strides = [1, 1]} : vector<32x384xf32> to vector<32x383xf32>
    %15 = arith.addf %13, %14 : vector<32x383xf32>
    %c0_17 = arith.constant 0 : index
    %c0_18 = arith.constant 0 : index
    %16 = vector.load %arg5[%c0_17, %c0_18] : memref<32x384xf32, #tpu.memory_space<vmem>>, vector<32x383xf32>
    tpu.vector_store %arg5[%c0_17, %c0_18], %15 {strides = array<i32>} : memref<32x384xf32, #tpu.memory_space<vmem>>, vector<32x383xf32>,
    %c2 = arith.constant 2 : index
    %c0_19 = arith.constant 0 : index
    %c0_20 = arith.constant 0 : index
    %17 = vector.load %arg1[%c2, %c0_19, %c0_20] : memref<9x32x8xbf16, #tpu.memory_space<vmem>>, vector<1x32x8xbf16>
    %18 = vector.shape_cast %17 : vector<1x32x8xbf16> to vector<32x8xbf16>
    %cst_21 = arith.constant dense<0.000000e+00> : vector<32x384xf32>
    %19 = tpu.matmul %18, %1, %cst_21 {dimension_numbers = #tpu.dot_dimension_numbers<[1], [0], [0], [1], [0, 0, 1, 1], [], []>} : vector<32x8xbf16>, vector<8x384xbf16>, vector<32x384xf32> -> vector<32x384xf32>
    %c0_22 = arith.constant 0 : index
    %c0_23 = arith.constant 0 : index
    %20 = vector.load %arg5[%c0_22, %c0_23] : memref<32x384xf32, #tpu.memory_space<vmem>>, vector<32x382xf32>
    %21 = vector.extract_strided_slice %19 {offsets = [0, 2], sizes = [32, 382], strides = [1, 1]} : vector<32x384xf32> to vector<32x382xf32>
    %22 = arith.addf %20, %21 : vector<32x382xf32>
    %c0_24 = arith.constant 0 : index
    %c0_25 = arith.constant 0 : index
    %23 = vector.load %arg5[%c0_24, %c0_25] : memref<32x384xf32, #tpu.memory_space<vmem>>, vector<32x382xf32>
    tpu.vector_store %arg5[%c0_24, %c0_25], %22 {strides = array<i32>} : memref<32x384xf32, #tpu.memory_space<vmem>>, vector<32x382xf32>,
    %c3 = arith.constant 3 : index
    %c0_26 = arith.constant 0 : index
    %c0_27 = arith.constant 0 : index
    %24 = vector.load %arg1[%c3, %c0_26, %c0_27] : memref<9x32x8xbf16, #tpu.memory_space<vmem>>, vector<1x32x8xbf16>
    %25 = vector.shape_cast %24 : vector<1x32x8xbf16> to vector<32x8xbf16>
    %cst_28 = arith.constant dense<0.000000e+00> : vector<32x384xf32>
    %26 = tpu.matmul %25, %1, %cst_28 {dimension_numbers = #tpu.dot_dimension_numbers<[1], [0], [0], [1], [0, 0, 1, 1], [], []>} : vector<32x8xbf16>, vector<8x384xbf16>, vector<32x384xf32> -> vector<32x384xf32>
    %c0_29 = arith.constant 0 : index
    %c0_30 = arith.constant 0 : index
    %27 = vector.load %arg5[%c0_29, %c0_30] : memref<32x384xf32, #tpu.memory_space<vmem>>, vector<32x366xf32>
    %28 = vector.extract_strided_slice %26 {offsets = [0, 18], sizes = [32, 366], strides = [1, 1]} : vector<32x384xf32> to vector<32x366xf32>
    %29 = arith.addf %27, %28 : vector<32x366xf32>
    %c0_31 = arith.constant 0 : index
    %c0_32 = arith.constant 0 : index
    %30 = vector.load %arg5[%c0_31, %c0_32] : memref<32x384xf32, #tpu.memory_space<vmem>>, vector<32x366xf32>
    tpu.vector_store %arg5[%c0_31, %c0_32], %29 {strides = array<i32>} : memref<32x384xf32, #tpu.memory_space<vmem>>, vector<32x366xf32>,
    %c4 = arith.constant 4 : index
    %c0_33 = arith.constant 0 : index
    %c0_34 = arith.constant 0 : index
    %31 = vector.load %arg1[%c4, %c0_33, %c0_34] : memref<9x32x8xbf16, #tpu.memory_space<vmem>>, vector<1x32x8xbf16>
    %32 = vector.shape_cast %31 : vector<1x32x8xbf16> to vector<32x8xbf16>
    %cst_35 = arith.constant dense<0.000000e+00> : vector<32x384xf32>
    %33 = tpu.matmul %32, %1, %cst_35 {dimension_numbers = #tpu.dot_dimension_numbers<[1], [0], [0], [1], [0, 0, 1, 1], [], []>} : vector<32x8xbf16>, vector<8x384xbf16>, vector<32x384xf32> -> vector<32x384xf32>
    %c0_36 = arith.constant 0 : index
    %c0_37 = arith.constant 0 : index
    %34 = vector.load %arg5[%c0_36, %c0_37] : memref<32x384xf32, #tpu.memory_space<vmem>>, vector<32x365xf32>
    %35 = vector.extract_strided_slice %33 {offsets = [0, 19], sizes = [32, 365], strides = [1, 1]} : vector<32x384xf32> to vector<32x365xf32>
    %36 = arith.addf %34, %35 : vector<32x365xf32>
    %c0_38 = arith.constant 0 : index
    %c0_39 = arith.constant 0 : index
    %37 = vector.load %arg5[%c0_38, %c0_39] : memref<32x384xf32, #tpu.memory_space<vmem>>, vector<32x365xf32>
    tpu.vector_store %arg5[%c0_38, %c0_39], %36 {strides = array<i32>} : memref<32x384xf32, #tpu.memory_space<vmem>>, vector<32x365xf32>,
    %c5 = arith.constant 5 : index
    %c0_40 = arith.constant 0 : index
    %c0_41 = arith.constant 0 : index
    %38 = vector.load %arg1[%c5, %c0_40, %c0_41] : memref<9x32x8xbf16, #tpu.memory_space<vmem>>, vector<1x32x8xbf16>
    %39 = vector.shape_cast %38 : vector<1x32x8xbf16> to vector<32x8xbf16>
    %cst_42 = arith.constant dense<0.000000e+00> : vector<32x384xf32>
    %40 = tpu.matmul %39, %1, %cst_42 {dimension_numbers = #tpu.dot_dimension_numbers<[1], [0], [0], [1], [0, 0, 1, 1], [], []>} : vector<32x8xbf16>, vector<8x384xbf16>, vector<32x384xf32> -> vector<32x384xf32>
    %c0_43 = arith.constant 0 : index
    %c0_44 = arith.constant 0 : index
    %41 = vector.load %arg5[%c0_43, %c0_44] : memref<32x384xf32, #tpu.memory_space<vmem>>, vector<32x364xf32>
    %42 = vector.extract_strided_slice %40 {offsets = [0, 20], sizes = [32, 364], strides = [1, 1]} : vector<32x384xf32> to vector<32x364xf32>
    %43 = arith.addf %41, %42 : vector<32x364xf32>
    %c0_45 = arith.constant 0 : index
    %c0_46 = arith.constant 0 : index
    %44 = vector.load %arg5[%c0_45, %c0_46] : memref<32x384xf32, #tpu.memory_space<vmem>>, vector<32x364xf32>
    tpu.vector_store %arg5[%c0_45, %c0_46], %43 {strides = array<i32>} : memref<32x384xf32, #tpu.memory_space<vmem>>, vector<32x364xf32>,
    %c6 = arith.constant 6 : index
    %c0_47 = arith.constant 0 : index
    %c0_48 = arith.constant 0 : index
    %45 = vector.load %arg1[%c6, %c0_47, %c0_48] : memref<9x32x8xbf16, #tpu.memory_space<vmem>>, vector<1x32x8xbf16>
    %46 = vector.shape_cast %45 : vector<1x32x8xbf16> to vector<32x8xbf16>
    %cst_49 = arith.constant dense<0.000000e+00> : vector<32x384xf32>
    %47 = tpu.matmul %46, %1, %cst_49 {dimension_numbers = #tpu.dot_dimension_numbers<[1], [0], [0], [1], [0, 0, 1, 1], [], []>} : vector<32x8xbf16>, vector<8x384xbf16>, vector<32x384xf32> -> vector<32x384xf32>
    %c0_50 = arith.constant 0 : index
    %c0_51 = arith.constant 0 : index
    %48 = vector.load %arg5[%c0_50, %c0_51] : memref<32x384xf32, #tpu.memory_space<vmem>>, vector<32x348xf32>
    %49 = vector.extract_strided_slice %47 {offsets = [0, 36], sizes = [32, 348], strides = [1, 1]} : vector<32x384xf32> to vector<32x348xf32>
    %50 = arith.addf %48, %49 : vector<32x348xf32>
    %c0_52 = arith.constant 0 : index
    %c0_53 = arith.constant 0 : index
    %51 = vector.load %arg5[%c0_52, %c0_53] : memref<32x384xf32, #tpu.memory_space<vmem>>, vector<32x348xf32>
    tpu.vector_store %arg5[%c0_52, %c0_53], %50 {strides = array<i32>} : memref<32x384xf32, #tpu.memory_space<vmem>>, vector<32x348xf32>,
    %c7 = arith.constant 7 : index
    %c0_54 = arith.constant 0 : index
    %c0_55 = arith.constant 0 : index
    %52 = vector.load %arg1[%c7, %c0_54, %c0_55] : memref<9x32x8xbf16, #tpu.memory_space<vmem>>, vector<1x32x8xbf16>
    %53 = vector.shape_cast %52 : vector<1x32x8xbf16> to vector<32x8xbf16>
    %cst_56 = arith.constant dense<0.000000e+00> : vector<32x384xf32>
    %54 = tpu.matmul %53, %1, %cst_56 {dimension_numbers = #tpu.dot_dimension_numbers<[1], [0], [0], [1], [0, 0, 1, 1], [], []>} : vector<32x8xbf16>, vector<8x384xbf16>, vector<32x384xf32> -> vector<32x384xf32>
    %c0_57 = arith.constant 0 : index
    %c0_58 = arith.constant 0 : index
    %55 = vector.load %arg5[%c0_57, %c0_58] : memref<32x384xf32, #tpu.memory_space<vmem>>, vector<32x347xf32>
    %56 = vector.extract_strided_slice %54 {offsets = [0, 37], sizes = [32, 347], strides = [1, 1]} : vector<32x384xf32> to vector<32x347xf32>
    %57 = arith.addf %55, %56 : vector<32x347xf32>
    %c0_59 = arith.constant 0 : index
    %c0_60 = arith.constant 0 : index
    %58 = vector.load %arg5[%c0_59, %c0_60] : memref<32x384xf32, #tpu.memory_space<vmem>>, vector<32x347xf32>
    tpu.vector_store %arg5[%c0_59, %c0_60], %57 {strides = array<i32>} : memref<32x384xf32, #tpu.memory_space<vmem>>, vector<32x347xf32>,
    %c8 = arith.constant 8 : index
    %c0_61 = arith.constant 0 : index
    %c0_62 = arith.constant 0 : index
    %59 = vector.load %arg1[%c8, %c0_61, %c0_62] : memref<9x32x8xbf16, #tpu.memory_space<vmem>>, vector<1x32x8xbf16>
    %60 = vector.shape_cast %59 : vector<1x32x8xbf16> to vector<32x8xbf16>
    %cst_63 = arith.constant dense<0.000000e+00> : vector<32x384xf32>
    %61 = tpu.matmul %60, %1, %cst_63 {dimension_numbers = #tpu.dot_dimension_numbers<[1], [0], [0], [1], [0, 0, 1, 1], [], []>} : vector<32x8xbf16>, vector<8x384xbf16>, vector<32x384xf32> -> vector<32x384xf32>
    %c0_64 = arith.constant 0 : index
    %c0_65 = arith.constant 0 : index
    %62 = vector.load %arg5[%c0_64, %c0_65] : memref<32x384xf32, #tpu.memory_space<vmem>>, vector<32x346xf32>
    %63 = vector.extract_strided_slice %61 {offsets = [0, 38], sizes = [32, 346], strides = [1, 1]} : vector<32x384xf32> to vector<32x346xf32>
    %64 = arith.addf %62, %63 : vector<32x346xf32>
    %c0_66 = arith.constant 0 : index
    %c0_67 = arith.constant 0 : index
    %65 = vector.load %arg5[%c0_66, %c0_67] : memref<32x384xf32, #tpu.memory_space<vmem>>, vector<32x346xf32>
    tpu.vector_store %arg5[%c0_66, %c0_67], %64 {strides = array<i32>} : memref<32x384xf32, #tpu.memory_space<vmem>>, vector<32x346xf32>,
    %c0_68 = arith.constant 0 : index
    %c0_69 = arith.constant 0 : index
    %66 = vector.load %arg5[%c0_68, %c0_69] : memref<32x384xf32, #tpu.memory_space<vmem>>, vector<32x384xf32>
    %c0_70 = arith.constant 0 : index
    %c0_71 = arith.constant 0 : index
    %67 = vector.load %arg2[%c0_70, %c0_71] : memref<32x1xf32, #tpu.memory_space<vmem>>, vector<32x1xf32>
    %68 = vector.broadcast %67 : vector<32x1xf32> to vector<32x384xf32>
    %69 = arith.addf %66, %68 : vector<32x384xf32>
    %cst_72 = arith.constant 0.000000e+00 : f32
    %70 = vector.broadcast %cst_72 : f32 to vector<32x384xf32>
    %71 = arith.cmpf ogt, %69, %70 : vector<32x384xf32>
    %cst_73 = arith.constant 0.00999999977 : f32
    %72 = vector.broadcast %cst_73 : f32 to vector<32x384xf32>
    %73 = arith.mulf %72, %69 : vector<32x384xf32>
    %74 = arith.select %71, %69, %73 : vector<32x384xi1>, vector<32x384xf32>
    %75 = arith.truncf %74 : vector<32x384xf32> to vector<32x384xbf16>
    %c0_74 = arith.constant 0 : index
    %c0_75 = arith.constant 0 : index
    %c0_76 = arith.constant 0 : index
    %76 = vector.load %arg4[%c0_74, %c0_75, %c0_76] : memref<2x32x384xbf16, #tpu.memory_space<vmem>>, vector<1x32x384xbf16>
    %77 = vector.shape_cast %76 : vector<1x32x384xbf16> to vector<32x384xbf16>
    %78 = vector.shape_cast %75 : vector<32x384xbf16> to vector<1x32x384xbf16>
    tpu.vector_store %arg4[%c0_74, %c0_75, %c0_76], %78 {strides = array<i32>} : memref<2x32x384xbf16, #tpu.memory_space<vmem>>, vector<1x32x384xbf16>,
    %c1_77 = arith.constant 1 : index
    %c0_78 = arith.constant 0 : index
    %c0_79 = arith.constant 0 : index
    %79 = vector.load %arg3[%c1_77, %c0_78, %c0_79] : memref<2x8x384xbf16, #tpu.memory_space<vmem>>, vector<1x8x384xbf16>
    %80 = vector.shape_cast %79 : vector<1x8x384xbf16> to vector<8x384xbf16>
    %cst_80 = arith.constant 0.000000e+00 : f32
    %81 = vector.broadcast %cst_80 : f32 to vector<32x384xf32>
    %c0_81 = arith.constant 0 : index
    %c0_82 = arith.constant 0 : index
    %82 = vector.load %arg5[%c0_81, %c0_82] : memref<32x384xf32, #tpu.memory_space<vmem>>, vector<32x384xf32>
    tpu.vector_store %arg5[%c0_81, %c0_82], %81 {strides = array<i32>} : memref<32x384xf32, #tpu.memory_space<vmem>>, vector<32x384xf32>,
    %c0_83 = arith.constant 0 : index
    %c0_84 = arith.constant 0 : index
    %c0_85 = arith.constant 0 : index
    %83 = vector.load %arg1[%c0_83, %c0_84, %c0_85] : memref<9x32x8xbf16, #tpu.memory_space<vmem>>, vector<1x32x8xbf16>
    %84 = vector.shape_cast %83 : vector<1x32x8xbf16> to vector<32x8xbf16>
    %cst_86 = arith.constant dense<0.000000e+00> : vector<32x384xf32>
    %85 = tpu.matmul %84, %80, %cst_86 {dimension_numbers = #tpu.dot_dimension_numbers<[1], [0], [0], [1], [0, 0, 1, 1], [], []>} : vector<32x8xbf16>, vector<8x384xbf16>, vector<32x384xf32> -> vector<32x384xf32>
    %c0_87 = arith.constant 0 : index
    %c0_88 = arith.constant 0 : index
    %86 = vector.load %arg5[%c0_87, %c0_88] : memref<32x384xf32, #tpu.memory_space<vmem>>, vector<32x384xf32>
    %87 = arith.addf %86, %85 : vector<32x384xf32>
    %c0_89 = arith.constant 0 : index
    %c0_90 = arith.constant 0 : index
    %88 = vector.load %arg5[%c0_89, %c0_90] : memref<32x384xf32, #tpu.memory_space<vmem>>, vector<32x384xf32>
    tpu.vector_store %arg5[%c0_89, %c0_90], %87 {strides = array<i32>} : memref<32x384xf32, #tpu.memory_space<vmem>>, vector<32x384xf32>,
    %c1_91 = arith.constant 1 : index
    %c0_92 = arith.constant 0 : index
    %c0_93 = arith.constant 0 : index
    %89 = vector.load %arg1[%c1_91, %c0_92, %c0_93] : memref<9x32x8xbf16, #tpu.memory_space<vmem>>, vector<1x32x8xbf16>
    %90 = vector.shape_cast %89 : vector<1x32x8xbf16> to vector<32x8xbf16>
    %cst_94 = arith.constant dense<0.000000e+00> : vector<32x384xf32>
    %91 = tpu.matmul %90, %80, %cst_94 {dimension_numbers = #tpu.dot_dimension_numbers<[1], [0], [0], [1], [0, 0, 1, 1], [], []>} : vector<32x8xbf16>, vector<8x384xbf16>, vector<32x384xf32> -> vector<32x384xf32>
    %c0_95 = arith.constant 0 : index
    %c0_96 = arith.constant 0 : index
    %92 = vector.load %arg5[%c0_95, %c0_96] : memref<32x384xf32, #tpu.memory_space<vmem>>, vector<32x383xf32>
    %93 = vector.extract_strided_slice %91 {offsets = [0, 1], sizes = [32, 383], strides = [1, 1]} : vector<32x384xf32> to vector<32x383xf32>
    %94 = arith.addf %92, %93 : vector<32x383xf32>
    %c0_97 = arith.constant 0 : index
    %c0_98 = arith.constant 0 : index
    %95 = vector.load %arg5[%c0_97, %c0_98] : memref<32x384xf32, #tpu.memory_space<vmem>>, vector<32x383xf32>
    tpu.vector_store %arg5[%c0_97, %c0_98], %94 {strides = array<i32>} : memref<32x384xf32, #tpu.memory_space<vmem>>, vector<32x383xf32>,
    %c2_99 = arith.constant 2 : index
    %c0_100 = arith.constant 0 : index
    %c0_101 = arith.constant 0 : index
    %96 = vector.load %arg1[%c2_99, %c0_100, %c0_101] : memref<9x32x8xbf16, #tpu.memory_space<vmem>>, vector<1x32x8xbf16>
    %97 = vector.shape_cast %96 : vector<1x32x8xbf16> to vector<32x8xbf16>
    %cst_102 = arith.constant dense<0.000000e+00> : vector<32x384xf32>
    %98 = tpu.matmul %97, %80, %cst_102 {dimension_numbers = #tpu.dot_dimension_numbers<[1], [0], [0], [1], [0, 0, 1, 1], [], []>} : vector<32x8xbf16>, vector<8x384xbf16>, vector<32x384xf32> -> vector<32x384xf32>
    %c0_103 = arith.constant 0 : index
    %c0_104 = arith.constant 0 : index
    %99 = vector.load %arg5[%c0_103, %c0_104] : memref<32x384xf32, #tpu.memory_space<vmem>>, vector<32x382xf32>
    %100 = vector.extract_strided_slice %98 {offsets = [0, 2], sizes = [32, 382], strides = [1, 1]} : vector<32x384xf32> to vector<32x382xf32>
    %101 = arith.addf %99, %100 : vector<32x382xf32>
    %c0_105 = arith.constant 0 : index
    %c0_106 = arith.constant 0 : index
    %102 = vector.load %arg5[%c0_105, %c0_106] : memref<32x384xf32, #tpu.memory_space<vmem>>, vector<32x382xf32>
    tpu.vector_store %arg5[%c0_105, %c0_106], %101 {strides = array<i32>} : memref<32x384xf32, #tpu.memory_space<vmem>>, vector<32x382xf32>,
    %c3_107 = arith.constant 3 : index
    %c0_108 = arith.constant 0 : index
    %c0_109 = arith.constant 0 : index
    %103 = vector.load %arg1[%c3_107, %c0_108, %c0_109] : memref<9x32x8xbf16, #tpu.memory_space<vmem>>, vector<1x32x8xbf16>
    %104 = vector.shape_cast %103 : vector<1x32x8xbf16> to vector<32x8xbf16>
    %cst_110 = arith.constant dense<0.000000e+00> : vector<32x384xf32>
    %105 = tpu.matmul %104, %80, %cst_110 {dimension_numbers = #tpu.dot_dimension_numbers<[1], [0], [0], [1], [0, 0, 1, 1], [], []>} : vector<32x8xbf16>, vector<8x384xbf16>, vector<32x384xf32> -> vector<32x384xf32>
    %c0_111 = arith.constant 0 : index
    %c0_112 = arith.constant 0 : index
    %106 = vector.load %arg5[%c0_111, %c0_112] : memref<32x384xf32, #tpu.memory_space<vmem>>, vector<32x366xf32>
    %107 = vector.extract_strided_slice %105 {offsets = [0, 18], sizes = [32, 366], strides = [1, 1]} : vector<32x384xf32> to vector<32x366xf32>
    %108 = arith.addf %106, %107 : vector<32x366xf32>
    %c0_113 = arith.constant 0 : index
    %c0_114 = arith.constant 0 : index
    %109 = vector.load %arg5[%c0_113, %c0_114] : memref<32x384xf32, #tpu.memory_space<vmem>>, vector<32x366xf32>
    tpu.vector_store %arg5[%c0_113, %c0_114], %108 {strides = array<i32>} : memref<32x384xf32, #tpu.memory_space<vmem>>, vector<32x366xf32>,
    %c4_115 = arith.constant 4 : index
    %c0_116 = arith.constant 0 : index
    %c0_117 = arith.constant 0 : index
    %110 = vector.load %arg1[%c4_115, %c0_116, %c0_117] : memref<9x32x8xbf16, #tpu.memory_space<vmem>>, vector<1x32x8xbf16>
    %111 = vector.shape_cast %110 : vector<1x32x8xbf16> to vector<32x8xbf16>
    %cst_118 = arith.constant dense<0.000000e+00> : vector<32x384xf32>
    %112 = tpu.matmul %111, %80, %cst_118 {dimension_numbers = #tpu.dot_dimension_numbers<[1], [0], [0], [1], [0, 0, 1, 1], [], []>} : vector<32x8xbf16>, vector<8x384xbf16>, vector<32x384xf32> -> vector<32x384xf32>
    %c0_119 = arith.constant 0 : index
    %c0_120 = arith.constant 0 : index
    %113 = vector.load %arg5[%c0_119, %c0_120] : memref<32x384xf32, #tpu.memory_space<vmem>>, vector<32x365xf32>
    %114 = vector.extract_strided_slice %112 {offsets = [0, 19], sizes = [32, 365], strides = [1, 1]} : vector<32x384xf32> to vector<32x365xf32>
    %115 = arith.addf %113, %114 : vector<32x365xf32>
    %c0_121 = arith.constant 0 : index
    %c0_122 = arith.constant 0 : index
    %116 = vector.load %arg5[%c0_121, %c0_122] : memref<32x384xf32, #tpu.memory_space<vmem>>, vector<32x365xf32>
    tpu.vector_store %arg5[%c0_121, %c0_122], %115 {strides = array<i32>} : memref<32x384xf32, #tpu.memory_space<vmem>>, vector<32x365xf32>,
    %c5_123 = arith.constant 5 : index
    %c0_124 = arith.constant 0 : index
    %c0_125 = arith.constant 0 : index
    %117 = vector.load %arg1[%c5_123, %c0_124, %c0_125] : memref<9x32x8xbf16, #tpu.memory_space<vmem>>, vector<1x32x8xbf16>
    %118 = vector.shape_cast %117 : vector<1x32x8xbf16> to vector<32x8xbf16>
    %cst_126 = arith.constant dense<0.000000e+00> : vector<32x384xf32>
    %119 = tpu.matmul %118, %80, %cst_126 {dimension_numbers = #tpu.dot_dimension_numbers<[1], [0], [0], [1], [0, 0, 1, 1], [], []>} : vector<32x8xbf16>, vector<8x384xbf16>, vector<32x384xf32> -> vector<32x384xf32>
    %c0_127 = arith.constant 0 : index
    %c0_128 = arith.constant 0 : index
    %120 = vector.load %arg5[%c0_127, %c0_128] : memref<32x384xf32, #tpu.memory_space<vmem>>, vector<32x364xf32>
    %121 = vector.extract_strided_slice %119 {offsets = [0, 20], sizes = [32, 364], strides = [1, 1]} : vector<32x384xf32> to vector<32x364xf32>
    %122 = arith.addf %120, %121 : vector<32x364xf32>
    %c0_129 = arith.constant 0 : index
    %c0_130 = arith.constant 0 : index
    %123 = vector.load %arg5[%c0_129, %c0_130] : memref<32x384xf32, #tpu.memory_space<vmem>>, vector<32x364xf32>
    tpu.vector_store %arg5[%c0_129, %c0_130], %122 {strides = array<i32>} : memref<32x384xf32, #tpu.memory_space<vmem>>, vector<32x364xf32>,
    %c6_131 = arith.constant 6 : index
    %c0_132 = arith.constant 0 : index
    %c0_133 = arith.constant 0 : index
    %124 = vector.load %arg1[%c6_131, %c0_132, %c0_133] : memref<9x32x8xbf16, #tpu.memory_space<vmem>>, vector<1x32x8xbf16>
    %125 = vector.shape_cast %124 : vector<1x32x8xbf16> to vector<32x8xbf16>
    %cst_134 = arith.constant dense<0.000000e+00> : vector<32x384xf32>
    %126 = tpu.matmul %125, %80, %cst_134 {dimension_numbers = #tpu.dot_dimension_numbers<[1], [0], [0], [1], [0, 0, 1, 1], [], []>} : vector<32x8xbf16>, vector<8x384xbf16>, vector<32x384xf32> -> vector<32x384xf32>
    %c0_135 = arith.constant 0 : index
    %c0_136 = arith.constant 0 : index
    %127 = vector.load %arg5[%c0_135, %c0_136] : memref<32x384xf32, #tpu.memory_space<vmem>>, vector<32x348xf32>
    %128 = vector.extract_strided_slice %126 {offsets = [0, 36], sizes = [32, 348], strides = [1, 1]} : vector<32x384xf32> to vector<32x348xf32>
    %129 = arith.addf %127, %128 : vector<32x348xf32>
    %c0_137 = arith.constant 0 : index
    %c0_138 = arith.constant 0 : index
    %130 = vector.load %arg5[%c0_137, %c0_138] : memref<32x384xf32, #tpu.memory_space<vmem>>, vector<32x348xf32>
    tpu.vector_store %arg5[%c0_137, %c0_138], %129 {strides = array<i32>} : memref<32x384xf32, #tpu.memory_space<vmem>>, vector<32x348xf32>,
    %c7_139 = arith.constant 7 : index
    %c0_140 = arith.constant 0 : index
    %c0_141 = arith.constant 0 : index
    %131 = vector.load %arg1[%c7_139, %c0_140, %c0_141] : memref<9x32x8xbf16, #tpu.memory_space<vmem>>, vector<1x32x8xbf16>
    %132 = vector.shape_cast %131 : vector<1x32x8xbf16> to vector<32x8xbf16>
    %cst_142 = arith.constant dense<0.000000e+00> : vector<32x384xf32>
    %133 = tpu.matmul %132, %80, %cst_142 {dimension_numbers = #tpu.dot_dimension_numbers<[1], [0], [0], [1], [0, 0, 1, 1], [], []>} : vector<32x8xbf16>, vector<8x384xbf16>, vector<32x384xf32> -> vector<32x384xf32>
    %c0_143 = arith.constant 0 : index
    %c0_144 = arith.constant 0 : index
    %134 = vector.load %arg5[%c0_143, %c0_144] : memref<32x384xf32, #tpu.memory_space<vmem>>, vector<32x347xf32>
    %135 = vector.extract_strided_slice %133 {offsets = [0, 37], sizes = [32, 347], strides = [1, 1]} : vector<32x384xf32> to vector<32x347xf32>
    %136 = arith.addf %134, %135 : vector<32x347xf32>
    %c0_145 = arith.constant 0 : index
    %c0_146 = arith.constant 0 : index
    %137 = vector.load %arg5[%c0_145, %c0_146] : memref<32x384xf32, #tpu.memory_space<vmem>>, vector<32x347xf32>
    tpu.vector_store %arg5[%c0_145, %c0_146], %136 {strides = array<i32>} : memref<32x384xf32, #tpu.memory_space<vmem>>, vector<32x347xf32>,
    %c8_147 = arith.constant 8 : index
    %c0_148 = arith.constant 0 : index
    %c0_149 = arith.constant 0 : index
    %138 = vector.load %arg1[%c8_147, %c0_148, %c0_149] : memref<9x32x8xbf16, #tpu.memory_space<vmem>>, vector<1x32x8xbf16>
    %139 = vector.shape_cast %138 : vector<1x32x8xbf16> to vector<32x8xbf16>
    %cst_150 = arith.constant dense<0.000000e+00> : vector<32x384xf32>
    %140 = tpu.matmul %139, %80, %cst_150 {dimension_numbers = #tpu.dot_dimension_numbers<[1], [0], [0], [1], [0, 0, 1, 1], [], []>} : vector<32x8xbf16>, vector<8x384xbf16>, vector<32x384xf32> -> vector<32x384xf32>
    %c0_151 = arith.constant 0 : index
    %c0_152 = arith.constant 0 : index
    %141 = vector.load %arg5[%c0_151, %c0_152] : memref<32x384xf32, #tpu.memory_space<vmem>>, vector<32x346xf32>
    %142 = vector.extract_strided_slice %140 {offsets = [0, 38], sizes = [32, 346], strides = [1, 1]} : vector<32x384xf32> to vector<32x346xf32>
    %143 = arith.addf %141, %142 : vector<32x346xf32>
    %c0_153 = arith.constant 0 : index
    %c0_154 = arith.constant 0 : index
    %144 = vector.load %arg5[%c0_153, %c0_154] : memref<32x384xf32, #tpu.memory_space<vmem>>, vector<32x346xf32>
    tpu.vector_store %arg5[%c0_153, %c0_154], %143 {strides = array<i32>} : memref<32x384xf32, #tpu.memory_space<vmem>>, vector<32x346xf32>,
    %c0_155 = arith.constant 0 : index
    %c0_156 = arith.constant 0 : index
    %145 = vector.load %arg5[%c0_155, %c0_156] : memref<32x384xf32, #tpu.memory_space<vmem>>, vector<32x384xf32>
    %c0_157 = arith.constant 0 : index
    %c0_158 = arith.constant 0 : index
    %146 = vector.load %arg2[%c0_157, %c0_158] : memref<32x1xf32, #tpu.memory_space<vmem>>, vector<32x1xf32>
    %147 = vector.broadcast %146 : vector<32x1xf32> to vector<32x384xf32>
    %148 = arith.addf %145, %147 : vector<32x384xf32>
    %cst_159 = arith.constant 0.000000e+00 : f32
    %149 = vector.broadcast %cst_159 : f32 to vector<32x384xf32>
    %150 = arith.cmpf ogt, %148, %149 : vector<32x384xf32>
    %cst_160 = arith.constant 0.00999999977 : f32
    %151 = vector.broadcast %cst_160 : f32 to vector<32x384xf32>
    %152 = arith.mulf %151, %148 : vector<32x384xf32>
    %153 = arith.select %150, %148, %152 : vector<32x384xi1>, vector<32x384xf32>
    %154 = arith.truncf %153 : vector<32x384xf32> to vector<32x384xbf16>
    %c1_161 = arith.constant 1 : index
    %c0_162 = arith.constant 0 : index
    %c0_163 = arith.constant 0 : index
    %155 = vector.load %arg4[%c1_161, %c0_162, %c0_163] : memref<2x32x384xbf16, #tpu.memory_space<vmem>>, vector<1x32x384xbf16>
    %156 = vector.shape_cast %155 : vector<1x32x384xbf16> to vector<32x384xbf16>
    %157 = vector.shape_cast %154 : vector<32x384xbf16> to vector<1x32x384xbf16>
    tpu.vector_store %arg4[%c1_161, %c0_162, %c0_163], %157 {strides = array<i32>} : memref<2x32x384xbf16, #tpu.memory_space<vmem>>, vector<1x32x384xbf16>,
    return
  }
  func.func @transform_0(%arg0: i32) -> (i32, i32, i32) {
    %c0_i32 = arith.constant 0 : i32
    %c0_i32_0 = arith.constant 0 : i32
    %c0_i32_1 = arith.constant 0 : i32
    %c0_i32_2 = arith.constant 0 : i32
    return %c0_i32, %c0_i32_0, %c0_i32_1 : i32, i32, i32
  }
  func.func @transform_1(%arg0: i32) -> (i32, i32) {
    %c0_i32 = arith.constant 0 : i32
    %c0_i32_0 = arith.constant 0 : i32
    %c0_i32_1 = arith.constant 0 : i32
    return %c0_i32, %c0_i32_0 : i32, i32
  }
  func.func @transform_2(%arg0: i32) -> (i32, i32, i32) {
    %c0_i32 = arith.constant 0 : i32
    %c0_i32_0 = arith.constant 0 : i32
    %c0_i32_1 = arith.constant 0 : i32
    return %arg0, %c0_i32, %c0_i32_0 : i32, i32, i32
  }
  func.func @transform_3(%arg0: i32) -> (i32, i32, i32) {
    %c0_i32 = arith.constant 0 : i32
    %c0_i32_0 = arith.constant 0 : i32
    %c0_i32_1 = arith.constant 0 : i32
    return %arg0, %c0_i32, %c0_i32_0 : i32, i32, i32
  }
}

module attributes {stable_mosaic.version = 11 : i64} {
  func.func @_conv9_kernel(%arg0: i32, %arg1: memref<9x8x8xbf16, #tpu.memory_space<vmem>>, %arg2: memref<8x1xf32, #tpu.memory_space<vmem>>, %arg3: memref<2x8x1280xbf16, #tpu.memory_space<vmem>>, %arg4: memref<2x8x1280xf32, #tpu.memory_space<vmem>>, %arg5: memref<8x1280xf32, #tpu.memory_space<vmem>>) attributes {dimension_semantics = [#tpu.dimension_semantics<parallel>], iteration_bounds = array<i64: 1>, scalar_prefetch = 0 : i64, scratch_operands = 1 : i64, tpu.core_type = #tpu.core_type<tc>, window_params = [{pipeline_mode = #tpu.pipeline_mode<synchronous>, transform_indices = @transform_0, window_bounds = array<i64: 9, 8, 8>}, {pipeline_mode = #tpu.pipeline_mode<synchronous>, transform_indices = @transform_1, window_bounds = array<i64: 8, 1>}, {transform_indices = @transform_2, window_bounds = array<i64: 2, 8, 1280>}, {transform_indices = @transform_3, window_bounds = array<i64: 2, 8, 1280>}]} {
    %c0 = arith.constant 0 : index
    %c0_0 = arith.constant 0 : index
    %c0_1 = arith.constant 0 : index
    %0 = vector.load %arg3[%c0, %c0_0, %c0_1] : memref<2x8x1280xbf16, #tpu.memory_space<vmem>>, vector<1x8x1280xbf16>
    %1 = vector.shape_cast %0 : vector<1x8x1280xbf16> to vector<8x1280xbf16>
    %cst = arith.constant 0.000000e+00 : f32
    %2 = vector.broadcast %cst : f32 to vector<8x1280xf32>
    %c0_2 = arith.constant 0 : index
    %c0_3 = arith.constant 0 : index
    %3 = vector.load %arg5[%c0_2, %c0_3] : memref<8x1280xf32, #tpu.memory_space<vmem>>, vector<8x1280xf32>
    tpu.vector_store %arg5[%c0_2, %c0_3], %2 {strides = array<i32>} : memref<8x1280xf32, #tpu.memory_space<vmem>>, vector<8x1280xf32>,
    %c0_4 = arith.constant 0 : index
    %c0_5 = arith.constant 0 : index
    %c0_6 = arith.constant 0 : index
    %4 = vector.load %arg1[%c0_4, %c0_5, %c0_6] : memref<9x8x8xbf16, #tpu.memory_space<vmem>>, vector<1x8x8xbf16>
    %5 = vector.shape_cast %4 : vector<1x8x8xbf16> to vector<8x8xbf16>
    %cst_7 = arith.constant dense<0.000000e+00> : vector<8x1280xf32>
    %6 = tpu.matmul %5, %1, %cst_7 {dimension_numbers = #tpu.dot_dimension_numbers<[1], [0], [0], [1], [0, 0, 1, 1], [], []>} : vector<8x8xbf16>, vector<8x1280xbf16>, vector<8x1280xf32> -> vector<8x1280xf32>
    %c0_8 = arith.constant 0 : index
    %c0_9 = arith.constant 0 : index
    %7 = vector.load %arg5[%c0_8, %c0_9] : memref<8x1280xf32, #tpu.memory_space<vmem>>, vector<8x1280xf32>
    %8 = arith.addf %7, %6 : vector<8x1280xf32>
    %c0_10 = arith.constant 0 : index
    %c0_11 = arith.constant 0 : index
    %9 = vector.load %arg5[%c0_10, %c0_11] : memref<8x1280xf32, #tpu.memory_space<vmem>>, vector<8x1280xf32>
    tpu.vector_store %arg5[%c0_10, %c0_11], %8 {strides = array<i32>} : memref<8x1280xf32, #tpu.memory_space<vmem>>, vector<8x1280xf32>,
    %c1 = arith.constant 1 : index
    %c0_12 = arith.constant 0 : index
    %c0_13 = arith.constant 0 : index
    %10 = vector.load %arg1[%c1, %c0_12, %c0_13] : memref<9x8x8xbf16, #tpu.memory_space<vmem>>, vector<1x8x8xbf16>
    %11 = vector.shape_cast %10 : vector<1x8x8xbf16> to vector<8x8xbf16>
    %cst_14 = arith.constant dense<0.000000e+00> : vector<8x1280xf32>
    %12 = tpu.matmul %11, %1, %cst_14 {dimension_numbers = #tpu.dot_dimension_numbers<[1], [0], [0], [1], [0, 0, 1, 1], [], []>} : vector<8x8xbf16>, vector<8x1280xbf16>, vector<8x1280xf32> -> vector<8x1280xf32>
    %c0_15 = arith.constant 0 : index
    %c0_16 = arith.constant 0 : index
    %13 = vector.load %arg5[%c0_15, %c0_16] : memref<8x1280xf32, #tpu.memory_space<vmem>>, vector<8x1279xf32>
    %14 = vector.extract_strided_slice %12 {offsets = [0, 1], sizes = [8, 1279], strides = [1, 1]} : vector<8x1280xf32> to vector<8x1279xf32>
    %15 = arith.addf %13, %14 : vector<8x1279xf32>
    %c0_17 = arith.constant 0 : index
    %c0_18 = arith.constant 0 : index
    %16 = vector.load %arg5[%c0_17, %c0_18] : memref<8x1280xf32, #tpu.memory_space<vmem>>, vector<8x1279xf32>
    tpu.vector_store %arg5[%c0_17, %c0_18], %15 {strides = array<i32>} : memref<8x1280xf32, #tpu.memory_space<vmem>>, vector<8x1279xf32>,
    %c2 = arith.constant 2 : index
    %c0_19 = arith.constant 0 : index
    %c0_20 = arith.constant 0 : index
    %17 = vector.load %arg1[%c2, %c0_19, %c0_20] : memref<9x8x8xbf16, #tpu.memory_space<vmem>>, vector<1x8x8xbf16>
    %18 = vector.shape_cast %17 : vector<1x8x8xbf16> to vector<8x8xbf16>
    %cst_21 = arith.constant dense<0.000000e+00> : vector<8x1280xf32>
    %19 = tpu.matmul %18, %1, %cst_21 {dimension_numbers = #tpu.dot_dimension_numbers<[1], [0], [0], [1], [0, 0, 1, 1], [], []>} : vector<8x8xbf16>, vector<8x1280xbf16>, vector<8x1280xf32> -> vector<8x1280xf32>
    %c0_22 = arith.constant 0 : index
    %c0_23 = arith.constant 0 : index
    %20 = vector.load %arg5[%c0_22, %c0_23] : memref<8x1280xf32, #tpu.memory_space<vmem>>, vector<8x1278xf32>
    %21 = vector.extract_strided_slice %19 {offsets = [0, 2], sizes = [8, 1278], strides = [1, 1]} : vector<8x1280xf32> to vector<8x1278xf32>
    %22 = arith.addf %20, %21 : vector<8x1278xf32>
    %c0_24 = arith.constant 0 : index
    %c0_25 = arith.constant 0 : index
    %23 = vector.load %arg5[%c0_24, %c0_25] : memref<8x1280xf32, #tpu.memory_space<vmem>>, vector<8x1278xf32>
    tpu.vector_store %arg5[%c0_24, %c0_25], %22 {strides = array<i32>} : memref<8x1280xf32, #tpu.memory_space<vmem>>, vector<8x1278xf32>,
    %c3 = arith.constant 3 : index
    %c0_26 = arith.constant 0 : index
    %c0_27 = arith.constant 0 : index
    %24 = vector.load %arg1[%c3, %c0_26, %c0_27] : memref<9x8x8xbf16, #tpu.memory_space<vmem>>, vector<1x8x8xbf16>
    %25 = vector.shape_cast %24 : vector<1x8x8xbf16> to vector<8x8xbf16>
    %cst_28 = arith.constant dense<0.000000e+00> : vector<8x1280xf32>
    %26 = tpu.matmul %25, %1, %cst_28 {dimension_numbers = #tpu.dot_dimension_numbers<[1], [0], [0], [1], [0, 0, 1, 1], [], []>} : vector<8x8xbf16>, vector<8x1280xbf16>, vector<8x1280xf32> -> vector<8x1280xf32>
    %c0_29 = arith.constant 0 : index
    %c0_30 = arith.constant 0 : index
    %27 = vector.load %arg5[%c0_29, %c0_30] : memref<8x1280xf32, #tpu.memory_space<vmem>>, vector<8x1246xf32>
    %28 = vector.extract_strided_slice %26 {offsets = [0, 34], sizes = [8, 1246], strides = [1, 1]} : vector<8x1280xf32> to vector<8x1246xf32>
    %29 = arith.addf %27, %28 : vector<8x1246xf32>
    %c0_31 = arith.constant 0 : index
    %c0_32 = arith.constant 0 : index
    %30 = vector.load %arg5[%c0_31, %c0_32] : memref<8x1280xf32, #tpu.memory_space<vmem>>, vector<8x1246xf32>
    tpu.vector_store %arg5[%c0_31, %c0_32], %29 {strides = array<i32>} : memref<8x1280xf32, #tpu.memory_space<vmem>>, vector<8x1246xf32>,
    %c4 = arith.constant 4 : index
    %c0_33 = arith.constant 0 : index
    %c0_34 = arith.constant 0 : index
    %31 = vector.load %arg1[%c4, %c0_33, %c0_34] : memref<9x8x8xbf16, #tpu.memory_space<vmem>>, vector<1x8x8xbf16>
    %32 = vector.shape_cast %31 : vector<1x8x8xbf16> to vector<8x8xbf16>
    %cst_35 = arith.constant dense<0.000000e+00> : vector<8x1280xf32>
    %33 = tpu.matmul %32, %1, %cst_35 {dimension_numbers = #tpu.dot_dimension_numbers<[1], [0], [0], [1], [0, 0, 1, 1], [], []>} : vector<8x8xbf16>, vector<8x1280xbf16>, vector<8x1280xf32> -> vector<8x1280xf32>
    %c0_36 = arith.constant 0 : index
    %c0_37 = arith.constant 0 : index
    %34 = vector.load %arg5[%c0_36, %c0_37] : memref<8x1280xf32, #tpu.memory_space<vmem>>, vector<8x1245xf32>
    %35 = vector.extract_strided_slice %33 {offsets = [0, 35], sizes = [8, 1245], strides = [1, 1]} : vector<8x1280xf32> to vector<8x1245xf32>
    %36 = arith.addf %34, %35 : vector<8x1245xf32>
    %c0_38 = arith.constant 0 : index
    %c0_39 = arith.constant 0 : index
    %37 = vector.load %arg5[%c0_38, %c0_39] : memref<8x1280xf32, #tpu.memory_space<vmem>>, vector<8x1245xf32>
    tpu.vector_store %arg5[%c0_38, %c0_39], %36 {strides = array<i32>} : memref<8x1280xf32, #tpu.memory_space<vmem>>, vector<8x1245xf32>,
    %c5 = arith.constant 5 : index
    %c0_40 = arith.constant 0 : index
    %c0_41 = arith.constant 0 : index
    %38 = vector.load %arg1[%c5, %c0_40, %c0_41] : memref<9x8x8xbf16, #tpu.memory_space<vmem>>, vector<1x8x8xbf16>
    %39 = vector.shape_cast %38 : vector<1x8x8xbf16> to vector<8x8xbf16>
    %cst_42 = arith.constant dense<0.000000e+00> : vector<8x1280xf32>
    %40 = tpu.matmul %39, %1, %cst_42 {dimension_numbers = #tpu.dot_dimension_numbers<[1], [0], [0], [1], [0, 0, 1, 1], [], []>} : vector<8x8xbf16>, vector<8x1280xbf16>, vector<8x1280xf32> -> vector<8x1280xf32>
    %c0_43 = arith.constant 0 : index
    %c0_44 = arith.constant 0 : index
    %41 = vector.load %arg5[%c0_43, %c0_44] : memref<8x1280xf32, #tpu.memory_space<vmem>>, vector<8x1244xf32>
    %42 = vector.extract_strided_slice %40 {offsets = [0, 36], sizes = [8, 1244], strides = [1, 1]} : vector<8x1280xf32> to vector<8x1244xf32>
    %43 = arith.addf %41, %42 : vector<8x1244xf32>
    %c0_45 = arith.constant 0 : index
    %c0_46 = arith.constant 0 : index
    %44 = vector.load %arg5[%c0_45, %c0_46] : memref<8x1280xf32, #tpu.memory_space<vmem>>, vector<8x1244xf32>
    tpu.vector_store %arg5[%c0_45, %c0_46], %43 {strides = array<i32>} : memref<8x1280xf32, #tpu.memory_space<vmem>>, vector<8x1244xf32>,
    %c6 = arith.constant 6 : index
    %c0_47 = arith.constant 0 : index
    %c0_48 = arith.constant 0 : index
    %45 = vector.load %arg1[%c6, %c0_47, %c0_48] : memref<9x8x8xbf16, #tpu.memory_space<vmem>>, vector<1x8x8xbf16>
    %46 = vector.shape_cast %45 : vector<1x8x8xbf16> to vector<8x8xbf16>
    %cst_49 = arith.constant dense<0.000000e+00> : vector<8x1280xf32>
    %47 = tpu.matmul %46, %1, %cst_49 {dimension_numbers = #tpu.dot_dimension_numbers<[1], [0], [0], [1], [0, 0, 1, 1], [], []>} : vector<8x8xbf16>, vector<8x1280xbf16>, vector<8x1280xf32> -> vector<8x1280xf32>
    %c0_50 = arith.constant 0 : index
    %c0_51 = arith.constant 0 : index
    %48 = vector.load %arg5[%c0_50, %c0_51] : memref<8x1280xf32, #tpu.memory_space<vmem>>, vector<8x1212xf32>
    %49 = vector.extract_strided_slice %47 {offsets = [0, 68], sizes = [8, 1212], strides = [1, 1]} : vector<8x1280xf32> to vector<8x1212xf32>
    %50 = arith.addf %48, %49 : vector<8x1212xf32>
    %c0_52 = arith.constant 0 : index
    %c0_53 = arith.constant 0 : index
    %51 = vector.load %arg5[%c0_52, %c0_53] : memref<8x1280xf32, #tpu.memory_space<vmem>>, vector<8x1212xf32>
    tpu.vector_store %arg5[%c0_52, %c0_53], %50 {strides = array<i32>} : memref<8x1280xf32, #tpu.memory_space<vmem>>, vector<8x1212xf32>,
    %c7 = arith.constant 7 : index
    %c0_54 = arith.constant 0 : index
    %c0_55 = arith.constant 0 : index
    %52 = vector.load %arg1[%c7, %c0_54, %c0_55] : memref<9x8x8xbf16, #tpu.memory_space<vmem>>, vector<1x8x8xbf16>
    %53 = vector.shape_cast %52 : vector<1x8x8xbf16> to vector<8x8xbf16>
    %cst_56 = arith.constant dense<0.000000e+00> : vector<8x1280xf32>
    %54 = tpu.matmul %53, %1, %cst_56 {dimension_numbers = #tpu.dot_dimension_numbers<[1], [0], [0], [1], [0, 0, 1, 1], [], []>} : vector<8x8xbf16>, vector<8x1280xbf16>, vector<8x1280xf32> -> vector<8x1280xf32>
    %c0_57 = arith.constant 0 : index
    %c0_58 = arith.constant 0 : index
    %55 = vector.load %arg5[%c0_57, %c0_58] : memref<8x1280xf32, #tpu.memory_space<vmem>>, vector<8x1211xf32>
    %56 = vector.extract_strided_slice %54 {offsets = [0, 69], sizes = [8, 1211], strides = [1, 1]} : vector<8x1280xf32> to vector<8x1211xf32>
    %57 = arith.addf %55, %56 : vector<8x1211xf32>
    %c0_59 = arith.constant 0 : index
    %c0_60 = arith.constant 0 : index
    %58 = vector.load %arg5[%c0_59, %c0_60] : memref<8x1280xf32, #tpu.memory_space<vmem>>, vector<8x1211xf32>
    tpu.vector_store %arg5[%c0_59, %c0_60], %57 {strides = array<i32>} : memref<8x1280xf32, #tpu.memory_space<vmem>>, vector<8x1211xf32>,
    %c8 = arith.constant 8 : index
    %c0_61 = arith.constant 0 : index
    %c0_62 = arith.constant 0 : index
    %59 = vector.load %arg1[%c8, %c0_61, %c0_62] : memref<9x8x8xbf16, #tpu.memory_space<vmem>>, vector<1x8x8xbf16>
    %60 = vector.shape_cast %59 : vector<1x8x8xbf16> to vector<8x8xbf16>
    %cst_63 = arith.constant dense<0.000000e+00> : vector<8x1280xf32>
    %61 = tpu.matmul %60, %1, %cst_63 {dimension_numbers = #tpu.dot_dimension_numbers<[1], [0], [0], [1], [0, 0, 1, 1], [], []>} : vector<8x8xbf16>, vector<8x1280xbf16>, vector<8x1280xf32> -> vector<8x1280xf32>
    %c0_64 = arith.constant 0 : index
    %c0_65 = arith.constant 0 : index
    %62 = vector.load %arg5[%c0_64, %c0_65] : memref<8x1280xf32, #tpu.memory_space<vmem>>, vector<8x1210xf32>
    %63 = vector.extract_strided_slice %61 {offsets = [0, 70], sizes = [8, 1210], strides = [1, 1]} : vector<8x1280xf32> to vector<8x1210xf32>
    %64 = arith.addf %62, %63 : vector<8x1210xf32>
    %c0_66 = arith.constant 0 : index
    %c0_67 = arith.constant 0 : index
    %65 = vector.load %arg5[%c0_66, %c0_67] : memref<8x1280xf32, #tpu.memory_space<vmem>>, vector<8x1210xf32>
    tpu.vector_store %arg5[%c0_66, %c0_67], %64 {strides = array<i32>} : memref<8x1280xf32, #tpu.memory_space<vmem>>, vector<8x1210xf32>,
    %c0_68 = arith.constant 0 : index
    %c0_69 = arith.constant 0 : index
    %66 = vector.load %arg5[%c0_68, %c0_69] : memref<8x1280xf32, #tpu.memory_space<vmem>>, vector<8x1280xf32>
    %c0_70 = arith.constant 0 : index
    %c0_71 = arith.constant 0 : index
    %67 = vector.load %arg2[%c0_70, %c0_71] : memref<8x1xf32, #tpu.memory_space<vmem>>, vector<8x1xf32>
    %68 = vector.broadcast %67 : vector<8x1xf32> to vector<8x1280xf32>
    %69 = arith.addf %66, %68 : vector<8x1280xf32>
    %cst_72 = arith.constant 0.000000e+00 : f32
    %70 = vector.broadcast %cst_72 : f32 to vector<8x1280xf32>
    %71 = arith.cmpf ogt, %69, %70 : vector<8x1280xf32>
    %cst_73 = arith.constant 0.00999999977 : f32
    %72 = vector.broadcast %cst_73 : f32 to vector<8x1280xf32>
    %73 = arith.mulf %72, %69 : vector<8x1280xf32>
    %74 = arith.select %71, %69, %73 : vector<8x1280xi1>, vector<8x1280xf32>
    %c0_74 = arith.constant 0 : index
    %c0_75 = arith.constant 0 : index
    %c0_76 = arith.constant 0 : index
    %75 = vector.load %arg4[%c0_74, %c0_75, %c0_76] : memref<2x8x1280xf32, #tpu.memory_space<vmem>>, vector<1x8x1280xf32>
    %76 = vector.shape_cast %75 : vector<1x8x1280xf32> to vector<8x1280xf32>
    %77 = vector.shape_cast %74 : vector<8x1280xf32> to vector<1x8x1280xf32>
    tpu.vector_store %arg4[%c0_74, %c0_75, %c0_76], %77 {strides = array<i32>} : memref<2x8x1280xf32, #tpu.memory_space<vmem>>, vector<1x8x1280xf32>,
    %c1_77 = arith.constant 1 : index
    %c0_78 = arith.constant 0 : index
    %c0_79 = arith.constant 0 : index
    %78 = vector.load %arg3[%c1_77, %c0_78, %c0_79] : memref<2x8x1280xbf16, #tpu.memory_space<vmem>>, vector<1x8x1280xbf16>
    %79 = vector.shape_cast %78 : vector<1x8x1280xbf16> to vector<8x1280xbf16>
    %cst_80 = arith.constant 0.000000e+00 : f32
    %80 = vector.broadcast %cst_80 : f32 to vector<8x1280xf32>
    %c0_81 = arith.constant 0 : index
    %c0_82 = arith.constant 0 : index
    %81 = vector.load %arg5[%c0_81, %c0_82] : memref<8x1280xf32, #tpu.memory_space<vmem>>, vector<8x1280xf32>
    tpu.vector_store %arg5[%c0_81, %c0_82], %80 {strides = array<i32>} : memref<8x1280xf32, #tpu.memory_space<vmem>>, vector<8x1280xf32>,
    %c0_83 = arith.constant 0 : index
    %c0_84 = arith.constant 0 : index
    %c0_85 = arith.constant 0 : index
    %82 = vector.load %arg1[%c0_83, %c0_84, %c0_85] : memref<9x8x8xbf16, #tpu.memory_space<vmem>>, vector<1x8x8xbf16>
    %83 = vector.shape_cast %82 : vector<1x8x8xbf16> to vector<8x8xbf16>
    %cst_86 = arith.constant dense<0.000000e+00> : vector<8x1280xf32>
    %84 = tpu.matmul %83, %79, %cst_86 {dimension_numbers = #tpu.dot_dimension_numbers<[1], [0], [0], [1], [0, 0, 1, 1], [], []>} : vector<8x8xbf16>, vector<8x1280xbf16>, vector<8x1280xf32> -> vector<8x1280xf32>
    %c0_87 = arith.constant 0 : index
    %c0_88 = arith.constant 0 : index
    %85 = vector.load %arg5[%c0_87, %c0_88] : memref<8x1280xf32, #tpu.memory_space<vmem>>, vector<8x1280xf32>
    %86 = arith.addf %85, %84 : vector<8x1280xf32>
    %c0_89 = arith.constant 0 : index
    %c0_90 = arith.constant 0 : index
    %87 = vector.load %arg5[%c0_89, %c0_90] : memref<8x1280xf32, #tpu.memory_space<vmem>>, vector<8x1280xf32>
    tpu.vector_store %arg5[%c0_89, %c0_90], %86 {strides = array<i32>} : memref<8x1280xf32, #tpu.memory_space<vmem>>, vector<8x1280xf32>,
    %c1_91 = arith.constant 1 : index
    %c0_92 = arith.constant 0 : index
    %c0_93 = arith.constant 0 : index
    %88 = vector.load %arg1[%c1_91, %c0_92, %c0_93] : memref<9x8x8xbf16, #tpu.memory_space<vmem>>, vector<1x8x8xbf16>
    %89 = vector.shape_cast %88 : vector<1x8x8xbf16> to vector<8x8xbf16>
    %cst_94 = arith.constant dense<0.000000e+00> : vector<8x1280xf32>
    %90 = tpu.matmul %89, %79, %cst_94 {dimension_numbers = #tpu.dot_dimension_numbers<[1], [0], [0], [1], [0, 0, 1, 1], [], []>} : vector<8x8xbf16>, vector<8x1280xbf16>, vector<8x1280xf32> -> vector<8x1280xf32>
    %c0_95 = arith.constant 0 : index
    %c0_96 = arith.constant 0 : index
    %91 = vector.load %arg5[%c0_95, %c0_96] : memref<8x1280xf32, #tpu.memory_space<vmem>>, vector<8x1279xf32>
    %92 = vector.extract_strided_slice %90 {offsets = [0, 1], sizes = [8, 1279], strides = [1, 1]} : vector<8x1280xf32> to vector<8x1279xf32>
    %93 = arith.addf %91, %92 : vector<8x1279xf32>
    %c0_97 = arith.constant 0 : index
    %c0_98 = arith.constant 0 : index
    %94 = vector.load %arg5[%c0_97, %c0_98] : memref<8x1280xf32, #tpu.memory_space<vmem>>, vector<8x1279xf32>
    tpu.vector_store %arg5[%c0_97, %c0_98], %93 {strides = array<i32>} : memref<8x1280xf32, #tpu.memory_space<vmem>>, vector<8x1279xf32>,
    %c2_99 = arith.constant 2 : index
    %c0_100 = arith.constant 0 : index
    %c0_101 = arith.constant 0 : index
    %95 = vector.load %arg1[%c2_99, %c0_100, %c0_101] : memref<9x8x8xbf16, #tpu.memory_space<vmem>>, vector<1x8x8xbf16>
    %96 = vector.shape_cast %95 : vector<1x8x8xbf16> to vector<8x8xbf16>
    %cst_102 = arith.constant dense<0.000000e+00> : vector<8x1280xf32>
    %97 = tpu.matmul %96, %79, %cst_102 {dimension_numbers = #tpu.dot_dimension_numbers<[1], [0], [0], [1], [0, 0, 1, 1], [], []>} : vector<8x8xbf16>, vector<8x1280xbf16>, vector<8x1280xf32> -> vector<8x1280xf32>
    %c0_103 = arith.constant 0 : index
    %c0_104 = arith.constant 0 : index
    %98 = vector.load %arg5[%c0_103, %c0_104] : memref<8x1280xf32, #tpu.memory_space<vmem>>, vector<8x1278xf32>
    %99 = vector.extract_strided_slice %97 {offsets = [0, 2], sizes = [8, 1278], strides = [1, 1]} : vector<8x1280xf32> to vector<8x1278xf32>
    %100 = arith.addf %98, %99 : vector<8x1278xf32>
    %c0_105 = arith.constant 0 : index
    %c0_106 = arith.constant 0 : index
    %101 = vector.load %arg5[%c0_105, %c0_106] : memref<8x1280xf32, #tpu.memory_space<vmem>>, vector<8x1278xf32>
    tpu.vector_store %arg5[%c0_105, %c0_106], %100 {strides = array<i32>} : memref<8x1280xf32, #tpu.memory_space<vmem>>, vector<8x1278xf32>,
    %c3_107 = arith.constant 3 : index
    %c0_108 = arith.constant 0 : index
    %c0_109 = arith.constant 0 : index
    %102 = vector.load %arg1[%c3_107, %c0_108, %c0_109] : memref<9x8x8xbf16, #tpu.memory_space<vmem>>, vector<1x8x8xbf16>
    %103 = vector.shape_cast %102 : vector<1x8x8xbf16> to vector<8x8xbf16>
    %cst_110 = arith.constant dense<0.000000e+00> : vector<8x1280xf32>
    %104 = tpu.matmul %103, %79, %cst_110 {dimension_numbers = #tpu.dot_dimension_numbers<[1], [0], [0], [1], [0, 0, 1, 1], [], []>} : vector<8x8xbf16>, vector<8x1280xbf16>, vector<8x1280xf32> -> vector<8x1280xf32>
    %c0_111 = arith.constant 0 : index
    %c0_112 = arith.constant 0 : index
    %105 = vector.load %arg5[%c0_111, %c0_112] : memref<8x1280xf32, #tpu.memory_space<vmem>>, vector<8x1246xf32>
    %106 = vector.extract_strided_slice %104 {offsets = [0, 34], sizes = [8, 1246], strides = [1, 1]} : vector<8x1280xf32> to vector<8x1246xf32>
    %107 = arith.addf %105, %106 : vector<8x1246xf32>
    %c0_113 = arith.constant 0 : index
    %c0_114 = arith.constant 0 : index
    %108 = vector.load %arg5[%c0_113, %c0_114] : memref<8x1280xf32, #tpu.memory_space<vmem>>, vector<8x1246xf32>
    tpu.vector_store %arg5[%c0_113, %c0_114], %107 {strides = array<i32>} : memref<8x1280xf32, #tpu.memory_space<vmem>>, vector<8x1246xf32>,
    %c4_115 = arith.constant 4 : index
    %c0_116 = arith.constant 0 : index
    %c0_117 = arith.constant 0 : index
    %109 = vector.load %arg1[%c4_115, %c0_116, %c0_117] : memref<9x8x8xbf16, #tpu.memory_space<vmem>>, vector<1x8x8xbf16>
    %110 = vector.shape_cast %109 : vector<1x8x8xbf16> to vector<8x8xbf16>
    %cst_118 = arith.constant dense<0.000000e+00> : vector<8x1280xf32>
    %111 = tpu.matmul %110, %79, %cst_118 {dimension_numbers = #tpu.dot_dimension_numbers<[1], [0], [0], [1], [0, 0, 1, 1], [], []>} : vector<8x8xbf16>, vector<8x1280xbf16>, vector<8x1280xf32> -> vector<8x1280xf32>
    %c0_119 = arith.constant 0 : index
    %c0_120 = arith.constant 0 : index
    %112 = vector.load %arg5[%c0_119, %c0_120] : memref<8x1280xf32, #tpu.memory_space<vmem>>, vector<8x1245xf32>
    %113 = vector.extract_strided_slice %111 {offsets = [0, 35], sizes = [8, 1245], strides = [1, 1]} : vector<8x1280xf32> to vector<8x1245xf32>
    %114 = arith.addf %112, %113 : vector<8x1245xf32>
    %c0_121 = arith.constant 0 : index
    %c0_122 = arith.constant 0 : index
    %115 = vector.load %arg5[%c0_121, %c0_122] : memref<8x1280xf32, #tpu.memory_space<vmem>>, vector<8x1245xf32>
    tpu.vector_store %arg5[%c0_121, %c0_122], %114 {strides = array<i32>} : memref<8x1280xf32, #tpu.memory_space<vmem>>, vector<8x1245xf32>,
    %c5_123 = arith.constant 5 : index
    %c0_124 = arith.constant 0 : index
    %c0_125 = arith.constant 0 : index
    %116 = vector.load %arg1[%c5_123, %c0_124, %c0_125] : memref<9x8x8xbf16, #tpu.memory_space<vmem>>, vector<1x8x8xbf16>
    %117 = vector.shape_cast %116 : vector<1x8x8xbf16> to vector<8x8xbf16>
    %cst_126 = arith.constant dense<0.000000e+00> : vector<8x1280xf32>
    %118 = tpu.matmul %117, %79, %cst_126 {dimension_numbers = #tpu.dot_dimension_numbers<[1], [0], [0], [1], [0, 0, 1, 1], [], []>} : vector<8x8xbf16>, vector<8x1280xbf16>, vector<8x1280xf32> -> vector<8x1280xf32>
    %c0_127 = arith.constant 0 : index
    %c0_128 = arith.constant 0 : index
    %119 = vector.load %arg5[%c0_127, %c0_128] : memref<8x1280xf32, #tpu.memory_space<vmem>>, vector<8x1244xf32>
    %120 = vector.extract_strided_slice %118 {offsets = [0, 36], sizes = [8, 1244], strides = [1, 1]} : vector<8x1280xf32> to vector<8x1244xf32>
    %121 = arith.addf %119, %120 : vector<8x1244xf32>
    %c0_129 = arith.constant 0 : index
    %c0_130 = arith.constant 0 : index
    %122 = vector.load %arg5[%c0_129, %c0_130] : memref<8x1280xf32, #tpu.memory_space<vmem>>, vector<8x1244xf32>
    tpu.vector_store %arg5[%c0_129, %c0_130], %121 {strides = array<i32>} : memref<8x1280xf32, #tpu.memory_space<vmem>>, vector<8x1244xf32>,
    %c6_131 = arith.constant 6 : index
    %c0_132 = arith.constant 0 : index
    %c0_133 = arith.constant 0 : index
    %123 = vector.load %arg1[%c6_131, %c0_132, %c0_133] : memref<9x8x8xbf16, #tpu.memory_space<vmem>>, vector<1x8x8xbf16>
    %124 = vector.shape_cast %123 : vector<1x8x8xbf16> to vector<8x8xbf16>
    %cst_134 = arith.constant dense<0.000000e+00> : vector<8x1280xf32>
    %125 = tpu.matmul %124, %79, %cst_134 {dimension_numbers = #tpu.dot_dimension_numbers<[1], [0], [0], [1], [0, 0, 1, 1], [], []>} : vector<8x8xbf16>, vector<8x1280xbf16>, vector<8x1280xf32> -> vector<8x1280xf32>
    %c0_135 = arith.constant 0 : index
    %c0_136 = arith.constant 0 : index
    %126 = vector.load %arg5[%c0_135, %c0_136] : memref<8x1280xf32, #tpu.memory_space<vmem>>, vector<8x1212xf32>
    %127 = vector.extract_strided_slice %125 {offsets = [0, 68], sizes = [8, 1212], strides = [1, 1]} : vector<8x1280xf32> to vector<8x1212xf32>
    %128 = arith.addf %126, %127 : vector<8x1212xf32>
    %c0_137 = arith.constant 0 : index
    %c0_138 = arith.constant 0 : index
    %129 = vector.load %arg5[%c0_137, %c0_138] : memref<8x1280xf32, #tpu.memory_space<vmem>>, vector<8x1212xf32>
    tpu.vector_store %arg5[%c0_137, %c0_138], %128 {strides = array<i32>} : memref<8x1280xf32, #tpu.memory_space<vmem>>, vector<8x1212xf32>,
    %c7_139 = arith.constant 7 : index
    %c0_140 = arith.constant 0 : index
    %c0_141 = arith.constant 0 : index
    %130 = vector.load %arg1[%c7_139, %c0_140, %c0_141] : memref<9x8x8xbf16, #tpu.memory_space<vmem>>, vector<1x8x8xbf16>
    %131 = vector.shape_cast %130 : vector<1x8x8xbf16> to vector<8x8xbf16>
    %cst_142 = arith.constant dense<0.000000e+00> : vector<8x1280xf32>
    %132 = tpu.matmul %131, %79, %cst_142 {dimension_numbers = #tpu.dot_dimension_numbers<[1], [0], [0], [1], [0, 0, 1, 1], [], []>} : vector<8x8xbf16>, vector<8x1280xbf16>, vector<8x1280xf32> -> vector<8x1280xf32>
    %c0_143 = arith.constant 0 : index
    %c0_144 = arith.constant 0 : index
    %133 = vector.load %arg5[%c0_143, %c0_144] : memref<8x1280xf32, #tpu.memory_space<vmem>>, vector<8x1211xf32>
    %134 = vector.extract_strided_slice %132 {offsets = [0, 69], sizes = [8, 1211], strides = [1, 1]} : vector<8x1280xf32> to vector<8x1211xf32>
    %135 = arith.addf %133, %134 : vector<8x1211xf32>
    %c0_145 = arith.constant 0 : index
    %c0_146 = arith.constant 0 : index
    %136 = vector.load %arg5[%c0_145, %c0_146] : memref<8x1280xf32, #tpu.memory_space<vmem>>, vector<8x1211xf32>
    tpu.vector_store %arg5[%c0_145, %c0_146], %135 {strides = array<i32>} : memref<8x1280xf32, #tpu.memory_space<vmem>>, vector<8x1211xf32>,
    %c8_147 = arith.constant 8 : index
    %c0_148 = arith.constant 0 : index
    %c0_149 = arith.constant 0 : index
    %137 = vector.load %arg1[%c8_147, %c0_148, %c0_149] : memref<9x8x8xbf16, #tpu.memory_space<vmem>>, vector<1x8x8xbf16>
    %138 = vector.shape_cast %137 : vector<1x8x8xbf16> to vector<8x8xbf16>
    %cst_150 = arith.constant dense<0.000000e+00> : vector<8x1280xf32>
    %139 = tpu.matmul %138, %79, %cst_150 {dimension_numbers = #tpu.dot_dimension_numbers<[1], [0], [0], [1], [0, 0, 1, 1], [], []>} : vector<8x8xbf16>, vector<8x1280xbf16>, vector<8x1280xf32> -> vector<8x1280xf32>
    %c0_151 = arith.constant 0 : index
    %c0_152 = arith.constant 0 : index
    %140 = vector.load %arg5[%c0_151, %c0_152] : memref<8x1280xf32, #tpu.memory_space<vmem>>, vector<8x1210xf32>
    %141 = vector.extract_strided_slice %139 {offsets = [0, 70], sizes = [8, 1210], strides = [1, 1]} : vector<8x1280xf32> to vector<8x1210xf32>
    %142 = arith.addf %140, %141 : vector<8x1210xf32>
    %c0_153 = arith.constant 0 : index
    %c0_154 = arith.constant 0 : index
    %143 = vector.load %arg5[%c0_153, %c0_154] : memref<8x1280xf32, #tpu.memory_space<vmem>>, vector<8x1210xf32>
    tpu.vector_store %arg5[%c0_153, %c0_154], %142 {strides = array<i32>} : memref<8x1280xf32, #tpu.memory_space<vmem>>, vector<8x1210xf32>,
    %c0_155 = arith.constant 0 : index
    %c0_156 = arith.constant 0 : index
    %144 = vector.load %arg5[%c0_155, %c0_156] : memref<8x1280xf32, #tpu.memory_space<vmem>>, vector<8x1280xf32>
    %c0_157 = arith.constant 0 : index
    %c0_158 = arith.constant 0 : index
    %145 = vector.load %arg2[%c0_157, %c0_158] : memref<8x1xf32, #tpu.memory_space<vmem>>, vector<8x1xf32>
    %146 = vector.broadcast %145 : vector<8x1xf32> to vector<8x1280xf32>
    %147 = arith.addf %144, %146 : vector<8x1280xf32>
    %cst_159 = arith.constant 0.000000e+00 : f32
    %148 = vector.broadcast %cst_159 : f32 to vector<8x1280xf32>
    %149 = arith.cmpf ogt, %147, %148 : vector<8x1280xf32>
    %cst_160 = arith.constant 0.00999999977 : f32
    %150 = vector.broadcast %cst_160 : f32 to vector<8x1280xf32>
    %151 = arith.mulf %150, %147 : vector<8x1280xf32>
    %152 = arith.select %149, %147, %151 : vector<8x1280xi1>, vector<8x1280xf32>
    %c1_161 = arith.constant 1 : index
    %c0_162 = arith.constant 0 : index
    %c0_163 = arith.constant 0 : index
    %153 = vector.load %arg4[%c1_161, %c0_162, %c0_163] : memref<2x8x1280xf32, #tpu.memory_space<vmem>>, vector<1x8x1280xf32>
    %154 = vector.shape_cast %153 : vector<1x8x1280xf32> to vector<8x1280xf32>
    %155 = vector.shape_cast %152 : vector<8x1280xf32> to vector<1x8x1280xf32>
    tpu.vector_store %arg4[%c1_161, %c0_162, %c0_163], %155 {strides = array<i32>} : memref<2x8x1280xf32, #tpu.memory_space<vmem>>, vector<1x8x1280xf32>,
    return
  }
  func.func @transform_0(%arg0: i32) -> (i32, i32, i32) {
    %c0_i32 = arith.constant 0 : i32
    %c0_i32_0 = arith.constant 0 : i32
    %c0_i32_1 = arith.constant 0 : i32
    %c0_i32_2 = arith.constant 0 : i32
    return %c0_i32, %c0_i32_0, %c0_i32_1 : i32, i32, i32
  }
  func.func @transform_1(%arg0: i32) -> (i32, i32) {
    %c0_i32 = arith.constant 0 : i32
    %c0_i32_0 = arith.constant 0 : i32
    %c0_i32_1 = arith.constant 0 : i32
    return %c0_i32, %c0_i32_0 : i32, i32
  }
  func.func @transform_2(%arg0: i32) -> (i32, i32, i32) {
    %c0_i32 = arith.constant 0 : i32
    %c0_i32_0 = arith.constant 0 : i32
    %c0_i32_1 = arith.constant 0 : i32
    return %arg0, %c0_i32, %c0_i32_0 : i32, i32, i32
  }
  func.func @transform_3(%arg0: i32) -> (i32, i32, i32) {
    %c0_i32 = arith.constant 0 : i32
    %c0_i32_0 = arith.constant 0 : i32
    %c0_i32_1 = arith.constant 0 : i32
    return %arg0, %c0_i32, %c0_i32_0 : i32, i32, i32
  }
}

</mosaic_0001>

<llo_original>
// kernel: tile.6
$region0: #{tile.6}
  #allocation0 [shape = 's32[1]{0}', space=sflag, size = 0x4, scoped, tag = 'scoped memory for tile.6']
  %s0 = inlined_call_operand.vmem [shape: f32[8], index: 0, kind: input, shape index: {}]
  %s1 = inlined_call_operand.vmem [shape: f32[4,8], index: 1, kind: output, shape index: {}]
  // Predicated region
  $region2: #{tile.6} parent=0 // pred_check
    _
  $region3: #{tile.6} parent=0 // pred_check_branch
    %3 = sbr.rel (0) target = $region5
  $region4: #{tile.6} parent=0 // pred_region
    _
  $region5: #{tile.6} parent=0 // pred_fallthru
    _
  %v4 = vld [vmem:[%s0] ss:$0 sm:$0xff]
  %5 = vst [vmem:[%s1] sm:$0xf] %v4

// kernel: tile.0
$region0: #{tile.0}
  %s0 = inlined_call_operand.vmem [shape: f32[4,8], index: 0, kind: input, shape index: {}]
  %s1 = inlined_call_operand.vmem [shape: f32[32,1], index: 1, kind: output, shape index: {}]
  $region1: #{tile.0} parent=0
    #allocation0 [shape = 'u8[4096]{0}', space=vmem, size = 0x1000, scoped, tag = 'scoped mem for input reshape']
    %s3 = sshllo.u32 0, 4
    %v4 = vld [vmem:[%s0] sm:%s3]
    %5 = vst [vmem:[#allocation0] sm:%s3] %v4
    %v6 = vld [vmem:[#allocation0] sm:$0xf]
    %vm7 = vcmask 7168
    %8 = vst.msk [vmem:[%s1] ss:$8 sm:$0xf] %vm7, %v6
    %v9 = vld [vmem:[#allocation0] sm:$0xf]
    %10 = vrot.lane.b32.xlu0 %v9, 127
    %v11 = vpop.permute.xlu0 %10
    %vm12 = vcmask 7168
    %s13 = scalar_lea.vmem %s1, 1
    %14 = vst.msk [vmem:[%s13] ss:$8 sm:$0xf] %vm12, %v11
    %v15 = vld [vmem:[#allocation0] sm:$0xf]
    %16 = vrot.lane.b32.xlu0 %v15, 126
    %v17 = vpop.permute.xlu0 %16
    %vm18 = vcmask 7168
    %s19 = scalar_lea.vmem %s1, 2
    %20 = vst.msk [vmem:[%s19] ss:$8 sm:$0xf] %vm18, %v17
    %v21 = vld [vmem:[#allocation0] sm:$0xf]
    %22 = vrot.lane.b32.xlu0 %v21, 125
    %v23 = vpop.permute.xlu0 %22
    %vm24 = vcmask 7168
    %s25 = scalar_lea.vmem %s1, 3
    %26 = vst.msk [vmem:[%s25] ss:$8 sm:$0xf] %vm24, %v23
    %v27 = vld [vmem:[#allocation0] sm:$0xf]
    %28 = vrot.lane.b32.xlu0 %v27, 124
    %v29 = vpop.permute.xlu0 %28
    %vm30 = vcmask 7168
    %s31 = scalar_lea.vmem %s1, 4
    %32 = vst.msk [vmem:[%s31] ss:$8 sm:$0xf] %vm30, %v29
    %v33 = vld [vmem:[#allocation0] sm:$0xf]
    %34 = vrot.lane.b32.xlu0 %v33, 123
    %v35 = vpop.permute.xlu0 %34
    %vm36 = vcmask 7168
    %s37 = scalar_lea.vmem %s1, 5
    %38 = vst.msk [vmem:[%s37] ss:$8 sm:$0xf] %vm36, %v35
    %v39 = vld [vmem:[#allocation0] sm:$0xf]
    %40 = vrot.lane.b32.xlu0 %v39, 122
    %v41 = vpop.permute.xlu0 %40
    %vm42 = vcmask 7168
    %s43 = scalar_lea.vmem %s1, 6
    %44 = vst.msk [vmem:[%s43] ss:$8 sm:$0xf] %vm42, %v41
    %v45 = vld [vmem:[#allocation0] sm:$0xf]
    %46 = vrot.lane.b32.xlu0 %v45, 121
    %v47 = vpop.permute.xlu0 %46
    %vm48 = vcmask 7168
    %s49 = scalar_lea.vmem %s1, 7
    %50 = vst.msk [vmem:[%s49] ss:$8 sm:$0xf] %vm48, %v47

// kernel: _lambda_.2
$region0: #{_lambda_.2}
  #allocation0 [shape = 'u32[]', space=smem, size = 0x4, offset = 0x4, fixed_abs, tag = 'smem constant byte address 0x4 - core index']
  #allocation1 [shape = 'u32[144,128]{1,0:T(1,128)}', space=vmem, size = 0x12000, scoped, tag = 'internal scratch']
  #allocation2 [shape = 'f32[32,384]{1,0:T(8,128)}', space=vmem, size = 0xc000, scoped, tag = 'scratch operand']
  %s0 = inlined_call_operand.vmem [shape: bf16[9,32,8], index: 0, kind: input, shape index: {}]
  %s1 = inlined_call_operand.vmem [shape: f32[32,1], index: 1, kind: input, shape index: {}]
  %s2 = inlined_call_operand.vmem [shape: bf16[2,8,384], index: 2, kind: input, shape index: {}]
  %s3 = inlined_call_operand.vmem [shape: bf16[2,32,384], index: 3, kind: output, shape index: {}]
  %s4 = sld [smem:[#allocation0]]
  $region22: #{_lambda_.2} parent=0
    _
  %s6 = ssub.s32 1, %s4
  %s7 = scalar_select 0, %s6, %s4
  // Predicated region
  $region2: #{_lambda_.2} parent=0 // pred_check
    _
  $region3: #{_lambda_.2} parent=0 // pred_check_branch
    %9 = sbr.rel (0) target = $region5
  $region4: #{_lambda_.2} parent=0 // pred_region
    _
  $region5: #{_lambda_.2} parent=0 // pred_fallthru
    _
  // Predicated region
  $region6: #{_lambda_.2} parent=0 // pred_check
    _
  $region7: #{_lambda_.2} parent=0 // pred_check_branch
    %11 = sbr.rel (0) target = $region9
  $region8: #{_lambda_.2} parent=0 // pred_region
    _
  $region9: #{_lambda_.2} parent=0 // pred_fallthru
    _
  // Predicated region
  $region10: #{_lambda_.2} parent=0 // pred_check
    _
  $region11: #{_lambda_.2} parent=0 // pred_check_branch
    %13 = sbr.rel (0) target = $region13
  $region12: #{_lambda_.2} parent=0 // pred_region
    _
  $region13: #{_lambda_.2} parent=0 // pred_fallthru
    _
  %v15 = vld [vmem:[%s2] sm:$0xff]
  %v16 = vld [vmem:[%s2 + $0x8] sm:$0xf]
  %17 = vst [vmem:[#allocation2] sm:$0xff] 0.0
  %18 = vst [vmem:[#allocation2 + $0x8] sm:$0xff] 0.0
  %19 = vst [vmem:[#allocation2 + $0x10] sm:$0xff] 0.0
  %20 = vst [vmem:[#allocation2 + $0x18] sm:$0xff] 0.0
  %21 = vst [vmem:[#allocation2 + $0x20] sm:$0xff] 0.0
  %22 = vst [vmem:[#allocation2 + $0x28] sm:$0xff] 0.0
  %23 = vst [vmem:[#allocation2 + $0x30] sm:$0xff] 0.0
  %24 = vst [vmem:[#allocation2 + $0x38] sm:$0xff] 0.0
  %25 = vst [vmem:[#allocation2 + $0x40] sm:$0xff] 0.0
  %26 = vst [vmem:[#allocation2 + $0x48] sm:$0xff] 0.0
  %27 = vst [vmem:[#allocation2 + $0x50] sm:$0xff] 0.0
  %28 = vst [vmem:[#allocation2 + $0x58] sm:$0xff] 0.0
  %v29 = vld [vmem:[%s0] sm:$0xf]
  %v30 = vld [vmem:[%s0 + $0x4] sm:$0xf]
  %v31 = vld [vmem:[%s0 + $0x8] sm:$0xf]
  %v32 = vld [vmem:[%s0 + $0xc] sm:$0xf]
  %v37 = vunpack.c.l.b16 %v29
  %v38 = vunpack.c.l.b16 %v30
  %v39 = vunpack.c.l.b16 %v31
  %v40 = vunpack.c.l.b16 %v32
  %v41 = vpack.c.b16 %v38, %v37
  %v42 = vpack.c.b16 %v40, %v39
  %v45 = vunpack.c.l.b16 %v15
  %v46 = vunpack.c.h.b16 %v15
  %v47 = vunpack.c.l.b16 %v16
  %v48 = vpack.c.b16 %v45, %v45
  %v49 = vpack.c.b16 %v46, %v46
  %v50 = vpack.c.b16 %v47, %v47
  %vm51 = vcmask 64512
  %v53 = vsel %vm51, %v41, 0
  %v56 = vsel %vm51, %v42, 0
  %vm58 = vcmask 1043456
  %v60 = vsel %vm58, %v48, 0
  %v63 = vsel %vm58, %v49, 0
  %v66 = vsel %vm58, %v50, 0
  %68 = vmatprep.subr.bf16.mxu0 %v63
  %69 = vmatpush1.bf16.msra.mxu0 %v60
  %70 = vmatprep.subr.bf16.mxu0 0
  %71 = vmatpush1.bf16.msra.mxu0 0
  %72 = vmatprep.subr.bf16.mxu0 0
  %73 = vmatpush1.bf16.msra.mxu0 0
  %74 = vmatprep.subr.bf16.mxu0 0
  %75 = vmatpush1.bf16.msra.mxu0 0
  %76 = vmatprep.subr.bf16.mxu0 0
  %77 = vmatpush1.bf16.msra.mxu0 0
  %78 = vmatprep.subr.bf16.mxu0 0
  %79 = vmatpush1.bf16.msra.mxu0 0
  %80 = vmatprep.subr.bf16.mxu0 0
  %81 = vmatpush1.bf16.msra.mxu0 0
  %82 = vmatprep.subr.bf16.mxu0 0
  %83 = vmatpush1.bf16.msra.mxu0 0
  %84 = vmatprep.subr.bf16.mxu0 0
  %85 = vmatpush1.bf16.msra.mxu0 0
  %86 = vmatprep.subr.bf16.mxu0 0
  %87 = vmatpush1.bf16.msra.mxu0 0
  %88 = vmatprep.subr.bf16.mxu0 0
  %89 = vmatpush1.bf16.msra.mxu0 0
  %90 = vmatprep.subr.bf16.mxu0 0
  %91 = vmatpush1.bf16.msra.mxu0 0
  %92 = vmatprep.subr.bf16.mxu0 0
  %93 = vmatpush1.bf16.msra.mxu0 0
  %94 = vmatprep.subr.bf16.mxu0 0
  %95 = vmatpush1.bf16.msra.mxu0 0
  %96 = vmatprep.subr.bf16.mxu0 0
  %97 = vmatpush1.bf16.msra.mxu0 0
  %98 = vmatprep.subr.bf16.mxu0 0
  %99 = vmatpush1.bf16.msra.mxu0 0
  %100 = vmatprep.mubr.bf16.mxu0 0
  %101 = vmatmul.mubr.bf16.gmra.mrb[0].mxu0 %v53
  %v102 = vpop.f32.mrb[0].mxu0
  %v103 = vadd.f32 0.0, %v102
  %v104 = vpop.f32.mrb[0].mxu0
  %v105 = vadd.f32 0.0, %v104
  %v106 = vpop.f32.mrb[0].mxu0
  %v107 = vadd.f32 0.0, %v106
  %v108 = vpop.f32.mrb[0].mxu0
  %v109 = vadd.f32 0.0, %v108
  %110 = vmatprep.mubr.bf16.mxu0 0
  %111 = vmatmul.mubr.bf16.gmra.mrb[0].mxu0 %v56
  %v112 = vpop.f32.mrb[0].mxu0
  %v113 = vadd.f32 0.0, %v112
  %v114 = vpop.f32.mrb[0].mxu0
  %v115 = vadd.f32 0.0, %v114
  %v116 = vpop.f32.mrb[0].mxu0
  %v117 = vadd.f32 0.0, %v116
  %v118 = vpop.f32.mrb[0].mxu0
  %v119 = vadd.f32 0.0, %v118
  %120 = vdwg.mxu0
  %121 = vmatprep.subr.bf16.mxu0 0
  %122 = vmatpush1.bf16.msra.mxu0 %v66
  %123 = vmatprep.subr.bf16.mxu0 0
  %124 = vmatpush1.bf16.msra.mxu0 0
  %125 = vmatprep.subr.bf16.mxu0 0
  %126 = vmatpush1.bf16.msra.mxu0 0
  %127 = vmatprep.subr.bf16.mxu0 0
  %128 = vmatpush1.bf16.msra.mxu0 0
  %129 = vmatprep.subr.bf16.mxu0 0
  %130 = vmatpush1.bf16.msra.mxu0 0
  %131 = vmatprep.subr.bf16.mxu0 0
  %132 = vmatpush1.bf16.msra.mxu0 0
  %133 = vmatprep.subr.bf16.mxu0 0
  %134 = vmatpush1.bf16.msra.mxu0 0
  %135 = vmatprep.subr.bf16.mxu0 0
  %136 = vmatpush1.bf16.msra.mxu0 0
  %137 = vmatprep.subr.bf16.mxu0 0
  %138 = vmatpush1.bf16.msra.mxu0 0
  %139 = vmatprep.subr.bf16.mxu0 0
  %140 = vmatpush1.bf16.msra.mxu0 0
  %141 = vmatprep.subr.bf16.mxu0 0
  %142 = vmatpush1.bf16.msra.mxu0 0
  %143 = vmatprep.subr.bf16.mxu0 0
  %144 = vmatpush1.bf16.msra.mxu0 0
  %145 = vmatprep.subr.bf16.mxu0 0
  %146 = vmatpush1.bf16.msra.mxu0 0
  %147 = vmatprep.subr.bf16.mxu0 0
  %148 = vmatpush1.bf16.msra.mxu0 0
  %149 = vmatprep.subr.bf16.mxu0 0
  %150 = vmatpush1.bf16.msra.mxu0 0
  %151 = vmatprep.subr.bf16.mxu0 0
  %152 = vmatpush1.bf16.msra.mxu0 0
  %153 = vmatprep.mubr.bf16.mxu0 0
  %154 = vmatmul.mubr.bf16.gmra.mrb[0].mxu0 %v53
  %v155 = vpop.f32.mrb[0].mxu0
  %v156 = vadd.f32 0.0, %v155
  %v157 = vpop.f32.mrb[0].mxu0
  %v158 = vpop.f32.mrb[0].mxu0
  %v159 = vadd.f32 0.0, %v158
  %v160 = vpop.f32.mrb[0].mxu0
  %161 = vmatprep.mubr.bf16.mxu0 0
  %162 = vmatmul.mubr.bf16.gmra.mrb[0].mxu0 %v56
  %v163 = vpop.f32.mrb[0].mxu0
  %v164 = vadd.f32 0.0, %v163
  %v165 = vpop.f32.mrb[0].mxu0
  %v166 = vpop.f32.mrb[0].mxu0
  %v167 = vadd.f32 0.0, %v166
  %v168 = vpop.f32.mrb[0].mxu0
  %169 = vdwg.mxu0
  %v170 = vld [vmem:[#allocation2] sm:$0xff]
  %v171 = vld [vmem:[#allocation2 + $0x8] sm:$0xff]
  %v172 = vld [vmem:[#allocation2 + $0x10] sm:$0xff]
  %v173 = vld [vmem:[#allocation2 + $0x18] sm:$0xff]
  %v174 = vld [vmem:[#allocation2 + $0x20] sm:$0xff]
  %v175 = vld [vmem:[#allocation2 + $0x28] sm:$0xff]
  %v176 = vld [vmem:[#allocation2 + $0x30] sm:$0xff]
  %v177 = vld [vmem:[#allocation2 + $0x38] sm:$0xff]
  %v178 = vld [vmem:[#allocation2 + $0x40] sm:$0xff]
  %v179 = vld [vmem:[#allocation2 + $0x48] sm:$0xff]
  %v180 = vld [vmem:[#allocation2 + $0x50] sm:$0xff]
  %v181 = vld [vmem:[#allocation2 + $0x58] sm:$0xff]
  %v182 = vadd.f32 %v170, %v103
  %v183 = vadd.f32 %v171, %v105
  %v184 = vadd.f32 %v172, %v156
  %v185 = vadd.f32 %v173, %v107
  %v186 = vadd.f32 %v174, %v109
  %v187 = vadd.f32 %v175, %v159
  %v188 = vadd.f32 %v176, %v113
  %v189 = vadd.f32 %v177, %v115
  %v190 = vadd.f32 %v178, %v164
  %v191 = vadd.f32 %v179, %v117
  %v192 = vadd.f32 %v180, %v119
  %v193 = vadd.f32 %v181, %v167
  %194 = vst [vmem:[#allocation2] sm:$0xff] %v182
  %195 = vst [vmem:[#allocation2 + $0x8] sm:$0xff] %v183
  %196 = vst [vmem:[#allocation2 + $0x10] sm:$0xff] %v184
  %197 = vst [vmem:[#allocation2 + $0x18] sm:$0xff] %v185
  %198 = vst [vmem:[#allocation2 + $0x20] sm:$0xff] %v186
  %199 = vst [vmem:[#allocation2 + $0x28] sm:$0xff] %v187
  %200 = vst [vmem:[#allocation2 + $0x30] sm:$0xff] %v188
  %201 = vst [vmem:[#allocation2 + $0x38] sm:$0xff] %v189
  %202 = vst [vmem:[#allocation2 + $0x40] sm:$0xff] %v190
  %203 = vst [vmem:[#allocation2 + $0x48] sm:$0xff] %v191
  %204 = vst [vmem:[#allocation2 + $0x50] sm:$0xff] %v192
  %205 = vst [vmem:[#allocation2 + $0x58] sm:$0xff] %v193
  %s206 = scalar_lea.vmem %s0, 16
  %v207 = vld [vmem:[%s206] sm:$0xf]
  %v208 = vld [vmem:[%s206 + $0x4] sm:$0xf]
  %v209 = vld [vmem:[%s206 + $0x8] sm:$0xf]
  %v210 = vld [vmem:[%s206 + $0xc] sm:$0xf]
  %v215 = vunpack.c.l.b16 %v207
  %v216 = vunpack.c.l.b16 %v208
  %v217 = vunpack.c.l.b16 %v209
  %v218 = vunpack.c.l.b16 %v210
  %v219 = vpack.c.b16 %v216, %v215
  %v220 = vpack.c.b16 %v218, %v217
  %v222 = vsel %vm51, %v219, 0
  %v225 = vsel %vm51, %v220, 0
  %227 = vmatprep.subr.bf16.mxu0 %v63
  %228 = vmatpush1.bf16.msra.mxu0 %v60
  %229 = vmatprep.subr.bf16.mxu0 0
  %230 = vmatpush1.bf16.msra.mxu0 0
  %231 = vmatprep.subr.bf16.mxu0 0
  %232 = vmatpush1.bf16.msra.mxu0 0
  %233 = vmatprep.subr.bf16.mxu0 0
  %234 = vmatpush1.bf16.msra.mxu0 0
  %235 = vmatprep.subr.bf16.mxu0 0
  %236 = vmatpush1.bf16.msra.mxu0 0
  %237 = vmatprep.subr.bf16.mxu0 0
  %238 = vmatpush1.bf16.msra.mxu0 0
  %239 = vmatprep.subr.bf16.mxu0 0
  %240 = vmatpush1.bf16.msra.mxu0 0
  %241 = vmatprep.subr.bf16.mxu0 0
  %242 = vmatpush1.bf16.msra.mxu0 0
  %243 = vmatprep.subr.bf16.mxu0 0
  %244 = vmatpush1.bf16.msra.mxu0 0
  %245 = vmatprep.subr.bf16.mxu0 0
  %246 = vmatpush1.bf16.msra.mxu0 0
  %247 = vmatprep.subr.bf16.mxu0 0
  %248 = vmatpush1.bf16.msra.mxu0 0
  %249 = vmatprep.subr.bf16.mxu0 0
  %250 = vmatpush1.bf16.msra.mxu0 0
  %251 = vmatprep.subr.bf16.mxu0 0
  %252 = vmatpush1.bf16.msra.mxu0 0
  %253 = vmatprep.subr.bf16.mxu0 0
  %254 = vmatpush1.bf16.msra.mxu0 0
  %255 = vmatprep.subr.bf16.mxu0 0
  %256 = vmatpush1.bf16.msra.mxu0 0
  %257 = vmatprep.subr.bf16.mxu0 0
  %258 = vmatpush1.bf16.msra.mxu0 0
  %259 = vmatprep.mubr.bf16.mxu0 0
  %260 = vmatmul.mubr.bf16.gmra.mrb[0].mxu0 %v222
  %v261 = vpop.f32.mrb[0].mxu0
  %v262 = vadd.f32 0.0, %v261
  %v263 = vpop.f32.mrb[0].mxu0
  %v264 = vadd.f32 0.0, %v263
  %v265 = vpop.f32.mrb[0].mxu0
  %v266 = vadd.f32 0.0, %v265
  %v267 = vpop.f32.mrb[0].mxu0
  %v268 = vadd.f32 0.0, %v267
  %269 = vmatprep.mubr.bf16.mxu0 0
  %270 = vmatmul.mubr.bf16.gmra.mrb[0].mxu0 %v225
  %v271 = vpop.f32.mrb[0].mxu0
  %v272 = vadd.f32 0.0, %v271
  %v273 = vpop.f32.mrb[0].mxu0
  %v274 = vadd.f32 0.0, %v273
  %v275 = vpop.f32.mrb[0].mxu0
  %v276 = vadd.f32 0.0, %v275
  %v277 = vpop.f32.mrb[0].mxu0
  %v278 = vadd.f32 0.0, %v277
  %279 = vdwg.mxu0
  %280 = vmatprep.subr.bf16.mxu0 0
  %281 = vmatpush1.bf16.msra.mxu0 %v66
  %282 = vmatprep.subr.bf16.mxu0 0
  %283 = vmatpush1.bf16.msra.mxu0 0
  %284 = vmatprep.subr.bf16.mxu0 0
  %285 = vmatpush1.bf16.msra.mxu0 0
  %286 = vmatprep.subr.bf16.mxu0 0
  %287 = vmatpush1.bf16.msra.mxu0 0
  %288 = vmatprep.subr.bf16.mxu0 0
  %289 = vmatpush1.bf16.msra.mxu0 0
  %290 = vmatprep.subr.bf16.mxu0 0
  %291 = vmatpush1.bf16.msra.mxu0 0
  %292 = vmatprep.subr.bf16.mxu0 0
  %293 = vmatpush1.bf16.msra.mxu0 0
  %294 = vmatprep.subr.bf16.mxu0 0
  %295 = vmatpush1.bf16.msra.mxu0 0
  %296 = vmatprep.subr.bf16.mxu0 0
  %297 = vmatpush1.bf16.msra.mxu0 0
  %298 = vmatprep.subr.bf16.mxu0 0
  %299 = vmatpush1.bf16.msra.mxu0 0
  %300 = vmatprep.subr.bf16.mxu0 0
  %301 = vmatpush1.bf16.msra.mxu0 0
  %302 = vmatprep.subr.bf16.mxu0 0
  %303 = vmatpush1.bf16.msra.mxu0 0
  %304 = vmatprep.subr.bf16.mxu0 0
  %305 = vmatpush1.bf16.msra.mxu0 0
  %306 = vmatprep.subr.bf16.mxu0 0
  %307 = vmatpush1.bf16.msra.mxu0 0
  %308 = vmatprep.subr.bf16.mxu0 0
  %309 = vmatpush1.bf16.msra.mxu0 0
  %310 = vmatprep.subr.bf16.mxu0 0
  %311 = vmatpush1.bf16.msra.mxu0 0
  %312 = vmatprep.mubr.bf16.mxu0 0
  %313 = vmatmul.mubr.bf16.gmra.mrb[0].mxu0 %v222
  %v314 = vpop.f32.mrb[0].mxu0
  %v315 = vadd.f32 0.0, %v314
  %v316 = vpop.f32.mrb[0].mxu0
  %v317 = vpop.f32.mrb[0].mxu0
  %v318 = vadd.f32 0.0, %v317
  %v319 = vpop.f32.mrb[0].mxu0
  %320 = vmatprep.mubr.bf16.mxu0 0
  %321 = vmatmul.mubr.bf16.gmra.mrb[0].mxu0 %v225
  %v322 = vpop.f32.mrb[0].mxu0
  %v323 = vadd.f32 0.0, %v322
  %v324 = vpop.f32.mrb[0].mxu0
  %v325 = vpop.f32.mrb[0].mxu0
  %v326 = vadd.f32 0.0, %v325
  %v327 = vpop.f32.mrb[0].mxu0
  %328 = vdwg.mxu0
  %v329 = vld [vmem:[#allocation2] sm:$0xff]
  %v330 = vld [vmem:[#allocation2 + $0x8] sm:$0xff]
  %v331 = vld [vmem:[#allocation2 + $0x10] sm:$0xff]
  %v332 = vld [vmem:[#allocation2 + $0x18] sm:$0xff]
  %v333 = vld [vmem:[#allocation2 + $0x20] sm:$0xff]
  %v334 = vld [vmem:[#allocation2 + $0x28] sm:$0xff]
  %v335 = vld [vmem:[#allocation2 + $0x30] sm:$0xff]
  %v336 = vld [vmem:[#allocation2 + $0x38] sm:$0xff]
  %v337 = vld [vmem:[#allocation2 + $0x40] sm:$0xff]
  %v338 = vld [vmem:[#allocation2 + $0x48] sm:$0xff]
  %v339 = vld [vmem:[#allocation2 + $0x50] sm:$0xff]
  %v340 = vld [vmem:[#allocation2 + $0x58] sm:$0xff]
  %353 = vrot.lane.b32.xlu0 %v262, 127
  %v354 = vpop.permute.xlu0 %353
  %355 = vrot.lane.b32.xlu0 %v264, 127
  %v356 = vpop.permute.xlu0 %355
  %357 = vrot.lane.b32.xlu0 %v315, 127
  %v358 = vpop.permute.xlu0 %357
  %359 = vrot.lane.b32.xlu0 %v266, 127
  %v360 = vpop.permute.xlu0 %359
  %361 = vrot.lane.b32.xlu0 %v268, 127
  %v362 = vpop.permute.xlu0 %361
  %363 = vrot.lane.b32.xlu0 %v318, 127
  %v364 = vpop.permute.xlu0 %363
  %365 = vrot.lane.b32.xlu0 %v272, 127
  %v366 = vpop.permute.xlu0 %365
  %367 = vrot.lane.b32.xlu0 %v274, 127
  %v368 = vpop.permute.xlu0 %367
  %369 = vrot.lane.b32.xlu0 %v323, 127
  %v370 = vpop.permute.xlu0 %369
  %371 = vrot.lane.b32.xlu0 %v276, 127
  %v372 = vpop.permute.xlu0 %371
  %373 = vrot.lane.b32.xlu0 %v278, 127
  %v374 = vpop.permute.xlu0 %373
  %375 = vrot.lane.b32.xlu0 %v326, 127
  %v376 = vpop.permute.xlu0 %375
  %vm377 = vcmask 1039360
  %v378 = vsel %vm377, %v354, %v356
  %v379 = vsel %vm377, %v356, %v358
  %v380 = vsel %vm377, %v360, %v362
  %v381 = vsel %vm377, %v362, %v364
  %v382 = vsel %vm377, %v366, %v368
  %v383 = vsel %vm377, %v368, %v370
  %v384 = vsel %vm377, %v372, %v374
  %v385 = vsel %vm377, %v374, %v376
  %v398 = vadd.f32 %v329, %v378
  %v399 = vadd.f32 %v330, %v379
  %v400 = vadd.f32 %v331, %v358
  %v401 = vadd.f32 %v332, %v380
  %v402 = vadd.f32 %v333, %v381
  %v403 = vadd.f32 %v334, %v364
  %v404 = vadd.f32 %v335, %v382
  %v405 = vadd.f32 %v336, %v383
  %v406 = vadd.f32 %v337, %v370
  %v407 = vadd.f32 %v338, %v384
  %v408 = vadd.f32 %v339, %v385
  %v409 = vadd.f32 %v340, %v376
  %410 = vst [vmem:[#allocation2] sm:$0xff] %v398
  %411 = vst [vmem:[#allocation2 + $0x8] sm:$0xff] %v399
  %412 = vst.msk [vmem:[#allocation2 + $0x10] sm:$0xff] %vm377, %v400
  %413 = vst [vmem:[#allocation2 + $0x18] sm:$0xff] %v401
  %414 = vst [vmem:[#allocation2 + $0x20] sm:$0xff] %v402
  %415 = vst.msk [vmem:[#allocation2 + $0x28] sm:$0xff] %vm377, %v403
  %416 = vst [vmem:[#allocation2 + $0x30] sm:$0xff] %v404
  %417 = vst [vmem:[#allocation2 + $0x38] sm:$0xff] %v405
  %418 = vst.msk [vmem:[#allocation2 + $0x40] sm:$0xff] %vm377, %v406
  %419 = vst [vmem:[#allocation2 + $0x48] sm:$0xff] %v407
  %420 = vst [vmem:[#allocation2 + $0x50] sm:$0xff] %v408
  %421 = vst.msk [vmem:[#allocation2 + $0x58] sm:$0xff] %vm377, %v409
  %s422 = scalar_lea.vmem %s0, 32
  %v423 = vld [vmem:[%s422] sm:$0xf]
  %v424 = vld [vmem:[%s422 + $0x4] sm:$0xf]
  %v425 = vld [vmem:[%s422 + $0x8] sm:$0xf]
  %v426 = vld [vmem:[%s422 + $0xc] sm:$0xf]
  %v431 = vunpack.c.l.b16 %v423
  %v432 = vunpack.c.l.b16 %v424
  %v433 = vunpack.c.l.b16 %v425
  %v434 = vunpack.c.l.b16 %v426
  %v435 = vpack.c.b16 %v432, %v431
  %v436 = vpack.c.b16 %v434, %v433
  %v438 = vsel %vm51, %v435, 0
  %v441 = vsel %vm51, %v436, 0
  %443 = vmatprep.subr.bf16.mxu0 %v63
  %444 = vmatpush1.bf16.msra.mxu0 %v60
  %445 = vmatprep.subr.bf16.mxu0 0
  %446 = vmatpush1.bf16.msra.mxu0 0
  %447 = vmatprep.subr.bf16.mxu0 0
  %448 = vmatpush1.bf16.msra.mxu0 0
  %449 = vmatprep.subr.bf16.mxu0 0
  %450 = vmatpush1.bf16.msra.mxu0 0
  %451 = vmatprep.subr.bf16.mxu0 0
  %452 = vmatpush1.bf16.msra.mxu0 0
  %453 = vmatprep.subr.bf16.mxu0 0
  %454 = vmatpush1.bf16.msra.mxu0 0
  %455 = vmatprep.subr.bf16.mxu0 0
  %456 = vmatpush1.bf16.msra.mxu0 0
  %457 = vmatprep.subr.bf16.mxu0 0
  %458 = vmatpush1.bf16.msra.mxu0 0
  %459 = vmatprep.subr.bf16.mxu0 0
  %460 = vmatpush1.bf16.msra.mxu0 0
  %461 = vmatprep.subr.bf16.mxu0 0
  %462 = vmatpush1.bf16.msra.mxu0 0
  %463 = vmatprep.subr.bf16.mxu0 0
  %464 = vmatpush1.bf16.msra.mxu0 0
  %465 = vmatprep.subr.bf16.mxu0 0
  %466 = vmatpush1.bf16.msra.mxu0 0
  %467 = vmatprep.subr.bf16.mxu0 0
  %468 = vmatpush1.bf16.msra.mxu0 0
  %469 = vmatprep.subr.bf16.mxu0 0
  %470 = vmatpush1.bf16.msra.mxu0 0
  %471 = vmatprep.subr.bf16.mxu0 0
  %472 = vmatpush1.bf16.msra.mxu0 0
  %473 = vmatprep.subr.bf16.mxu0 0
  %474 = vmatpush1.bf16.msra.mxu0 0
  %475 = vmatprep.mubr.bf16.mxu0 0
  %476 = vmatmul.mubr.bf16.gmra.mrb[0].mxu0 %v438
  %v477 = vpop.f32.mrb[0].mxu0
  %v478 = vadd.f32 0.0, %v477
  %v479 = vpop.f32.mrb[0].mxu0
  %v480 = vadd.f32 0.0, %v479
  %v481 = vpop.f32.mrb[0].mxu0
  %v482 = vadd.f32 0.0, %v481
  %v483 = vpop.f32.mrb[0].mxu0
  %v484 = vadd.f32 0.0, %v483
  %485 = vmatprep.mubr.bf16.mxu0 0
  %486 = vmatmul.mubr.bf16.gmra.mrb[0].mxu0 %v441
  %v487 = vpop.f32.mrb[0].mxu0
  %v488 = vadd.f32 0.0, %v487
  %v489 = vpop.f32.mrb[0].mxu0
  %v490 = vadd.f32 0.0, %v489
  %v491 = vpop.f32.mrb[0].mxu0
  %v492 = vadd.f32 0.0, %v491
  %v493 = vpop.f32.mrb[0].mxu0
  %v494 = vadd.f32 0.0, %v493
  %495 = vdwg.mxu0
  %496 = vmatprep.subr.bf16.mxu0 0
  %497 = vmatpush1.bf16.msra.mxu0 %v66
  %498 = vmatprep.subr.bf16.mxu0 0
  %499 = vmatpush1.bf16.msra.mxu0 0
  %500 = vmatprep.subr.bf16.mxu0 0
  %501 = vmatpush1.bf16.msra.mxu0 0
  %502 = vmatprep.subr.bf16.mxu0 0
  %503 = vmatpush1.bf16.msra.mxu0 0
  %504 = vmatprep.subr.bf16.mxu0 0
  %505 = vmatpush1.bf16.msra.mxu0 0
  %506 = vmatprep.subr.bf16.mxu0 0
  %507 = vmatpush1.bf16.msra.mxu0 0
  %508 = vmatprep.subr.bf16.mxu0 0
  %509 = vmatpush1.bf16.msra.mxu0 0
  %510 = vmatprep.subr.bf16.mxu0 0
  %511 = vmatpush1.bf16.msra.mxu0 0
  %512 = vmatprep.subr.bf16.mxu0 0
  %513 = vmatpush1.bf16.msra.mxu0 0
  %514 = vmatprep.subr.bf16.mxu0 0
  %515 = vmatpush1.bf16.msra.mxu0 0
  %516 = vmatprep.subr.bf16.mxu0 0
  %517 = vmatpush1.bf16.msra.mxu0 0
  %518 = vmatprep.subr.bf16.mxu0 0
  %519 = vmatpush1.bf16.msra.mxu0 0
  %520 = vmatprep.subr.bf16.mxu0 0
  %521 = vmatpush1.bf16.msra.mxu0 0
  %522 = vmatprep.subr.bf16.mxu0 0
  %523 = vmatpush1.bf16.msra.mxu0 0
  %524 = vmatprep.subr.bf16.mxu0 0
  %525 = vmatpush1.bf16.msra.mxu0 0
  %526 = vmatprep.subr.bf16.mxu0 0
  %527 = vmatpush1.bf16.msra.mxu0 0
  %528 = vmatprep.mubr.bf16.mxu0 0
  %529 = vmatmul.mubr.bf16.gmra.mrb[0].mxu0 %v438
  %v530 = vpop.f32.mrb[0].mxu0
  %v531 = vadd.f32 0.0, %v530
  %v532 = vpop.f32.mrb[0].mxu0
  %v533 = vpop.f32.mrb[0].mxu0
  %v534 = vadd.f32 0.0, %v533
  %v535 = vpop.f32.mrb[0].mxu0
  %536 = vmatprep.mubr.bf16.mxu0 0
  %537 = vmatmul.mubr.bf16.gmra.mrb[0].mxu0 %v441
  %v538 = vpop.f32.mrb[0].mxu0
  %v539 = vadd.f32 0.0, %v538
  %v540 = vpop.f32.mrb[0].mxu0
  %v541 = vpop.f32.mrb[0].mxu0
  %v542 = vadd.f32 0.0, %v541
  %v543 = vpop.f32.mrb[0].mxu0
  %544 = vdwg.mxu0
  %v545 = vld [vmem:[#allocation2] sm:$0xff]
  %v546 = vld [vmem:[#allocation2 + $0x8] sm:$0xff]
  %v547 = vld [vmem:[#allocation2 + $0x10] sm:$0xff]
  %v548 = vld [vmem:[#allocation2 + $0x18] sm:$0xff]
  %v549 = vld [vmem:[#allocation2 + $0x20] sm:$0xff]
  %v550 = vld [vmem:[#allocation2 + $0x28] sm:$0xff]
  %v551 = vld [vmem:[#allocation2 + $0x30] sm:$0xff]
  %v552 = vld [vmem:[#allocation2 + $0x38] sm:$0xff]
  %v553 = vld [vmem:[#allocation2 + $0x40] sm:$0xff]
  %v554 = vld [vmem:[#allocation2 + $0x48] sm:$0xff]
  %v555 = vld [vmem:[#allocation2 + $0x50] sm:$0xff]
  %v556 = vld [vmem:[#allocation2 + $0x58] sm:$0xff]
  %569 = vrot.lane.b32.xlu0 %v478, 126
  %v570 = vpop.permute.xlu0 %569
  %571 = vrot.lane.b32.xlu0 %v480, 126
  %v572 = vpop.permute.xlu0 %571
  %573 = vrot.lane.b32.xlu0 %v531, 126
  %v574 = vpop.permute.xlu0 %573
  %575 = vrot.lane.b32.xlu0 %v482, 126
  %v576 = vpop.permute.xlu0 %575
  %577 = vrot.lane.b32.xlu0 %v484, 126
  %v578 = vpop.permute.xlu0 %577
  %579 = vrot.lane.b32.xlu0 %v534, 126
  %v580 = vpop.permute.xlu0 %579
  %581 = vrot.lane.b32.xlu0 %v488, 126
  %v582 = vpop.permute.xlu0 %581
  %583 = vrot.lane.b32.xlu0 %v490, 126
  %v584 = vpop.permute.xlu0 %583
  %585 = vrot.lane.b32.xlu0 %v539, 126
  %v586 = vpop.permute.xlu0 %585
  %587 = vrot.lane.b32.xlu0 %v492, 126
  %v588 = vpop.permute.xlu0 %587
  %589 = vrot.lane.b32.xlu0 %v494, 126
  %v590 = vpop.permute.xlu0 %589
  %591 = vrot.lane.b32.xlu0 %v542, 126
  %v592 = vpop.permute.xlu0 %591
  %vm593 = vcmask 1031168
  %v594 = vsel %vm593, %v570, %v572
  %v595 = vsel %vm593, %v572, %v574
  %v596 = vsel %vm593, %v576, %v578
  %v597 = vsel %vm593, %v578, %v580
  %v598 = vsel %vm593, %v582, %v584
  %v599 = vsel %vm593, %v584, %v586
  %v600 = vsel %vm593, %v588, %v590
  %v601 = vsel %vm593, %v590, %v592
  %v614 = vadd.f32 %v545, %v594
  %v615 = vadd.f32 %v546, %v595
  %v616 = vadd.f32 %v547, %v574
  %v617 = vadd.f32 %v548, %v596
  %v618 = vadd.f32 %v549, %v597
  %v619 = vadd.f32 %v550, %v580
  %v620 = vadd.f32 %v551, %v598
  %v621 = vadd.f32 %v552, %v599
  %v622 = vadd.f32 %v553, %v586
  %v623 = vadd.f32 %v554, %v600
  %v624 = vadd.f32 %v555, %v601
  %v625 = vadd.f32 %v556, %v592
  %626 = vst [vmem:[#allocation2] sm:$0xff] %v614
  %627 = vst [vmem:[#allocation2 + $0x8] sm:$0xff] %v615
  %628 = vst.msk [vmem:[#allocation2 + $0x10] sm:$0xff] %vm593, %v616
  %629 = vst [vmem:[#allocation2 + $0x18] sm:$0xff] %v617
  %630 = vst [vmem:[#allocation2 + $0x20] sm:$0xff] %v618
  %631 = vst.msk [vmem:[#allocation2 + $0x28] sm:$0xff] %vm593, %v619
  %632 = vst [vmem:[#allocation2 + $0x30] sm:$0xff] %v620
  %633 = vst [vmem:[#allocation2 + $0x38] sm:$0xff] %v621
  %634 = vst.msk [vmem:[#allocation2 + $0x40] sm:$0xff] %vm593, %v622
  %635 = vst [vmem:[#allocation2 + $0x48] sm:$0xff] %v623
  %636 = vst [vmem:[#allocation2 + $0x50] sm:$0xff] %v624
  %637 = vst.msk [vmem:[#allocation2 + $0x58] sm:$0xff] %vm593, %v625
  %s638 = scalar_lea.vmem %s0, 48
  %v639 = vld [vmem:[%s638] sm:$0xf]
  %v640 = vld [vmem:[%s638 + $0x4] sm:$0xf]
  %v641 = vld [vmem:[%s638 + $0x8] sm:$0xf]
  %v642 = vld [vmem:[%s638 + $0xc] sm:$0xf]
  %v647 = vunpack.c.l.b16 %v639
  %v648 = vunpack.c.l.b16 %v640
  %v649 = vunpack.c.l.b16 %v641
  %v650 = vunpack.c.l.b16 %v642
  %v651 = vpack.c.b16 %v648, %v647
  %v652 = vpack.c.b16 %v650, %v649
  %v654 = vsel %vm51, %v651, 0
  %v657 = vsel %vm51, %v652, 0
  %659 = vmatprep.subr.bf16.mxu0 %v63
  %660 = vmatpush1.bf16.msra.mxu0 %v60
  %661 = vmatprep.subr.bf16.mxu0 0
  %662 = vmatpush1.bf16.msra.mxu0 0
  %663 = vmatprep.subr.bf16.mxu0 0
  %664 = vmatpush1.bf16.msra.mxu0 0
  %665 = vmatprep.subr.bf16.mxu0 0
  %666 = vmatpush1.bf16.msra.mxu0 0
  %667 = vmatprep.subr.bf16.mxu0 0
  %668 = vmatpush1.bf16.msra.mxu0 0
  %669 = vmatprep.subr.bf16.mxu0 0
  %670 = vmatpush1.bf16.msra.mxu0 0
  %671 = vmatprep.subr.bf16.mxu0 0
  %672 = vmatpush1.bf16.msra.mxu0 0
  %673 = vmatprep.subr.bf16.mxu0 0
  %674 = vmatpush1.bf16.msra.mxu0 0
  %675 = vmatprep.subr.bf16.mxu0 0
  %676 = vmatpush1.bf16.msra.mxu0 0
  %677 = vmatprep.subr.bf16.mxu0 0
  %678 = vmatpush1.bf16.msra.mxu0 0
  %679 = vmatprep.subr.bf16.mxu0 0
  %680 = vmatpush1.bf16.msra.mxu0 0
  %681 = vmatprep.subr.bf16.mxu0 0
  %682 = vmatpush1.bf16.msra.mxu0 0
  %683 = vmatprep.subr.bf16.mxu0 0
  %684 = vmatpush1.bf16.msra.mxu0 0
  %685 = vmatprep.subr.bf16.mxu0 0
  %686 = vmatpush1.bf16.msra.mxu0 0
  %687 = vmatprep.subr.bf16.mxu0 0
  %688 = vmatpush1.bf16.msra.mxu0 0
  %689 = vmatprep.subr.bf16.mxu0 0
  %690 = vmatpush1.bf16.msra.mxu0 0
  %691 = vmatprep.mubr.bf16.mxu0 0
  %692 = vmatmul.mubr.bf16.gmra.mrb[0].mxu0 %v654
  %v693 = vpop.f32.mrb[0].mxu0
  %v694 = vadd.f32 0.0, %v693
  %v695 = vpop.f32.mrb[0].mxu0
  %v696 = vadd.f32 0.0, %v695
  %v697 = vpop.f32.mrb[0].mxu0
  %v698 = vadd.f32 0.0, %v697
  %v699 = vpop.f32.mrb[0].mxu0
  %v700 = vadd.f32 0.0, %v699
  %701 = vmatprep.mubr.bf16.mxu0 0
  %702 = vmatmul.mubr.bf16.gmra.mrb[0].mxu0 %v657
  %v703 = vpop.f32.mrb[0].mxu0
  %v704 = vadd.f32 0.0, %v703
  %v705 = vpop.f32.mrb[0].mxu0
  %v706 = vadd.f32 0.0, %v705
  %v707 = vpop.f32.mrb[0].mxu0
  %v708 = vadd.f32 0.0, %v707
  %v709 = vpop.f32.mrb[0].mxu0
  %v710 = vadd.f32 0.0, %v709
  %711 = vdwg.mxu0
  %712 = vmatprep.subr.bf16.mxu0 0
  %713 = vmatpush1.bf16.msra.mxu0 %v66
  %714 = vmatprep.subr.bf16.mxu0 0
  %715 = vmatpush1.bf16.msra.mxu0 0
  %716 = vmatprep.subr.bf16.mxu0 0
  %717 = vmatpush1.bf16.msra.mxu0 0
  %718 = vmatprep.subr.bf16.mxu0 0
  %719 = vmatpush1.bf16.msra.mxu0 0
  %720 = vmatprep.subr.bf16.mxu0 0
  %721 = vmatpush1.bf16.msra.mxu0 0
  %722 = vmatprep.subr.bf16.mxu0 0
  %723 = vmatpush1.bf16.msra.mxu0 0
  %724 = vmatprep.subr.bf16.mxu0 0
  %725 = vmatpush1.bf16.msra.mxu0 0
  %726 = vmatprep.subr.bf16.mxu0 0
  %727 = vmatpush1.bf16.msra.mxu0 0
  %728 = vmatprep.subr.bf16.mxu0 0
  %729 = vmatpush1.bf16.msra.mxu0 0
  %730 = vmatprep.subr.bf16.mxu0 0
  %731 = vmatpush1.bf16.msra.mxu0 0
  %732 = vmatprep.subr.bf16.mxu0 0
  %733 = vmatpush1.bf16.msra.mxu0 0
  %734 = vmatprep.subr.bf16.mxu0 0
  %735 = vmatpush1.bf16.msra.mxu0 0
  %736 = vmatprep.subr.bf16.mxu0 0
  %737 = vmatpush1.bf16.msra.mxu0 0
  %738 = vmatprep.subr.bf16.mxu0 0
  %739 = vmatpush1.bf16.msra.mxu0 0
  %740 = vmatprep.subr.bf16.mxu0 0
  %741 = vmatpush1.bf16.msra.mxu0 0
  %742 = vmatprep.subr.bf16.mxu0 0
  %743 = vmatpush1.bf16.msra.mxu0 0
  %744 = vmatprep.mubr.bf16.mxu0 0
  %745 = vmatmul.mubr.bf16.gmra.mrb[0].mxu0 %v654
  %v746 = vpop.f32.mrb[0].mxu0
  %v747 = vadd.f32 0.0, %v746
  %v748 = vpop.f32.mrb[0].mxu0
  %v749 = vpop.f32.mrb[0].mxu0
  %v750 = vadd.f32 0.0, %v749
  %v751 = vpop.f32.mrb[0].mxu0
  %752 = vmatprep.mubr.bf16.mxu0 0
  %753 = vmatmul.mubr.bf16.gmra.mrb[0].mxu0 %v657
  %v754 = vpop.f32.mrb[0].mxu0
  %v755 = vadd.f32 0.0, %v754
  %v756 = vpop.f32.mrb[0].mxu0
  %v757 = vpop.f32.mrb[0].mxu0
  %v758 = vadd.f32 0.0, %v757
  %v759 = vpop.f32.mrb[0].mxu0
  %760 = vdwg.mxu0
  %v761 = vld [vmem:[#allocation2] sm:$0xff]
  %v762 = vld [vmem:[#allocation2 + $0x8] sm:$0xff]
  %v763 = vld [vmem:[#allocation2 + $0x10] sm:$0xff]
  %v764 = vld [vmem:[#allocation2 + $0x18] sm:$0xff]
  %v765 = vld [vmem:[#allocation2 + $0x20] sm:$0xff]
  %v766 = vld [vmem:[#allocation2 + $0x28] sm:$0xff]
  %v767 = vld [vmem:[#allocation2 + $0x30] sm:$0xff]
  %v768 = vld [vmem:[#allocation2 + $0x38] sm:$0xff]
  %v769 = vld [vmem:[#allocation2 + $0x40] sm:$0xff]
  %v770 = vld [vmem:[#allocation2 + $0x48] sm:$0xff]
  %v771 = vld [vmem:[#allocation2 + $0x50] sm:$0xff]
  %v772 = vld [vmem:[#allocation2 + $0x58] sm:$0xff]
  %785 = vrot.lane.b32.xlu0 %v694, 110
  %v786 = vpop.permute.xlu0 %785
  %787 = vrot.lane.b32.xlu0 %v696, 110
  %v788 = vpop.permute.xlu0 %787
  %789 = vrot.lane.b32.xlu0 %v747, 110
  %v790 = vpop.permute.xlu0 %789
  %791 = vrot.lane.b32.xlu0 %v698, 110
  %v792 = vpop.permute.xlu0 %791
  %793 = vrot.lane.b32.xlu0 %v700, 110
  %v794 = vpop.permute.xlu0 %793
  %795 = vrot.lane.b32.xlu0 %v750, 110
  %v796 = vpop.permute.xlu0 %795
  %797 = vrot.lane.b32.xlu0 %v704, 110
  %v798 = vpop.permute.xlu0 %797
  %799 = vrot.lane.b32.xlu0 %v706, 110
  %v800 = vpop.permute.xlu0 %799
  %801 = vrot.lane.b32.xlu0 %v755, 110
  %v802 = vpop.permute.xlu0 %801
  %803 = vrot.lane.b32.xlu0 %v708, 110
  %v804 = vpop.permute.xlu0 %803
  %805 = vrot.lane.b32.xlu0 %v710, 110
  %v806 = vpop.permute.xlu0 %805
  %807 = vrot.lane.b32.xlu0 %v758, 110
  %v808 = vpop.permute.xlu0 %807
  %vm809 = vcmask 900096
  %v810 = vsel %vm809, %v786, %v788
  %v811 = vsel %vm809, %v788, %v790
  %v812 = vsel %vm809, %v792, %v794
  %v813 = vsel %vm809, %v794, %v796
  %v814 = vsel %vm809, %v798, %v800
  %v815 = vsel %vm809, %v800, %v802
  %v816 = vsel %vm809, %v804, %v806
  %v817 = vsel %vm809, %v806, %v808
  %v830 = vadd.f32 %v761, %v810
  %v831 = vadd.f32 %v762, %v811
  %v832 = vadd.f32 %v763, %v790
  %v833 = vadd.f32 %v764, %v812
  %v834 = vadd.f32 %v765, %v813
  %v835 = vadd.f32 %v766, %v796
  %v836 = vadd.f32 %v767, %v814
  %v837 = vadd.f32 %v768, %v815
  %v838 = vadd.f32 %v769, %v802
  %v839 = vadd.f32 %v770, %v816
  %v840 = vadd.f32 %v771, %v817
  %v841 = vadd.f32 %v772, %v808
  %842 = vst [vmem:[#allocation2] sm:$0xff] %v830
  %843 = vst [vmem:[#allocation2 + $0x8] sm:$0xff] %v831
  %844 = vst.msk [vmem:[#allocation2 + $0x10] sm:$0xff] %vm809, %v832
  %845 = vst [vmem:[#allocation2 + $0x18] sm:$0xff] %v833
  %846 = vst [vmem:[#allocation2 + $0x20] sm:$0xff] %v834
  %847 = vst.msk [vmem:[#allocation2 + $0x28] sm:$0xff] %vm809, %v835
  %848 = vst [vmem:[#allocation2 + $0x30] sm:$0xff] %v836
  %849 = vst [vmem:[#allocation2 + $0x38] sm:$0xff] %v837
  %850 = vst.msk [vmem:[#allocation2 + $0x40] sm:$0xff] %vm809, %v838
  %851 = vst [vmem:[#allocation2 + $0x48] sm:$0xff] %v839
  %852 = vst [vmem:[#allocation2 + $0x50] sm:$0xff] %v840
  %853 = vst.msk [vmem:[#allocation2 + $0x58] sm:$0xff] %vm809, %v841
  %s854 = scalar_lea.vmem %s0, 64
  %v855 = vld [vmem:[%s854] sm:$0xf]
  %v856 = vld [vmem:[%s854 + $0x4] sm:$0xf]
  %v857 = vld [vmem:[%s854 + $0x8] sm:$0xf]
  %v858 = vld [vmem:[%s854 + $0xc] sm:$0xf]
  %v863 = vunpack.c.l.b16 %v855
  %v864 = vunpack.c.l.b16 %v856
  %v865 = vunpack.c.l.b16 %v857
  %v866 = vunpack.c.l.b16 %v858
  %v867 = vpack.c.b16 %v864, %v863
  %v868 = vpack.c.b16 %v866, %v865
  %v870 = vsel %vm51, %v867, 0
  %v873 = vsel %vm51, %v868, 0
  %875 = vmatprep.subr.bf16.mxu0 %v63
  %876 = vmatpush1.bf16.msra.mxu0 %v60
  %877 = vmatprep.subr.bf16.mxu0 0
  %878 = vmatpush1.bf16.msra.mxu0 0
  %879 = vmatprep.subr.bf16.mxu0 0
  %880 = vmatpush1.bf16.msra.mxu0 0
  %881 = vmatprep.subr.bf16.mxu0 0
  %882 = vmatpush1.bf16.msra.mxu0 0
  %883 = vmatprep.subr.bf16.mxu0 0
  %884 = vmatpush1.bf16.msra.mxu0 0
  %885 = vmatprep.subr.bf16.mxu0 0
  %886 = vmatpush1.bf16.msra.mxu0 0
  %887 = vmatprep.subr.bf16.mxu0 0
  %888 = vmatpush1.bf16.msra.mxu0 0
  %889 = vmatprep.subr.bf16.mxu0 0
  %890 = vmatpush1.bf16.msra.mxu0 0
  %891 = vmatprep.subr.bf16.mxu0 0
  %892 = vmatpush1.bf16.msra.mxu0 0
  %893 = vmatprep.subr.bf16.mxu0 0
  %894 = vmatpush1.bf16.msra.mxu0 0
  %895 = vmatprep.subr.bf16.mxu0 0
  %896 = vmatpush1.bf16.msra.mxu0 0
  %897 = vmatprep.subr.bf16.mxu0 0
  %898 = vmatpush1.bf16.msra.mxu0 0
  %899 = vmatprep.subr.bf16.mxu0 0
  %900 = vmatpush1.bf16.msra.mxu0 0
  %901 = vmatprep.subr.bf16.mxu0 0
  %902 = vmatpush1.bf16.msra.mxu0 0
  %903 = vmatprep.subr.bf16.mxu0 0
  %904 = vmatpush1.bf16.msra.mxu0 0
  %905 = vmatprep.subr.bf16.mxu0 0
  %906 = vmatpush1.bf16.msra.mxu0 0
  %907 = vmatprep.mubr.bf16.mxu0 0
  %908 = vmatmul.mubr.bf16.gmra.mrb[0].mxu0 %v870
  %v909 = vpop.f32.mrb[0].mxu0
  %v910 = vadd.f32 0.0, %v909
  %v911 = vpop.f32.mrb[0].mxu0
  %v912 = vadd.f32 0.0, %v911
  %v913 = vpop.f32.mrb[0].mxu0
  %v914 = vadd.f32 0.0, %v913
  %v915 = vpop.f32.mrb[0].mxu0
  %v916 = vadd.f32 0.0, %v915
  %917 = vmatprep.mubr.bf16.mxu0 0
  %918 = vmatmul.mubr.bf16.gmra.mrb[0].mxu0 %v873
  %v919 = vpop.f32.mrb[0].mxu0
  %v920 = vadd.f32 0.0, %v919
  %v921 = vpop.f32.mrb[0].mxu0
  %v922 = vadd.f32 0.0, %v921
  %v923 = vpop.f32.mrb[0].mxu0
  %v924 = vadd.f32 0.0, %v923
  %v925 = vpop.f32.mrb[0].mxu0
  %v926 = vadd.f32 0.0, %v925
  %927 = vdwg.mxu0
  %928 = vmatprep.subr.bf16.mxu0 0
  %929 = vmatpush1.bf16.msra.mxu0 %v66
  %930 = vmatprep.subr.bf16.mxu0 0
  %931 = vmatpush1.bf16.msra.mxu0 0
  %932 = vmatprep.subr.bf16.mxu0 0
  %933 = vmatpush1.bf16.msra.mxu0 0
  %934 = vmatprep.subr.bf16.mxu0 0
  %935 = vmatpush1.bf16.msra.mxu0 0
  %936 = vmatprep.subr.bf16.mxu0 0
  %937 = vmatpush1.bf16.msra.mxu0 0
  %938 = vmatprep.subr.bf16.mxu0 0
  %939 = vmatpush1.bf16.msra.mxu0 0
  %940 = vmatprep.subr.bf16.mxu0 0
  %941 = vmatpush1.bf16.msra.mxu0 0
  %942 = vmatprep.subr.bf16.mxu0 0
  %943 = vmatpush1.bf16.msra.mxu0 0
  %944 = vmatprep.subr.bf16.mxu0 0
  %945 = vmatpush1.bf16.msra.mxu0 0
  %946 = vmatprep.subr.bf16.mxu0 0
  %947 = vmatpush1.bf16.msra.mxu0 0
  %948 = vmatprep.subr.bf16.mxu0 0
  %949 = vmatpush1.bf16.msra.mxu0 0
  %950 = vmatprep.subr.bf16.mxu0 0
  %951 = vmatpush1.bf16.msra.mxu0 0
  %952 = vmatprep.subr.bf16.mxu0 0
  %953 = vmatpush1.bf16.msra.mxu0 0
  %954 = vmatprep.subr.bf16.mxu0 0
  %955 = vmatpush1.bf16.msra.mxu0 0
  %956 = vmatprep.subr.bf16.mxu0 0
  %957 = vmatpush1.bf16.msra.mxu0 0
  %958 = vmatprep.subr.bf16.mxu0 0
  %959 = vmatpush1.bf16.msra.mxu0 0
  %960 = vmatprep.mubr.bf16.mxu0 0
  %961 = vmatmul.mubr.bf16.gmra.mrb[0].mxu0 %v870
  %v962 = vpop.f32.mrb[0].mxu0
  %v963 = vadd.f32 0.0, %v962
  %v964 = vpop.f32.mrb[0].mxu0
  %v965 = vpop.f32.mrb[0].mxu0
  %v966 = vadd.f32 0.0, %v965
  %v967 = vpop.f32.mrb[0].mxu0
  %968 = vmatprep.mubr.bf16.mxu0 0
  %969 = vmatmul.mubr.bf16.gmra.mrb[0].mxu0 %v873
  %v970 = vpop.f32.mrb[0].mxu0
  %v971 = vadd.f32 0.0, %v970
  %v972 = vpop.f32.mrb[0].mxu0
  %v973 = vpop.f32.mrb[0].mxu0
  %v974 = vadd.f32 0.0, %v973
  %v975 = vpop.f32.mrb[0].mxu0
  %976 = vdwg.mxu0
  %v977 = vld [vmem:[#allocation2] sm:$0xff]
  %v978 = vld [vmem:[#allocation2 + $0x8] sm:$0xff]
  %v979 = vld [vmem:[#allocation2 + $0x10] sm:$0xff]
  %v980 = vld [vmem:[#allocation2 + $0x18] sm:$0xff]
  %v981 = vld [vmem:[#allocation2 + $0x20] sm:$0xff]
  %v982 = vld [vmem:[#allocation2 + $0x28] sm:$0xff]
  %v983 = vld [vmem:[#allocation2 + $0x30] sm:$0xff]
  %v984 = vld [vmem:[#allocation2 + $0x38] sm:$0xff]
  %v985 = vld [vmem:[#allocation2 + $0x40] sm:$0xff]
  %v986 = vld [vmem:[#allocation2 + $0x48] sm:$0xff]
  %v987 = vld [vmem:[#allocation2 + $0x50] sm:$0xff]
  %v988 = vld [vmem:[#allocation2 + $0x58] sm:$0xff]
  %1001 = vrot.lane.b32.xlu0 %v910, 109
  %v1002 = vpop.permute.xlu0 %1001
  %1003 = vrot.lane.b32.xlu0 %v912, 109
  %v1004 = vpop.permute.xlu0 %1003
  %1005 = vrot.lane.b32.xlu0 %v963, 109
  %v1006 = vpop.permute.xlu0 %1005
  %1007 = vrot.lane.b32.xlu0 %v914, 109
  %v1008 = vpop.permute.xlu0 %1007
  %1009 = vrot.lane.b32.xlu0 %v916, 109
  %v1010 = vpop.permute.xlu0 %1009
  %1011 = vrot.lane.b32.xlu0 %v966, 109
  %v1012 = vpop.permute.xlu0 %1011
  %1013 = vrot.lane.b32.xlu0 %v920, 109
  %v1014 = vpop.permute.xlu0 %1013
  %1015 = vrot.lane.b32.xlu0 %v922, 109
  %v1016 = vpop.permute.xlu0 %1015
  %1017 = vrot.lane.b32.xlu0 %v971, 109
  %v1018 = vpop.permute.xlu0 %1017
  %1019 = vrot.lane.b32.xlu0 %v924, 109
  %v1020 = vpop.permute.xlu0 %1019
  %1021 = vrot.lane.b32.xlu0 %v926, 109
  %v1022 = vpop.permute.xlu0 %1021
  %1023 = vrot.lane.b32.xlu0 %v974, 109
  %v1024 = vpop.permute.xlu0 %1023
  %vm1025 = vcmask 891904
  %v1026 = vsel %vm1025, %v1002, %v1004
  %v1027 = vsel %vm1025, %v1004, %v1006
  %v1028 = vsel %vm1025, %v1008, %v1010
  %v1029 = vsel %vm1025, %v1010, %v1012
  %v1030 = vsel %vm1025, %v1014, %v1016
  %v1031 = vsel %vm1025, %v1016, %v1018
  %v1032 = vsel %vm1025, %v1020, %v1022
  %v1033 = vsel %vm1025, %v1022, %v1024
  %v1046 = vadd.f32 %v977, %v1026
  %v1047 = vadd.f32 %v978, %v1027
  %v1048 = vadd.f32 %v979, %v1006
  %v1049 = vadd.f32 %v980, %v1028
  %v1050 = vadd.f32 %v981, %v1029
  %v1051 = vadd.f32 %v982, %v1012
  %v1052 = vadd.f32 %v983, %v1030
  %v1053 = vadd.f32 %v984, %v1031
  %v1054 = vadd.f32 %v985, %v1018
  %v1055 = vadd.f32 %v986, %v1032
  %v1056 = vadd.f32 %v987, %v1033
  %v1057 = vadd.f32 %v988, %v1024
  %1058 = vst [vmem:[#allocation2] sm:$0xff] %v1046
  %1059 = vst [vmem:[#allocation2 + $0x8] sm:$0xff] %v1047
  %1060 = vst.msk [vmem:[#allocation2 + $0x10] sm:$0xff] %vm1025, %v1048
  %1061 = vst [vmem:[#allocation2 + $0x18] sm:$0xff] %v1049
  %1062 = vst [vmem:[#allocation2 + $0x20] sm:$0xff] %v1050
  %1063 = vst.msk [vmem:[#allocation2 + $0x28] sm:$0xff] %vm1025, %v1051
  %1064 = vst [vmem:[#allocation2 + $0x30] sm:$0xff] %v1052
  %1065 = vst [vmem:[#allocation2 + $0x38] sm:$0xff] %v1053
  %1066 = vst.msk [vmem:[#allocation2 + $0x40] sm:$0xff] %vm1025, %v1054
  %1067 = vst [vmem:[#allocation2 + $0x48] sm:$0xff] %v1055
  %1068 = vst [vmem:[#allocation2 + $0x50] sm:$0xff] %v1056
  %1069 = vst.msk [vmem:[#allocation2 + $0x58] sm:$0xff] %vm1025, %v1057
  %s1070 = scalar_lea.vmem %s0, 80
  %v1071 = vld [vmem:[%s1070] sm:$0xf]
  %v1072 = vld [vmem:[%s1070 + $0x4] sm:$0xf]
  %v1073 = vld [vmem:[%s1070 + $0x8] sm:$0xf]
  %v1074 = vld [vmem:[%s1070 + $0xc] sm:$0xf]
  %v1079 = vunpack.c.l.b16 %v1071
  %v1080 = vunpack.c.l.b16 %v1072
  %v1081 = vunpack.c.l.b16 %v1073
  %v1082 = vunpack.c.l.b16 %v1074
  %v1083 = vpack.c.b16 %v1080, %v1079
  %v1084 = vpack.c.b16 %v1082, %v1081
  %v1086 = vsel %vm51, %v1083, 0
  %v1089 = vsel %vm51, %v1084, 0
  %1091 = vmatprep.subr.bf16.mxu0 %v63
  %1092 = vmatpush1.bf16.msra.mxu0 %v60
  %1093 = vmatprep.subr.bf16.mxu0 0
  %1094 = vmatpush1.bf16.msra.mxu0 0
  %1095 = vmatprep.subr.bf16.mxu0 0
  %1096 = vmatpush1.bf16.msra.mxu0 0
  %1097 = vmatprep.subr.bf16.mxu0 0
  %1098 = vmatpush1.bf16.msra.mxu0 0
  %1099 = vmatprep.subr.bf16.mxu0 0
  %1100 = vmatpush1.bf16.msra.mxu0 0
  %1101 = vmatprep.subr.bf16.mxu0 0
  %1102 = vmatpush1.bf16.msra.mxu0 0
  %1103 = vmatprep.subr.bf16.mxu0 0
  %1104 = vmatpush1.bf16.msra.mxu0 0
  %1105 = vmatprep.subr.bf16.mxu0 0
  %1106 = vmatpush1.bf16.msra.mxu0 0
  %1107 = vmatprep.subr.bf16.mxu0 0
  %1108 = vmatpush1.bf16.msra.mxu0 0
  %1109 = vmatprep.subr.bf16.mxu0 0
  %1110 = vmatpush1.bf16.msra.mxu0 0
  %1111 = vmatprep.subr.bf16.mxu0 0
  %1112 = vmatpush1.bf16.msra.mxu0 0
  %1113 = vmatprep.subr.bf16.mxu0 0
  %1114 = vmatpush1.bf16.msra.mxu0 0
  %1115 = vmatprep.subr.bf16.mxu0 0
  %1116 = vmatpush1.bf16.msra.mxu0 0
  %1117 = vmatprep.subr.bf16.mxu0 0
  %1118 = vmatpush1.bf16.msra.mxu0 0
  %1119 = vmatprep.subr.bf16.mxu0 0
  %1120 = vmatpush1.bf16.msra.mxu0 0
  %1121 = vmatprep.subr.bf16.mxu0 0
  %1122 = vmatpush1.bf16.msra.mxu0 0
  %1123 = vmatprep.mubr.bf16.mxu0 0
  %1124 = vmatmul.mubr.bf16.gmra.mrb[0].mxu0 %v1086
  %v1125 = vpop.f32.mrb[0].mxu0
  %v1126 = vadd.f32 0.0, %v1125
  %v1127 = vpop.f32.mrb[0].mxu0
  %v1128 = vadd.f32 0.0, %v1127
  %v1129 = vpop.f32.mrb[0].mxu0
  %v1130 = vadd.f32 0.0, %v1129
  %v1131 = vpop.f32.mrb[0].mxu0
  %v1132 = vadd.f32 0.0, %v1131
  %1133 = vmatprep.mubr.bf16.mxu0 0
  %1134 = vmatmul.mubr.bf16.gmra.mrb[0].mxu0 %v1089
  %v1135 = vpop.f32.mrb[0].mxu0
  %v1136 = vadd.f32 0.0, %v1135
  %v1137 = vpop.f32.mrb[0].mxu0
  %v1138 = vadd.f32 0.0, %v1137
  %v1139 = vpop.f32.mrb[0].mxu0
  %v1140 = vadd.f32 0.0, %v1139
  %v1141 = vpop.f32.mrb[0].mxu0
  %v1142 = vadd.f32 0.0, %v1141
  %1143 = vdwg.mxu0
  %1144 = vmatprep.subr.bf16.mxu0 0
  %1145 = vmatpush1.bf16.msra.mxu0 %v66
  %1146 = vmatprep.subr.bf16.mxu0 0
  %1147 = vmatpush1.bf16.msra.mxu0 0
  %1148 = vmatprep.subr.bf16.mxu0 0
  %1149 = vmatpush1.bf16.msra.mxu0 0
  %1150 = vmatprep.subr.bf16.mxu0 0
  %1151 = vmatpush1.bf16.msra.mxu0 0
  %1152 = vmatprep.subr.bf16.mxu0 0
  %1153 = vmatpush1.bf16.msra.mxu0 0
  %1154 = vmatprep.subr.bf16.mxu0 0
  %1155 = vmatpush1.bf16.msra.mxu0 0
  %1156 = vmatprep.subr.bf16.mxu0 0
  %1157 = vmatpush1.bf16.msra.mxu0 0
  %1158 = vmatprep.subr.bf16.mxu0 0
  %1159 = vmatpush1.bf16.msra.mxu0 0
  %1160 = vmatprep.subr.bf16.mxu0 0
  %1161 = vmatpush1.bf16.msra.mxu0 0
  %1162 = vmatprep.subr.bf16.mxu0 0
  %1163 = vmatpush1.bf16.msra.mxu0 0
  %1164 = vmatprep.subr.bf16.mxu0 0
  %1165 = vmatpush1.bf16.msra.mxu0 0
  %1166 = vmatprep.subr.bf16.mxu0 0
  %1167 = vmatpush1.bf16.msra.mxu0 0
  %1168 = vmatprep.subr.bf16.mxu0 0
  %1169 = vmatpush1.bf16.msra.mxu0 0
  %1170 = vmatprep.subr.bf16.mxu0 0
  %1171 = vmatpush1.bf16.msra.mxu0 0
  %1172 = vmatprep.subr.bf16.mxu0 0
  %1173 = vmatpush1.bf16.msra.mxu0 0
  %1174 = vmatprep.subr.bf16.mxu0 0
  %1175 = vmatpush1.bf16.msra.mxu0 0
  %1176 = vmatprep.mubr.bf16.mxu0 0
  %1177 = vmatmul.mubr.bf16.gmra.mrb[0].mxu0 %v1086
  %v1178 = vpop.f32.mrb[0].mxu0
  %v1179 = vadd.f32 0.0, %v1178
  %v1180 = vpop.f32.mrb[0].mxu0
  %v1181 = vpop.f32.mrb[0].mxu0
  %v1182 = vadd.f32 0.0, %v1181
  %v1183 = vpop.f32.mrb[0].mxu0
  %1184 = vmatprep.mubr.bf16.mxu0 0
  %1185 = vmatmul.mubr.bf16.gmra.mrb[0].mxu0 %v1089
  %v1186 = vpop.f32.mrb[0].mxu0
  %v1187 = vadd.f32 0.0, %v1186
  %v1188 = vpop.f32.mrb[0].mxu0
  %v1189 = vpop.f32.mrb[0].mxu0
  %v1190 = vadd.f32 0.0, %v1189
  %v1191 = vpop.f32.mrb[0].mxu0
  %1192 = vdwg.mxu0
  %v1193 = vld [vmem:[#allocation2] sm:$0xff]
  %v1194 = vld [vmem:[#allocation2 + $0x8] sm:$0xff]
  %v1195 = vld [vmem:[#allocation2 + $0x10] sm:$0xff]
  %v1196 = vld [vmem:[#allocation2 + $0x18] sm:$0xff]
  %v1197 = vld [vmem:[#allocation2 + $0x20] sm:$0xff]
  %v1198 = vld [vmem:[#allocation2 + $0x28] sm:$0xff]
  %v1199 = vld [vmem:[#allocation2 + $0x30] sm:$0xff]
  %v1200 = vld [vmem:[#allocation2 + $0x38] sm:$0xff]
  %v1201 = vld [vmem:[#allocation2 + $0x40] sm:$0xff]
  %v1202 = vld [vmem:[#allocation2 + $0x48] sm:$0xff]
  %v1203 = vld [vmem:[#allocation2 + $0x50] sm:$0xff]
  %v1204 = vld [vmem:[#allocation2 + $0x58] sm:$0xff]
  %1217 = vrot.lane.b32.xlu0 %v1126, 108
  %v1218 = vpop.permute.xlu0 %1217
  %1219 = vrot.lane.b32.xlu0 %v1128, 108
  %v1220 = vpop.permute.xlu0 %1219
  %1221 = vrot.lane.b32.xlu0 %v1179, 108
  %v1222 = vpop.permute.xlu0 %1221
  %1223 = vrot.lane.b32.xlu0 %v1130, 108
  %v1224 = vpop.permute.xlu0 %1223
  %1225 = vrot.lane.b32.xlu0 %v1132, 108
  %v1226 = vpop.permute.xlu0 %1225
  %1227 = vrot.lane.b32.xlu0 %v1182, 108
  %v1228 = vpop.permute.xlu0 %1227
  %1229 = vrot.lane.b32.xlu0 %v1136, 108
  %v1230 = vpop.permute.xlu0 %1229
  %1231 = vrot.lane.b32.xlu0 %v1138, 108
  %v1232 = vpop.permute.xlu0 %1231
  %1233 = vrot.lane.b32.xlu0 %v1187, 108
  %v1234 = vpop.permute.xlu0 %1233
  %1235 = vrot.lane.b32.xlu0 %v1140, 108
  %v1236 = vpop.permute.xlu0 %1235
  %1237 = vrot.lane.b32.xlu0 %v1142, 108
  %v1238 = vpop.permute.xlu0 %1237
  %1239 = vrot.lane.b32.xlu0 %v1190, 108
  %v1240 = vpop.permute.xlu0 %1239
  %vm1241 = vcmask 883712
  %v1242 = vsel %vm1241, %v1218, %v1220
  %v1243 = vsel %vm1241, %v1220, %v1222
  %v1244 = vsel %vm1241, %v1224, %v1226
  %v1245 = vsel %vm1241, %v1226, %v1228
  %v1246 = vsel %vm1241, %v1230, %v1232
  %v1247 = vsel %vm1241, %v1232, %v1234
  %v1248 = vsel %vm1241, %v1236, %v1238
  %v1249 = vsel %vm1241, %v1238, %v1240
  %v1262 = vadd.f32 %v1193, %v1242
  %v1263 = vadd.f32 %v1194, %v1243
  %v1264 = vadd.f32 %v1195, %v1222
  %v1265 = vadd.f32 %v1196, %v1244
  %v1266 = vadd.f32 %v1197, %v1245
  %v1267 = vadd.f32 %v1198, %v1228
  %v1268 = vadd.f32 %v1199, %v1246
  %v1269 = vadd.f32 %v1200, %v1247
  %v1270 = vadd.f32 %v1201, %v1234
  %v1271 = vadd.f32 %v1202, %v1248
  %v1272 = vadd.f32 %v1203, %v1249
  %v1273 = vadd.f32 %v1204, %v1240
  %1274 = vst [vmem:[#allocation2] sm:$0xff] %v1262
  %1275 = vst [vmem:[#allocation2 + $0x8] sm:$0xff] %v1263
  %1276 = vst.msk [vmem:[#allocation2 + $0x10] sm:$0xff] %vm1241, %v1264
  %1277 = vst [vmem:[#allocation2 + $0x18] sm:$0xff] %v1265
  %1278 = vst [vmem:[#allocation2 + $0x20] sm:$0xff] %v1266
  %1279 = vst.msk [vmem:[#allocation2 + $0x28] sm:$0xff] %vm1241, %v1267
  %1280 = vst [vmem:[#allocation2 + $0x30] sm:$0xff] %v1268
  %1281 = vst [vmem:[#allocation2 + $0x38] sm:$0xff] %v1269
  %1282 = vst.msk [vmem:[#allocation2 + $0x40] sm:$0xff] %vm1241, %v1270
  %1283 = vst [vmem:[#allocation2 + $0x48] sm:$0xff] %v1271
  %1284 = vst [vmem:[#allocation2 + $0x50] sm:$0xff] %v1272
  %1285 = vst.msk [vmem:[#allocation2 + $0x58] sm:$0xff] %vm1241, %v1273
  %s1286 = scalar_lea.vmem %s0, 96
  %v1287 = vld [vmem:[%s1286] sm:$0xf]
  %v1288 = vld [vmem:[%s1286 + $0x4] sm:$0xf]
  %v1289 = vld [vmem:[%s1286 + $0x8] sm:$0xf]
  %v1290 = vld [vmem:[%s1286 + $0xc] sm:$0xf]
  %v1295 = vunpack.c.l.b16 %v1287
  %v1296 = vunpack.c.l.b16 %v1288
  %v1297 = vunpack.c.l.b16 %v1289
  %v1298 = vunpack.c.l.b16 %v1290
  %v1299 = vpack.c.b16 %v1296, %v1295
  %v1300 = vpack.c.b16 %v1298, %v1297
  %v1302 = vsel %vm51, %v1299, 0
  %v1305 = vsel %vm51, %v1300, 0
  %1307 = vmatprep.subr.bf16.mxu0 %v63
  %1308 = vmatpush1.bf16.msra.mxu0 %v60
  %1309 = vmatprep.subr.bf16.mxu0 0
  %1310 = vmatpush1.bf16.msra.mxu0 0
  %1311 = vmatprep.subr.bf16.mxu0 0
  %1312 = vmatpush1.bf16.msra.mxu0 0
  %1313 = vmatprep.subr.bf16.mxu0 0
  %1314 = vmatpush1.bf16.msra.mxu0 0
  %1315 = vmatprep.subr.bf16.mxu0 0
  %1316 = vmatpush1.bf16.msra.mxu0 0
  %1317 = vmatprep.subr.bf16.mxu0 0
  %1318 = vmatpush1.bf16.msra.mxu0 0
  %1319 = vmatprep.subr.bf16.mxu0 0
  %1320 = vmatpush1.bf16.msra.mxu0 0
  %1321 = vmatprep.subr.bf16.mxu0 0
  %1322 = vmatpush1.bf16.msra.mxu0 0
  %1323 = vmatprep.subr.bf16.mxu0 0
  %1324 = vmatpush1.bf16.msra.mxu0 0
  %1325 = vmatprep.subr.bf16.mxu0 0
  %1326 = vmatpush1.bf16.msra.mxu0 0
  %1327 = vmatprep.subr.bf16.mxu0 0
  %1328 = vmatpush1.bf16.msra.mxu0 0
  %1329 = vmatprep.subr.bf16.mxu0 0
  %1330 = vmatpush1.bf16.msra.mxu0 0
  %1331 = vmatprep.subr.bf16.mxu0 0
  %1332 = vmatpush1.bf16.msra.mxu0 0
  %1333 = vmatprep.subr.bf16.mxu0 0
  %1334 = vmatpush1.bf16.msra.mxu0 0
  %1335 = vmatprep.subr.bf16.mxu0 0
  %1336 = vmatpush1.bf16.msra.mxu0 0
  %1337 = vmatprep.subr.bf16.mxu0 0
  %1338 = vmatpush1.bf16.msra.mxu0 0
  %1339 = vmatprep.mubr.bf16.mxu0 0
  %1340 = vmatmul.mubr.bf16.gmra.mrb[0].mxu0 %v1302
  %v1341 = vpop.f32.mrb[0].mxu0
  %v1342 = vadd.f32 0.0, %v1341
  %v1343 = vpop.f32.mrb[0].mxu0
  %v1344 = vadd.f32 0.0, %v1343
  %v1345 = vpop.f32.mrb[0].mxu0
  %v1346 = vadd.f32 0.0, %v1345
  %v1347 = vpop.f32.mrb[0].mxu0
  %v1348 = vadd.f32 0.0, %v1347
  %1349 = vmatprep.mubr.bf16.mxu0 0
  %1350 = vmatmul.mubr.bf16.gmra.mrb[0].mxu0 %v1305
  %v1351 = vpop.f32.mrb[0].mxu0
  %v1352 = vadd.f32 0.0, %v1351
  %v1353 = vpop.f32.mrb[0].mxu0
  %v1354 = vadd.f32 0.0, %v1353
  %v1355 = vpop.f32.mrb[0].mxu0
  %v1356 = vadd.f32 0.0, %v1355
  %v1357 = vpop.f32.mrb[0].mxu0
  %v1358 = vadd.f32 0.0, %v1357
  %1359 = vdwg.mxu0
  %1360 = vmatprep.subr.bf16.mxu0 0
  %1361 = vmatpush1.bf16.msra.mxu0 %v66
  %1362 = vmatprep.subr.bf16.mxu0 0
  %1363 = vmatpush1.bf16.msra.mxu0 0
  %1364 = vmatprep.subr.bf16.mxu0 0
  %1365 = vmatpush1.bf16.msra.mxu0 0
  %1366 = vmatprep.subr.bf16.mxu0 0
  %1367 = vmatpush1.bf16.msra.mxu0 0
  %1368 = vmatprep.subr.bf16.mxu0 0
  %1369 = vmatpush1.bf16.msra.mxu0 0
  %1370 = vmatprep.subr.bf16.mxu0 0
  %1371 = vmatpush1.bf16.msra.mxu0 0
  %1372 = vmatprep.subr.bf16.mxu0 0
  %1373 = vmatpush1.bf16.msra.mxu0 0
  %1374 = vmatprep.subr.bf16.mxu0 0
  %1375 = vmatpush1.bf16.msra.mxu0 0
  %1376 = vmatprep.subr.bf16.mxu0 0
  %1377 = vmatpush1.bf16.msra.mxu0 0
  %1378 = vmatprep.subr.bf16.mxu0 0
  %1379 = vmatpush1.bf16.msra.mxu0 0
  %1380 = vmatprep.subr.bf16.mxu0 0
  %1381 = vmatpush1.bf16.msra.mxu0 0
  %1382 = vmatprep.subr.bf16.mxu0 0
  %1383 = vmatpush1.bf16.msra.mxu0 0
  %1384 = vmatprep.subr.bf16.mxu0 0
  %1385 = vmatpush1.bf16.msra.mxu0 0
  %1386 = vmatprep.subr.bf16.mxu0 0
  %1387 = vmatpush1.bf16.msra.mxu0 0
  %1388 = vmatprep.subr.bf16.mxu0 0
  %1389 = vmatpush1.bf16.msra.mxu0 0
  %1390 = vmatprep.subr.bf16.mxu0 0
  %1391 = vmatpush1.bf16.msra.mxu0 0
  %1392 = vmatprep.mubr.bf16.mxu0 0
  %1393 = vmatmul.mubr.bf16.gmra.mrb[0].mxu0 %v1302
  %v1394 = vpop.f32.mrb[0].mxu0
  %v1395 = vadd.f32 0.0, %v1394
  %v1396 = vpop.f32.mrb[0].mxu0
  %v1397 = vpop.f32.mrb[0].mxu0
  %v1398 = vadd.f32 0.0, %v1397
  %v1399 = vpop.f32.mrb[0].mxu0
  %1400 = vmatprep.mubr.bf16.mxu0 0
  %1401 = vmatmul.mubr.bf16.gmra.mrb[0].mxu0 %v1305
  %v1402 = vpop.f32.mrb[0].mxu0
  %v1403 = vadd.f32 0.0, %v1402
  %v1404 = vpop.f32.mrb[0].mxu0
  %v1405 = vpop.f32.mrb[0].mxu0
  %v1406 = vadd.f32 0.0, %v1405
  %v1407 = vpop.f32.mrb[0].mxu0
  %1408 = vdwg.mxu0
  %v1409 = vld [vmem:[#allocation2] sm:$0xff]
  %v1410 = vld [vmem:[#allocation2 + $0x8] sm:$0xff]
  %v1411 = vld [vmem:[#allocation2 + $0x10] sm:$0xff]
  %v1412 = vld [vmem:[#allocation2 + $0x18] sm:$0xff]
  %v1413 = vld [vmem:[#allocation2 + $0x20] sm:$0xff]
  %v1414 = vld [vmem:[#allocation2 + $0x28] sm:$0xff]
  %v1415 = vld [vmem:[#allocation2 + $0x30] sm:$0xff]
  %v1416 = vld [vmem:[#allocation2 + $0x38] sm:$0xff]
  %v1417 = vld [vmem:[#allocation2 + $0x40] sm:$0xff]
  %v1418 = vld [vmem:[#allocation2 + $0x48] sm:$0xff]
  %v1419 = vld [vmem:[#allocation2 + $0x50] sm:$0xff]
  %v1420 = vld [vmem:[#allocation2 + $0x58] sm:$0xff]
  %1433 = vrot.lane.b32.xlu0 %v1342, 92
  %v1434 = vpop.permute.xlu0 %1433
  %1435 = vrot.lane.b32.xlu0 %v1344, 92
  %v1436 = vpop.permute.xlu0 %1435
  %1437 = vrot.lane.b32.xlu0 %v1395, 92
  %v1438 = vpop.permute.xlu0 %1437
  %1439 = vrot.lane.b32.xlu0 %v1346, 92
  %v1440 = vpop.permute.xlu0 %1439
  %1441 = vrot.lane.b32.xlu0 %v1348, 92
  %v1442 = vpop.permute.xlu0 %1441
  %1443 = vrot.lane.b32.xlu0 %v1398, 92
  %v1444 = vpop.permute.xlu0 %1443
  %1445 = vrot.lane.b32.xlu0 %v1352, 92
  %v1446 = vpop.permute.xlu0 %1445
  %1447 = vrot.lane.b32.xlu0 %v1354, 92
  %v1448 = vpop.permute.xlu0 %1447
  %1449 = vrot.lane.b32.xlu0 %v1403, 92
  %v1450 = vpop.permute.xlu0 %1449
  %1451 = vrot.lane.b32.xlu0 %v1356, 92
  %v1452 = vpop.permute.xlu0 %1451
  %1453 = vrot.lane.b32.xlu0 %v1358, 92
  %v1454 = vpop.permute.xlu0 %1453
  %1455 = vrot.lane.b32.xlu0 %v1406, 92
  %v1456 = vpop.permute.xlu0 %1455
  %vm1457 = vcmask 752640
  %v1458 = vsel %vm1457, %v1434, %v1436
  %v1459 = vsel %vm1457, %v1436, %v1438
  %v1460 = vsel %vm1457, %v1440, %v1442
  %v1461 = vsel %vm1457, %v1442, %v1444
  %v1462 = vsel %vm1457, %v1446, %v1448
  %v1463 = vsel %vm1457, %v1448, %v1450
  %v1464 = vsel %vm1457, %v1452, %v1454
  %v1465 = vsel %vm1457, %v1454, %v1456
  %v1478 = vadd.f32 %v1409, %v1458
  %v1479 = vadd.f32 %v1410, %v1459
  %v1480 = vadd.f32 %v1411, %v1438
  %v1481 = vadd.f32 %v1412, %v1460
  %v1482 = vadd.f32 %v1413, %v1461
  %v1483 = vadd.f32 %v1414, %v1444
  %v1484 = vadd.f32 %v1415, %v1462
  %v1485 = vadd.f32 %v1416, %v1463
  %v1486 = vadd.f32 %v1417, %v1450
  %v1487 = vadd.f32 %v1418, %v1464
  %v1488 = vadd.f32 %v1419, %v1465
  %v1489 = vadd.f32 %v1420, %v1456
  %1490 = vst [vmem:[#allocation2] sm:$0xff] %v1478
  %1491 = vst [vmem:[#allocation2 + $0x8] sm:$0xff] %v1479
  %1492 = vst.msk [vmem:[#allocation2 + $0x10] sm:$0xff] %vm1457, %v1480
  %1493 = vst [vmem:[#allocation2 + $0x18] sm:$0xff] %v1481
  %1494 = vst [vmem:[#allocation2 + $0x20] sm:$0xff] %v1482
  %1495 = vst.msk [vmem:[#allocation2 + $0x28] sm:$0xff] %vm1457, %v1483
  %1496 = vst [vmem:[#allocation2 + $0x30] sm:$0xff] %v1484
  %1497 = vst [vmem:[#allocation2 + $0x38] sm:$0xff] %v1485
  %1498 = vst.msk [vmem:[#allocation2 + $0x40] sm:$0xff] %vm1457, %v1486
  %1499 = vst [vmem:[#allocation2 + $0x48] sm:$0xff] %v1487
  %1500 = vst [vmem:[#allocation2 + $0x50] sm:$0xff] %v1488
  %1501 = vst.msk [vmem:[#allocation2 + $0x58] sm:$0xff] %vm1457, %v1489
  %s1502 = scalar_lea.vmem %s0, 112
  %v1503 = vld [vmem:[%s1502] sm:$0xf]
  %v1504 = vld [vmem:[%s1502 + $0x4] sm:$0xf]
  %v1505 = vld [vmem:[%s1502 + $0x8] sm:$0xf]
  %v1506 = vld [vmem:[%s1502 + $0xc] sm:$0xf]
  %v1511 = vunpack.c.l.b16 %v1503
  %v1512 = vunpack.c.l.b16 %v1504
  %v1513 = vunpack.c.l.b16 %v1505
  %v1514 = vunpack.c.l.b16 %v1506
  %v1515 = vpack.c.b16 %v1512, %v1511
  %v1516 = vpack.c.b16 %v1514, %v1513
  %v1518 = vsel %vm51, %v1515, 0
  %v1521 = vsel %vm51, %v1516, 0
  %1523 = vmatprep.subr.bf16.mxu0 %v63
  %1524 = vmatpush1.bf16.msra.mxu0 %v60
  %1525 = vmatprep.subr.bf16.mxu0 0
  %1526 = vmatpush1.bf16.msra.mxu0 0
  %1527 = vmatprep.subr.bf16.mxu0 0
  %1528 = vmatpush1.bf16.msra.mxu0 0
  %1529 = vmatprep.subr.bf16.mxu0 0
  %1530 = vmatpush1.bf16.msra.mxu0 0
  %1531 = vmatprep.subr.bf16.mxu0 0
  %1532 = vmatpush1.bf16.msra.mxu0 0
  %1533 = vmatprep.subr.bf16.mxu0 0
  %1534 = vmatpush1.bf16.msra.mxu0 0
  %1535 = vmatprep.subr.bf16.mxu0 0
  %1536 = vmatpush1.bf16.msra.mxu0 0
  %1537 = vmatprep.subr.bf16.mxu0 0
  %1538 = vmatpush1.bf16.msra.mxu0 0
  %1539 = vmatprep.subr.bf16.mxu0 0
  %1540 = vmatpush1.bf16.msra.mxu0 0
  %1541 = vmatprep.subr.bf16.mxu0 0
  %1542 = vmatpush1.bf16.msra.mxu0 0
  %1543 = vmatprep.subr.bf16.mxu0 0
  %1544 = vmatpush1.bf16.msra.mxu0 0
  %1545 = vmatprep.subr.bf16.mxu0 0
  %1546 = vmatpush1.bf16.msra.mxu0 0
  %1547 = vmatprep.subr.bf16.mxu0 0
  %1548 = vmatpush1.bf16.msra.mxu0 0
  %1549 = vmatprep.subr.bf16.mxu0 0
  %1550 = vmatpush1.bf16.msra.mxu0 0
  %1551 = vmatprep.subr.bf16.mxu0 0
  %1552 = vmatpush1.bf16.msra.mxu0 0
  %1553 = vmatprep.subr.bf16.mxu0 0
  %1554 = vmatpush1.bf16.msra.mxu0 0
  %1555 = vmatprep.mubr.bf16.mxu0 0
  %1556 = vmatmul.mubr.bf16.gmra.mrb[0].mxu0 %v1518
  %v1557 = vpop.f32.mrb[0].mxu0
  %v1558 = vadd.f32 0.0, %v1557
  %v1559 = vpop.f32.mrb[0].mxu0
  %v1560 = vadd.f32 0.0, %v1559
  %v1561 = vpop.f32.mrb[0].mxu0
  %v1562 = vadd.f32 0.0, %v1561
  %v1563 = vpop.f32.mrb[0].mxu0
  %v1564 = vadd.f32 0.0, %v1563
  %1565 = vmatprep.mubr.bf16.mxu0 0
  %1566 = vmatmul.mubr.bf16.gmra.mrb[0].mxu0 %v1521
  %v1567 = vpop.f32.mrb[0].mxu0
  %v1568 = vadd.f32 0.0, %v1567
  %v1569 = vpop.f32.mrb[0].mxu0
  %v1570 = vadd.f32 0.0, %v1569
  %v1571 = vpop.f32.mrb[0].mxu0
  %v1572 = vadd.f32 0.0, %v1571
  %v1573 = vpop.f32.mrb[0].mxu0
  %v1574 = vadd.f32 0.0, %v1573
  %1575 = vdwg.mxu0
  %1576 = vmatprep.subr.bf16.mxu0 0
  %1577 = vmatpush1.bf16.msra.mxu0 %v66
  %1578 = vmatprep.subr.bf16.mxu0 0
  %1579 = vmatpush1.bf16.msra.mxu0 0
  %1580 = vmatprep.subr.bf16.mxu0 0
  %1581 = vmatpush1.bf16.msra.mxu0 0
  %1582 = vmatprep.subr.bf16.mxu0 0
  %1583 = vmatpush1.bf16.msra.mxu0 0
  %1584 = vmatprep.subr.bf16.mxu0 0
  %1585 = vmatpush1.bf16.msra.mxu0 0
  %1586 = vmatprep.subr.bf16.mxu0 0
  %1587 = vmatpush1.bf16.msra.mxu0 0
  %1588 = vmatprep.subr.bf16.mxu0 0
  %1589 = vmatpush1.bf16.msra.mxu0 0
  %1590 = vmatprep.subr.bf16.mxu0 0
  %1591 = vmatpush1.bf16.msra.mxu0 0
  %1592 = vmatprep.subr.bf16.mxu0 0
  %1593 = vmatpush1.bf16.msra.mxu0 0
  %1594 = vmatprep.subr.bf16.mxu0 0
  %1595 = vmatpush1.bf16.msra.mxu0 0
  %1596 = vmatprep.subr.bf16.mxu0 0
  %1597 = vmatpush1.bf16.msra.mxu0 0
  %1598 = vmatprep.subr.bf16.mxu0 0
  %1599 = vmatpush1.bf16.msra.mxu0 0
  %1600 = vmatprep.subr.bf16.mxu0 0
  %1601 = vmatpush1.bf16.msra.mxu0 0
  %1602 = vmatprep.subr.bf16.mxu0 0
  %1603 = vmatpush1.bf16.msra.mxu0 0
  %1604 = vmatprep.subr.bf16.mxu0 0
  %1605 = vmatpush1.bf16.msra.mxu0 0
  %1606 = vmatprep.subr.bf16.mxu0 0
  %1607 = vmatpush1.bf16.msra.mxu0 0
  %1608 = vmatprep.mubr.bf16.mxu0 0
  %1609 = vmatmul.mubr.bf16.gmra.mrb[0].mxu0 %v1518
  %v1610 = vpop.f32.mrb[0].mxu0
  %v1611 = vadd.f32 0.0, %v1610
  %v1612 = vpop.f32.mrb[0].mxu0
  %v1613 = vpop.f32.mrb[0].mxu0
  %v1614 = vadd.f32 0.0, %v1613
  %v1615 = vpop.f32.mrb[0].mxu0
  %1616 = vmatprep.mubr.bf16.mxu0 0
  %1617 = vmatmul.mubr.bf16.gmra.mrb[0].mxu0 %v1521
  %v1618 = vpop.f32.mrb[0].mxu0
  %v1619 = vadd.f32 0.0, %v1618
  %v1620 = vpop.f32.mrb[0].mxu0
  %v1621 = vpop.f32.mrb[0].mxu0
  %v1622 = vadd.f32 0.0, %v1621
  %v1623 = vpop.f32.mrb[0].mxu0
  %1624 = vdwg.mxu0
  %v1625 = vld [vmem:[#allocation2] sm:$0xff]
  %v1626 = vld [vmem:[#allocation2 + $0x8] sm:$0xff]
  %v1627 = vld [vmem:[#allocation2 + $0x10] sm:$0xff]
  %v1628 = vld [vmem:[#allocation2 + $0x18] sm:$0xff]
  %v1629 = vld [vmem:[#allocation2 + $0x20] sm:$0xff]
  %v1630 = vld [vmem:[#allocation2 + $0x28] sm:$0xff]
  %v1631 = vld [vmem:[#allocation2 + $0x30] sm:$0xff]
  %v1632 = vld [vmem:[#allocation2 + $0x38] sm:$0xff]
  %v1633 = vld [vmem:[#allocation2 + $0x40] sm:$0xff]
  %v1634 = vld [vmem:[#allocation2 + $0x48] sm:$0xff]
  %v1635 = vld [vmem:[#allocation2 + $0x50] sm:$0xff]
  %v1636 = vld [vmem:[#allocation2 + $0x58] sm:$0xff]
  %1649 = vrot.lane.b32.xlu0 %v1558, 91
  %v1650 = vpop.permute.xlu0 %1649
  %1651 = vrot.lane.b32.xlu0 %v1560, 91
  %v1652 = vpop.permute.xlu0 %1651
  %1653 = vrot.lane.b32.xlu0 %v1611, 91
  %v1654 = vpop.permute.xlu0 %1653
  %1655 = vrot.lane.b32.xlu0 %v1562, 91
  %v1656 = vpop.permute.xlu0 %1655
  %1657 = vrot.lane.b32.xlu0 %v1564, 91
  %v1658 = vpop.permute.xlu0 %1657
  %1659 = vrot.lane.b32.xlu0 %v1614, 91
  %v1660 = vpop.permute.xlu0 %1659
  %1661 = vrot.lane.b32.xlu0 %v1568, 91
  %v1662 = vpop.permute.xlu0 %1661
  %1663 = vrot.lane.b32.xlu0 %v1570, 91
  %v1664 = vpop.permute.xlu0 %1663
  %1665 = vrot.lane.b32.xlu0 %v1619, 91
  %v1666 = vpop.permute.xlu0 %1665
  %1667 = vrot.lane.b32.xlu0 %v1572, 91
  %v1668 = vpop.permute.xlu0 %1667
  %1669 = vrot.lane.b32.xlu0 %v1574, 91
  %v1670 = vpop.permute.xlu0 %1669
  %1671 = vrot.lane.b32.xlu0 %v1622, 91
  %v1672 = vpop.permute.xlu0 %1671
  %vm1673 = vcmask 744448
  %v1674 = vsel %vm1673, %v1650, %v1652
  %v1675 = vsel %vm1673, %v1652, %v1654
  %v1676 = vsel %vm1673, %v1656, %v1658
  %v1677 = vsel %vm1673, %v1658, %v1660
  %v1678 = vsel %vm1673, %v1662, %v1664
  %v1679 = vsel %vm1673, %v1664, %v1666
  %v1680 = vsel %vm1673, %v1668, %v1670
  %v1681 = vsel %vm1673, %v1670, %v1672
  %v1694 = vadd.f32 %v1625, %v1674
  %v1695 = vadd.f32 %v1626, %v1675
  %v1696 = vadd.f32 %v1627, %v1654
  %v1697 = vadd.f32 %v1628, %v1676
  %v1698 = vadd.f32 %v1629, %v1677
  %v1699 = vadd.f32 %v1630, %v1660
  %v1700 = vadd.f32 %v1631, %v1678
  %v1701 = vadd.f32 %v1632, %v1679
  %v1702 = vadd.f32 %v1633, %v1666
  %v1703 = vadd.f32 %v1634, %v1680
  %v1704 = vadd.f32 %v1635, %v1681
  %v1705 = vadd.f32 %v1636, %v1672
  %1706 = vst [vmem:[#allocation2] sm:$0xff] %v1694
  %1707 = vst [vmem:[#allocation2 + $0x8] sm:$0xff] %v1695
  %1708 = vst.msk [vmem:[#allocation2 + $0x10] sm:$0xff] %vm1673, %v1696
  %1709 = vst [vmem:[#allocation2 + $0x18] sm:$0xff] %v1697
  %1710 = vst [vmem:[#allocation2 + $0x20] sm:$0xff] %v1698
  %1711 = vst.msk [vmem:[#allocation2 + $0x28] sm:$0xff] %vm1673, %v1699
  %1712 = vst [vmem:[#allocation2 + $0x30] sm:$0xff] %v1700
  %1713 = vst [vmem:[#allocation2 + $0x38] sm:$0xff] %v1701
  %1714 = vst.msk [vmem:[#allocation2 + $0x40] sm:$0xff] %vm1673, %v1702
  %1715 = vst [vmem:[#allocation2 + $0x48] sm:$0xff] %v1703
  %1716 = vst [vmem:[#allocation2 + $0x50] sm:$0xff] %v1704
  %1717 = vst.msk [vmem:[#allocation2 + $0x58] sm:$0xff] %vm1673, %v1705
  %s1718 = scalar_lea.vmem %s0, 128
  %v1719 = vld [vmem:[%s1718] sm:$0xf]
  %v1720 = vld [vmem:[%s1718 + $0x4] sm:$0xf]
  %v1721 = vld [vmem:[%s1718 + $0x8] sm:$0xf]
  %v1722 = vld [vmem:[%s1718 + $0xc] sm:$0xf]
  %v1727 = vunpack.c.l.b16 %v1719
  %v1728 = vunpack.c.l.b16 %v1720
  %v1729 = vunpack.c.l.b16 %v1721
  %v1730 = vunpack.c.l.b16 %v1722
  %v1731 = vpack.c.b16 %v1728, %v1727
  %v1732 = vpack.c.b16 %v1730, %v1729
  %v1734 = vsel %vm51, %v1731, 0
  %v1737 = vsel %vm51, %v1732, 0
  %1739 = vmatprep.subr.bf16.mxu0 %v63
  %1740 = vmatpush1.bf16.msra.mxu0 %v60
  %1741 = vmatprep.subr.bf16.mxu0 0
  %1742 = vmatpush1.bf16.msra.mxu0 0
  %1743 = vmatprep.subr.bf16.mxu0 0
  %1744 = vmatpush1.bf16.msra.mxu0 0
  %1745 = vmatprep.subr.bf16.mxu0 0
  %1746 = vmatpush1.bf16.msra.mxu0 0
  %1747 = vmatprep.subr.bf16.mxu0 0
  %1748 = vmatpush1.bf16.msra.mxu0 0
  %1749 = vmatprep.subr.bf16.mxu0 0
  %1750 = vmatpush1.bf16.msra.mxu0 0
  %1751 = vmatprep.subr.bf16.mxu0 0
  %1752 = vmatpush1.bf16.msra.mxu0 0
  %1753 = vmatprep.subr.bf16.mxu0 0
  %1754 = vmatpush1.bf16.msra.mxu0 0
  %1755 = vmatprep.subr.bf16.mxu0 0
  %1756 = vmatpush1.bf16.msra.mxu0 0
  %1757 = vmatprep.subr.bf16.mxu0 0
  %1758 = vmatpush1.bf16.msra.mxu0 0
  %1759 = vmatprep.subr.bf16.mxu0 0
  %1760 = vmatpush1.bf16.msra.mxu0 0
  %1761 = vmatprep.subr.bf16.mxu0 0
  %1762 = vmatpush1.bf16.msra.mxu0 0
  %1763 = vmatprep.subr.bf16.mxu0 0
  %1764 = vmatpush1.bf16.msra.mxu0 0
  %1765 = vmatprep.subr.bf16.mxu0 0
  %1766 = vmatpush1.bf16.msra.mxu0 0
  %1767 = vmatprep.subr.bf16.mxu0 0
  %1768 = vmatpush1.bf16.msra.mxu0 0
  %1769 = vmatprep.subr.bf16.mxu0 0
  %1770 = vmatpush1.bf16.msra.mxu0 0
  %1771 = vmatprep.mubr.bf16.mxu0 0
  %1772 = vmatmul.mubr.bf16.gmra.mrb[0].mxu0 %v1734
  %v1773 = vpop.f32.mrb[0].mxu0
  %v1774 = vadd.f32 0.0, %v1773
  %v1775 = vpop.f32.mrb[0].mxu0
  %v1776 = vadd.f32 0.0, %v1775
  %v1777 = vpop.f32.mrb[0].mxu0
  %v1778 = vadd.f32 0.0, %v1777
  %v1779 = vpop.f32.mrb[0].mxu0
  %v1780 = vadd.f32 0.0, %v1779
  %1781 = vmatprep.mubr.bf16.mxu0 0
  %1782 = vmatmul.mubr.bf16.gmra.mrb[0].mxu0 %v1737
  %v1783 = vpop.f32.mrb[0].mxu0
  %v1784 = vadd.f32 0.0, %v1783
  %v1785 = vpop.f32.mrb[0].mxu0
  %v1786 = vadd.f32 0.0, %v1785
  %v1787 = vpop.f32.mrb[0].mxu0
  %v1788 = vadd.f32 0.0, %v1787
  %v1789 = vpop.f32.mrb[0].mxu0
  %v1790 = vadd.f32 0.0, %v1789
  %1791 = vdwg.mxu0
  %1792 = vmatprep.subr.bf16.mxu0 0
  %1793 = vmatpush1.bf16.msra.mxu0 %v66
  %1794 = vmatprep.subr.bf16.mxu0 0
  %1795 = vmatpush1.bf16.msra.mxu0 0
  %1796 = vmatprep.subr.bf16.mxu0 0
  %1797 = vmatpush1.bf16.msra.mxu0 0
  %1798 = vmatprep.subr.bf16.mxu0 0
  %1799 = vmatpush1.bf16.msra.mxu0 0
  %1800 = vmatprep.subr.bf16.mxu0 0
  %1801 = vmatpush1.bf16.msra.mxu0 0
  %1802 = vmatprep.subr.bf16.mxu0 0
  %1803 = vmatpush1.bf16.msra.mxu0 0
  %1804 = vmatprep.subr.bf16.mxu0 0
  %1805 = vmatpush1.bf16.msra.mxu0 0
  %1806 = vmatprep.subr.bf16.mxu0 0
  %1807 = vmatpush1.bf16.msra.mxu0 0
  %1808 = vmatprep.subr.bf16.mxu0 0
  %1809 = vmatpush1.bf16.msra.mxu0 0
  %1810 = vmatprep.subr.bf16.mxu0 0
  %1811 = vmatpush1.bf16.msra.mxu0 0
  %1812 = vmatprep.subr.bf16.mxu0 0
  %1813 = vmatpush1.bf16.msra.mxu0 0
  %1814 = vmatprep.subr.bf16.mxu0 0
  %1815 = vmatpush1.bf16.msra.mxu0 0
  %1816 = vmatprep.subr.bf16.mxu0 0
  %1817 = vmatpush1.bf16.msra.mxu0 0
  %1818 = vmatprep.subr.bf16.mxu0 0
  %1819 = vmatpush1.bf16.msra.mxu0 0
  %1820 = vmatprep.subr.bf16.mxu0 0
  %1821 = vmatpush1.bf16.msra.mxu0 0
  %1822 = vmatprep.subr.bf16.mxu0 0
  %1823 = vmatpush1.bf16.msra.mxu0 0
  %1824 = vmatprep.mubr.bf16.mxu0 0
  %1825 = vmatmul.mubr.bf16.gmra.mrb[0].mxu0 %v1734
  %v1826 = vpop.f32.mrb[0].mxu0
  %v1827 = vadd.f32 0.0, %v1826
  %v1828 = vpop.f32.mrb[0].mxu0
  %v1829 = vpop.f32.mrb[0].mxu0
  %v1830 = vadd.f32 0.0, %v1829
  %v1831 = vpop.f32.mrb[0].mxu0
  %1832 = vmatprep.mubr.bf16.mxu0 0
  %1833 = vmatmul.mubr.bf16.gmra.mrb[0].mxu0 %v1737
  %v1834 = vpop.f32.mrb[0].mxu0
  %v1835 = vadd.f32 0.0, %v1834
  %v1836 = vpop.f32.mrb[0].mxu0
  %v1837 = vpop.f32.mrb[0].mxu0
  %v1838 = vadd.f32 0.0, %v1837
  %v1839 = vpop.f32.mrb[0].mxu0
  %1840 = vdwg.mxu0
  %v1841 = vld [vmem:[#allocation2] sm:$0xff]
  %v1842 = vld [vmem:[#allocation2 + $0x8] sm:$0xff]
  %v1843 = vld [vmem:[#allocation2 + $0x10] sm:$0xff]
  %v1844 = vld [vmem:[#allocation2 + $0x18] sm:$0xff]
  %v1845 = vld [vmem:[#allocation2 + $0x20] sm:$0xff]
  %v1846 = vld [vmem:[#allocation2 + $0x28] sm:$0xff]
  %v1847 = vld [vmem:[#allocation2 + $0x30] sm:$0xff]
  %v1848 = vld [vmem:[#allocation2 + $0x38] sm:$0xff]
  %v1849 = vld [vmem:[#allocation2 + $0x40] sm:$0xff]
  %v1850 = vld [vmem:[#allocation2 + $0x48] sm:$0xff]
  %v1851 = vld [vmem:[#allocation2 + $0x50] sm:$0xff]
  %v1852 = vld [vmem:[#allocation2 + $0x58] sm:$0xff]
  %1865 = vrot.lane.b32.xlu0 %v1774, 90
  %v1866 = vpop.permute.xlu0 %1865
  %1867 = vrot.lane.b32.xlu0 %v1776, 90
  %v1868 = vpop.permute.xlu0 %1867
  %1869 = vrot.lane.b32.xlu0 %v1827, 90
  %v1870 = vpop.permute.xlu0 %1869
  %1871 = vrot.lane.b32.xlu0 %v1778, 90
  %v1872 = vpop.permute.xlu0 %1871
  %1873 = vrot.lane.b32.xlu0 %v1780, 90
  %v1874 = vpop.permute.xlu0 %1873
  %1875 = vrot.lane.b32.xlu0 %v1830, 90
  %v1876 = vpop.permute.xlu0 %1875
  %1877 = vrot.lane.b32.xlu0 %v1784, 90
  %v1878 = vpop.permute.xlu0 %1877
  %1879 = vrot.lane.b32.xlu0 %v1786, 90
  %v1880 = vpop.permute.xlu0 %1879
  %1881 = vrot.lane.b32.xlu0 %v1835, 90
  %v1882 = vpop.permute.xlu0 %1881
  %1883 = vrot.lane.b32.xlu0 %v1788, 90
  %v1884 = vpop.permute.xlu0 %1883
  %1885 = vrot.lane.b32.xlu0 %v1790, 90
  %v1886 = vpop.permute.xlu0 %1885
  %1887 = vrot.lane.b32.xlu0 %v1838, 90
  %v1888 = vpop.permute.xlu0 %1887
  %vm1889 = vcmask 736256
  %v1890 = vsel %vm1889, %v1866, %v1868
  %v1891 = vsel %vm1889, %v1868, %v1870
  %v1892 = vsel %vm1889, %v1872, %v1874
  %v1893 = vsel %vm1889, %v1874, %v1876
  %v1894 = vsel %vm1889, %v1878, %v1880
  %v1895 = vsel %vm1889, %v1880, %v1882
  %v1896 = vsel %vm1889, %v1884, %v1886
  %v1897 = vsel %vm1889, %v1886, %v1888
  %v1910 = vadd.f32 %v1841, %v1890
  %v1911 = vadd.f32 %v1842, %v1891
  %v1912 = vadd.f32 %v1843, %v1870
  %v1913 = vadd.f32 %v1844, %v1892
  %v1914 = vadd.f32 %v1845, %v1893
  %v1915 = vadd.f32 %v1846, %v1876
  %v1916 = vadd.f32 %v1847, %v1894
  %v1917 = vadd.f32 %v1848, %v1895
  %v1918 = vadd.f32 %v1849, %v1882
  %v1919 = vadd.f32 %v1850, %v1896
  %v1920 = vadd.f32 %v1851, %v1897
  %v1921 = vadd.f32 %v1852, %v1888
  %1922 = vst [vmem:[#allocation2] sm:$0xff] %v1910
  %1923 = vst [vmem:[#allocation2 + $0x8] sm:$0xff] %v1911
  %1924 = vst.msk [vmem:[#allocation2 + $0x10] sm:$0xff] %vm1889, %v1912
  %1925 = vst [vmem:[#allocation2 + $0x18] sm:$0xff] %v1913
  %1926 = vst [vmem:[#allocation2 + $0x20] sm:$0xff] %v1914
  %1927 = vst.msk [vmem:[#allocation2 + $0x28] sm:$0xff] %vm1889, %v1915
  %1928 = vst [vmem:[#allocation2 + $0x30] sm:$0xff] %v1916
  %1929 = vst [vmem:[#allocation2 + $0x38] sm:$0xff] %v1917
  %1930 = vst.msk [vmem:[#allocation2 + $0x40] sm:$0xff] %vm1889, %v1918
  %1931 = vst [vmem:[#allocation2 + $0x48] sm:$0xff] %v1919
  %1932 = vst [vmem:[#allocation2 + $0x50] sm:$0xff] %v1920
  %1933 = vst.msk [vmem:[#allocation2 + $0x58] sm:$0xff] %vm1889, %v1921
  %v1934 = vld [vmem:[#allocation2] sm:$0xff]
  %v1935 = vld [vmem:[#allocation2 + $0x8] sm:$0xff]
  %v1936 = vld [vmem:[#allocation2 + $0x10] sm:$0xff]
  %v1937 = vld [vmem:[#allocation2 + $0x18] sm:$0xff]
  %v1938 = vld [vmem:[#allocation2 + $0x20] sm:$0xff]
  %v1939 = vld [vmem:[#allocation2 + $0x28] sm:$0xff]
  %v1940 = vld [vmem:[#allocation2 + $0x30] sm:$0xff]
  %v1941 = vld [vmem:[#allocation2 + $0x38] sm:$0xff]
  %v1942 = vld [vmem:[#allocation2 + $0x40] sm:$0xff]
  %v1943 = vld [vmem:[#allocation2 + $0x48] sm:$0xff]
  %v1944 = vld [vmem:[#allocation2 + $0x50] sm:$0xff]
  %v1945 = vld [vmem:[#allocation2 + $0x58] sm:$0xff]
  %v1946 = vld [vmem:[%s1] sm:$0xff]
  %v1947 = vld [vmem:[%s1 + $0x8] sm:$0xff]
  %v1948 = vld [vmem:[%s1 + $0x10] sm:$0xff]
  %v1949 = vld [vmem:[%s1 + $0x18] sm:$0xff]
  %1951 = vset.pattern.permute.xlu0 0
  %1952 = vperm.xlu0 %1951, %v1946
  %v1953 = vpop.permute.xlu0 %1952
  %1956 = vset.pattern.permute.xlu0 0
  %1957 = vperm.xlu0 %1956, %v1947
  %v1958 = vpop.permute.xlu0 %1957
  %1961 = vset.pattern.permute.xlu0 0
  %1962 = vperm.xlu0 %1961, %v1948
  %v1963 = vpop.permute.xlu0 %1962
  %1966 = vset.pattern.permute.xlu0 0
  %1967 = vperm.xlu0 %1966, %v1949
  %v1968 = vpop.permute.xlu0 %1967
  %v1970 = vadd.f32 %v1934, %v1953
  %v1971 = vadd.f32 %v1935, %v1953
  %v1972 = vadd.f32 %v1936, %v1953
  %v1973 = vadd.f32 %v1937, %v1958
  %v1974 = vadd.f32 %v1938, %v1958
  %v1975 = vadd.f32 %v1939, %v1958
  %v1976 = vadd.f32 %v1940, %v1963
  %v1977 = vadd.f32 %v1941, %v1963
  %v1978 = vadd.f32 %v1942, %v1963
  %v1979 = vadd.f32 %v1943, %v1968
  %v1980 = vadd.f32 %v1944, %v1968
  %v1981 = vadd.f32 %v1945, %v1968
  %vm1982 = vcmp.gt.f32.partialorder %v1970, 0.0
  %vm1983 = vcmp.gt.f32.partialorder %v1971, 0.0
  %vm1984 = vcmp.gt.f32.partialorder %v1972, 0.0
  %vm1985 = vcmp.gt.f32.partialorder %v1973, 0.0
  %vm1986 = vcmp.gt.f32.partialorder %v1974, 0.0
  %vm1987 = vcmp.gt.f32.partialorder %v1975, 0.0
  %vm1988 = vcmp.gt.f32.partialorder %v1976, 0.0
  %vm1989 = vcmp.gt.f32.partialorder %v1977, 0.0
  %vm1990 = vcmp.gt.f32.partialorder %v1978, 0.0
  %vm1991 = vcmp.gt.f32.partialorder %v1979, 0.0
  %vm1992 = vcmp.gt.f32.partialorder %v1980, 0.0
  %vm1993 = vcmp.gt.f32.partialorder %v1981, 0.0
  %v1994 = vmul.f32 %v1970, 0.01
  %v1995 = vmul.f32 %v1971, 0.01
  %v1996 = vmul.f32 %v1972, 0.01
  %v1997 = vmul.f32 %v1973, 0.01
  %v1998 = vmul.f32 %v1974, 0.01
  %v1999 = vmul.f32 %v1975, 0.01
  %v2000 = vmul.f32 %v1976, 0.01
  %v2001 = vmul.f32 %v1977, 0.01
  %v2002 = vmul.f32 %v1978, 0.01
  %v2003 = vmul.f32 %v1979, 0.01
  %v2004 = vmul.f32 %v1980, 0.01
  %v2005 = vmul.f32 %v1981, 0.01
  %v2006 = vsel %vm1982, %v1970, %v1994
  %v2007 = vsel %vm1983, %v1971, %v1995
  %v2008 = vsel %vm1984, %v1972, %v1996
  %v2009 = vsel %vm1985, %v1973, %v1997
  %v2010 = vsel %vm1986, %v1974, %v1998
  %v2011 = vsel %vm1987, %v1975, %v1999
  %v2012 = vsel %vm1988, %v1976, %v2000
  %v2013 = vsel %vm1989, %v1977, %v2001
  %v2014 = vsel %vm1990, %v1978, %v2002
  %v2015 = vsel %vm1991, %v1979, %v2003
  %v2016 = vsel %vm1992, %v1980, %v2004
  %v2017 = vsel %vm1993, %v1981, %v2005
  %v2018 = vpack.c.bf16 %v2009, %v2006
  %v2019 = vpack.c.bf16 %v2010, %v2007
  %v2020 = vpack.c.bf16 %v2011, %v2008
  %v2021 = vpack.c.bf16 %v2015, %v2012
  %v2022 = vpack.c.bf16 %v2016, %v2013
  %v2023 = vpack.c.bf16 %v2017, %v2014
  %v2030 = vunpack.c.l.b16 %v2018
  %v2031 = vunpack.c.l.b16 %v2019
  %v2032 = vunpack.c.l.b16 %v2020
  %v2033 = vunpack.c.h.b16 %v2018
  %v2034 = vunpack.c.h.b16 %v2019
  %v2035 = vunpack.c.h.b16 %v2020
  %v2036 = vunpack.c.l.b16 %v2021
  %v2037 = vunpack.c.l.b16 %v2022
  %v2038 = vunpack.c.l.b16 %v2023
  %v2039 = vunpack.c.h.b16 %v2021
  %v2040 = vunpack.c.h.b16 %v2022
  %v2041 = vunpack.c.h.b16 %v2023
  %v2042 = vpack.c.b16 %v2031, %v2030
  %v2043 = vpack.c.b16 %v2032, %v2032
  %v2044 = vpack.c.b16 %v2034, %v2033
  %v2045 = vpack.c.b16 %v2035, %v2035
  %v2046 = vpack.c.b16 %v2037, %v2036
  %v2047 = vpack.c.b16 %v2038, %v2038
  %v2048 = vpack.c.b16 %v2040, %v2039
  %v2049 = vpack.c.b16 %v2041, %v2041
  %2058 = vst [vmem:[%s3] sm:$0xff] %v2042
  %2059 = vst [vmem:[%s3 + $0x8] sm:$0xf] %v2043
  %2060 = vst [vmem:[%s3 + $0xc] sm:$0xff] %v2044
  %2061 = vst [vmem:[%s3 + $0x14] sm:$0xf] %v2045
  %2062 = vst [vmem:[%s3 + $0x18] sm:$0xff] %v2046
  %2063 = vst [vmem:[%s3 + $0x20] sm:$0xf] %v2047
  %2064 = vst [vmem:[%s3 + $0x24] sm:$0xff] %v2048
  %2065 = vst [vmem:[%s3 + $0x2c] sm:$0xf] %v2049
  %s2066 = scalar_lea.vmem %s2, 12
  %v2067 = vld [vmem:[%s2066] sm:$0xff]
  %v2068 = vld [vmem:[%s2066 + $0x8] sm:$0xf]
  %2069 = vst [vmem:[#allocation2] sm:$0xff] 0.0
  %2070 = vst [vmem:[#allocation2 + $0x8] sm:$0xff] 0.0
  %2071 = vst [vmem:[#allocation2 + $0x10] sm:$0xff] 0.0
  %2072 = vst [vmem:[#allocation2 + $0x18] sm:$0xff] 0.0
  %2073 = vst [vmem:[#allocation2 + $0x20] sm:$0xff] 0.0
  %2074 = vst [vmem:[#allocation2 + $0x28] sm:$0xff] 0.0
  %2075 = vst [vmem:[#allocation2 + $0x30] sm:$0xff] 0.0
  %2076 = vst [vmem:[#allocation2 + $0x38] sm:$0xff] 0.0
  %2077 = vst [vmem:[#allocation2 + $0x40] sm:$0xff] 0.0
  %2078 = vst [vmem:[#allocation2 + $0x48] sm:$0xff] 0.0
  %2079 = vst [vmem:[#allocation2 + $0x50] sm:$0xff] 0.0
  %2080 = vst [vmem:[#allocation2 + $0x58] sm:$0xff] 0.0
  %v2081 = vld [vmem:[%s0] sm:$0xf]
  %v2082 = vld [vmem:[%s0 + $0x4] sm:$0xf]
  %v2083 = vld [vmem:[%s0 + $0x8] sm:$0xf]
  %v2084 = vld [vmem:[%s0 + $0xc] sm:$0xf]
  %v2089 = vunpack.c.l.b16 %v2081
  %v2090 = vunpack.c.l.b16 %v2082
  %v2091 = vunpack.c.l.b16 %v2083
  %v2092 = vunpack.c.l.b16 %v2084
  %v2093 = vpack.c.b16 %v2090, %v2089
  %v2094 = vpack.c.b16 %v2092, %v2091
  %v2097 = vunpack.c.l.b16 %v2067
  %v2098 = vunpack.c.h.b16 %v2067
  %v2099 = vunpack.c.l.b16 %v2068
  %v2100 = vpack.c.b16 %v2097, %v2097
  %v2101 = vpack.c.b16 %v2098, %v2098
  %v2102 = vpack.c.b16 %v2099, %v2099
  %v2104 = vsel %vm51, %v2093, 0
  %v2107 = vsel %vm51, %v2094, 0
  %v2110 = vsel %vm58, %v2100, 0
  %v2113 = vsel %vm58, %v2101, 0
  %v2116 = vsel %vm58, %v2102, 0
  %2118 = vmatprep.subr.bf16.mxu0 %v2113
  %2119 = vmatpush1.bf16.msra.mxu0 %v2110
  %2120 = vmatprep.subr.bf16.mxu0 0
  %2121 = vmatpush1.bf16.msra.mxu0 0
  %2122 = vmatprep.subr.bf16.mxu0 0
  %2123 = vmatpush1.bf16.msra.mxu0 0
  %2124 = vmatprep.subr.bf16.mxu0 0
  %2125 = vmatpush1.bf16.msra.mxu0 0
  %2126 = vmatprep.subr.bf16.mxu0 0
  %2127 = vmatpush1.bf16.msra.mxu0 0
  %2128 = vmatprep.subr.bf16.mxu0 0
  %2129 = vmatpush1.bf16.msra.mxu0 0
  %2130 = vmatprep.subr.bf16.mxu0 0
  %2131 = vmatpush1.bf16.msra.mxu0 0
  %2132 = vmatprep.subr.bf16.mxu0 0
  %2133 = vmatpush1.bf16.msra.mxu0 0
  %2134 = vmatprep.subr.bf16.mxu0 0
  %2135 = vmatpush1.bf16.msra.mxu0 0
  %2136 = vmatprep.subr.bf16.mxu0 0
  %2137 = vmatpush1.bf16.msra.mxu0 0
  %2138 = vmatprep.subr.bf16.mxu0 0
  %2139 = vmatpush1.bf16.msra.mxu0 0
  %2140 = vmatprep.subr.bf16.mxu0 0
  %2141 = vmatpush1.bf16.msra.mxu0 0
  %2142 = vmatprep.subr.bf16.mxu0 0
  %2143 = vmatpush1.bf16.msra.mxu0 0
  %2144 = vmatprep.subr.bf16.mxu0 0
  %2145 = vmatpush1.bf16.msra.mxu0 0
  %2146 = vmatprep.subr.bf16.mxu0 0
  %2147 = vmatpush1.bf16.msra.mxu0 0
  %2148 = vmatprep.subr.bf16.mxu0 0
  %2149 = vmatpush1.bf16.msra.mxu0 0
  %2150 = vmatprep.mubr.bf16.mxu0 0
  %2151 = vmatmul.mubr.bf16.gmra.mrb[0].mxu0 %v2104
  %v2152 = vpop.f32.mrb[0].mxu0
  %v2153 = vadd.f32 0.0, %v2152
  %v2154 = vpop.f32.mrb[0].mxu0
  %v2155 = vadd.f32 0.0, %v2154
  %v2156 = vpop.f32.mrb[0].mxu0
  %v2157 = vadd.f32 0.0, %v2156
  %v2158 = vpop.f32.mrb[0].mxu0
  %v2159 = vadd.f32 0.0, %v2158
  %2160 = vmatprep.mubr.bf16.mxu0 0
  %2161 = vmatmul.mubr.bf16.gmra.mrb[0].mxu0 %v2107
  %v2162 = vpop.f32.mrb[0].mxu0
  %v2163 = vadd.f32 0.0, %v2162
  %v2164 = vpop.f32.mrb[0].mxu0
  %v2165 = vadd.f32 0.0, %v2164
  %v2166 = vpop.f32.mrb[0].mxu0
  %v2167 = vadd.f32 0.0, %v2166
  %v2168 = vpop.f32.mrb[0].mxu0
  %v2169 = vadd.f32 0.0, %v2168
  %2170 = vdwg.mxu0
  %2171 = vmatprep.subr.bf16.mxu0 0
  %2172 = vmatpush1.bf16.msra.mxu0 %v2116
  %2173 = vmatprep.subr.bf16.mxu0 0
  %2174 = vmatpush1.bf16.msra.mxu0 0
  %2175 = vmatprep.subr.bf16.mxu0 0
  %2176 = vmatpush1.bf16.msra.mxu0 0
  %2177 = vmatprep.subr.bf16.mxu0 0
  %2178 = vmatpush1.bf16.msra.mxu0 0
  %2179 = vmatprep.subr.bf16.mxu0 0
  %2180 = vmatpush1.bf16.msra.mxu0 0
  %2181 = vmatprep.subr.bf16.mxu0 0
  %2182 = vmatpush1.bf16.msra.mxu0 0
  %2183 = vmatprep.subr.bf16.mxu0 0
  %2184 = vmatpush1.bf16.msra.mxu0 0
  %2185 = vmatprep.subr.bf16.mxu0 0
  %2186 = vmatpush1.bf16.msra.mxu0 0
  %2187 = vmatprep.subr.bf16.mxu0 0
  %2188 = vmatpush1.bf16.msra.mxu0 0
  %2189 = vmatprep.subr.bf16.mxu0 0
  %2190 = vmatpush1.bf16.msra.mxu0 0
  %2191 = vmatprep.subr.bf16.mxu0 0
  %2192 = vmatpush1.bf16.msra.mxu0 0
  %2193 = vmatprep.subr.bf16.mxu0 0
  %2194 = vmatpush1.bf16.msra.mxu0 0
  %2195 = vmatprep.subr.bf16.mxu0 0
  %2196 = vmatpush1.bf16.msra.mxu0 0
  %2197 = vmatprep.subr.bf16.mxu0 0
  %2198 = vmatpush1.bf16.msra.mxu0 0
  %2199 = vmatprep.subr.bf16.mxu0 0
  %2200 = vmatpush1.bf16.msra.mxu0 0
  %2201 = vmatprep.subr.bf16.mxu0 0
  %2202 = vmatpush1.bf16.msra.mxu0 0
  %2203 = vmatprep.mubr.bf16.mxu0 0
  %2204 = vmatmul.mubr.bf16.gmra.mrb[0].mxu0 %v2104
  %v2205 = vpop.f32.mrb[0].mxu0
  %v2206 = vadd.f32 0.0, %v2205
  %v2207 = vpop.f32.mrb[0].mxu0
  %v2208 = vpop.f32.mrb[0].mxu0
  %v2209 = vadd.f32 0.0, %v2208
  %v2210 = vpop.f32.mrb[0].mxu0
  %2211 = vmatprep.mubr.bf16.mxu0 0
  %2212 = vmatmul.mubr.bf16.gmra.mrb[0].mxu0 %v2107
  %v2213 = vpop.f32.mrb[0].mxu0
  %v2214 = vadd.f32 0.0, %v2213
  %v2215 = vpop.f32.mrb[0].mxu0
  %v2216 = vpop.f32.mrb[0].mxu0
  %v2217 = vadd.f32 0.0, %v2216
  %v2218 = vpop.f32.mrb[0].mxu0
  %2219 = vdwg.mxu0
  %v2220 = vld [vmem:[#allocation2] sm:$0xff]
  %v2221 = vld [vmem:[#allocation2 + $0x8] sm:$0xff]
  %v2222 = vld [vmem:[#allocation2 + $0x10] sm:$0xff]
  %v2223 = vld [vmem:[#allocation2 + $0x18] sm:$0xff]
  %v2224 = vld [vmem:[#allocation2 + $0x20] sm:$0xff]
  %v2225 = vld [vmem:[#allocation2 + $0x28] sm:$0xff]
  %v2226 = vld [vmem:[#allocation2 + $0x30] sm:$0xff]
  %v2227 = vld [vmem:[#allocation2 + $0x38] sm:$0xff]
  %v2228 = vld [vmem:[#allocation2 + $0x40] sm:$0xff]
  %v2229 = vld [vmem:[#allocation2 + $0x48] sm:$0xff]
  %v2230 = vld [vmem:[#allocation2 + $0x50] sm:$0xff]
  %v2231 = vld [vmem:[#allocation2 + $0x58] sm:$0xff]
  %v2232 = vadd.f32 %v2220, %v2153
  %v2233 = vadd.f32 %v2221, %v2155
  %v2234 = vadd.f32 %v2222, %v2206
  %v2235 = vadd.f32 %v2223, %v2157
  %v2236 = vadd.f32 %v2224, %v2159
  %v2237 = vadd.f32 %v2225, %v2209
  %v2238 = vadd.f32 %v2226, %v2163
  %v2239 = vadd.f32 %v2227, %v2165
  %v2240 = vadd.f32 %v2228, %v2214
  %v2241 = vadd.f32 %v2229, %v2167
  %v2242 = vadd.f32 %v2230, %v2169
  %v2243 = vadd.f32 %v2231, %v2217
  %2244 = vst [vmem:[#allocation2] sm:$0xff] %v2232
  %2245 = vst [vmem:[#allocation2 + $0x8] sm:$0xff] %v2233
  %2246 = vst [vmem:[#allocation2 + $0x10] sm:$0xff] %v2234
  %2247 = vst [vmem:[#allocation2 + $0x18] sm:$0xff] %v2235
  %2248 = vst [vmem:[#allocation2 + $0x20] sm:$0xff] %v2236
  %2249 = vst [vmem:[#allocation2 + $0x28] sm:$0xff] %v2237
  %2250 = vst [vmem:[#allocation2 + $0x30] sm:$0xff] %v2238
  %2251 = vst [vmem:[#allocation2 + $0x38] sm:$0xff] %v2239
  %2252 = vst [vmem:[#allocation2 + $0x40] sm:$0xff] %v2240
  %2253 = vst [vmem:[#allocation2 + $0x48] sm:$0xff] %v2241
  %2254 = vst [vmem:[#allocation2 + $0x50] sm:$0xff] %v2242
  %2255 = vst [vmem:[#allocation2 + $0x58] sm:$0xff] %v2243
  %v2256 = vld [vmem:[%s206] sm:$0xf]
  %v2257 = vld [vmem:[%s206 + $0x4] sm:$0xf]
  %v2258 = vld [vmem:[%s206 + $0x8] sm:$0xf]
  %v2259 = vld [vmem:[%s206 + $0xc] sm:$0xf]
  %v2264 = vunpack.c.l.b16 %v2256
  %v2265 = vunpack.c.l.b16 %v2257
  %v2266 = vunpack.c.l.b16 %v2258
  %v2267 = vunpack.c.l.b16 %v2259
  %v2268 = vpack.c.b16 %v2265, %v2264
  %v2269 = vpack.c.b16 %v2267, %v2266
  %v2271 = vsel %vm51, %v2268, 0
  %v2274 = vsel %vm51, %v2269, 0
  %2276 = vmatprep.subr.bf16.mxu0 %v2113
  %2277 = vmatpush1.bf16.msra.mxu0 %v2110
  %2278 = vmatprep.subr.bf16.mxu0 0
  %2279 = vmatpush1.bf16.msra.mxu0 0
  %2280 = vmatprep.subr.bf16.mxu0 0
  %2281 = vmatpush1.bf16.msra.mxu0 0
  %2282 = vmatprep.subr.bf16.mxu0 0
  %2283 = vmatpush1.bf16.msra.mxu0 0
  %2284 = vmatprep.subr.bf16.mxu0 0
  %2285 = vmatpush1.bf16.msra.mxu0 0
  %2286 = vmatprep.subr.bf16.mxu0 0
  %2287 = vmatpush1.bf16.msra.mxu0 0
  %2288 = vmatprep.subr.bf16.mxu0 0
  %2289 = vmatpush1.bf16.msra.mxu0 0
  %2290 = vmatprep.subr.bf16.mxu0 0
  %2291 = vmatpush1.bf16.msra.mxu0 0
  %2292 = vmatprep.subr.bf16.mxu0 0
  %2293 = vmatpush1.bf16.msra.mxu0 0
  %2294 = vmatprep.subr.bf16.mxu0 0
  %2295 = vmatpush1.bf16.msra.mxu0 0
  %2296 = vmatprep.subr.bf16.mxu0 0
  %2297 = vmatpush1.bf16.msra.mxu0 0
  %2298 = vmatprep.subr.bf16.mxu0 0
  %2299 = vmatpush1.bf16.msra.mxu0 0
  %2300 = vmatprep.subr.bf16.mxu0 0
  %2301 = vmatpush1.bf16.msra.mxu0 0
  %2302 = vmatprep.subr.bf16.mxu0 0
  %2303 = vmatpush1.bf16.msra.mxu0 0
  %2304 = vmatprep.subr.bf16.mxu0 0
  %2305 = vmatpush1.bf16.msra.mxu0 0
  %2306 = vmatprep.subr.bf16.mxu0 0
  %2307 = vmatpush1.bf16.msra.mxu0 0
  %2308 = vmatprep.mubr.bf16.mxu0 0
  %2309 = vmatmul.mubr.bf16.gmra.mrb[0].mxu0 %v2271
  %v2310 = vpop.f32.mrb[0].mxu0
  %v2311 = vadd.f32 0.0, %v2310
  %v2312 = vpop.f32.mrb[0].mxu0
  %v2313 = vadd.f32 0.0, %v2312
  %v2314 = vpop.f32.mrb[0].mxu0
  %v2315 = vadd.f32 0.0, %v2314
  %v2316 = vpop.f32.mrb[0].mxu0
  %v2317 = vadd.f32 0.0, %v2316
  %2318 = vmatprep.mubr.bf16.mxu0 0
  %2319 = vmatmul.mubr.bf16.gmra.mrb[0].mxu0 %v2274
  %v2320 = vpop.f32.mrb[0].mxu0
  %v2321 = vadd.f32 0.0, %v2320
  %v2322 = vpop.f32.mrb[0].mxu0
  %v2323 = vadd.f32 0.0, %v2322
  %v2324 = vpop.f32.mrb[0].mxu0
  %v2325 = vadd.f32 0.0, %v2324
  %v2326 = vpop.f32.mrb[0].mxu0
  %v2327 = vadd.f32 0.0, %v2326
  %2328 = vdwg.mxu0
  %2329 = vmatprep.subr.bf16.mxu0 0
  %2330 = vmatpush1.bf16.msra.mxu0 %v2116
  %2331 = vmatprep.subr.bf16.mxu0 0
  %2332 = vmatpush1.bf16.msra.mxu0 0
  %2333 = vmatprep.subr.bf16.mxu0 0
  %2334 = vmatpush1.bf16.msra.mxu0 0
  %2335 = vmatprep.subr.bf16.mxu0 0
  %2336 = vmatpush1.bf16.msra.mxu0 0
  %2337 = vmatprep.subr.bf16.mxu0 0
  %2338 = vmatpush1.bf16.msra.mxu0 0
  %2339 = vmatprep.subr.bf16.mxu0 0
  %2340 = vmatpush1.bf16.msra.mxu0 0
  %2341 = vmatprep.subr.bf16.mxu0 0
  %2342 = vmatpush1.bf16.msra.mxu0 0
  %2343 = vmatprep.subr.bf16.mxu0 0
  %2344 = vmatpush1.bf16.msra.mxu0 0
  %2345 = vmatprep.subr.bf16.mxu0 0
  %2346 = vmatpush1.bf16.msra.mxu0 0
  %2347 = vmatprep.subr.bf16.mxu0 0
  %2348 = vmatpush1.bf16.msra.mxu0 0
  %2349 = vmatprep.subr.bf16.mxu0 0
  %2350 = vmatpush1.bf16.msra.mxu0 0
  %2351 = vmatprep.subr.bf16.mxu0 0
  %2352 = vmatpush1.bf16.msra.mxu0 0
  %2353 = vmatprep.subr.bf16.mxu0 0
  %2354 = vmatpush1.bf16.msra.mxu0 0
  %2355 = vmatprep.subr.bf16.mxu0 0
  %2356 = vmatpush1.bf16.msra.mxu0 0
  %2357 = vmatprep.subr.bf16.mxu0 0
  %2358 = vmatpush1.bf16.msra.mxu0 0
  %2359 = vmatprep.subr.bf16.mxu0 0
  %2360 = vmatpush1.bf16.msra.mxu0 0
  %2361 = vmatprep.mubr.bf16.mxu0 0
  %2362 = vmatmul.mubr.bf16.gmra.mrb[0].mxu0 %v2271
  %v2363 = vpop.f32.mrb[0].mxu0
  %v2364 = vadd.f32 0.0, %v2363
  %v2365 = vpop.f32.mrb[0].mxu0
  %v2366 = vpop.f32.mrb[0].mxu0
  %v2367 = vadd.f32 0.0, %v2366
  %v2368 = vpop.f32.mrb[0].mxu0
  %2369 = vmatprep.mubr.bf16.mxu0 0
  %2370 = vmatmul.mubr.bf16.gmra.mrb[0].mxu0 %v2274
  %v2371 = vpop.f32.mrb[0].mxu0
  %v2372 = vadd.f32 0.0, %v2371
  %v2373 = vpop.f32.mrb[0].mxu0
  %v2374 = vpop.f32.mrb[0].mxu0
  %v2375 = vadd.f32 0.0, %v2374
  %v2376 = vpop.f32.mrb[0].mxu0
  %2377 = vdwg.mxu0
  %v2378 = vld [vmem:[#allocation2] sm:$0xff]
  %v2379 = vld [vmem:[#allocation2 + $0x8] sm:$0xff]
  %v2380 = vld [vmem:[#allocation2 + $0x10] sm:$0xff]
  %v2381 = vld [vmem:[#allocation2 + $0x18] sm:$0xff]
  %v2382 = vld [vmem:[#allocation2 + $0x20] sm:$0xff]
  %v2383 = vld [vmem:[#allocation2 + $0x28] sm:$0xff]
  %v2384 = vld [vmem:[#allocation2 + $0x30] sm:$0xff]
  %v2385 = vld [vmem:[#allocation2 + $0x38] sm:$0xff]
  %v2386 = vld [vmem:[#allocation2 + $0x40] sm:$0xff]
  %v2387 = vld [vmem:[#allocation2 + $0x48] sm:$0xff]
  %v2388 = vld [vmem:[#allocation2 + $0x50] sm:$0xff]
  %v2389 = vld [vmem:[#allocation2 + $0x58] sm:$0xff]
  %2402 = vrot.lane.b32.xlu0 %v2311, 127
  %v2403 = vpop.permute.xlu0 %2402
  %2404 = vrot.lane.b32.xlu0 %v2313, 127
  %v2405 = vpop.permute.xlu0 %2404
  %2406 = vrot.lane.b32.xlu0 %v2364, 127
  %v2407 = vpop.permute.xlu0 %2406
  %2408 = vrot.lane.b32.xlu0 %v2315, 127
  %v2409 = vpop.permute.xlu0 %2408
  %2410 = vrot.lane.b32.xlu0 %v2317, 127
  %v2411 = vpop.permute.xlu0 %2410
  %2412 = vrot.lane.b32.xlu0 %v2367, 127
  %v2413 = vpop.permute.xlu0 %2412
  %2414 = vrot.lane.b32.xlu0 %v2321, 127
  %v2415 = vpop.permute.xlu0 %2414
  %2416 = vrot.lane.b32.xlu0 %v2323, 127
  %v2417 = vpop.permute.xlu0 %2416
  %2418 = vrot.lane.b32.xlu0 %v2372, 127
  %v2419 = vpop.permute.xlu0 %2418
  %2420 = vrot.lane.b32.xlu0 %v2325, 127
  %v2421 = vpop.permute.xlu0 %2420
  %2422 = vrot.lane.b32.xlu0 %v2327, 127
  %v2423 = vpop.permute.xlu0 %2422
  %2424 = vrot.lane.b32.xlu0 %v2375, 127
  %v2425 = vpop.permute.xlu0 %2424
  %v2426 = vsel %vm377, %v2403, %v2405
  %v2427 = vsel %vm377, %v2405, %v2407
  %v2428 = vsel %vm377, %v2409, %v2411
  %v2429 = vsel %vm377, %v2411, %v2413
  %v2430 = vsel %vm377, %v2415, %v2417
  %v2431 = vsel %vm377, %v2417, %v2419
  %v2432 = vsel %vm377, %v2421, %v2423
  %v2433 = vsel %vm377, %v2423, %v2425
  %v2446 = vadd.f32 %v2378, %v2426
  %v2447 = vadd.f32 %v2379, %v2427
  %v2448 = vadd.f32 %v2380, %v2407
  %v2449 = vadd.f32 %v2381, %v2428
  %v2450 = vadd.f32 %v2382, %v2429
  %v2451 = vadd.f32 %v2383, %v2413
  %v2452 = vadd.f32 %v2384, %v2430
  %v2453 = vadd.f32 %v2385, %v2431
  %v2454 = vadd.f32 %v2386, %v2419
  %v2455 = vadd.f32 %v2387, %v2432
  %v2456 = vadd.f32 %v2388, %v2433
  %v2457 = vadd.f32 %v2389, %v2425
  %2458 = vst [vmem:[#allocation2] sm:$0xff] %v2446
  %2459 = vst [vmem:[#allocation2 + $0x8] sm:$0xff] %v2447
  %2460 = vst.msk [vmem:[#allocation2 + $0x10] sm:$0xff] %vm377, %v2448
  %2461 = vst [vmem:[#allocation2 + $0x18] sm:$0xff] %v2449
  %2462 = vst [vmem:[#allocation2 + $0x20] sm:$0xff] %v2450
  %2463 = vst.msk [vmem:[#allocation2 + $0x28] sm:$0xff] %vm377, %v2451
  %2464 = vst [vmem:[#allocation2 + $0x30] sm:$0xff] %v2452
  %2465 = vst [vmem:[#allocation2 + $0x38] sm:$0xff] %v2453
  %2466 = vst.msk [vmem:[#allocation2 + $0x40] sm:$0xff] %vm377, %v2454
  %2467 = vst [vmem:[#allocation2 + $0x48] sm:$0xff] %v2455
  %2468 = vst [vmem:[#allocation2 + $0x50] sm:$0xff] %v2456
  %2469 = vst.msk [vmem:[#allocation2 + $0x58] sm:$0xff] %vm377, %v2457
  %v2470 = vld [vmem:[%s422] sm:$0xf]
  %v2471 = vld [vmem:[%s422 + $0x4] sm:$0xf]
  %v2472 = vld [vmem:[%s422 + $0x8] sm:$0xf]
  %v2473 = vld [vmem:[%s422 + $0xc] sm:$0xf]
  %v2478 = vunpack.c.l.b16 %v2470
  %v2479 = vunpack.c.l.b16 %v2471
  %v2480 = vunpack.c.l.b16 %v2472
  %v2481 = vunpack.c.l.b16 %v2473
  %v2482 = vpack.c.b16 %v2479, %v2478
  %v2483 = vpack.c.b16 %v2481, %v2480
  %v2485 = vsel %vm51, %v2482, 0
  %v2488 = vsel %vm51, %v2483, 0
  %2490 = vmatprep.subr.bf16.mxu0 %v2113
  %2491 = vmatpush1.bf16.msra.mxu0 %v2110
  %2492 = vmatprep.subr.bf16.mxu0 0
  %2493 = vmatpush1.bf16.msra.mxu0 0
  %2494 = vmatprep.subr.bf16.mxu0 0
  %2495 = vmatpush1.bf16.msra.mxu0 0
  %2496 = vmatprep.subr.bf16.mxu0 0
  %2497 = vmatpush1.bf16.msra.mxu0 0
  %2498 = vmatprep.subr.bf16.mxu0 0
  %2499 = vmatpush1.bf16.msra.mxu0 0
  %2500 = vmatprep.subr.bf16.mxu0 0
  %2501 = vmatpush1.bf16.msra.mxu0 0
  %2502 = vmatprep.subr.bf16.mxu0 0
  %2503 = vmatpush1.bf16.msra.mxu0 0
  %2504 = vmatprep.subr.bf16.mxu0 0
  %2505 = vmatpush1.bf16.msra.mxu0 0
  %2506 = vmatprep.subr.bf16.mxu0 0
  %2507 = vmatpush1.bf16.msra.mxu0 0
  %2508 = vmatprep.subr.bf16.mxu0 0
  %2509 = vmatpush1.bf16.msra.mxu0 0
  %2510 = vmatprep.subr.bf16.mxu0 0
  %2511 = vmatpush1.bf16.msra.mxu0 0
  %2512 = vmatprep.subr.bf16.mxu0 0
  %2513 = vmatpush1.bf16.msra.mxu0 0
  %2514 = vmatprep.subr.bf16.mxu0 0
  %2515 = vmatpush1.bf16.msra.mxu0 0
  %2516 = vmatprep.subr.bf16.mxu0 0
  %2517 = vmatpush1.bf16.msra.mxu0 0
  %2518 = vmatprep.subr.bf16.mxu0 0
  %2519 = vmatpush1.bf16.msra.mxu0 0
  %2520 = vmatprep.subr.bf16.mxu0 0
  %2521 = vmatpush1.bf16.msra.mxu0 0
  %2522 = vmatprep.mubr.bf16.mxu0 0
  %2523 = vmatmul.mubr.bf16.gmra.mrb[0].mxu0 %v2485
  %v2524 = vpop.f32.mrb[0].mxu0
  %v2525 = vadd.f32 0.0, %v2524
  %v2526 = vpop.f32.mrb[0].mxu0
  %v2527 = vadd.f32 0.0, %v2526
  %v2528 = vpop.f32.mrb[0].mxu0
  %v2529 = vadd.f32 0.0, %v2528
  %v2530 = vpop.f32.mrb[0].mxu0
  %v2531 = vadd.f32 0.0, %v2530
  %2532 = vmatprep.mubr.bf16.mxu0 0
  %2533 = vmatmul.mubr.bf16.gmra.mrb[0].mxu0 %v2488
  %v2534 = vpop.f32.mrb[0].mxu0
  %v2535 = vadd.f32 0.0, %v2534
  %v2536 = vpop.f32.mrb[0].mxu0
  %v2537 = vadd.f32 0.0, %v2536
  %v2538 = vpop.f32.mrb[0].mxu0
  %v2539 = vadd.f32 0.0, %v2538
  %v2540 = vpop.f32.mrb[0].mxu0
  %v2541 = vadd.f32 0.0, %v2540
  %2542 = vdwg.mxu0
  %2543 = vmatprep.subr.bf16.mxu0 0
  %2544 = vmatpush1.bf16.msra.mxu0 %v2116
  %2545 = vmatprep.subr.bf16.mxu0 0
  %2546 = vmatpush1.bf16.msra.mxu0 0
  %2547 = vmatprep.subr.bf16.mxu0 0
  %2548 = vmatpush1.bf16.msra.mxu0 0
  %2549 = vmatprep.subr.bf16.mxu0 0
  %2550 = vmatpush1.bf16.msra.mxu0 0
  %2551 = vmatprep.subr.bf16.mxu0 0
  %2552 = vmatpush1.bf16.msra.mxu0 0
  %2553 = vmatprep.subr.bf16.mxu0 0
  %2554 = vmatpush1.bf16.msra.mxu0 0
  %2555 = vmatprep.subr.bf16.mxu0 0
  %2556 = vmatpush1.bf16.msra.mxu0 0
  %2557 = vmatprep.subr.bf16.mxu0 0
  %2558 = vmatpush1.bf16.msra.mxu0 0
  %2559 = vmatprep.subr.bf16.mxu0 0
  %2560 = vmatpush1.bf16.msra.mxu0 0
  %2561 = vmatprep.subr.bf16.mxu0 0
  %2562 = vmatpush1.bf16.msra.mxu0 0
  %2563 = vmatprep.subr.bf16.mxu0 0
  %2564 = vmatpush1.bf16.msra.mxu0 0
  %2565 = vmatprep.subr.bf16.mxu0 0
  %2566 = vmatpush1.bf16.msra.mxu0 0
  %2567 = vmatprep.subr.bf16.mxu0 0
  %2568 = vmatpush1.bf16.msra.mxu0 0
  %2569 = vmatprep.subr.bf16.mxu0 0
  %2570 = vmatpush1.bf16.msra.mxu0 0
  %2571 = vmatprep.subr.bf16.mxu0 0
  %2572 = vmatpush1.bf16.msra.mxu0 0
  %2573 = vmatprep.subr.bf16.mxu0 0
  %2574 = vmatpush1.bf16.msra.mxu0 0
  %2575 = vmatprep.mubr.bf16.mxu0 0
  %2576 = vmatmul.mubr.bf16.gmra.mrb[0].mxu0 %v2485
  %v2577 = vpop.f32.mrb[0].mxu0
  %v2578 = vadd.f32 0.0, %v2577
  %v2579 = vpop.f32.mrb[0].mxu0
  %v2580 = vpop.f32.mrb[0].mxu0
  %v2581 = vadd.f32 0.0, %v2580
  %v2582 = vpop.f32.mrb[0].mxu0
  %2583 = vmatprep.mubr.bf16.mxu0 0
  %2584 = vmatmul.mubr.bf16.gmra.mrb[0].mxu0 %v2488
  %v2585 = vpop.f32.mrb[0].mxu0
  %v2586 = vadd.f32 0.0, %v2585
  %v2587 = vpop.f32.mrb[0].mxu0
  %v2588 = vpop.f32.mrb[0].mxu0
  %v2589 = vadd.f32 0.0, %v2588
  %v2590 = vpop.f32.mrb[0].mxu0
  %2591 = vdwg.mxu0
  %v2592 = vld [vmem:[#allocation2] sm:$0xff]
  %v2593 = vld [vmem:[#allocation2 + $0x8] sm:$0xff]
  %v2594 = vld [vmem:[#allocation2 + $0x10] sm:$0xff]
  %v2595 = vld [vmem:[#allocation2 + $0x18] sm:$0xff]
  %v2596 = vld [vmem:[#allocation2 + $0x20] sm:$0xff]
  %v2597 = vld [vmem:[#allocation2 + $0x28] sm:$0xff]
  %v2598 = vld [vmem:[#allocation2 + $0x30] sm:$0xff]
  %v2599 = vld [vmem:[#allocation2 + $0x38] sm:$0xff]
  %v2600 = vld [vmem:[#allocation2 + $0x40] sm:$0xff]
  %v2601 = vld [vmem:[#allocation2 + $0x48] sm:$0xff]
  %v2602 = vld [vmem:[#allocation2 + $0x50] sm:$0xff]
  %v2603 = vld [vmem:[#allocation2 + $0x58] sm:$0xff]
  %2616 = vrot.lane.b32.xlu0 %v2525, 126
  %v2617 = vpop.permute.xlu0 %2616
  %2618 = vrot.lane.b32.xlu0 %v2527, 126
  %v2619 = vpop.permute.xlu0 %2618
  %2620 = vrot.lane.b32.xlu0 %v2578, 126
  %v2621 = vpop.permute.xlu0 %2620
  %2622 = vrot.lane.b32.xlu0 %v2529, 126
  %v2623 = vpop.permute.xlu0 %2622
  %2624 = vrot.lane.b32.xlu0 %v2531, 126
  %v2625 = vpop.permute.xlu0 %2624
  %2626 = vrot.lane.b32.xlu0 %v2581, 126
  %v2627 = vpop.permute.xlu0 %2626
  %2628 = vrot.lane.b32.xlu0 %v2535, 126
  %v2629 = vpop.permute.xlu0 %2628
  %2630 = vrot.lane.b32.xlu0 %v2537, 126
  %v2631 = vpop.permute.xlu0 %2630
  %2632 = vrot.lane.b32.xlu0 %v2586, 126
  %v2633 = vpop.permute.xlu0 %2632
  %2634 = vrot.lane.b32.xlu0 %v2539, 126
  %v2635 = vpop.permute.xlu0 %2634
  %2636 = vrot.lane.b32.xlu0 %v2541, 126
  %v2637 = vpop.permute.xlu0 %2636
  %2638 = vrot.lane.b32.xlu0 %v2589, 126
  %v2639 = vpop.permute.xlu0 %2638
  %v2640 = vsel %vm593, %v2617, %v2619
  %v2641 = vsel %vm593, %v2619, %v2621
  %v2642 = vsel %vm593, %v2623, %v2625
  %v2643 = vsel %vm593, %v2625, %v2627
  %v2644 = vsel %vm593, %v2629, %v2631
  %v2645 = vsel %vm593, %v2631, %v2633
  %v2646 = vsel %vm593, %v2635, %v2637
  %v2647 = vsel %vm593, %v2637, %v2639
  %v2660 = vadd.f32 %v2592, %v2640
  %v2661 = vadd.f32 %v2593, %v2641
  %v2662 = vadd.f32 %v2594, %v2621
  %v2663 = vadd.f32 %v2595, %v2642
  %v2664 = vadd.f32 %v2596, %v2643
  %v2665 = vadd.f32 %v2597, %v2627
  %v2666 = vadd.f32 %v2598, %v2644
  %v2667 = vadd.f32 %v2599, %v2645
  %v2668 = vadd.f32 %v2600, %v2633
  %v2669 = vadd.f32 %v2601, %v2646
  %v2670 = vadd.f32 %v2602, %v2647
  %v2671 = vadd.f32 %v2603, %v2639
  %2672 = vst [vmem:[#allocation2] sm:$0xff] %v2660
  %2673 = vst [vmem:[#allocation2 + $0x8] sm:$0xff] %v2661
  %2674 = vst.msk [vmem:[#allocation2 + $0x10] sm:$0xff] %vm593, %v2662
  %2675 = vst [vmem:[#allocation2 + $0x18] sm:$0xff] %v2663
  %2676 = vst [vmem:[#allocation2 + $0x20] sm:$0xff] %v2664
  %2677 = vst.msk [vmem:[#allocation2 + $0x28] sm:$0xff] %vm593, %v2665
  %2678 = vst [vmem:[#allocation2 + $0x30] sm:$0xff] %v2666
  %2679 = vst [vmem:[#allocation2 + $0x38] sm:$0xff] %v2667
  %2680 = vst.msk [vmem:[#allocation2 + $0x40] sm:$0xff] %vm593, %v2668
  %2681 = vst [vmem:[#allocation2 + $0x48] sm:$0xff] %v2669
  %2682 = vst [vmem:[#allocation2 + $0x50] sm:$0xff] %v2670
  %2683 = vst.msk [vmem:[#allocation2 + $0x58] sm:$0xff] %vm593, %v2671
  %v2684 = vld [vmem:[%s638] sm:$0xf]
  %v2685 = vld [vmem:[%s638 + $0x4] sm:$0xf]
  %v2686 = vld [vmem:[%s638 + $0x8] sm:$0xf]
  %v2687 = vld [vmem:[%s638 + $0xc] sm:$0xf]
  %v2692 = vunpack.c.l.b16 %v2684
  %v2693 = vunpack.c.l.b16 %v2685
  %v2694 = vunpack.c.l.b16 %v2686
  %v2695 = vunpack.c.l.b16 %v2687
  %v2696 = vpack.c.b16 %v2693, %v2692
  %v2697 = vpack.c.b16 %v2695, %v2694
  %v2699 = vsel %vm51, %v2696, 0
  %v2702 = vsel %vm51, %v2697, 0
  %2704 = vmatprep.subr.bf16.mxu0 %v2113
  %2705 = vmatpush1.bf16.msra.mxu0 %v2110
  %2706 = vmatprep.subr.bf16.mxu0 0
  %2707 = vmatpush1.bf16.msra.mxu0 0
  %2708 = vmatprep.subr.bf16.mxu0 0
  %2709 = vmatpush1.bf16.msra.mxu0 0
  %2710 = vmatprep.subr.bf16.mxu0 0
  %2711 = vmatpush1.bf16.msra.mxu0 0
  %2712 = vmatprep.subr.bf16.mxu0 0
  %2713 = vmatpush1.bf16.msra.mxu0 0
  %2714 = vmatprep.subr.bf16.mxu0 0
  %2715 = vmatpush1.bf16.msra.mxu0 0
  %2716 = vmatprep.subr.bf16.mxu0 0
  %2717 = vmatpush1.bf16.msra.mxu0 0
  %2718 = vmatprep.subr.bf16.mxu0 0
  %2719 = vmatpush1.bf16.msra.mxu0 0
  %2720 = vmatprep.subr.bf16.mxu0 0
  %2721 = vmatpush1.bf16.msra.mxu0 0
  %2722 = vmatprep.subr.bf16.mxu0 0
  %2723 = vmatpush1.bf16.msra.mxu0 0
  %2724 = vmatprep.subr.bf16.mxu0 0
  %2725 = vmatpush1.bf16.msra.mxu0 0
  %2726 = vmatprep.subr.bf16.mxu0 0
  %2727 = vmatpush1.bf16.msra.mxu0 0
  %2728 = vmatprep.subr.bf16.mxu0 0
  %2729 = vmatpush1.bf16.msra.mxu0 0
  %2730 = vmatprep.subr.bf16.mxu0 0
  %2731 = vmatpush1.bf16.msra.mxu0 0
  %2732 = vmatprep.subr.bf16.mxu0 0
  %2733 = vmatpush1.bf16.msra.mxu0 0
  %2734 = vmatprep.subr.bf16.mxu0 0
  %2735 = vmatpush1.bf16.msra.mxu0 0
  %2736 = vmatprep.mubr.bf16.mxu0 0
  %2737 = vmatmul.mubr.bf16.gmra.mrb[0].mxu0 %v2699
  %v2738 = vpop.f32.mrb[0].mxu0
  %v2739 = vadd.f32 0.0, %v2738
  %v2740 = vpop.f32.mrb[0].mxu0
  %v2741 = vadd.f32 0.0, %v2740
  %v2742 = vpop.f32.mrb[0].mxu0
  %v2743 = vadd.f32 0.0, %v2742
  %v2744 = vpop.f32.mrb[0].mxu0
  %v2745 = vadd.f32 0.0, %v2744
  %2746 = vmatprep.mubr.bf16.mxu0 0
  %2747 = vmatmul.mubr.bf16.gmra.mrb[0].mxu0 %v2702
  %v2748 = vpop.f32.mrb[0].mxu0
  %v2749 = vadd.f32 0.0, %v2748
  %v2750 = vpop.f32.mrb[0].mxu0
  %v2751 = vadd.f32 0.0, %v2750
  %v2752 = vpop.f32.mrb[0].mxu0
  %v2753 = vadd.f32 0.0, %v2752
  %v2754 = vpop.f32.mrb[0].mxu0
  %v2755 = vadd.f32 0.0, %v2754
  %2756 = vdwg.mxu0
  %2757 = vmatprep.subr.bf16.mxu0 0
  %2758 = vmatpush1.bf16.msra.mxu0 %v2116
  %2759 = vmatprep.subr.bf16.mxu0 0
  %2760 = vmatpush1.bf16.msra.mxu0 0
  %2761 = vmatprep.subr.bf16.mxu0 0
  %2762 = vmatpush1.bf16.msra.mxu0 0
  %2763 = vmatprep.subr.bf16.mxu0 0
  %2764 = vmatpush1.bf16.msra.mxu0 0
  %2765 = vmatprep.subr.bf16.mxu0 0
  %2766 = vmatpush1.bf16.msra.mxu0 0
  %2767 = vmatprep.subr.bf16.mxu0 0
  %2768 = vmatpush1.bf16.msra.mxu0 0
  %2769 = vmatprep.subr.bf16.mxu0 0
  %2770 = vmatpush1.bf16.msra.mxu0 0
  %2771 = vmatprep.subr.bf16.mxu0 0
  %2772 = vmatpush1.bf16.msra.mxu0 0
  %2773 = vmatprep.subr.bf16.mxu0 0
  %2774 = vmatpush1.bf16.msra.mxu0 0
  %2775 = vmatprep.subr.bf16.mxu0 0
  %2776 = vmatpush1.bf16.msra.mxu0 0
  %2777 = vmatprep.subr.bf16.mxu0 0
  %2778 = vmatpush1.bf16.msra.mxu0 0
  %2779 = vmatprep.subr.bf16.mxu0 0
  %2780 = vmatpush1.bf16.msra.mxu0 0
  %2781 = vmatprep.subr.bf16.mxu0 0
  %2782 = vmatpush1.bf16.msra.mxu0 0
  %2783 = vmatprep.subr.bf16.mxu0 0
  %2784 = vmatpush1.bf16.msra.mxu0 0
  %2785 = vmatprep.subr.bf16.mxu0 0
  %2786 = vmatpush1.bf16.msra.mxu0 0
  %2787 = vmatprep.subr.bf16.mxu0 0
  %2788 = vmatpush1.bf16.msra.mxu0 0
  %2789 = vmatprep.mubr.bf16.mxu0 0
  %2790 = vmatmul.mubr.bf16.gmra.mrb[0].mxu0 %v2699
  %v2791 = vpop.f32.mrb[0].mxu0
  %v2792 = vadd.f32 0.0, %v2791
  %v2793 = vpop.f32.mrb[0].mxu0
  %v2794 = vpop.f32.mrb[0].mxu0
  %v2795 = vadd.f32 0.0, %v2794
  %v2796 = vpop.f32.mrb[0].mxu0
  %2797 = vmatprep.mubr.bf16.mxu0 0
  %2798 = vmatmul.mubr.bf16.gmra.mrb[0].mxu0 %v2702
  %v2799 = vpop.f32.mrb[0].mxu0
  %v2800 = vadd.f32 0.0, %v2799
  %v2801 = vpop.f32.mrb[0].mxu0
  %v2802 = vpop.f32.mrb[0].mxu0
  %v2803 = vadd.f32 0.0, %v2802
  %v2804 = vpop.f32.mrb[0].mxu0
  %2805 = vdwg.mxu0
  %v2806 = vld [vmem:[#allocation2] sm:$0xff]
  %v2807 = vld [vmem:[#allocation2 + $0x8] sm:$0xff]
  %v2808 = vld [vmem:[#allocation2 + $0x10] sm:$0xff]
  %v2809 = vld [vmem:[#allocation2 + $0x18] sm:$0xff]
  %v2810 = vld [vmem:[#allocation2 + $0x20] sm:$0xff]
  %v2811 = vld [vmem:[#allocation2 + $0x28] sm:$0xff]
  %v2812 = vld [vmem:[#allocation2 + $0x30] sm:$0xff]
  %v2813 = vld [vmem:[#allocation2 + $0x38] sm:$0xff]
  %v2814 = vld [vmem:[#allocation2 + $0x40] sm:$0xff]
  %v2815 = vld [vmem:[#allocation2 + $0x48] sm:$0xff]
  %v2816 = vld [vmem:[#allocation2 + $0x50] sm:$0xff]
  %v2817 = vld [vmem:[#allocation2 + $0x58] sm:$0xff]
  %2830 = vrot.lane.b32.xlu0 %v2739, 110
  %v2831 = vpop.permute.xlu0 %2830
  %2832 = vrot.lane.b32.xlu0 %v2741, 110
  %v2833 = vpop.permute.xlu0 %2832
  %2834 = vrot.lane.b32.xlu0 %v2792, 110
  %v2835 = vpop.permute.xlu0 %2834
  %2836 = vrot.lane.b32.xlu0 %v2743, 110
  %v2837 = vpop.permute.xlu0 %2836
  %2838 = vrot.lane.b32.xlu0 %v2745, 110
  %v2839 = vpop.permute.xlu0 %2838
  %2840 = vrot.lane.b32.xlu0 %v2795, 110
  %v2841 = vpop.permute.xlu0 %2840
  %2842 = vrot.lane.b32.xlu0 %v2749, 110
  %v2843 = vpop.permute.xlu0 %2842
  %2844 = vrot.lane.b32.xlu0 %v2751, 110
  %v2845 = vpop.permute.xlu0 %2844
  %2846 = vrot.lane.b32.xlu0 %v2800, 110
  %v2847 = vpop.permute.xlu0 %2846
  %2848 = vrot.lane.b32.xlu0 %v2753, 110
  %v2849 = vpop.permute.xlu0 %2848
  %2850 = vrot.lane.b32.xlu0 %v2755, 110
  %v2851 = vpop.permute.xlu0 %2850
  %2852 = vrot.lane.b32.xlu0 %v2803, 110
  %v2853 = vpop.permute.xlu0 %2852
  %v2854 = vsel %vm809, %v2831, %v2833
  %v2855 = vsel %vm809, %v2833, %v2835
  %v2856 = vsel %vm809, %v2837, %v2839
  %v2857 = vsel %vm809, %v2839, %v2841
  %v2858 = vsel %vm809, %v2843, %v2845
  %v2859 = vsel %vm809, %v2845, %v2847
  %v2860 = vsel %vm809, %v2849, %v2851
  %v2861 = vsel %vm809, %v2851, %v2853
  %v2874 = vadd.f32 %v2806, %v2854
  %v2875 = vadd.f32 %v2807, %v2855
  %v2876 = vadd.f32 %v2808, %v2835
  %v2877 = vadd.f32 %v2809, %v2856
  %v2878 = vadd.f32 %v2810, %v2857
  %v2879 = vadd.f32 %v2811, %v2841
  %v2880 = vadd.f32 %v2812, %v2858
  %v2881 = vadd.f32 %v2813, %v2859
  %v2882 = vadd.f32 %v2814, %v2847
  %v2883 = vadd.f32 %v2815, %v2860
  %v2884 = vadd.f32 %v2816, %v2861
  %v2885 = vadd.f32 %v2817, %v2853
  %2886 = vst [vmem:[#allocation2] sm:$0xff] %v2874
  %2887 = vst [vmem:[#allocation2 + $0x8] sm:$0xff] %v2875
  %2888 = vst.msk [vmem:[#allocation2 + $0x10] sm:$0xff] %vm809, %v2876
  %2889 = vst [vmem:[#allocation2 + $0x18] sm:$0xff] %v2877
  %2890 = vst [vmem:[#allocation2 + $0x20] sm:$0xff] %v2878
  %2891 = vst.msk [vmem:[#allocation2 + $0x28] sm:$0xff] %vm809, %v2879
  %2892 = vst [vmem:[#allocation2 + $0x30] sm:$0xff] %v2880
  %2893 = vst [vmem:[#allocation2 + $0x38] sm:$0xff] %v2881
  %2894 = vst.msk [vmem:[#allocation2 + $0x40] sm:$0xff] %vm809, %v2882
  %2895 = vst [vmem:[#allocation2 + $0x48] sm:$0xff] %v2883
  %2896 = vst [vmem:[#allocation2 + $0x50] sm:$0xff] %v2884
  %2897 = vst.msk [vmem:[#allocation2 + $0x58] sm:$0xff] %vm809, %v2885
  %v2898 = vld [vmem:[%s854] sm:$0xf]
  %v2899 = vld [vmem:[%s854 + $0x4] sm:$0xf]
  %v2900 = vld [vmem:[%s854 + $0x8] sm:$0xf]
  %v2901 = vld [vmem:[%s854 + $0xc] sm:$0xf]
  %v2906 = vunpack.c.l.b16 %v2898
  %v2907 = vunpack.c.l.b16 %v2899
  %v2908 = vunpack.c.l.b16 %v2900
  %v2909 = vunpack.c.l.b16 %v2901
  %v2910 = vpack.c.b16 %v2907, %v2906
  %v2911 = vpack.c.b16 %v2909, %v2908
  %v2913 = vsel %vm51, %v2910, 0
  %v2916 = vsel %vm51, %v2911, 0
  %2918 = vmatprep.subr.bf16.mxu0 %v2113
  %2919 = vmatpush1.bf16.msra.mxu0 %v2110
  %2920 = vmatprep.subr.bf16.mxu0 0
  %2921 = vmatpush1.bf16.msra.mxu0 0
  %2922 = vmatprep.subr.bf16.mxu0 0
  %2923 = vmatpush1.bf16.msra.mxu0 0
  %2924 = vmatprep.subr.bf16.mxu0 0
  %2925 = vmatpush1.bf16.msra.mxu0 0
  %2926 = vmatprep.subr.bf16.mxu0 0
  %2927 = vmatpush1.bf16.msra.mxu0 0
  %2928 = vmatprep.subr.bf16.mxu0 0
  %2929 = vmatpush1.bf16.msra.mxu0 0
  %2930 = vmatprep.subr.bf16.mxu0 0
  %2931 = vmatpush1.bf16.msra.mxu0 0
  %2932 = vmatprep.subr.bf16.mxu0 0
  %2933 = vmatpush1.bf16.msra.mxu0 0
  %2934 = vmatprep.subr.bf16.mxu0 0
  %2935 = vmatpush1.bf16.msra.mxu0 0
  %2936 = vmatprep.subr.bf16.mxu0 0
  %2937 = vmatpush1.bf16.msra.mxu0 0
  %2938 = vmatprep.subr.bf16.mxu0 0
  %2939 = vmatpush1.bf16.msra.mxu0 0
  %2940 = vmatprep.subr.bf16.mxu0 0
  %2941 = vmatpush1.bf16.msra.mxu0 0
  %2942 = vmatprep.subr.bf16.mxu0 0
  %2943 = vmatpush1.bf16.msra.mxu0 0
  %2944 = vmatprep.subr.bf16.mxu0 0
  %2945 = vmatpush1.bf16.msra.mxu0 0
  %2946 = vmatprep.subr.bf16.mxu0 0
  %2947 = vmatpush1.bf16.msra.mxu0 0
  %2948 = vmatprep.subr.bf16.mxu0 0
  %2949 = vmatpush1.bf16.msra.mxu0 0
  %2950 = vmatprep.mubr.bf16.mxu0 0
  %2951 = vmatmul.mubr.bf16.gmra.mrb[0].mxu0 %v2913
  %v2952 = vpop.f32.mrb[0].mxu0
  %v2953 = vadd.f32 0.0, %v2952
  %v2954 = vpop.f32.mrb[0].mxu0
  %v2955 = vadd.f32 0.0, %v2954
  %v2956 = vpop.f32.mrb[0].mxu0
  %v2957 = vadd.f32 0.0, %v2956
  %v2958 = vpop.f32.mrb[0].mxu0
  %v2959 = vadd.f32 0.0, %v2958
  %2960 = vmatprep.mubr.bf16.mxu0 0
  %2961 = vmatmul.mubr.bf16.gmra.mrb[0].mxu0 %v2916
  %v2962 = vpop.f32.mrb[0].mxu0
  %v2963 = vadd.f32 0.0, %v2962
  %v2964 = vpop.f32.mrb[0].mxu0
  %v2965 = vadd.f32 0.0, %v2964
  %v2966 = vpop.f32.mrb[0].mxu0
  %v2967 = vadd.f32 0.0, %v2966
  %v2968 = vpop.f32.mrb[0].mxu0
  %v2969 = vadd.f32 0.0, %v2968
  %2970 = vdwg.mxu0
  %2971 = vmatprep.subr.bf16.mxu0 0
  %2972 = vmatpush1.bf16.msra.mxu0 %v2116
  %2973 = vmatprep.subr.bf16.mxu0 0
  %2974 = vmatpush1.bf16.msra.mxu0 0
  %2975 = vmatprep.subr.bf16.mxu0 0
  %2976 = vmatpush1.bf16.msra.mxu0 0
  %2977 = vmatprep.subr.bf16.mxu0 0
  %2978 = vmatpush1.bf16.msra.mxu0 0
  %2979 = vmatprep.subr.bf16.mxu0 0
  %2980 = vmatpush1.bf16.msra.mxu0 0
  %2981 = vmatprep.subr.bf16.mxu0 0
  %2982 = vmatpush1.bf16.msra.mxu0 0
  %2983 = vmatprep.subr.bf16.mxu0 0
  %2984 = vmatpush1.bf16.msra.mxu0 0
  %2985 = vmatprep.subr.bf16.mxu0 0
  %2986 = vmatpush1.bf16.msra.mxu0 0
  %2987 = vmatprep.subr.bf16.mxu0 0
  %2988 = vmatpush1.bf16.msra.mxu0 0
  %2989 = vmatprep.subr.bf16.mxu0 0
  %2990 = vmatpush1.bf16.msra.mxu0 0
  %2991 = vmatprep.subr.bf16.mxu0 0
  %2992 = vmatpush1.bf16.msra.mxu0 0
  %2993 = vmatprep.subr.bf16.mxu0 0
  %2994 = vmatpush1.bf16.msra.mxu0 0
  %2995 = vmatprep.subr.bf16.mxu0 0
  %2996 = vmatpush1.bf16.msra.mxu0 0
  %2997 = vmatprep.subr.bf16.mxu0 0
  %2998 = vmatpush1.bf16.msra.mxu0 0
  %2999 = vmatprep.subr.bf16.mxu0 0
  %3000 = vmatpush1.bf16.msra.mxu0 0
  %3001 = vmatprep.subr.bf16.mxu0 0
  %3002 = vmatpush1.bf16.msra.mxu0 0
  %3003 = vmatprep.mubr.bf16.mxu0 0
  %3004 = vmatmul.mubr.bf16.gmra.mrb[0].mxu0 %v2913
  %v3005 = vpop.f32.mrb[0].mxu0
  %v3006 = vadd.f32 0.0, %v3005
  %v3007 = vpop.f32.mrb[0].mxu0
  %v3008 = vpop.f32.mrb[0].mxu0
  %v3009 = vadd.f32 0.0, %v3008
  %v3010 = vpop.f32.mrb[0].mxu0
  %3011 = vmatprep.mubr.bf16.mxu0 0
  %3012 = vmatmul.mubr.bf16.gmra.mrb[0].mxu0 %v2916
  %v3013 = vpop.f32.mrb[0].mxu0
  %v3014 = vadd.f32 0.0, %v3013
  %v3015 = vpop.f32.mrb[0].mxu0
  %v3016 = vpop.f32.mrb[0].mxu0
  %v3017 = vadd.f32 0.0, %v3016
  %v3018 = vpop.f32.mrb[0].mxu0
  %3019 = vdwg.mxu0
  %v3020 = vld [vmem:[#allocation2] sm:$0xff]
  %v3021 = vld [vmem:[#allocation2 + $0x8] sm:$0xff]
  %v3022 = vld [vmem:[#allocation2 + $0x10] sm:$0xff]
  %v3023 = vld [vmem:[#allocation2 + $0x18] sm:$0xff]
  %v3024 = vld [vmem:[#allocation2 + $0x20] sm:$0xff]
  %v3025 = vld [vmem:[#allocation2 + $0x28] sm:$0xff]
  %v3026 = vld [vmem:[#allocation2 + $0x30] sm:$0xff]
  %v3027 = vld [vmem:[#allocation2 + $0x38] sm:$0xff]
  %v3028 = vld [vmem:[#allocation2 + $0x40] sm:$0xff]
  %v3029 = vld [vmem:[#allocation2 + $0x48] sm:$0xff]
  %v3030 = vld [vmem:[#allocation2 + $0x50] sm:$0xff]
  %v3031 = vld [vmem:[#allocation2 + $0x58] sm:$0xff]
  %3044 = vrot.lane.b32.xlu0 %v2953, 109
  %v3045 = vpop.permute.xlu0 %3044
  %3046 = vrot.lane.b32.xlu0 %v2955, 109
  %v3047 = vpop.permute.xlu0 %3046
  %3048 = vrot.lane.b32.xlu0 %v3006, 109
  %v3049 = vpop.permute.xlu0 %3048
  %3050 = vrot.lane.b32.xlu0 %v2957, 109
  %v3051 = vpop.permute.xlu0 %3050
  %3052 = vrot.lane.b32.xlu0 %v2959, 109
  %v3053 = vpop.permute.xlu0 %3052
  %3054 = vrot.lane.b32.xlu0 %v3009, 109
  %v3055 = vpop.permute.xlu0 %3054
  %3056 = vrot.lane.b32.xlu0 %v2963, 109
  %v3057 = vpop.permute.xlu0 %3056
  %3058 = vrot.lane.b32.xlu0 %v2965, 109
  %v3059 = vpop.permute.xlu0 %3058
  %3060 = vrot.lane.b32.xlu0 %v3014, 109
  %v3061 = vpop.permute.xlu0 %3060
  %3062 = vrot.lane.b32.xlu0 %v2967, 109
  %v3063 = vpop.permute.xlu0 %3062
  %3064 = vrot.lane.b32.xlu0 %v2969, 109
  %v3065 = vpop.permute.xlu0 %3064
  %3066 = vrot.lane.b32.xlu0 %v3017, 109
  %v3067 = vpop.permute.xlu0 %3066
  %v3068 = vsel %vm1025, %v3045, %v3047
  %v3069 = vsel %vm1025, %v3047, %v3049
  %v3070 = vsel %vm1025, %v3051, %v3053
  %v3071 = vsel %vm1025, %v3053, %v3055
  %v3072 = vsel %vm1025, %v3057, %v3059
  %v3073 = vsel %vm1025, %v3059, %v3061
  %v3074 = vsel %vm1025, %v3063, %v3065
  %v3075 = vsel %vm1025, %v3065, %v3067
  %v3088 = vadd.f32 %v3020, %v3068
  %v3089 = vadd.f32 %v3021, %v3069
  %v3090 = vadd.f32 %v3022, %v3049
  %v3091 = vadd.f32 %v3023, %v3070
  %v3092 = vadd.f32 %v3024, %v3071
  %v3093 = vadd.f32 %v3025, %v3055
  %v3094 = vadd.f32 %v3026, %v3072
  %v3095 = vadd.f32 %v3027, %v3073
  %v3096 = vadd.f32 %v3028, %v3061
  %v3097 = vadd.f32 %v3029, %v3074
  %v3098 = vadd.f32 %v3030, %v3075
  %v3099 = vadd.f32 %v3031, %v3067
  %3100 = vst [vmem:[#allocation2] sm:$0xff] %v3088
  %3101 = vst [vmem:[#allocation2 + $0x8] sm:$0xff] %v3089
  %3102 = vst.msk [vmem:[#allocation2 + $0x10] sm:$0xff] %vm1025, %v3090
  %3103 = vst [vmem:[#allocation2 + $0x18] sm:$0xff] %v3091
  %3104 = vst [vmem:[#allocation2 + $0x20] sm:$0xff] %v3092
  %3105 = vst.msk [vmem:[#allocation2 + $0x28] sm:$0xff] %vm1025, %v3093
  %3106 = vst [vmem:[#allocation2 + $0x30] sm:$0xff] %v3094
  %3107 = vst [vmem:[#allocation2 + $0x38] sm:$0xff] %v3095
  %3108 = vst.msk [vmem:[#allocation2 + $0x40] sm:$0xff] %vm1025, %v3096
  %3109 = vst [vmem:[#allocation2 + $0x48] sm:$0xff] %v3097
  %3110 = vst [vmem:[#allocation2 + $0x50] sm:$0xff] %v3098
  %3111 = vst.msk [vmem:[#allocation2 + $0x58] sm:$0xff] %vm1025, %v3099
  %v3112 = vld [vmem:[%s1070] sm:$0xf]
  %v3113 = vld [vmem:[%s1070 + $0x4] sm:$0xf]
  %v3114 = vld [vmem:[%s1070 + $0x8] sm:$0xf]
  %v3115 = vld [vmem:[%s1070 + $0xc] sm:$0xf]
  %v3120 = vunpack.c.l.b16 %v3112
  %v3121 = vunpack.c.l.b16 %v3113
  %v3122 = vunpack.c.l.b16 %v3114
  %v3123 = vunpack.c.l.b16 %v3115
  %v3124 = vpack.c.b16 %v3121, %v3120
  %v3125 = vpack.c.b16 %v3123, %v3122
  %v3127 = vsel %vm51, %v3124, 0
  %v3130 = vsel %vm51, %v3125, 0
  %3132 = vmatprep.subr.bf16.mxu0 %v2113
  %3133 = vmatpush1.bf16.msra.mxu0 %v2110
  %3134 = vmatprep.subr.bf16.mxu0 0
  %3135 = vmatpush1.bf16.msra.mxu0 0
  %3136 = vmatprep.subr.bf16.mxu0 0
  %3137 = vmatpush1.bf16.msra.mxu0 0
  %3138 = vmatprep.subr.bf16.mxu0 0
  %3139 = vmatpush1.bf16.msra.mxu0 0
  %3140 = vmatprep.subr.bf16.mxu0 0
  %3141 = vmatpush1.bf16.msra.mxu0 0
  %3142 = vmatprep.subr.bf16.mxu0 0
  %3143 = vmatpush1.bf16.msra.mxu0 0
  %3144 = vmatprep.subr.bf16.mxu0 0
  %3145 = vmatpush1.bf16.msra.mxu0 0
  %3146 = vmatprep.subr.bf16.mxu0 0
  %3147 = vmatpush1.bf16.msra.mxu0 0
  %3148 = vmatprep.subr.bf16.mxu0 0
  %3149 = vmatpush1.bf16.msra.mxu0 0
  %3150 = vmatprep.subr.bf16.mxu0 0
  %3151 = vmatpush1.bf16.msra.mxu0 0
  %3152 = vmatprep.subr.bf16.mxu0 0
  %3153 = vmatpush1.bf16.msra.mxu0 0
  %3154 = vmatprep.subr.bf16.mxu0 0
  %3155 = vmatpush1.bf16.msra.mxu0 0
  %3156 = vmatprep.subr.bf16.mxu0 0
  %3157 = vmatpush1.bf16.msra.mxu0 0
  %3158 = vmatprep.subr.bf16.mxu0 0
  %3159 = vmatpush1.bf16.msra.mxu0 0
  %3160 = vmatprep.subr.bf16.mxu0 0
  %3161 = vmatpush1.bf16.msra.mxu0 0
  %3162 = vmatprep.subr.bf16.mxu0 0
  %3163 = vmatpush1.bf16.msra.mxu0 0
  %3164 = vmatprep.mubr.bf16.mxu0 0
  %3165 = vmatmul.mubr.bf16.gmra.mrb[0].mxu0 %v3127
  %v3166 = vpop.f32.mrb[0].mxu0
  %v3167 = vadd.f32 0.0, %v3166
  %v3168 = vpop.f32.mrb[0].mxu0
  %v3169 = vadd.f32 0.0, %v3168
  %v3170 = vpop.f32.mrb[0].mxu0
  %v3171 = vadd.f32 0.0, %v3170
  %v3172 = vpop.f32.mrb[0].mxu0
  %v3173 = vadd.f32 0.0, %v3172
  %3174 = vmatprep.mubr.bf16.mxu0 0
  %3175 = vmatmul.mubr.bf16.gmra.mrb[0].mxu0 %v3130
  %v3176 = vpop.f32.mrb[0].mxu0
  %v3177 = vadd.f32 0.0, %v3176
  %v3178 = vpop.f32.mrb[0].mxu0
  %v3179 = vadd.f32 0.0, %v3178
  %v3180 = vpop.f32.mrb[0].mxu0
  %v3181 = vadd.f32 0.0, %v3180
  %v3182 = vpop.f32.mrb[0].mxu0
  %v3183 = vadd.f32 0.0, %v3182
  %3184 = vdwg.mxu0
  %3185 = vmatprep.subr.bf16.mxu0 0
  %3186 = vmatpush1.bf16.msra.mxu0 %v2116
  %3187 = vmatprep.subr.bf16.mxu0 0
  %3188 = vmatpush1.bf16.msra.mxu0 0
  %3189 = vmatprep.subr.bf16.mxu0 0
  %3190 = vmatpush1.bf16.msra.mxu0 0
  %3191 = vmatprep.subr.bf16.mxu0 0
  %3192 = vmatpush1.bf16.msra.mxu0 0
  %3193 = vmatprep.subr.bf16.mxu0 0
  %3194 = vmatpush1.bf16.msra.mxu0 0
  %3195 = vmatprep.subr.bf16.mxu0 0
  %3196 = vmatpush1.bf16.msra.mxu0 0
  %3197 = vmatprep.subr.bf16.mxu0 0
  %3198 = vmatpush1.bf16.msra.mxu0 0
  %3199 = vmatprep.subr.bf16.mxu0 0
  %3200 = vmatpush1.bf16.msra.mxu0 0
  %3201 = vmatprep.subr.bf16.mxu0 0
  %3202 = vmatpush1.bf16.msra.mxu0 0
  %3203 = vmatprep.subr.bf16.mxu0 0
  %3204 = vmatpush1.bf16.msra.mxu0 0
  %3205 = vmatprep.subr.bf16.mxu0 0
  %3206 = vmatpush1.bf16.msra.mxu0 0
  %3207 = vmatprep.subr.bf16.mxu0 0
  %3208 = vmatpush1.bf16.msra.mxu0 0
  %3209 = vmatprep.subr.bf16.mxu0 0
  %3210 = vmatpush1.bf16.msra.mxu0 0
  %3211 = vmatprep.subr.bf16.mxu0 0
  %3212 = vmatpush1.bf16.msra.mxu0 0
  %3213 = vmatprep.subr.bf16.mxu0 0
  %3214 = vmatpush1.bf16.msra.mxu0 0
  %3215 = vmatprep.subr.bf16.mxu0 0
  %3216 = vmatpush1.bf16.msra.mxu0 0
  %3217 = vmatprep.mubr.bf16.mxu0 0
  %3218 = vmatmul.mubr.bf16.gmra.mrb[0].mxu0 %v3127
  %v3219 = vpop.f32.mrb[0].mxu0
  %v3220 = vadd.f32 0.0, %v3219
  %v3221 = vpop.f32.mrb[0].mxu0
  %v3222 = vpop.f32.mrb[0].mxu0
  %v3223 = vadd.f32 0.0, %v3222
  %v3224 = vpop.f32.mrb[0].mxu0
  %3225 = vmatprep.mubr.bf16.mxu0 0
  %3226 = vmatmul.mubr.bf16.gmra.mrb[0].mxu0 %v3130
  %v3227 = vpop.f32.mrb[0].mxu0
  %v3228 = vadd.f32 0.0, %v3227
  %v3229 = vpop.f32.mrb[0].mxu0
  %v3230 = vpop.f32.mrb[0].mxu0
  %v3231 = vadd.f32 0.0, %v3230
  %v3232 = vpop.f32.mrb[0].mxu0
  %3233 = vdwg.mxu0
  %v3234 = vld [vmem:[#allocation2] sm:$0xff]
  %v3235 = vld [vmem:[#allocation2 + $0x8] sm:$0xff]
  %v3236 = vld [vmem:[#allocation2 + $0x10] sm:$0xff]
  %v3237 = vld [vmem:[#allocation2 + $0x18] sm:$0xff]
  %v3238 = vld [vmem:[#allocation2 + $0x20] sm:$0xff]
  %v3239 = vld [vmem:[#allocation2 + $0x28] sm:$0xff]
  %v3240 = vld [vmem:[#allocation2 + $0x30] sm:$0xff]
  %v3241 = vld [vmem:[#allocation2 + $0x38] sm:$0xff]
  %v3242 = vld [vmem:[#allocation2 + $0x40] sm:$0xff]
  %v3243 = vld [vmem:[#allocation2 + $0x48] sm:$0xff]
  %v3244 = vld [vmem:[#allocation2 + $0x50] sm:$0xff]
  %v3245 = vld [vmem:[#allocation2 + $0x58] sm:$0xff]
  %3258 = vrot.lane.b32.xlu0 %v3167, 108
  %v3259 = vpop.permute.xlu0 %3258
  %3260 = vrot.lane.b32.xlu0 %v3169, 108
  %v3261 = vpop.permute.xlu0 %3260
  %3262 = vrot.lane.b32.xlu0 %v3220, 108
  %v3263 = vpop.permute.xlu0 %3262
  %3264 = vrot.lane.b32.xlu0 %v3171, 108
  %v3265 = vpop.permute.xlu0 %3264
  %3266 = vrot.lane.b32.xlu0 %v3173, 108
  %v3267 = vpop.permute.xlu0 %3266
  %3268 = vrot.lane.b32.xlu0 %v3223, 108
  %v3269 = vpop.permute.xlu0 %3268
  %3270 = vrot.lane.b32.xlu0 %v3177, 108
  %v3271 = vpop.permute.xlu0 %3270
  %3272 = vrot.lane.b32.xlu0 %v3179, 108
  %v3273 = vpop.permute.xlu0 %3272
  %3274 = vrot.lane.b32.xlu0 %v3228, 108
  %v3275 = vpop.permute.xlu0 %3274
  %3276 = vrot.lane.b32.xlu0 %v3181, 108
  %v3277 = vpop.permute.xlu0 %3276
  %3278 = vrot.lane.b32.xlu0 %v3183, 108
  %v3279 = vpop.permute.xlu0 %3278
  %3280 = vrot.lane.b32.xlu0 %v3231, 108
  %v3281 = vpop.permute.xlu0 %3280
  %v3282 = vsel %vm1241, %v3259, %v3261
  %v3283 = vsel %vm1241, %v3261, %v3263
  %v3284 = vsel %vm1241, %v3265, %v3267
  %v3285 = vsel %vm1241, %v3267, %v3269
  %v3286 = vsel %vm1241, %v3271, %v3273
  %v3287 = vsel %vm1241, %v3273, %v3275
  %v3288 = vsel %vm1241, %v3277, %v3279
  %v3289 = vsel %vm1241, %v3279, %v3281
  %v3302 = vadd.f32 %v3234, %v3282
  %v3303 = vadd.f32 %v3235, %v3283
  %v3304 = vadd.f32 %v3236, %v3263
  %v3305 = vadd.f32 %v3237, %v3284
  %v3306 = vadd.f32 %v3238, %v3285
  %v3307 = vadd.f32 %v3239, %v3269
  %v3308 = vadd.f32 %v3240, %v3286
  %v3309 = vadd.f32 %v3241, %v3287
  %v3310 = vadd.f32 %v3242, %v3275
  %v3311 = vadd.f32 %v3243, %v3288
  %v3312 = vadd.f32 %v3244, %v3289
  %v3313 = vadd.f32 %v3245, %v3281
  %3314 = vst [vmem:[#allocation2] sm:$0xff] %v3302
  %3315 = vst [vmem:[#allocation2 + $0x8] sm:$0xff] %v3303
  %3316 = vst.msk [vmem:[#allocation2 + $0x10] sm:$0xff] %vm1241, %v3304
  %3317 = vst [vmem:[#allocation2 + $0x18] sm:$0xff] %v3305
  %3318 = vst [vmem:[#allocation2 + $0x20] sm:$0xff] %v3306
  %3319 = vst.msk [vmem:[#allocation2 + $0x28] sm:$0xff] %vm1241, %v3307
  %3320 = vst [vmem:[#allocation2 + $0x30] sm:$0xff] %v3308
  %3321 = vst [vmem:[#allocation2 + $0x38] sm:$0xff] %v3309
  %3322 = vst.msk [vmem:[#allocation2 + $0x40] sm:$0xff] %vm1241, %v3310
  %3323 = vst [vmem:[#allocation2 + $0x48] sm:$0xff] %v3311
  %3324 = vst [vmem:[#allocation2 + $0x50] sm:$0xff] %v3312
  %3325 = vst.msk [vmem:[#allocation2 + $0x58] sm:$0xff] %vm1241, %v3313
  %v3326 = vld [vmem:[%s1286] sm:$0xf]
  %v3327 = vld [vmem:[%s1286 + $0x4] sm:$0xf]
  %v3328 = vld [vmem:[%s1286 + $0x8] sm:$0xf]
  %v3329 = vld [vmem:[%s1286 + $0xc] sm:$0xf]
  %v3334 = vunpack.c.l.b16 %v3326
  %v3335 = vunpack.c.l.b16 %v3327
  %v3336 = vunpack.c.l.b16 %v3328
  %v3337 = vunpack.c.l.b16 %v3329
  %v3338 = vpack.c.b16 %v3335, %v3334
  %v3339 = vpack.c.b16 %v3337, %v3336
  %v3341 = vsel %vm51, %v3338, 0
  %v3344 = vsel %vm51, %v3339, 0
  %3346 = vmatprep.subr.bf16.mxu0 %v2113
  %3347 = vmatpush1.bf16.msra.mxu0 %v2110
  %3348 = vmatprep.subr.bf16.mxu0 0
  %3349 = vmatpush1.bf16.msra.mxu0 0
  %3350 = vmatprep.subr.bf16.mxu0 0
  %3351 = vmatpush1.bf16.msra.mxu0 0
  %3352 = vmatprep.subr.bf16.mxu0 0
  %3353 = vmatpush1.bf16.msra.mxu0 0
  %3354 = vmatprep.subr.bf16.mxu0 0
  %3355 = vmatpush1.bf16.msra.mxu0 0
  %3356 = vmatprep.subr.bf16.mxu0 0
  %3357 = vmatpush1.bf16.msra.mxu0 0
  %3358 = vmatprep.subr.bf16.mxu0 0
  %3359 = vmatpush1.bf16.msra.mxu0 0
  %3360 = vmatprep.subr.bf16.mxu0 0
  %3361 = vmatpush1.bf16.msra.mxu0 0
  %3362 = vmatprep.subr.bf16.mxu0 0
  %3363 = vmatpush1.bf16.msra.mxu0 0
  %3364 = vmatprep.subr.bf16.mxu0 0
  %3365 = vmatpush1.bf16.msra.mxu0 0
  %3366 = vmatprep.subr.bf16.mxu0 0
  %3367 = vmatpush1.bf16.msra.mxu0 0
  %3368 = vmatprep.subr.bf16.mxu0 0
  %3369 = vmatpush1.bf16.msra.mxu0 0
  %3370 = vmatprep.subr.bf16.mxu0 0
  %3371 = vmatpush1.bf16.msra.mxu0 0
  %3372 = vmatprep.subr.bf16.mxu0 0
  %3373 = vmatpush1.bf16.msra.mxu0 0
  %3374 = vmatprep.subr.bf16.mxu0 0
  %3375 = vmatpush1.bf16.msra.mxu0 0
  %3376 = vmatprep.subr.bf16.mxu0 0
  %3377 = vmatpush1.bf16.msra.mxu0 0
  %3378 = vmatprep.mubr.bf16.mxu0 0
  %3379 = vmatmul.mubr.bf16.gmra.mrb[0].mxu0 %v3341
  %v3380 = vpop.f32.mrb[0].mxu0
  %v3381 = vadd.f32 0.0, %v3380
  %v3382 = vpop.f32.mrb[0].mxu0
  %v3383 = vadd.f32 0.0, %v3382
  %v3384 = vpop.f32.mrb[0].mxu0
  %v3385 = vadd.f32 0.0, %v3384
  %v3386 = vpop.f32.mrb[0].mxu0
  %v3387 = vadd.f32 0.0, %v3386
  %3388 = vmatprep.mubr.bf16.mxu0 0
  %3389 = vmatmul.mubr.bf16.gmra.mrb[0].mxu0 %v3344
  %v3390 = vpop.f32.mrb[0].mxu0
  %v3391 = vadd.f32 0.0, %v3390
  %v3392 = vpop.f32.mrb[0].mxu0
  %v3393 = vadd.f32 0.0, %v3392
  %v3394 = vpop.f32.mrb[0].mxu0
  %v3395 = vadd.f32 0.0, %v3394
  %v3396 = vpop.f32.mrb[0].mxu0
  %v3397 = vadd.f32 0.0, %v3396
  %3398 = vdwg.mxu0
  %3399 = vmatprep.subr.bf16.mxu0 0
  %3400 = vmatpush1.bf16.msra.mxu0 %v2116
  %3401 = vmatprep.subr.bf16.mxu0 0
  %3402 = vmatpush1.bf16.msra.mxu0 0
  %3403 = vmatprep.subr.bf16.mxu0 0
  %3404 = vmatpush1.bf16.msra.mxu0 0
  %3405 = vmatprep.subr.bf16.mxu0 0
  %3406 = vmatpush1.bf16.msra.mxu0 0
  %3407 = vmatprep.subr.bf16.mxu0 0
  %3408 = vmatpush1.bf16.msra.mxu0 0
  %3409 = vmatprep.subr.bf16.mxu0 0
  %3410 = vmatpush1.bf16.msra.mxu0 0
  %3411 = vmatprep.subr.bf16.mxu0 0
  %3412 = vmatpush1.bf16.msra.mxu0 0
  %3413 = vmatprep.subr.bf16.mxu0 0
  %3414 = vmatpush1.bf16.msra.mxu0 0
  %3415 = vmatprep.subr.bf16.mxu0 0
  %3416 = vmatpush1.bf16.msra.mxu0 0
  %3417 = vmatprep.subr.bf16.mxu0 0
  %3418 = vmatpush1.bf16.msra.mxu0 0
  %3419 = vmatprep.subr.bf16.mxu0 0
  %3420 = vmatpush1.bf16.msra.mxu0 0
  %3421 = vmatprep.subr.bf16.mxu0 0
  %3422 = vmatpush1.bf16.msra.mxu0 0
  %3423 = vmatprep.subr.bf16.mxu0 0
  %3424 = vmatpush1.bf16.msra.mxu0 0
  %3425 = vmatprep.subr.bf16.mxu0 0
  %3426 = vmatpush1.bf16.msra.mxu0 0
  %3427 = vmatprep.subr.bf16.mxu0 0
  %3428 = vmatpush1.bf16.msra.mxu0 0
  %3429 = vmatprep.subr.bf16.mxu0 0
  %3430 = vmatpush1.bf16.msra.mxu0 0
  %3431 = vmatprep.mubr.bf16.mxu0 0
  %3432 = vmatmul.mubr.bf16.gmra.mrb[0].mxu0 %v3341
  %v3433 = vpop.f32.mrb[0].mxu0
  %v3434 = vadd.f32 0.0, %v3433
  %v3435 = vpop.f32.mrb[0].mxu0
  %v3436 = vpop.f32.mrb[0].mxu0
  %v3437 = vadd.f32 0.0, %v3436
  %v3438 = vpop.f32.mrb[0].mxu0
  %3439 = vmatprep.mubr.bf16.mxu0 0
  %3440 = vmatmul.mubr.bf16.gmra.mrb[0].mxu0 %v3344
  %v3441 = vpop.f32.mrb[0].mxu0
  %v3442 = vadd.f32 0.0, %v3441
  %v3443 = vpop.f32.mrb[0].mxu0
  %v3444 = vpop.f32.mrb[0].mxu0
  %v3445 = vadd.f32 0.0, %v3444
  %v3446 = vpop.f32.mrb[0].mxu0
  %3447 = vdwg.mxu0
  %v3448 = vld [vmem:[#allocation2] sm:$0xff]
  %v3449 = vld [vmem:[#allocation2 + $0x8] sm:$0xff]
  %v3450 = vld [vmem:[#allocation2 + $0x10] sm:$0xff]
  %v3451 = vld [vmem:[#allocation2 + $0x18] sm:$0xff]
  %v3452 = vld [vmem:[#allocation2 + $0x20] sm:$0xff]
  %v3453 = vld [vmem:[#allocation2 + $0x28] sm:$0xff]
  %v3454 = vld [vmem:[#allocation2 + $0x30] sm:$0xff]
  %v3455 = vld [vmem:[#allocation2 + $0x38] sm:$0xff]
  %v3456 = vld [vmem:[#allocation2 + $0x40] sm:$0xff]
  %v3457 = vld [vmem:[#allocation2 + $0x48] sm:$0xff]
  %v3458 = vld [vmem:[#allocation2 + $0x50] sm:$0xff]
  %v3459 = vld [vmem:[#allocation2 + $0x58] sm:$0xff]
  %3472 = vrot.lane.b32.xlu0 %v3381, 92
  %v3473 = vpop.permute.xlu0 %3472
  %3474 = vrot.lane.b32.xlu0 %v3383, 92
  %v3475 = vpop.permute.xlu0 %3474
  %3476 = vrot.lane.b32.xlu0 %v3434, 92
  %v3477 = vpop.permute.xlu0 %3476
  %3478 = vrot.lane.b32.xlu0 %v3385, 92
  %v3479 = vpop.permute.xlu0 %3478
  %3480 = vrot.lane.b32.xlu0 %v3387, 92
  %v3481 = vpop.permute.xlu0 %3480
  %3482 = vrot.lane.b32.xlu0 %v3437, 92
  %v3483 = vpop.permute.xlu0 %3482
  %3484 = vrot.lane.b32.xlu0 %v3391, 92
  %v3485 = vpop.permute.xlu0 %3484
  %3486 = vrot.lane.b32.xlu0 %v3393, 92
  %v3487 = vpop.permute.xlu0 %3486
  %3488 = vrot.lane.b32.xlu0 %v3442, 92
  %v3489 = vpop.permute.xlu0 %3488
  %3490 = vrot.lane.b32.xlu0 %v3395, 92
  %v3491 = vpop.permute.xlu0 %3490
  %3492 = vrot.lane.b32.xlu0 %v3397, 92
  %v3493 = vpop.permute.xlu0 %3492
  %3494 = vrot.lane.b32.xlu0 %v3445, 92
  %v3495 = vpop.permute.xlu0 %3494
  %v3496 = vsel %vm1457, %v3473, %v3475
  %v3497 = vsel %vm1457, %v3475, %v3477
  %v3498 = vsel %vm1457, %v3479, %v3481
  %v3499 = vsel %vm1457, %v3481, %v3483
  %v3500 = vsel %vm1457, %v3485, %v3487
  %v3501 = vsel %vm1457, %v3487, %v3489
  %v3502 = vsel %vm1457, %v3491, %v3493
  %v3503 = vsel %vm1457, %v3493, %v3495
  %v3516 = vadd.f32 %v3448, %v3496
  %v3517 = vadd.f32 %v3449, %v3497
  %v3518 = vadd.f32 %v3450, %v3477
  %v3519 = vadd.f32 %v3451, %v3498
  %v3520 = vadd.f32 %v3452, %v3499
  %v3521 = vadd.f32 %v3453, %v3483
  %v3522 = vadd.f32 %v3454, %v3500
  %v3523 = vadd.f32 %v3455, %v3501
  %v3524 = vadd.f32 %v3456, %v3489
  %v3525 = vadd.f32 %v3457, %v3502
  %v3526 = vadd.f32 %v3458, %v3503
  %v3527 = vadd.f32 %v3459, %v3495
  %3528 = vst [vmem:[#allocation2] sm:$0xff] %v3516
  %3529 = vst [vmem:[#allocation2 + $0x8] sm:$0xff] %v3517
  %3530 = vst.msk [vmem:[#allocation2 + $0x10] sm:$0xff] %vm1457, %v3518
  %3531 = vst [vmem:[#allocation2 + $0x18] sm:$0xff] %v3519
  %3532 = vst [vmem:[#allocation2 + $0x20] sm:$0xff] %v3520
  %3533 = vst.msk [vmem:[#allocation2 + $0x28] sm:$0xff] %vm1457, %v3521
  %3534 = vst [vmem:[#allocation2 + $0x30] sm:$0xff] %v3522
  %3535 = vst [vmem:[#allocation2 + $0x38] sm:$0xff] %v3523
  %3536 = vst.msk [vmem:[#allocation2 + $0x40] sm:$0xff] %vm1457, %v3524
  %3537 = vst [vmem:[#allocation2 + $0x48] sm:$0xff] %v3525
  %3538 = vst [vmem:[#allocation2 + $0x50] sm:$0xff] %v3526
  %3539 = vst.msk [vmem:[#allocation2 + $0x58] sm:$0xff] %vm1457, %v3527
  %v3540 = vld [vmem:[%s1502] sm:$0xf]
  %v3541 = vld [vmem:[%s1502 + $0x4] sm:$0xf]
  %v3542 = vld [vmem:[%s1502 + $0x8] sm:$0xf]
  %v3543 = vld [vmem:[%s1502 + $0xc] sm:$0xf]
  %v3548 = vunpack.c.l.b16 %v3540
  %v3549 = vunpack.c.l.b16 %v3541
  %v3550 = vunpack.c.l.b16 %v3542
  %v3551 = vunpack.c.l.b16 %v3543
  %v3552 = vpack.c.b16 %v3549, %v3548
  %v3553 = vpack.c.b16 %v3551, %v3550
  %v3555 = vsel %vm51, %v3552, 0
  %v3558 = vsel %vm51, %v3553, 0
  %3560 = vmatprep.subr.bf16.mxu0 %v2113
  %3561 = vmatpush1.bf16.msra.mxu0 %v2110
  %3562 = vmatprep.subr.bf16.mxu0 0
  %3563 = vmatpush1.bf16.msra.mxu0 0
  %3564 = vmatprep.subr.bf16.mxu0 0
  %3565 = vmatpush1.bf16.msra.mxu0 0
  %3566 = vmatprep.subr.bf16.mxu0 0
  %3567 = vmatpush1.bf16.msra.mxu0 0
  %3568 = vmatprep.subr.bf16.mxu0 0
  %3569 = vmatpush1.bf16.msra.mxu0 0
  %3570 = vmatprep.subr.bf16.mxu0 0
  %3571 = vmatpush1.bf16.msra.mxu0 0
  %3572 = vmatprep.subr.bf16.mxu0 0
  %3573 = vmatpush1.bf16.msra.mxu0 0
  %3574 = vmatprep.subr.bf16.mxu0 0
  %3575 = vmatpush1.bf16.msra.mxu0 0
  %3576 = vmatprep.subr.bf16.mxu0 0
  %3577 = vmatpush1.bf16.msra.mxu0 0
  %3578 = vmatprep.subr.bf16.mxu0 0
  %3579 = vmatpush1.bf16.msra.mxu0 0
  %3580 = vmatprep.subr.bf16.mxu0 0
  %3581 = vmatpush1.bf16.msra.mxu0 0
  %3582 = vmatprep.subr.bf16.mxu0 0
  %3583 = vmatpush1.bf16.msra.mxu0 0
  %3584 = vmatprep.subr.bf16.mxu0 0
  %3585 = vmatpush1.bf16.msra.mxu0 0
  %3586 = vmatprep.subr.bf16.mxu0 0
  %3587 = vmatpush1.bf16.msra.mxu0 0
  %3588 = vmatprep.subr.bf16.mxu0 0
  %3589 = vmatpush1.bf16.msra.mxu0 0
  %3590 = vmatprep.subr.bf16.mxu0 0
  %3591 = vmatpush1.bf16.msra.mxu0 0
  %3592 = vmatprep.mubr.bf16.mxu0 0
  %3593 = vmatmul.mubr.bf16.gmra.mrb[0].mxu0 %v3555
  %v3594 = vpop.f32.mrb[0].mxu0
  %v3595 = vadd.f32 0.0, %v3594
  %v3596 = vpop.f32.mrb[0].mxu0
  %v3597 = vadd.f32 0.0, %v3596
  %v3598 = vpop.f32.mrb[0].mxu0
  %v3599 = vadd.f32 0.0, %v3598
  %v3600 = vpop.f32.mrb[0].mxu0
  %v3601 = vadd.f32 0.0, %v3600
  %3602 = vmatprep.mubr.bf16.mxu0 0
  %3603 = vmatmul.mubr.bf16.gmra.mrb[0].mxu0 %v3558
  %v3604 = vpop.f32.mrb[0].mxu0
  %v3605 = vadd.f32 0.0, %v3604
  %v3606 = vpop.f32.mrb[0].mxu0
  %v3607 = vadd.f32 0.0, %v3606
  %v3608 = vpop.f32.mrb[0].mxu0
  %v3609 = vadd.f32 0.0, %v3608
  %v3610 = vpop.f32.mrb[0].mxu0
  %v3611 = vadd.f32 0.0, %v3610
  %3612 = vdwg.mxu0
  %3613 = vmatprep.subr.bf16.mxu0 0
  %3614 = vmatpush1.bf16.msra.mxu0 %v2116
  %3615 = vmatprep.subr.bf16.mxu0 0
  %3616 = vmatpush1.bf16.msra.mxu0 0
  %3617 = vmatprep.subr.bf16.mxu0 0
  %3618 = vmatpush1.bf16.msra.mxu0 0
  %3619 = vmatprep.subr.bf16.mxu0 0
  %3620 = vmatpush1.bf16.msra.mxu0 0
  %3621 = vmatprep.subr.bf16.mxu0 0
  %3622 = vmatpush1.bf16.msra.mxu0 0
  %3623 = vmatprep.subr.bf16.mxu0 0
  %3624 = vmatpush1.bf16.msra.mxu0 0
  %3625 = vmatprep.subr.bf16.mxu0 0
  %3626 = vmatpush1.bf16.msra.mxu0 0
  %3627 = vmatprep.subr.bf16.mxu0 0
  %3628 = vmatpush1.bf16.msra.mxu0 0
  %3629 = vmatprep.subr.bf16.mxu0 0
  %3630 = vmatpush1.bf16.msra.mxu0 0
  %3631 = vmatprep.subr.bf16.mxu0 0
  %3632 = vmatpush1.bf16.msra.mxu0 0
  %3633 = vmatprep.subr.bf16.mxu0 0
  %3634 = vmatpush1.bf16.msra.mxu0 0
  %3635 = vmatprep.subr.bf16.mxu0 0
  %3636 = vmatpush1.bf16.msra.mxu0 0
  %3637 = vmatprep.subr.bf16.mxu0 0
  %3638 = vmatpush1.bf16.msra.mxu0 0
  %3639 = vmatprep.subr.bf16.mxu0 0
  %3640 = vmatpush1.bf16.msra.mxu0 0
  %3641 = vmatprep.subr.bf16.mxu0 0
  %3642 = vmatpush1.bf16.msra.mxu0 0
  %3643 = vmatprep.subr.bf16.mxu0 0
  %3644 = vmatpush1.bf16.msra.mxu0 0
  %3645 = vmatprep.mubr.bf16.mxu0 0
  %3646 = vmatmul.mubr.bf16.gmra.mrb[0].mxu0 %v3555
  %v3647 = vpop.f32.mrb[0].mxu0
  %v3648 = vadd.f32 0.0, %v3647
  %v3649 = vpop.f32.mrb[0].mxu0
  %v3650 = vpop.f32.mrb[0].mxu0
  %v3651 = vadd.f32 0.0, %v3650
  %v3652 = vpop.f32.mrb[0].mxu0
  %3653 = vmatprep.mubr.bf16.mxu0 0
  %3654 = vmatmul.mubr.bf16.gmra.mrb[0].mxu0 %v3558
  %v3655 = vpop.f32.mrb[0].mxu0
  %v3656 = vadd.f32 0.0, %v3655
  %v3657 = vpop.f32.mrb[0].mxu0
  %v3658 = vpop.f32.mrb[0].mxu0
  %v3659 = vadd.f32 0.0, %v3658
  %v3660 = vpop.f32.mrb[0].mxu0
  %3661 = vdwg.mxu0
  %v3662 = vld [vmem:[#allocation2] sm:$0xff]
  %v3663 = vld [vmem:[#allocation2 + $0x8] sm:$0xff]
  %v3664 = vld [vmem:[#allocation2 + $0x10] sm:$0xff]
  %v3665 = vld [vmem:[#allocation2 + $0x18] sm:$0xff]
  %v3666 = vld [vmem:[#allocation2 + $0x20] sm:$0xff]
  %v3667 = vld [vmem:[#allocation2 + $0x28] sm:$0xff]
  %v3668 = vld [vmem:[#allocation2 + $0x30] sm:$0xff]
  %v3669 = vld [vmem:[#allocation2 + $0x38] sm:$0xff]
  %v3670 = vld [vmem:[#allocation2 + $0x40] sm:$0xff]
  %v3671 = vld [vmem:[#allocation2 + $0x48] sm:$0xff]
  %v3672 = vld [vmem:[#allocation2 + $0x50] sm:$0xff]
  %v3673 = vld [vmem:[#allocation2 + $0x58] sm:$0xff]
  %3686 = vrot.lane.b32.xlu0 %v3595, 91
  %v3687 = vpop.permute.xlu0 %3686
  %3688 = vrot.lane.b32.xlu0 %v3597, 91
  %v3689 = vpop.permute.xlu0 %3688
  %3690 = vrot.lane.b32.xlu0 %v3648, 91
  %v3691 = vpop.permute.xlu0 %3690
  %3692 = vrot.lane.b32.xlu0 %v3599, 91
  %v3693 = vpop.permute.xlu0 %3692
  %3694 = vrot.lane.b32.xlu0 %v3601, 91
  %v3695 = vpop.permute.xlu0 %3694
  %3696 = vrot.lane.b32.xlu0 %v3651, 91
  %v3697 = vpop.permute.xlu0 %3696
  %3698 = vrot.lane.b32.xlu0 %v3605, 91
  %v3699 = vpop.permute.xlu0 %3698
  %3700 = vrot.lane.b32.xlu0 %v3607, 91
  %v3701 = vpop.permute.xlu0 %3700
  %3702 = vrot.lane.b32.xlu0 %v3656, 91
  %v3703 = vpop.permute.xlu0 %3702
  %3704 = vrot.lane.b32.xlu0 %v3609, 91
  %v3705 = vpop.permute.xlu0 %3704
  %3706 = vrot.lane.b32.xlu0 %v3611, 91
  %v3707 = vpop.permute.xlu0 %3706
  %3708 = vrot.lane.b32.xlu0 %v3659, 91
  %v3709 = vpop.permute.xlu0 %3708
  %v3710 = vsel %vm1673, %v3687, %v3689
  %v3711 = vsel %vm1673, %v3689, %v3691
  %v3712 = vsel %vm1673, %v3693, %v3695
  %v3713 = vsel %vm1673, %v3695, %v3697
  %v3714 = vsel %vm1673, %v3699, %v3701
  %v3715 = vsel %vm1673, %v3701, %v3703
  %v3716 = vsel %vm1673, %v3705, %v3707
  %v3717 = vsel %vm1673, %v3707, %v3709
  %v3730 = vadd.f32 %v3662, %v3710
  %v3731 = vadd.f32 %v3663, %v3711
  %v3732 = vadd.f32 %v3664, %v3691
  %v3733 = vadd.f32 %v3665, %v3712
  %v3734 = vadd.f32 %v3666, %v3713
  %v3735 = vadd.f32 %v3667, %v3697
  %v3736 = vadd.f32 %v3668, %v3714
  %v3737 = vadd.f32 %v3669, %v3715
  %v3738 = vadd.f32 %v3670, %v3703
  %v3739 = vadd.f32 %v3671, %v3716
  %v3740 = vadd.f32 %v3672, %v3717
  %v3741 = vadd.f32 %v3673, %v3709
  %3742 = vst [vmem:[#allocation2] sm:$0xff] %v3730
  %3743 = vst [vmem:[#allocation2 + $0x8] sm:$0xff] %v3731
  %3744 = vst.msk [vmem:[#allocation2 + $0x10] sm:$0xff] %vm1673, %v3732
  %3745 = vst [vmem:[#allocation2 + $0x18] sm:$0xff] %v3733
  %3746 = vst [vmem:[#allocation2 + $0x20] sm:$0xff] %v3734
  %3747 = vst.msk [vmem:[#allocation2 + $0x28] sm:$0xff] %vm1673, %v3735
  %3748 = vst [vmem:[#allocation2 + $0x30] sm:$0xff] %v3736
  %3749 = vst [vmem:[#allocation2 + $0x38] sm:$0xff] %v3737
  %3750 = vst.msk [vmem:[#allocation2 + $0x40] sm:$0xff] %vm1673, %v3738
  %3751 = vst [vmem:[#allocation2 + $0x48] sm:$0xff] %v3739
  %3752 = vst [vmem:[#allocation2 + $0x50] sm:$0xff] %v3740
  %3753 = vst.msk [vmem:[#allocation2 + $0x58] sm:$0xff] %vm1673, %v3741
  %v3754 = vld [vmem:[%s1718] sm:$0xf]
  %v3755 = vld [vmem:[%s1718 + $0x4] sm:$0xf]
  %v3756 = vld [vmem:[%s1718 + $0x8] sm:$0xf]
  %v3757 = vld [vmem:[%s1718 + $0xc] sm:$0xf]
  %v3762 = vunpack.c.l.b16 %v3754
  %v3763 = vunpack.c.l.b16 %v3755
  %v3764 = vunpack.c.l.b16 %v3756
  %v3765 = vunpack.c.l.b16 %v3757
  %v3766 = vpack.c.b16 %v3763, %v3762
  %v3767 = vpack.c.b16 %v3765, %v3764
  %v3769 = vsel %vm51, %v3766, 0
  %v3772 = vsel %vm51, %v3767, 0
  %3774 = vmatprep.subr.bf16.mxu0 %v2113
  %3775 = vmatpush1.bf16.msra.mxu0 %v2110
  %3776 = vmatprep.subr.bf16.mxu0 0
  %3777 = vmatpush1.bf16.msra.mxu0 0
  %3778 = vmatprep.subr.bf16.mxu0 0
  %3779 = vmatpush1.bf16.msra.mxu0 0
  %3780 = vmatprep.subr.bf16.mxu0 0
  %3781 = vmatpush1.bf16.msra.mxu0 0
  %3782 = vmatprep.subr.bf16.mxu0 0
  %3783 = vmatpush1.bf16.msra.mxu0 0
  %3784 = vmatprep.subr.bf16.mxu0 0
  %3785 = vmatpush1.bf16.msra.mxu0 0
  %3786 = vmatprep.subr.bf16.mxu0 0
  %3787 = vmatpush1.bf16.msra.mxu0 0
  %3788 = vmatprep.subr.bf16.mxu0 0
  %3789 = vmatpush1.bf16.msra.mxu0 0
  %3790 = vmatprep.subr.bf16.mxu0 0
  %3791 = vmatpush1.bf16.msra.mxu0 0
  %3792 = vmatprep.subr.bf16.mxu0 0
  %3793 = vmatpush1.bf16.msra.mxu0 0
  %3794 = vmatprep.subr.bf16.mxu0 0
  %3795 = vmatpush1.bf16.msra.mxu0 0
  %3796 = vmatprep.subr.bf16.mxu0 0
  %3797 = vmatpush1.bf16.msra.mxu0 0
  %3798 = vmatprep.subr.bf16.mxu0 0
  %3799 = vmatpush1.bf16.msra.mxu0 0
  %3800 = vmatprep.subr.bf16.mxu0 0
  %3801 = vmatpush1.bf16.msra.mxu0 0
  %3802 = vmatprep.subr.bf16.mxu0 0
  %3803 = vmatpush1.bf16.msra.mxu0 0
  %3804 = vmatprep.subr.bf16.mxu0 0
  %3805 = vmatpush1.bf16.msra.mxu0 0
  %3806 = vmatprep.mubr.bf16.mxu0 0
  %3807 = vmatmul.mubr.bf16.gmra.mrb[0].mxu0 %v3769
  %v3808 = vpop.f32.mrb[0].mxu0
  %v3809 = vadd.f32 0.0, %v3808
  %v3810 = vpop.f32.mrb[0].mxu0
  %v3811 = vadd.f32 0.0, %v3810
  %v3812 = vpop.f32.mrb[0].mxu0
  %v3813 = vadd.f32 0.0, %v3812
  %v3814 = vpop.f32.mrb[0].mxu0
  %v3815 = vadd.f32 0.0, %v3814
  %3816 = vmatprep.mubr.bf16.mxu0 0
  %3817 = vmatmul.mubr.bf16.gmra.mrb[0].mxu0 %v3772
  %v3818 = vpop.f32.mrb[0].mxu0
  %v3819 = vadd.f32 0.0, %v3818
  %v3820 = vpop.f32.mrb[0].mxu0
  %v3821 = vadd.f32 0.0, %v3820
  %v3822 = vpop.f32.mrb[0].mxu0
  %v3823 = vadd.f32 0.0, %v3822
  %v3824 = vpop.f32.mrb[0].mxu0
  %v3825 = vadd.f32 0.0, %v3824
  %3826 = vdwg.mxu0
  %3827 = vmatprep.subr.bf16.mxu0 0
  %3828 = vmatpush1.bf16.msra.mxu0 %v2116
  %3829 = vmatprep.subr.bf16.mxu0 0
  %3830 = vmatpush1.bf16.msra.mxu0 0
  %3831 = vmatprep.subr.bf16.mxu0 0
  %3832 = vmatpush1.bf16.msra.mxu0 0
  %3833 = vmatprep.subr.bf16.mxu0 0
  %3834 = vmatpush1.bf16.msra.mxu0 0
  %3835 = vmatprep.subr.bf16.mxu0 0
  %3836 = vmatpush1.bf16.msra.mxu0 0
  %3837 = vmatprep.subr.bf16.mxu0 0
  %3838 = vmatpush1.bf16.msra.mxu0 0
  %3839 = vmatprep.subr.bf16.mxu0 0
  %3840 = vmatpush1.bf16.msra.mxu0 0
  %3841 = vmatprep.subr.bf16.mxu0 0
  %3842 = vmatpush1.bf16.msra.mxu0 0
  %3843 = vmatprep.subr.bf16.mxu0 0
  %3844 = vmatpush1.bf16.msra.mxu0 0
  %3845 = vmatprep.subr.bf16.mxu0 0
  %3846 = vmatpush1.bf16.msra.mxu0 0
  %3847 = vmatprep.subr.bf16.mxu0 0
  %3848 = vmatpush1.bf16.msra.mxu0 0
  %3849 = vmatprep.subr.bf16.mxu0 0
  %3850 = vmatpush1.bf16.msra.mxu0 0
  %3851 = vmatprep.subr.bf16.mxu0 0
  %3852 = vmatpush1.bf16.msra.mxu0 0
  %3853 = vmatprep.subr.bf16.mxu0 0
  %3854 = vmatpush1.bf16.msra.mxu0 0
  %3855 = vmatprep.subr.bf16.mxu0 0
  %3856 = vmatpush1.bf16.msra.mxu0 0
  %3857 = vmatprep.subr.bf16.mxu0 0
  %3858 = vmatpush1.bf16.msra.mxu0 0
  %3859 = vmatprep.mubr.bf16.mxu0 0
  %3860 = vmatmul.mubr.bf16.gmra.mrb[0].mxu0 %v3769
  %v3861 = vpop.f32.mrb[0].mxu0
  %v3862 = vadd.f32 0.0, %v3861
  %v3863 = vpop.f32.mrb[0].mxu0
  %v3864 = vpop.f32.mrb[0].mxu0
  %v3865 = vadd.f32 0.0, %v3864
  %v3866 = vpop.f32.mrb[0].mxu0
  %3867 = vmatprep.mubr.bf16.mxu0 0
  %3868 = vmatmul.mubr.bf16.gmra.mrb[0].mxu0 %v3772
  %v3869 = vpop.f32.mrb[0].mxu0
  %v3870 = vadd.f32 0.0, %v3869
  %v3871 = vpop.f32.mrb[0].mxu0
  %v3872 = vpop.f32.mrb[0].mxu0
  %v3873 = vadd.f32 0.0, %v3872
  %v3874 = vpop.f32.mrb[0].mxu0
  %3875 = vdwg.mxu0
  %v3876 = vld [vmem:[#allocation2] sm:$0xff]
  %v3877 = vld [vmem:[#allocation2 + $0x8] sm:$0xff]
  %v3878 = vld [vmem:[#allocation2 + $0x10] sm:$0xff]
  %v3879 = vld [vmem:[#allocation2 + $0x18] sm:$0xff]
  %v3880 = vld [vmem:[#allocation2 + $0x20] sm:$0xff]
  %v3881 = vld [vmem:[#allocation2 + $0x28] sm:$0xff]
  %v3882 = vld [vmem:[#allocation2 + $0x30] sm:$0xff]
  %v3883 = vld [vmem:[#allocation2 + $0x38] sm:$0xff]
  %v3884 = vld [vmem:[#allocation2 + $0x40] sm:$0xff]
  %v3885 = vld [vmem:[#allocation2 + $0x48] sm:$0xff]
  %v3886 = vld [vmem:[#allocation2 + $0x50] sm:$0xff]
  %v3887 = vld [vmem:[#allocation2 + $0x58] sm:$0xff]
  %3900 = vrot.lane.b32.xlu0 %v3809, 90
  %v3901 = vpop.permute.xlu0 %3900
  %3902 = vrot.lane.b32.xlu0 %v3811, 90
  %v3903 = vpop.permute.xlu0 %3902
  %3904 = vrot.lane.b32.xlu0 %v3862, 90
  %v3905 = vpop.permute.xlu0 %3904
  %3906 = vrot.lane.b32.xlu0 %v3813, 90
  %v3907 = vpop.permute.xlu0 %3906
  %3908 = vrot.lane.b32.xlu0 %v3815, 90
  %v3909 = vpop.permute.xlu0 %3908
  %3910 = vrot.lane.b32.xlu0 %v3865, 90
  %v3911 = vpop.permute.xlu0 %3910
  %3912 = vrot.lane.b32.xlu0 %v3819, 90
  %v3913 = vpop.permute.xlu0 %3912
  %3914 = vrot.lane.b32.xlu0 %v3821, 90
  %v3915 = vpop.permute.xlu0 %3914
  %3916 = vrot.lane.b32.xlu0 %v3870, 90
  %v3917 = vpop.permute.xlu0 %3916
  %3918 = vrot.lane.b32.xlu0 %v3823, 90
  %v3919 = vpop.permute.xlu0 %3918
  %3920 = vrot.lane.b32.xlu0 %v3825, 90
  %v3921 = vpop.permute.xlu0 %3920
  %3922 = vrot.lane.b32.xlu0 %v3873, 90
  %v3923 = vpop.permute.xlu0 %3922
  %v3924 = vsel %vm1889, %v3901, %v3903
  %v3925 = vsel %vm1889, %v3903, %v3905
  %v3926 = vsel %vm1889, %v3907, %v3909
  %v3927 = vsel %vm1889, %v3909, %v3911
  %v3928 = vsel %vm1889, %v3913, %v3915
  %v3929 = vsel %vm1889, %v3915, %v3917
  %v3930 = vsel %vm1889, %v3919, %v3921
  %v3931 = vsel %vm1889, %v3921, %v3923
  %v3944 = vadd.f32 %v3876, %v3924
  %v3945 = vadd.f32 %v3877, %v3925
  %v3946 = vadd.f32 %v3878, %v3905
  %v3947 = vadd.f32 %v3879, %v3926
  %v3948 = vadd.f32 %v3880, %v3927
  %v3949 = vadd.f32 %v3881, %v3911
  %v3950 = vadd.f32 %v3882, %v3928
  %v3951 = vadd.f32 %v3883, %v3929
  %v3952 = vadd.f32 %v3884, %v3917
  %v3953 = vadd.f32 %v3885, %v3930
  %v3954 = vadd.f32 %v3886, %v3931
  %v3955 = vadd.f32 %v3887, %v3923
  %3956 = vst [vmem:[#allocation2] sm:$0xff] %v3944
  %3957 = vst [vmem:[#allocation2 + $0x8] sm:$0xff] %v3945
  %3958 = vst.msk [vmem:[#allocation2 + $0x10] sm:$0xff] %vm1889, %v3946
  %3959 = vst [vmem:[#allocation2 + $0x18] sm:$0xff] %v3947
  %3960 = vst [vmem:[#allocation2 + $0x20] sm:$0xff] %v3948
  %3961 = vst.msk [vmem:[#allocation2 + $0x28] sm:$0xff] %vm1889, %v3949
  %3962 = vst [vmem:[#allocation2 + $0x30] sm:$0xff] %v3950
  %3963 = vst [vmem:[#allocation2 + $0x38] sm:$0xff] %v3951
  %3964 = vst.msk [vmem:[#allocation2 + $0x40] sm:$0xff] %vm1889, %v3952
  %3965 = vst [vmem:[#allocation2 + $0x48] sm:$0xff] %v3953
  %3966 = vst [vmem:[#allocation2 + $0x50] sm:$0xff] %v3954
  %3967 = vst.msk [vmem:[#allocation2 + $0x58] sm:$0xff] %vm1889, %v3955
  %v3968 = vld [vmem:[#allocation2] sm:$0xff]
  %v3969 = vld [vmem:[#allocation2 + $0x8] sm:$0xff]
  %v3970 = vld [vmem:[#allocation2 + $0x10] sm:$0xff]
  %v3971 = vld [vmem:[#allocation2 + $0x18] sm:$0xff]
  %v3972 = vld [vmem:[#allocation2 + $0x20] sm:$0xff]
  %v3973 = vld [vmem:[#allocation2 + $0x28] sm:$0xff]
  %v3974 = vld [vmem:[#allocation2 + $0x30] sm:$0xff]
  %v3975 = vld [vmem:[#allocation2 + $0x38] sm:$0xff]
  %v3976 = vld [vmem:[#allocation2 + $0x40] sm:$0xff]
  %v3977 = vld [vmem:[#allocation2 + $0x48] sm:$0xff]
  %v3978 = vld [vmem:[#allocation2 + $0x50] sm:$0xff]
  %v3979 = vld [vmem:[#allocation2 + $0x58] sm:$0xff]
  %v3980 = vld [vmem:[%s1] sm:$0xff]
  %v3981 = vld [vmem:[%s1 + $0x8] sm:$0xff]
  %v3982 = vld [vmem:[%s1 + $0x10] sm:$0xff]
  %v3983 = vld [vmem:[%s1 + $0x18] sm:$0xff]
  %3985 = vset.pattern.permute.xlu0 0
  %3986 = vperm.xlu0 %3985, %v3980
  %v3987 = vpop.permute.xlu0 %3986
  %3990 = vset.pattern.permute.xlu0 0
  %3991 = vperm.xlu0 %3990, %v3981
  %v3992 = vpop.permute.xlu0 %3991
  %3995 = vset.pattern.permute.xlu0 0
  %3996 = vperm.xlu0 %3995, %v3982
  %v3997 = vpop.permute.xlu0 %3996
  %4000 = vset.pattern.permute.xlu0 0
  %4001 = vperm.xlu0 %4000, %v3983
  %v4002 = vpop.permute.xlu0 %4001
  %v4004 = vadd.f32 %v3968, %v3987
  %v4005 = vadd.f32 %v3969, %v3987
  %v4006 = vadd.f32 %v3970, %v3987
  %v4007 = vadd.f32 %v3971, %v3992
  %v4008 = vadd.f32 %v3972, %v3992
  %v4009 = vadd.f32 %v3973, %v3992
  %v4010 = vadd.f32 %v3974, %v3997
  %v4011 = vadd.f32 %v3975, %v3997
  %v4012 = vadd.f32 %v3976, %v3997
  %v4013 = vadd.f32 %v3977, %v4002
  %v4014 = vadd.f32 %v3978, %v4002
  %v4015 = vadd.f32 %v3979, %v4002
  %vm4016 = vcmp.gt.f32.partialorder %v4004, 0.0
  %vm4017 = vcmp.gt.f32.partialorder %v4005, 0.0
  %vm4018 = vcmp.gt.f32.partialorder %v4006, 0.0
  %vm4019 = vcmp.gt.f32.partialorder %v4007, 0.0
  %vm4020 = vcmp.gt.f32.partialorder %v4008, 0.0
  %vm4021 = vcmp.gt.f32.partialorder %v4009, 0.0
  %vm4022 = vcmp.gt.f32.partialorder %v4010, 0.0
  %vm4023 = vcmp.gt.f32.partialorder %v4011, 0.0
  %vm4024 = vcmp.gt.f32.partialorder %v4012, 0.0
  %vm4025 = vcmp.gt.f32.partialorder %v4013, 0.0
  %vm4026 = vcmp.gt.f32.partialorder %v4014, 0.0
  %vm4027 = vcmp.gt.f32.partialorder %v4015, 0.0
  %v4028 = vmul.f32 %v4004, 0.01
  %v4029 = vmul.f32 %v4005, 0.01
  %v4030 = vmul.f32 %v4006, 0.01
  %v4031 = vmul.f32 %v4007, 0.01
  %v4032 = vmul.f32 %v4008, 0.01
  %v4033 = vmul.f32 %v4009, 0.01
  %v4034 = vmul.f32 %v4010, 0.01
  %v4035 = vmul.f32 %v4011, 0.01
  %v4036 = vmul.f32 %v4012, 0.01
  %v4037 = vmul.f32 %v4013, 0.01
  %v4038 = vmul.f32 %v4014, 0.01
  %v4039 = vmul.f32 %v4015, 0.01
  %v4040 = vsel %vm4016, %v4004, %v4028
  %v4041 = vsel %vm4017, %v4005, %v4029
  %v4042 = vsel %vm4018, %v4006, %v4030
  %v4043 = vsel %vm4019, %v4007, %v4031
  %v4044 = vsel %vm4020, %v4008, %v4032
  %v4045 = vsel %vm4021, %v4009, %v4033
  %v4046 = vsel %vm4022, %v4010, %v4034
  %v4047 = vsel %vm4023, %v4011, %v4035
  %v4048 = vsel %vm4024, %v4012, %v4036
  %v4049 = vsel %vm4025, %v4013, %v4037
  %v4050 = vsel %vm4026, %v4014, %v4038
  %v4051 = vsel %vm4027, %v4015, %v4039
  %v4052 = vpack.c.bf16 %v4043, %v4040
  %v4053 = vpack.c.bf16 %v4044, %v4041
  %v4054 = vpack.c.bf16 %v4045, %v4042
  %v4055 = vpack.c.bf16 %v4049, %v4046
  %v4056 = vpack.c.bf16 %v4050, %v4047
  %v4057 = vpack.c.bf16 %v4051, %v4048
  %v4064 = vunpack.c.l.b16 %v4052
  %v4065 = vunpack.c.l.b16 %v4053
  %v4066 = vunpack.c.l.b16 %v4054
  %v4067 = vunpack.c.h.b16 %v4052
  %v4068 = vunpack.c.h.b16 %v4053
  %v4069 = vunpack.c.h.b16 %v4054
  %v4070 = vunpack.c.l.b16 %v4055
  %v4071 = vunpack.c.l.b16 %v4056
  %v4072 = vunpack.c.l.b16 %v4057
  %v4073 = vunpack.c.h.b16 %v4055
  %v4074 = vunpack.c.h.b16 %v4056
  %v4075 = vunpack.c.h.b16 %v4057
  %v4076 = vpack.c.b16 %v4065, %v4064
  %v4077 = vpack.c.b16 %v4066, %v4066
  %v4078 = vpack.c.b16 %v4068, %v4067
  %v4079 = vpack.c.b16 %v4069, %v4069
  %v4080 = vpack.c.b16 %v4071, %v4070
  %v4081 = vpack.c.b16 %v4072, %v4072
  %v4082 = vpack.c.b16 %v4074, %v4073
  %v4083 = vpack.c.b16 %v4075, %v4075
  %s4092 = scalar_lea.vmem %s3, 48
  %4093 = vst [vmem:[%s4092] sm:$0xff] %v4076
  %4094 = vst [vmem:[%s4092 + $0x8] sm:$0xf] %v4077
  %4095 = vst [vmem:[%s4092 + $0xc] sm:$0xff] %v4078
  %4096 = vst [vmem:[%s4092 + $0x14] sm:$0xf] %v4079
  %4097 = vst [vmem:[%s4092 + $0x18] sm:$0xff] %v4080
  %4098 = vst [vmem:[%s4092 + $0x20] sm:$0xf] %v4081
  %4099 = vst [vmem:[%s4092 + $0x24] sm:$0xff] %v4082
  %4100 = vst [vmem:[%s4092 + $0x2c] sm:$0xf] %v4083
  // Predicated region
  $region14: #{_lambda_.2} parent=0 // pred_check
    _
  $region15: #{_lambda_.2} parent=0 // pred_check_branch
    %4102 = sbr.rel (0) target = $region17
  $region16: #{_lambda_.2} parent=0 // pred_region
    _
  $region17: #{_lambda_.2} parent=0 // pred_fallthru
    _
  // Predicated region
  $region18: #{_lambda_.2} parent=0 // pred_check
    _
  $region19: #{_lambda_.2} parent=0 // pred_check_branch
    %4104 = sbr.rel (0) target = $region21
  $region20: #{_lambda_.2} parent=0 // pred_region
    _
  $region21: #{_lambda_.2} parent=0 // pred_fallthru
    _

// kernel: _lambda_.3
$region0: #{_lambda_.3}
  #allocation0 [shape = 'u32[]', space=smem, size = 0x4, offset = 0x4, fixed_abs, tag = 'smem constant byte address 0x4 - core index']
  #allocation1 [shape = 'u32[144,128]{1,0:T(1,128)}', space=vmem, size = 0x12000, scoped, tag = 'internal scratch']
  #allocation2 [shape = 'f32[8,1280]{1,0:T(8,128)}', space=vmem, size = 0xa000, scoped, tag = 'scratch operand']
  %s0 = inlined_call_operand.vmem [shape: bf16[9,8,8], index: 0, kind: input, shape index: {}]
  %s1 = inlined_call_operand.vmem [shape: f32[8,1], index: 1, kind: input, shape index: {}]
  %s2 = inlined_call_operand.vmem [shape: bf16[2,8,1280], index: 2, kind: input, shape index: {}]
  %s3 = inlined_call_operand.vmem [shape: f32[2,8,1280], index: 3, kind: output, shape index: {}]
  %s4 = sld [smem:[#allocation0]]
  $region22: #{_lambda_.3} parent=0
    _
  %s6 = ssub.s32 1, %s4
  %s7 = scalar_select 0, %s6, %s4
  // Predicated region
  $region2: #{_lambda_.3} parent=0 // pred_check
    _
  $region3: #{_lambda_.3} parent=0 // pred_check_branch
    %9 = sbr.rel (0) target = $region5
  $region4: #{_lambda_.3} parent=0 // pred_region
    _
  $region5: #{_lambda_.3} parent=0 // pred_fallthru
    _
  // Predicated region
  $region6: #{_lambda_.3} parent=0 // pred_check
    _
  $region7: #{_lambda_.3} parent=0 // pred_check_branch
    %11 = sbr.rel (0) target = $region9
  $region8: #{_lambda_.3} parent=0 // pred_region
    _
  $region9: #{_lambda_.3} parent=0 // pred_fallthru
    _
  // Predicated region
  $region10: #{_lambda_.3} parent=0 // pred_check
    _
  $region11: #{_lambda_.3} parent=0 // pred_check_branch
    %13 = sbr.rel (0) target = $region13
  $region12: #{_lambda_.3} parent=0 // pred_region
    _
  $region13: #{_lambda_.3} parent=0 // pred_fallthru
    _
  %v15 = vld [vmem:[%s2] sm:$0xff]
  %v16 = vld [vmem:[%s2 + $0x8] sm:$0xff]
  %v17 = vld [vmem:[%s2 + $0x10] sm:$0xff]
  %v18 = vld [vmem:[%s2 + $0x18] sm:$0xff]
  %v19 = vld [vmem:[%s2 + $0x20] sm:$0xff]
  %20 = vst [vmem:[#allocation2] sm:$0xff] 0.0
  %21 = vst [vmem:[#allocation2 + $0x8] sm:$0xff] 0.0
  %22 = vst [vmem:[#allocation2 + $0x10] sm:$0xff] 0.0
  %23 = vst [vmem:[#allocation2 + $0x18] sm:$0xff] 0.0
  %24 = vst [vmem:[#allocation2 + $0x20] sm:$0xff] 0.0
  %25 = vst [vmem:[#allocation2 + $0x28] sm:$0xff] 0.0
  %26 = vst [vmem:[#allocation2 + $0x30] sm:$0xff] 0.0
  %27 = vst [vmem:[#allocation2 + $0x38] sm:$0xff] 0.0
  %28 = vst [vmem:[#allocation2 + $0x40] sm:$0xff] 0.0
  %29 = vst [vmem:[#allocation2 + $0x48] sm:$0xff] 0.0
  %v30 = vld [vmem:[%s0] sm:$0xf]
  %v36 = vunpack.c.l.b16 %v15
  %v37 = vunpack.c.h.b16 %v15
  %v38 = vunpack.c.l.b16 %v16
  %v39 = vunpack.c.h.b16 %v16
  %v40 = vunpack.c.l.b16 %v17
  %v41 = vunpack.c.h.b16 %v17
  %v42 = vunpack.c.l.b16 %v18
  %v43 = vunpack.c.h.b16 %v18
  %v44 = vunpack.c.l.b16 %v19
  %v45 = vunpack.c.h.b16 %v19
  %v46 = vpack.c.b16 %v36, %v36
  %v47 = vpack.c.b16 %v37, %v37
  %v48 = vpack.c.b16 %v38, %v38
  %v49 = vpack.c.b16 %v39, %v39
  %v50 = vpack.c.b16 %v40, %v40
  %v51 = vpack.c.b16 %v41, %v41
  %v52 = vpack.c.b16 %v42, %v42
  %v53 = vpack.c.b16 %v43, %v43
  %v54 = vpack.c.b16 %v44, %v44
  %v55 = vpack.c.b16 %v45, %v45
  %vm56 = vcmask 64512
  %v58 = vsel %vm56, %v30, 0
  %vm60 = vcmask 1043456
  %v62 = vsel %vm60, %v46, 0
  %v65 = vsel %vm60, %v47, 0
  %v68 = vsel %vm60, %v48, 0
  %v71 = vsel %vm60, %v49, 0
  %v74 = vsel %vm60, %v50, 0
  %v77 = vsel %vm60, %v51, 0
  %v80 = vsel %vm60, %v52, 0
  %v83 = vsel %vm60, %v53, 0
  %v86 = vsel %vm60, %v54, 0
  %v89 = vsel %vm60, %v55, 0
  %91 = vmatprep.subr.bf16.mxu0 %v65
  %92 = vmatpush1.bf16.msra.mxu0 %v62
  %93 = vmatprep.subr.bf16.mxu0 0
  %94 = vmatpush1.bf16.msra.mxu0 0
  %95 = vmatprep.subr.bf16.mxu0 0
  %96 = vmatpush1.bf16.msra.mxu0 0
  %97 = vmatprep.subr.bf16.mxu0 0
  %98 = vmatpush1.bf16.msra.mxu0 0
  %99 = vmatprep.subr.bf16.mxu0 0
  %100 = vmatpush1.bf16.msra.mxu0 0
  %101 = vmatprep.subr.bf16.mxu0 0
  %102 = vmatpush1.bf16.msra.mxu0 0
  %103 = vmatprep.subr.bf16.mxu0 0
  %104 = vmatpush1.bf16.msra.mxu0 0
  %105 = vmatprep.subr.bf16.mxu0 0
  %106 = vmatpush1.bf16.msra.mxu0 0
  %107 = vmatprep.subr.bf16.mxu0 0
  %108 = vmatpush1.bf16.msra.mxu0 0
  %109 = vmatprep.subr.bf16.mxu0 0
  %110 = vmatpush1.bf16.msra.mxu0 0
  %111 = vmatprep.subr.bf16.mxu0 0
  %112 = vmatpush1.bf16.msra.mxu0 0
  %113 = vmatprep.subr.bf16.mxu0 0
  %114 = vmatpush1.bf16.msra.mxu0 0
  %115 = vmatprep.subr.bf16.mxu0 0
  %116 = vmatpush1.bf16.msra.mxu0 0
  %117 = vmatprep.subr.bf16.mxu0 0
  %118 = vmatpush1.bf16.msra.mxu0 0
  %119 = vmatprep.subr.bf16.mxu0 0
  %120 = vmatpush1.bf16.msra.mxu0 0
  %121 = vmatprep.subr.bf16.mxu0 0
  %122 = vmatpush1.bf16.msra.mxu0 0
  %123 = vmatprep.mubr.bf16.mxu0 0
  %124 = vmatmul.mubr.bf16.gmra.mrb[0].mxu0 %v58
  %v125 = vpop.f32.mrb[0].mxu0
  %v126 = vadd.f32 0.0, %v125
  %v127 = vpop.f32.mrb[0].mxu0
  %v128 = vadd.f32 0.0, %v127
  %v129 = vpop.f32.mrb[0].mxu0
  %v130 = vpop.f32.mrb[0].mxu0
  %131 = vdwg.mxu0
  %132 = vmatprep.subr.bf16.mxu0 %v71
  %133 = vmatpush1.bf16.msra.mxu0 %v68
  %134 = vmatprep.subr.bf16.mxu0 0
  %135 = vmatpush1.bf16.msra.mxu0 0
  %136 = vmatprep.subr.bf16.mxu0 0
  %137 = vmatpush1.bf16.msra.mxu0 0
  %138 = vmatprep.subr.bf16.mxu0 0
  %139 = vmatpush1.bf16.msra.mxu0 0
  %140 = vmatprep.subr.bf16.mxu0 0
  %141 = vmatpush1.bf16.msra.mxu0 0
  %142 = vmatprep.subr.bf16.mxu0 0
  %143 = vmatpush1.bf16.msra.mxu0 0
  %144 = vmatprep.subr.bf16.mxu0 0
  %145 = vmatpush1.bf16.msra.mxu0 0
  %146 = vmatprep.subr.bf16.mxu0 0
  %147 = vmatpush1.bf16.msra.mxu0 0
  %148 = vmatprep.subr.bf16.mxu0 0
  %149 = vmatpush1.bf16.msra.mxu0 0
  %150 = vmatprep.subr.bf16.mxu0 0
  %151 = vmatpush1.bf16.msra.mxu0 0
  %152 = vmatprep.subr.bf16.mxu0 0
  %153 = vmatpush1.bf16.msra.mxu0 0
  %154 = vmatprep.subr.bf16.mxu0 0
  %155 = vmatpush1.bf16.msra.mxu0 0
  %156 = vmatprep.subr.bf16.mxu0 0
  %157 = vmatpush1.bf16.msra.mxu0 0
  %158 = vmatprep.subr.bf16.mxu0 0
  %159 = vmatpush1.bf16.msra.mxu0 0
  %160 = vmatprep.subr.bf16.mxu0 0
  %161 = vmatpush1.bf16.msra.mxu0 0
  %162 = vmatprep.subr.bf16.mxu0 0
  %163 = vmatpush1.bf16.msra.mxu0 0
  %164 = vmatprep.mubr.bf16.mxu0 0
  %165 = vmatmul.mubr.bf16.gmra.mrb[0].mxu0 %v58
  %v166 = vpop.f32.mrb[0].mxu0
  %v167 = vadd.f32 0.0, %v166
  %v168 = vpop.f32.mrb[0].mxu0
  %v169 = vadd.f32 0.0, %v168
  %v170 = vpop.f32.mrb[0].mxu0
  %v171 = vpop.f32.mrb[0].mxu0
  %172 = vdwg.mxu0
  %173 = vmatprep.subr.bf16.mxu0 %v77
  %174 = vmatpush1.bf16.msra.mxu0 %v74
  %175 = vmatprep.subr.bf16.mxu0 0
  %176 = vmatpush1.bf16.msra.mxu0 0
  %177 = vmatprep.subr.bf16.mxu0 0
  %178 = vmatpush1.bf16.msra.mxu0 0
  %179 = vmatprep.subr.bf16.mxu0 0
  %180 = vmatpush1.bf16.msra.mxu0 0
  %181 = vmatprep.subr.bf16.mxu0 0
  %182 = vmatpush1.bf16.msra.mxu0 0
  %183 = vmatprep.subr.bf16.mxu0 0
  %184 = vmatpush1.bf16.msra.mxu0 0
  %185 = vmatprep.subr.bf16.mxu0 0
  %186 = vmatpush1.bf16.msra.mxu0 0
  %187 = vmatprep.subr.bf16.mxu0 0
  %188 = vmatpush1.bf16.msra.mxu0 0
  %189 = vmatprep.subr.bf16.mxu0 0
  %190 = vmatpush1.bf16.msra.mxu0 0
  %191 = vmatprep.subr.bf16.mxu0 0
  %192 = vmatpush1.bf16.msra.mxu0 0
  %193 = vmatprep.subr.bf16.mxu0 0
  %194 = vmatpush1.bf16.msra.mxu0 0
  %195 = vmatprep.subr.bf16.mxu0 0
  %196 = vmatpush1.bf16.msra.mxu0 0
  %197 = vmatprep.subr.bf16.mxu0 0
  %198 = vmatpush1.bf16.msra.mxu0 0
  %199 = vmatprep.subr.bf16.mxu0 0
  %200 = vmatpush1.bf16.msra.mxu0 0
  %201 = vmatprep.subr.bf16.mxu0 0
  %202 = vmatpush1.bf16.msra.mxu0 0
  %203 = vmatprep.subr.bf16.mxu0 0
  %204 = vmatpush1.bf16.msra.mxu0 0
  %205 = vmatprep.mubr.bf16.mxu0 0
  %206 = vmatmul.mubr.bf16.gmra.mrb[0].mxu0 %v58
  %v207 = vpop.f32.mrb[0].mxu0
  %v208 = vadd.f32 0.0, %v207
  %v209 = vpop.f32.mrb[0].mxu0
  %v210 = vadd.f32 0.0, %v209
  %v211 = vpop.f32.mrb[0].mxu0
  %v212 = vpop.f32.mrb[0].mxu0
  %213 = vdwg.mxu0
  %214 = vmatprep.subr.bf16.mxu0 %v83
  %215 = vmatpush1.bf16.msra.mxu0 %v80
  %216 = vmatprep.subr.bf16.mxu0 0
  %217 = vmatpush1.bf16.msra.mxu0 0
  %218 = vmatprep.subr.bf16.mxu0 0
  %219 = vmatpush1.bf16.msra.mxu0 0
  %220 = vmatprep.subr.bf16.mxu0 0
  %221 = vmatpush1.bf16.msra.mxu0 0
  %222 = vmatprep.subr.bf16.mxu0 0
  %223 = vmatpush1.bf16.msra.mxu0 0
  %224 = vmatprep.subr.bf16.mxu0 0
  %225 = vmatpush1.bf16.msra.mxu0 0
  %226 = vmatprep.subr.bf16.mxu0 0
  %227 = vmatpush1.bf16.msra.mxu0 0
  %228 = vmatprep.subr.bf16.mxu0 0
  %229 = vmatpush1.bf16.msra.mxu0 0
  %230 = vmatprep.subr.bf16.mxu0 0
  %231 = vmatpush1.bf16.msra.mxu0 0
  %232 = vmatprep.subr.bf16.mxu0 0
  %233 = vmatpush1.bf16.msra.mxu0 0
  %234 = vmatprep.subr.bf16.mxu0 0
  %235 = vmatpush1.bf16.msra.mxu0 0
  %236 = vmatprep.subr.bf16.mxu0 0
  %237 = vmatpush1.bf16.msra.mxu0 0
  %238 = vmatprep.subr.bf16.mxu0 0
  %239 = vmatpush1.bf16.msra.mxu0 0
  %240 = vmatprep.subr.bf16.mxu0 0
  %241 = vmatpush1.bf16.msra.mxu0 0
  %242 = vmatprep.subr.bf16.mxu0 0
  %243 = vmatpush1.bf16.msra.mxu0 0
  %244 = vmatprep.subr.bf16.mxu0 0
  %245 = vmatpush1.bf16.msra.mxu0 0
  %246 = vmatprep.mubr.bf16.mxu0 0
  %247 = vmatmul.mubr.bf16.gmra.mrb[0].mxu0 %v58
  %v248 = vpop.f32.mrb[0].mxu0
  %v249 = vadd.f32 0.0, %v248
  %v250 = vpop.f32.mrb[0].mxu0
  %v251 = vadd.f32 0.0, %v250
  %v252 = vpop.f32.mrb[0].mxu0
  %v253 = vpop.f32.mrb[0].mxu0
  %254 = vdwg.mxu0
  %255 = vmatprep.subr.bf16.mxu0 %v89
  %256 = vmatpush1.bf16.msra.mxu0 %v86
  %257 = vmatprep.subr.bf16.mxu0 0
  %258 = vmatpush1.bf16.msra.mxu0 0
  %259 = vmatprep.subr.bf16.mxu0 0
  %260 = vmatpush1.bf16.msra.mxu0 0
  %261 = vmatprep.subr.bf16.mxu0 0
  %262 = vmatpush1.bf16.msra.mxu0 0
  %263 = vmatprep.subr.bf16.mxu0 0
  %264 = vmatpush1.bf16.msra.mxu0 0
  %265 = vmatprep.subr.bf16.mxu0 0
  %266 = vmatpush1.bf16.msra.mxu0 0
  %267 = vmatprep.subr.bf16.mxu0 0
  %268 = vmatpush1.bf16.msra.mxu0 0
  %269 = vmatprep.subr.bf16.mxu0 0
  %270 = vmatpush1.bf16.msra.mxu0 0
  %271 = vmatprep.subr.bf16.mxu0 0
  %272 = vmatpush1.bf16.msra.mxu0 0
  %273 = vmatprep.subr.bf16.mxu0 0
  %274 = vmatpush1.bf16.msra.mxu0 0
  %275 = vmatprep.subr.bf16.mxu0 0
  %276 = vmatpush1.bf16.msra.mxu0 0
  %277 = vmatprep.subr.bf16.mxu0 0
  %278 = vmatpush1.bf16.msra.mxu0 0
  %279 = vmatprep.subr.bf16.mxu0 0
  %280 = vmatpush1.bf16.msra.mxu0 0
  %281 = vmatprep.subr.bf16.mxu0 0
  %282 = vmatpush1.bf16.msra.mxu0 0
  %283 = vmatprep.subr.bf16.mxu0 0
  %284 = vmatpush1.bf16.msra.mxu0 0
  %285 = vmatprep.subr.bf16.mxu0 0
  %286 = vmatpush1.bf16.msra.mxu0 0
  %287 = vmatprep.mubr.bf16.mxu0 0
  %288 = vmatmul.mubr.bf16.gmra.mrb[0].mxu0 %v58
  %v289 = vpop.f32.mrb[0].mxu0
  %v290 = vadd.f32 0.0, %v289
  %v291 = vpop.f32.mrb[0].mxu0
  %v292 = vadd.f32 0.0, %v291
  %v293 = vpop.f32.mrb[0].mxu0
  %v294 = vpop.f32.mrb[0].mxu0
  %295 = vdwg.mxu0
  %v296 = vld [vmem:[#allocation2] sm:$0xff]
  %v297 = vld [vmem:[#allocation2 + $0x8] sm:$0xff]
  %v298 = vld [vmem:[#allocation2 + $0x10] sm:$0xff]
  %v299 = vld [vmem:[#allocation2 + $0x18] sm:$0xff]
  %v300 = vld [vmem:[#allocation2 + $0x20] sm:$0xff]
  %v301 = vld [vmem:[#allocation2 + $0x28] sm:$0xff]
  %v302 = vld [vmem:[#allocation2 + $0x30] sm:$0xff]
  %v303 = vld [vmem:[#allocation2 + $0x38] sm:$0xff]
  %v304 = vld [vmem:[#allocation2 + $0x40] sm:$0xff]
  %v305 = vld [vmem:[#allocation2 + $0x48] sm:$0xff]
  %v306 = vadd.f32 %v296, %v126
  %v307 = vadd.f32 %v297, %v128
  %v308 = vadd.f32 %v298, %v167
  %v309 = vadd.f32 %v299, %v169
  %v310 = vadd.f32 %v300, %v208
  %v311 = vadd.f32 %v301, %v210
  %v312 = vadd.f32 %v302, %v249
  %v313 = vadd.f32 %v303, %v251
  %v314 = vadd.f32 %v304, %v290
  %v315 = vadd.f32 %v305, %v292
  %316 = vst [vmem:[#allocation2] sm:$0xff] %v306
  %317 = vst [vmem:[#allocation2 + $0x8] sm:$0xff] %v307
  %318 = vst [vmem:[#allocation2 + $0x10] sm:$0xff] %v308
  %319 = vst [vmem:[#allocation2 + $0x18] sm:$0xff] %v309
  %320 = vst [vmem:[#allocation2 + $0x20] sm:$0xff] %v310
  %321 = vst [vmem:[#allocation2 + $0x28] sm:$0xff] %v311
  %322 = vst [vmem:[#allocation2 + $0x30] sm:$0xff] %v312
  %323 = vst [vmem:[#allocation2 + $0x38] sm:$0xff] %v313
  %324 = vst [vmem:[#allocation2 + $0x40] sm:$0xff] %v314
  %325 = vst [vmem:[#allocation2 + $0x48] sm:$0xff] %v315
  %s326 = scalar_lea.vmem %s0, 4
  %v327 = vld [vmem:[%s326] sm:$0xf]
  %v329 = vsel %vm56, %v327, 0
  %331 = vmatprep.subr.bf16.mxu0 %v65
  %332 = vmatpush1.bf16.msra.mxu0 %v62
  %333 = vmatprep.subr.bf16.mxu0 0
  %334 = vmatpush1.bf16.msra.mxu0 0
  %335 = vmatprep.subr.bf16.mxu0 0
  %336 = vmatpush1.bf16.msra.mxu0 0
  %337 = vmatprep.subr.bf16.mxu0 0
  %338 = vmatpush1.bf16.msra.mxu0 0
  %339 = vmatprep.subr.bf16.mxu0 0
  %340 = vmatpush1.bf16.msra.mxu0 0
  %341 = vmatprep.subr.bf16.mxu0 0
  %342 = vmatpush1.bf16.msra.mxu0 0
  %343 = vmatprep.subr.bf16.mxu0 0
  %344 = vmatpush1.bf16.msra.mxu0 0
  %345 = vmatprep.subr.bf16.mxu0 0
  %346 = vmatpush1.bf16.msra.mxu0 0
  %347 = vmatprep.subr.bf16.mxu0 0
  %348 = vmatpush1.bf16.msra.mxu0 0
  %349 = vmatprep.subr.bf16.mxu0 0
  %350 = vmatpush1.bf16.msra.mxu0 0
  %351 = vmatprep.subr.bf16.mxu0 0
  %352 = vmatpush1.bf16.msra.mxu0 0
  %353 = vmatprep.subr.bf16.mxu0 0
  %354 = vmatpush1.bf16.msra.mxu0 0
  %355 = vmatprep.subr.bf16.mxu0 0
  %356 = vmatpush1.bf16.msra.mxu0 0
  %357 = vmatprep.subr.bf16.mxu0 0
  %358 = vmatpush1.bf16.msra.mxu0 0
  %359 = vmatprep.subr.bf16.mxu0 0
  %360 = vmatpush1.bf16.msra.mxu0 0
  %361 = vmatprep.subr.bf16.mxu0 0
  %362 = vmatpush1.bf16.msra.mxu0 0
  %363 = vmatprep.mubr.bf16.mxu0 0
  %364 = vmatmul.mubr.bf16.gmra.mrb[0].mxu0 %v329
  %v365 = vpop.f32.mrb[0].mxu0
  %v366 = vadd.f32 0.0, %v365
  %v367 = vpop.f32.mrb[0].mxu0
  %v368 = vadd.f32 0.0, %v367
  %v369 = vpop.f32.mrb[0].mxu0
  %v370 = vpop.f32.mrb[0].mxu0
  %371 = vdwg.mxu0
  %372 = vmatprep.subr.bf16.mxu0 %v71
  %373 = vmatpush1.bf16.msra.mxu0 %v68
  %374 = vmatprep.subr.bf16.mxu0 0
  %375 = vmatpush1.bf16.msra.mxu0 0
  %376 = vmatprep.subr.bf16.mxu0 0
  %377 = vmatpush1.bf16.msra.mxu0 0
  %378 = vmatprep.subr.bf16.mxu0 0
  %379 = vmatpush1.bf16.msra.mxu0 0
  %380 = vmatprep.subr.bf16.mxu0 0
  %381 = vmatpush1.bf16.msra.mxu0 0
  %382 = vmatprep.subr.bf16.mxu0 0
  %383 = vmatpush1.bf16.msra.mxu0 0
  %384 = vmatprep.subr.bf16.mxu0 0
  %385 = vmatpush1.bf16.msra.mxu0 0
  %386 = vmatprep.subr.bf16.mxu0 0
  %387 = vmatpush1.bf16.msra.mxu0 0
  %388 = vmatprep.subr.bf16.mxu0 0
  %389 = vmatpush1.bf16.msra.mxu0 0
  %390 = vmatprep.subr.bf16.mxu0 0
  %391 = vmatpush1.bf16.msra.mxu0 0
  %392 = vmatprep.subr.bf16.mxu0 0
  %393 = vmatpush1.bf16.msra.mxu0 0
  %394 = vmatprep.subr.bf16.mxu0 0
  %395 = vmatpush1.bf16.msra.mxu0 0
  %396 = vmatprep.subr.bf16.mxu0 0
  %397 = vmatpush1.bf16.msra.mxu0 0
  %398 = vmatprep.subr.bf16.mxu0 0
  %399 = vmatpush1.bf16.msra.mxu0 0
  %400 = vmatprep.subr.bf16.mxu0 0
  %401 = vmatpush1.bf16.msra.mxu0 0
  %402 = vmatprep.subr.bf16.mxu0 0
  %403 = vmatpush1.bf16.msra.mxu0 0
  %404 = vmatprep.mubr.bf16.mxu0 0
  %405 = vmatmul.mubr.bf16.gmra.mrb[0].mxu0 %v329
  %v406 = vpop.f32.mrb[0].mxu0
  %v407 = vadd.f32 0.0, %v406
  %v408 = vpop.f32.mrb[0].mxu0
  %v409 = vadd.f32 0.0, %v408
  %v410 = vpop.f32.mrb[0].mxu0
  %v411 = vpop.f32.mrb[0].mxu0
  %412 = vdwg.mxu0
  %413 = vmatprep.subr.bf16.mxu0 %v77
  %414 = vmatpush1.bf16.msra.mxu0 %v74
  %415 = vmatprep.subr.bf16.mxu0 0
  %416 = vmatpush1.bf16.msra.mxu0 0
  %417 = vmatprep.subr.bf16.mxu0 0
  %418 = vmatpush1.bf16.msra.mxu0 0
  %419 = vmatprep.subr.bf16.mxu0 0
  %420 = vmatpush1.bf16.msra.mxu0 0
  %421 = vmatprep.subr.bf16.mxu0 0
  %422 = vmatpush1.bf16.msra.mxu0 0
  %423 = vmatprep.subr.bf16.mxu0 0
  %424 = vmatpush1.bf16.msra.mxu0 0
  %425 = vmatprep.subr.bf16.mxu0 0
  %426 = vmatpush1.bf16.msra.mxu0 0
  %427 = vmatprep.subr.bf16.mxu0 0
  %428 = vmatpush1.bf16.msra.mxu0 0
  %429 = vmatprep.subr.bf16.mxu0 0
  %430 = vmatpush1.bf16.msra.mxu0 0
  %431 = vmatprep.subr.bf16.mxu0 0
  %432 = vmatpush1.bf16.msra.mxu0 0
  %433 = vmatprep.subr.bf16.mxu0 0
  %434 = vmatpush1.bf16.msra.mxu0 0
  %435 = vmatprep.subr.bf16.mxu0 0
  %436 = vmatpush1.bf16.msra.mxu0 0
  %437 = vmatprep.subr.bf16.mxu0 0
  %438 = vmatpush1.bf16.msra.mxu0 0
  %439 = vmatprep.subr.bf16.mxu0 0
  %440 = vmatpush1.bf16.msra.mxu0 0
  %441 = vmatprep.subr.bf16.mxu0 0
  %442 = vmatpush1.bf16.msra.mxu0 0
  %443 = vmatprep.subr.bf16.mxu0 0
  %444 = vmatpush1.bf16.msra.mxu0 0
  %445 = vmatprep.mubr.bf16.mxu0 0
  %446 = vmatmul.mubr.bf16.gmra.mrb[0].mxu0 %v329
  %v447 = vpop.f32.mrb[0].mxu0
  %v448 = vadd.f32 0.0, %v447
  %v449 = vpop.f32.mrb[0].mxu0
  %v450 = vadd.f32 0.0, %v449
  %v451 = vpop.f32.mrb[0].mxu0
  %v452 = vpop.f32.mrb[0].mxu0
  %453 = vdwg.mxu0
  %454 = vmatprep.subr.bf16.mxu0 %v83
  %455 = vmatpush1.bf16.msra.mxu0 %v80
  %456 = vmatprep.subr.bf16.mxu0 0
  %457 = vmatpush1.bf16.msra.mxu0 0
  %458 = vmatprep.subr.bf16.mxu0 0
  %459 = vmatpush1.bf16.msra.mxu0 0
  %460 = vmatprep.subr.bf16.mxu0 0
  %461 = vmatpush1.bf16.msra.mxu0 0
  %462 = vmatprep.subr.bf16.mxu0 0
  %463 = vmatpush1.bf16.msra.mxu0 0
  %464 = vmatprep.subr.bf16.mxu0 0
  %465 = vmatpush1.bf16.msra.mxu0 0
  %466 = vmatprep.subr.bf16.mxu0 0
  %467 = vmatpush1.bf16.msra.mxu0 0
  %468 = vmatprep.subr.bf16.mxu0 0
  %469 = vmatpush1.bf16.msra.mxu0 0
  %470 = vmatprep.subr.bf16.mxu0 0
  %471 = vmatpush1.bf16.msra.mxu0 0
  %472 = vmatprep.subr.bf16.mxu0 0
  %473 = vmatpush1.bf16.msra.mxu0 0
  %474 = vmatprep.subr.bf16.mxu0 0
  %475 = vmatpush1.bf16.msra.mxu0 0
  %476 = vmatprep.subr.bf16.mxu0 0
  %477 = vmatpush1.bf16.msra.mxu0 0
  %478 = vmatprep.subr.bf16.mxu0 0
  %479 = vmatpush1.bf16.msra.mxu0 0
  %480 = vmatprep.subr.bf16.mxu0 0
  %481 = vmatpush1.bf16.msra.mxu0 0
  %482 = vmatprep.subr.bf16.mxu0 0
  %483 = vmatpush1.bf16.msra.mxu0 0
  %484 = vmatprep.subr.bf16.mxu0 0
  %485 = vmatpush1.bf16.msra.mxu0 0
  %486 = vmatprep.mubr.bf16.mxu0 0
  %487 = vmatmul.mubr.bf16.gmra.mrb[0].mxu0 %v329
  %v488 = vpop.f32.mrb[0].mxu0
  %v489 = vadd.f32 0.0, %v488
  %v490 = vpop.f32.mrb[0].mxu0
  %v491 = vadd.f32 0.0, %v490
  %v492 = vpop.f32.mrb[0].mxu0
  %v493 = vpop.f32.mrb[0].mxu0
  %494 = vdwg.mxu0
  %495 = vmatprep.subr.bf16.mxu0 %v89
  %496 = vmatpush1.bf16.msra.mxu0 %v86
  %497 = vmatprep.subr.bf16.mxu0 0
  %498 = vmatpush1.bf16.msra.mxu0 0
  %499 = vmatprep.subr.bf16.mxu0 0
  %500 = vmatpush1.bf16.msra.mxu0 0
  %501 = vmatprep.subr.bf16.mxu0 0
  %502 = vmatpush1.bf16.msra.mxu0 0
  %503 = vmatprep.subr.bf16.mxu0 0
  %504 = vmatpush1.bf16.msra.mxu0 0
  %505 = vmatprep.subr.bf16.mxu0 0
  %506 = vmatpush1.bf16.msra.mxu0 0
  %507 = vmatprep.subr.bf16.mxu0 0
  %508 = vmatpush1.bf16.msra.mxu0 0
  %509 = vmatprep.subr.bf16.mxu0 0
  %510 = vmatpush1.bf16.msra.mxu0 0
  %511 = vmatprep.subr.bf16.mxu0 0
  %512 = vmatpush1.bf16.msra.mxu0 0
  %513 = vmatprep.subr.bf16.mxu0 0
  %514 = vmatpush1.bf16.msra.mxu0 0
  %515 = vmatprep.subr.bf16.mxu0 0
  %516 = vmatpush1.bf16.msra.mxu0 0
  %517 = vmatprep.subr.bf16.mxu0 0
  %518 = vmatpush1.bf16.msra.mxu0 0
  %519 = vmatprep.subr.bf16.mxu0 0
  %520 = vmatpush1.bf16.msra.mxu0 0
  %521 = vmatprep.subr.bf16.mxu0 0
  %522 = vmatpush1.bf16.msra.mxu0 0
  %523 = vmatprep.subr.bf16.mxu0 0
  %524 = vmatpush1.bf16.msra.mxu0 0
  %525 = vmatprep.subr.bf16.mxu0 0
  %526 = vmatpush1.bf16.msra.mxu0 0
  %527 = vmatprep.mubr.bf16.mxu0 0
  %528 = vmatmul.mubr.bf16.gmra.mrb[0].mxu0 %v329
  %v529 = vpop.f32.mrb[0].mxu0
  %v530 = vadd.f32 0.0, %v529
  %v531 = vpop.f32.mrb[0].mxu0
  %v532 = vadd.f32 0.0, %v531
  %v533 = vpop.f32.mrb[0].mxu0
  %v534 = vpop.f32.mrb[0].mxu0
  %535 = vdwg.mxu0
  %v536 = vld [vmem:[#allocation2] sm:$0xff]
  %v537 = vld [vmem:[#allocation2 + $0x8] sm:$0xff]
  %v538 = vld [vmem:[#allocation2 + $0x10] sm:$0xff]
  %v539 = vld [vmem:[#allocation2 + $0x18] sm:$0xff]
  %v540 = vld [vmem:[#allocation2 + $0x20] sm:$0xff]
  %v541 = vld [vmem:[#allocation2 + $0x28] sm:$0xff]
  %v542 = vld [vmem:[#allocation2 + $0x30] sm:$0xff]
  %v543 = vld [vmem:[#allocation2 + $0x38] sm:$0xff]
  %v544 = vld [vmem:[#allocation2 + $0x40] sm:$0xff]
  %v545 = vld [vmem:[#allocation2 + $0x48] sm:$0xff]
  %556 = vrot.lane.b32.xlu0 %v366, 127
  %v557 = vpop.permute.xlu0 %556
  %558 = vrot.lane.b32.xlu0 %v368, 127
  %v559 = vpop.permute.xlu0 %558
  %560 = vrot.lane.b32.xlu0 %v407, 127
  %v561 = vpop.permute.xlu0 %560
  %562 = vrot.lane.b32.xlu0 %v409, 127
  %v563 = vpop.permute.xlu0 %562
  %564 = vrot.lane.b32.xlu0 %v448, 127
  %v565 = vpop.permute.xlu0 %564
  %566 = vrot.lane.b32.xlu0 %v450, 127
  %v567 = vpop.permute.xlu0 %566
  %568 = vrot.lane.b32.xlu0 %v489, 127
  %v569 = vpop.permute.xlu0 %568
  %570 = vrot.lane.b32.xlu0 %v491, 127
  %v571 = vpop.permute.xlu0 %570
  %572 = vrot.lane.b32.xlu0 %v530, 127
  %v573 = vpop.permute.xlu0 %572
  %574 = vrot.lane.b32.xlu0 %v532, 127
  %v575 = vpop.permute.xlu0 %574
  %vm576 = vcmask 1039360
  %v577 = vsel %vm576, %v557, %v559
  %v578 = vsel %vm576, %v559, %v561
  %v579 = vsel %vm576, %v561, %v563
  %v580 = vsel %vm576, %v563, %v565
  %v581 = vsel %vm576, %v565, %v567
  %v582 = vsel %vm576, %v567, %v569
  %v583 = vsel %vm576, %v569, %v571
  %v584 = vsel %vm576, %v571, %v573
  %v585 = vsel %vm576, %v573, %v575
  %v596 = vadd.f32 %v536, %v577
  %v597 = vadd.f32 %v537, %v578
  %v598 = vadd.f32 %v538, %v579
  %v599 = vadd.f32 %v539, %v580
  %v600 = vadd.f32 %v540, %v581
  %v601 = vadd.f32 %v541, %v582
  %v602 = vadd.f32 %v542, %v583
  %v603 = vadd.f32 %v543, %v584
  %v604 = vadd.f32 %v544, %v585
  %v605 = vadd.f32 %v545, %v575
  %606 = vst [vmem:[#allocation2] sm:$0xff] %v596
  %607 = vst [vmem:[#allocation2 + $0x8] sm:$0xff] %v597
  %608 = vst [vmem:[#allocation2 + $0x10] sm:$0xff] %v598
  %609 = vst [vmem:[#allocation2 + $0x18] sm:$0xff] %v599
  %610 = vst [vmem:[#allocation2 + $0x20] sm:$0xff] %v600
  %611 = vst [vmem:[#allocation2 + $0x28] sm:$0xff] %v601
  %612 = vst [vmem:[#allocation2 + $0x30] sm:$0xff] %v602
  %613 = vst [vmem:[#allocation2 + $0x38] sm:$0xff] %v603
  %614 = vst [vmem:[#allocation2 + $0x40] sm:$0xff] %v604
  %615 = vst.msk [vmem:[#allocation2 + $0x48] sm:$0xff] %vm576, %v605
  %s616 = scalar_lea.vmem %s0, 8
  %v617 = vld [vmem:[%s616] sm:$0xf]
  %v619 = vsel %vm56, %v617, 0
  %621 = vmatprep.subr.bf16.mxu0 %v65
  %622 = vmatpush1.bf16.msra.mxu0 %v62
  %623 = vmatprep.subr.bf16.mxu0 0
  %624 = vmatpush1.bf16.msra.mxu0 0
  %625 = vmatprep.subr.bf16.mxu0 0
  %626 = vmatpush1.bf16.msra.mxu0 0
  %627 = vmatprep.subr.bf16.mxu0 0
  %628 = vmatpush1.bf16.msra.mxu0 0
  %629 = vmatprep.subr.bf16.mxu0 0
  %630 = vmatpush1.bf16.msra.mxu0 0
  %631 = vmatprep.subr.bf16.mxu0 0
  %632 = vmatpush1.bf16.msra.mxu0 0
  %633 = vmatprep.subr.bf16.mxu0 0
  %634 = vmatpush1.bf16.msra.mxu0 0
  %635 = vmatprep.subr.bf16.mxu0 0
  %636 = vmatpush1.bf16.msra.mxu0 0
  %637 = vmatprep.subr.bf16.mxu0 0
  %638 = vmatpush1.bf16.msra.mxu0 0
  %639 = vmatprep.subr.bf16.mxu0 0
  %640 = vmatpush1.bf16.msra.mxu0 0
  %641 = vmatprep.subr.bf16.mxu0 0
  %642 = vmatpush1.bf16.msra.mxu0 0
  %643 = vmatprep.subr.bf16.mxu0 0
  %644 = vmatpush1.bf16.msra.mxu0 0
  %645 = vmatprep.subr.bf16.mxu0 0
  %646 = vmatpush1.bf16.msra.mxu0 0
  %647 = vmatprep.subr.bf16.mxu0 0
  %648 = vmatpush1.bf16.msra.mxu0 0
  %649 = vmatprep.subr.bf16.mxu0 0
  %650 = vmatpush1.bf16.msra.mxu0 0
  %651 = vmatprep.subr.bf16.mxu0 0
  %652 = vmatpush1.bf16.msra.mxu0 0
  %653 = vmatprep.mubr.bf16.mxu0 0
  %654 = vmatmul.mubr.bf16.gmra.mrb[0].mxu0 %v619
  %v655 = vpop.f32.mrb[0].mxu0
  %v656 = vadd.f32 0.0, %v655
  %v657 = vpop.f32.mrb[0].mxu0
  %v658 = vadd.f32 0.0, %v657
  %v659 = vpop.f32.mrb[0].mxu0
  %v660 = vpop.f32.mrb[0].mxu0
  %661 = vdwg.mxu0
  %662 = vmatprep.subr.bf16.mxu0 %v71
  %663 = vmatpush1.bf16.msra.mxu0 %v68
  %664 = vmatprep.subr.bf16.mxu0 0
  %665 = vmatpush1.bf16.msra.mxu0 0
  %666 = vmatprep.subr.bf16.mxu0 0
  %667 = vmatpush1.bf16.msra.mxu0 0
  %668 = vmatprep.subr.bf16.mxu0 0
  %669 = vmatpush1.bf16.msra.mxu0 0
  %670 = vmatprep.subr.bf16.mxu0 0
  %671 = vmatpush1.bf16.msra.mxu0 0
  %672 = vmatprep.subr.bf16.mxu0 0
  %673 = vmatpush1.bf16.msra.mxu0 0
  %674 = vmatprep.subr.bf16.mxu0 0
  %675 = vmatpush1.bf16.msra.mxu0 0
  %676 = vmatprep.subr.bf16.mxu0 0
  %677 = vmatpush1.bf16.msra.mxu0 0
  %678 = vmatprep.subr.bf16.mxu0 0
  %679 = vmatpush1.bf16.msra.mxu0 0
  %680 = vmatprep.subr.bf16.mxu0 0
  %681 = vmatpush1.bf16.msra.mxu0 0
  %682 = vmatprep.subr.bf16.mxu0 0
  %683 = vmatpush1.bf16.msra.mxu0 0
  %684 = vmatprep.subr.bf16.mxu0 0
  %685 = vmatpush1.bf16.msra.mxu0 0
  %686 = vmatprep.subr.bf16.mxu0 0
  %687 = vmatpush1.bf16.msra.mxu0 0
  %688 = vmatprep.subr.bf16.mxu0 0
  %689 = vmatpush1.bf16.msra.mxu0 0
  %690 = vmatprep.subr.bf16.mxu0 0
  %691 = vmatpush1.bf16.msra.mxu0 0
  %692 = vmatprep.subr.bf16.mxu0 0
  %693 = vmatpush1.bf16.msra.mxu0 0
  %694 = vmatprep.mubr.bf16.mxu0 0
  %695 = vmatmul.mubr.bf16.gmra.mrb[0].mxu0 %v619
  %v696 = vpop.f32.mrb[0].mxu0
  %v697 = vadd.f32 0.0, %v696
  %v698 = vpop.f32.mrb[0].mxu0
  %v699 = vadd.f32 0.0, %v698
  %v700 = vpop.f32.mrb[0].mxu0
  %v701 = vpop.f32.mrb[0].mxu0
  %702 = vdwg.mxu0
  %703 = vmatprep.subr.bf16.mxu0 %v77
  %704 = vmatpush1.bf16.msra.mxu0 %v74
  %705 = vmatprep.subr.bf16.mxu0 0
  %706 = vmatpush1.bf16.msra.mxu0 0
  %707 = vmatprep.subr.bf16.mxu0 0
  %708 = vmatpush1.bf16.msra.mxu0 0
  %709 = vmatprep.subr.bf16.mxu0 0
  %710 = vmatpush1.bf16.msra.mxu0 0
  %711 = vmatprep.subr.bf16.mxu0 0
  %712 = vmatpush1.bf16.msra.mxu0 0
  %713 = vmatprep.subr.bf16.mxu0 0
  %714 = vmatpush1.bf16.msra.mxu0 0
  %715 = vmatprep.subr.bf16.mxu0 0
  %716 = vmatpush1.bf16.msra.mxu0 0
  %717 = vmatprep.subr.bf16.mxu0 0
  %718 = vmatpush1.bf16.msra.mxu0 0
  %719 = vmatprep.subr.bf16.mxu0 0
  %720 = vmatpush1.bf16.msra.mxu0 0
  %721 = vmatprep.subr.bf16.mxu0 0
  %722 = vmatpush1.bf16.msra.mxu0 0
  %723 = vmatprep.subr.bf16.mxu0 0
  %724 = vmatpush1.bf16.msra.mxu0 0
  %725 = vmatprep.subr.bf16.mxu0 0
  %726 = vmatpush1.bf16.msra.mxu0 0
  %727 = vmatprep.subr.bf16.mxu0 0
  %728 = vmatpush1.bf16.msra.mxu0 0
  %729 = vmatprep.subr.bf16.mxu0 0
  %730 = vmatpush1.bf16.msra.mxu0 0
  %731 = vmatprep.subr.bf16.mxu0 0
  %732 = vmatpush1.bf16.msra.mxu0 0
  %733 = vmatprep.subr.bf16.mxu0 0
  %734 = vmatpush1.bf16.msra.mxu0 0
  %735 = vmatprep.mubr.bf16.mxu0 0
  %736 = vmatmul.mubr.bf16.gmra.mrb[0].mxu0 %v619
  %v737 = vpop.f32.mrb[0].mxu0
  %v738 = vadd.f32 0.0, %v737
  %v739 = vpop.f32.mrb[0].mxu0
  %v740 = vadd.f32 0.0, %v739
  %v741 = vpop.f32.mrb[0].mxu0
  %v742 = vpop.f32.mrb[0].mxu0
  %743 = vdwg.mxu0
  %744 = vmatprep.subr.bf16.mxu0 %v83
  %745 = vmatpush1.bf16.msra.mxu0 %v80
  %746 = vmatprep.subr.bf16.mxu0 0
  %747 = vmatpush1.bf16.msra.mxu0 0
  %748 = vmatprep.subr.bf16.mxu0 0
  %749 = vmatpush1.bf16.msra.mxu0 0
  %750 = vmatprep.subr.bf16.mxu0 0
  %751 = vmatpush1.bf16.msra.mxu0 0
  %752 = vmatprep.subr.bf16.mxu0 0
  %753 = vmatpush1.bf16.msra.mxu0 0
  %754 = vmatprep.subr.bf16.mxu0 0
  %755 = vmatpush1.bf16.msra.mxu0 0
  %756 = vmatprep.subr.bf16.mxu0 0
  %757 = vmatpush1.bf16.msra.mxu0 0
  %758 = vmatprep.subr.bf16.mxu0 0
  %759 = vmatpush1.bf16.msra.mxu0 0
  %760 = vmatprep.subr.bf16.mxu0 0
  %761 = vmatpush1.bf16.msra.mxu0 0
  %762 = vmatprep.subr.bf16.mxu0 0
  %763 = vmatpush1.bf16.msra.mxu0 0
  %764 = vmatprep.subr.bf16.mxu0 0
  %765 = vmatpush1.bf16.msra.mxu0 0
  %766 = vmatprep.subr.bf16.mxu0 0
  %767 = vmatpush1.bf16.msra.mxu0 0
  %768 = vmatprep.subr.bf16.mxu0 0
  %769 = vmatpush1.bf16.msra.mxu0 0
  %770 = vmatprep.subr.bf16.mxu0 0
  %771 = vmatpush1.bf16.msra.mxu0 0
  %772 = vmatprep.subr.bf16.mxu0 0
  %773 = vmatpush1.bf16.msra.mxu0 0
  %774 = vmatprep.subr.bf16.mxu0 0
  %775 = vmatpush1.bf16.msra.mxu0 0
  %776 = vmatprep.mubr.bf16.mxu0 0
  %777 = vmatmul.mubr.bf16.gmra.mrb[0].mxu0 %v619
  %v778 = vpop.f32.mrb[0].mxu0
  %v779 = vadd.f32 0.0, %v778
  %v780 = vpop.f32.mrb[0].mxu0
  %v781 = vadd.f32 0.0, %v780
  %v782 = vpop.f32.mrb[0].mxu0
  %v783 = vpop.f32.mrb[0].mxu0
  %784 = vdwg.mxu0
  %785 = vmatprep.subr.bf16.mxu0 %v89
  %786 = vmatpush1.bf16.msra.mxu0 %v86
  %787 = vmatprep.subr.bf16.mxu0 0
  %788 = vmatpush1.bf16.msra.mxu0 0
  %789 = vmatprep.subr.bf16.mxu0 0
  %790 = vmatpush1.bf16.msra.mxu0 0
  %791 = vmatprep.subr.bf16.mxu0 0
  %792 = vmatpush1.bf16.msra.mxu0 0
  %793 = vmatprep.subr.bf16.mxu0 0
  %794 = vmatpush1.bf16.msra.mxu0 0
  %795 = vmatprep.subr.bf16.mxu0 0
  %796 = vmatpush1.bf16.msra.mxu0 0
  %797 = vmatprep.subr.bf16.mxu0 0
  %798 = vmatpush1.bf16.msra.mxu0 0
  %799 = vmatprep.subr.bf16.mxu0 0
  %800 = vmatpush1.bf16.msra.mxu0 0
  %801 = vmatprep.subr.bf16.mxu0 0
  %802 = vmatpush1.bf16.msra.mxu0 0
  %803 = vmatprep.subr.bf16.mxu0 0
  %804 = vmatpush1.bf16.msra.mxu0 0
  %805 = vmatprep.subr.bf16.mxu0 0
  %806 = vmatpush1.bf16.msra.mxu0 0
  %807 = vmatprep.subr.bf16.mxu0 0
  %808 = vmatpush1.bf16.msra.mxu0 0
  %809 = vmatprep.subr.bf16.mxu0 0
  %810 = vmatpush1.bf16.msra.mxu0 0
  %811 = vmatprep.subr.bf16.mxu0 0
  %812 = vmatpush1.bf16.msra.mxu0 0
  %813 = vmatprep.subr.bf16.mxu0 0
  %814 = vmatpush1.bf16.msra.mxu0 0
  %815 = vmatprep.subr.bf16.mxu0 0
  %816 = vmatpush1.bf16.msra.mxu0 0
  %817 = vmatprep.mubr.bf16.mxu0 0
  %818 = vmatmul.mubr.bf16.gmra.mrb[0].mxu0 %v619
  %v819 = vpop.f32.mrb[0].mxu0
  %v820 = vadd.f32 0.0, %v819
  %v821 = vpop.f32.mrb[0].mxu0
  %v822 = vadd.f32 0.0, %v821
  %v823 = vpop.f32.mrb[0].mxu0
  %v824 = vpop.f32.mrb[0].mxu0
  %825 = vdwg.mxu0
  %v826 = vld [vmem:[#allocation2] sm:$0xff]
  %v827 = vld [vmem:[#allocation2 + $0x8] sm:$0xff]
  %v828 = vld [vmem:[#allocation2 + $0x10] sm:$0xff]
  %v829 = vld [vmem:[#allocation2 + $0x18] sm:$0xff]
  %v830 = vld [vmem:[#allocation2 + $0x20] sm:$0xff]
  %v831 = vld [vmem:[#allocation2 + $0x28] sm:$0xff]
  %v832 = vld [vmem:[#allocation2 + $0x30] sm:$0xff]
  %v833 = vld [vmem:[#allocation2 + $0x38] sm:$0xff]
  %v834 = vld [vmem:[#allocation2 + $0x40] sm:$0xff]
  %v835 = vld [vmem:[#allocation2 + $0x48] sm:$0xff]
  %846 = vrot.lane.b32.xlu0 %v656, 126
  %v847 = vpop.permute.xlu0 %846
  %848 = vrot.lane.b32.xlu0 %v658, 126
  %v849 = vpop.permute.xlu0 %848
  %850 = vrot.lane.b32.xlu0 %v697, 126
  %v851 = vpop.permute.xlu0 %850
  %852 = vrot.lane.b32.xlu0 %v699, 126
  %v853 = vpop.permute.xlu0 %852
  %854 = vrot.lane.b32.xlu0 %v738, 126
  %v855 = vpop.permute.xlu0 %854
  %856 = vrot.lane.b32.xlu0 %v740, 126
  %v857 = vpop.permute.xlu0 %856
  %858 = vrot.lane.b32.xlu0 %v779, 126
  %v859 = vpop.permute.xlu0 %858
  %860 = vrot.lane.b32.xlu0 %v781, 126
  %v861 = vpop.permute.xlu0 %860
  %862 = vrot.lane.b32.xlu0 %v820, 126
  %v863 = vpop.permute.xlu0 %862
  %864 = vrot.lane.b32.xlu0 %v822, 126
  %v865 = vpop.permute.xlu0 %864
  %vm866 = vcmask 1031168
  %v867 = vsel %vm866, %v847, %v849
  %v868 = vsel %vm866, %v849, %v851
  %v869 = vsel %vm866, %v851, %v853
  %v870 = vsel %vm866, %v853, %v855
  %v871 = vsel %vm866, %v855, %v857
  %v872 = vsel %vm866, %v857, %v859
  %v873 = vsel %vm866, %v859, %v861
  %v874 = vsel %vm866, %v861, %v863
  %v875 = vsel %vm866, %v863, %v865
  %v886 = vadd.f32 %v826, %v867
  %v887 = vadd.f32 %v827, %v868
  %v888 = vadd.f32 %v828, %v869
  %v889 = vadd.f32 %v829, %v870
  %v890 = vadd.f32 %v830, %v871
  %v891 = vadd.f32 %v831, %v872
  %v892 = vadd.f32 %v832, %v873
  %v893 = vadd.f32 %v833, %v874
  %v894 = vadd.f32 %v834, %v875
  %v895 = vadd.f32 %v835, %v865
  %896 = vst [vmem:[#allocation2] sm:$0xff] %v886
  %897 = vst [vmem:[#allocation2 + $0x8] sm:$0xff] %v887
  %898 = vst [vmem:[#allocation2 + $0x10] sm:$0xff] %v888
  %899 = vst [vmem:[#allocation2 + $0x18] sm:$0xff] %v889
  %900 = vst [vmem:[#allocation2 + $0x20] sm:$0xff] %v890
  %901 = vst [vmem:[#allocation2 + $0x28] sm:$0xff] %v891
  %902 = vst [vmem:[#allocation2 + $0x30] sm:$0xff] %v892
  %903 = vst [vmem:[#allocation2 + $0x38] sm:$0xff] %v893
  %904 = vst [vmem:[#allocation2 + $0x40] sm:$0xff] %v894
  %905 = vst.msk [vmem:[#allocation2 + $0x48] sm:$0xff] %vm866, %v895
  %s906 = scalar_lea.vmem %s0, 12
  %v907 = vld [vmem:[%s906] sm:$0xf]
  %v909 = vsel %vm56, %v907, 0
  %911 = vmatprep.subr.bf16.mxu0 %v65
  %912 = vmatpush1.bf16.msra.mxu0 %v62
  %913 = vmatprep.subr.bf16.mxu0 0
  %914 = vmatpush1.bf16.msra.mxu0 0
  %915 = vmatprep.subr.bf16.mxu0 0
  %916 = vmatpush1.bf16.msra.mxu0 0
  %917 = vmatprep.subr.bf16.mxu0 0
  %918 = vmatpush1.bf16.msra.mxu0 0
  %919 = vmatprep.subr.bf16.mxu0 0
  %920 = vmatpush1.bf16.msra.mxu0 0
  %921 = vmatprep.subr.bf16.mxu0 0
  %922 = vmatpush1.bf16.msra.mxu0 0
  %923 = vmatprep.subr.bf16.mxu0 0
  %924 = vmatpush1.bf16.msra.mxu0 0
  %925 = vmatprep.subr.bf16.mxu0 0
  %926 = vmatpush1.bf16.msra.mxu0 0
  %927 = vmatprep.subr.bf16.mxu0 0
  %928 = vmatpush1.bf16.msra.mxu0 0
  %929 = vmatprep.subr.bf16.mxu0 0
  %930 = vmatpush1.bf16.msra.mxu0 0
  %931 = vmatprep.subr.bf16.mxu0 0
  %932 = vmatpush1.bf16.msra.mxu0 0
  %933 = vmatprep.subr.bf16.mxu0 0
  %934 = vmatpush1.bf16.msra.mxu0 0
  %935 = vmatprep.subr.bf16.mxu0 0
  %936 = vmatpush1.bf16.msra.mxu0 0
  %937 = vmatprep.subr.bf16.mxu0 0
  %938 = vmatpush1.bf16.msra.mxu0 0
  %939 = vmatprep.subr.bf16.mxu0 0
  %940 = vmatpush1.bf16.msra.mxu0 0
  %941 = vmatprep.subr.bf16.mxu0 0
  %942 = vmatpush1.bf16.msra.mxu0 0
  %943 = vmatprep.mubr.bf16.mxu0 0
  %944 = vmatmul.mubr.bf16.gmra.mrb[0].mxu0 %v909
  %v945 = vpop.f32.mrb[0].mxu0
  %v946 = vadd.f32 0.0, %v945
  %v947 = vpop.f32.mrb[0].mxu0
  %v948 = vadd.f32 0.0, %v947
  %v949 = vpop.f32.mrb[0].mxu0
  %v950 = vpop.f32.mrb[0].mxu0
  %951 = vdwg.mxu0
  %952 = vmatprep.subr.bf16.mxu0 %v71
  %953 = vmatpush1.bf16.msra.mxu0 %v68
  %954 = vmatprep.subr.bf16.mxu0 0
  %955 = vmatpush1.bf16.msra.mxu0 0
  %956 = vmatprep.subr.bf16.mxu0 0
  %957 = vmatpush1.bf16.msra.mxu0 0
  %958 = vmatprep.subr.bf16.mxu0 0
  %959 = vmatpush1.bf16.msra.mxu0 0
  %960 = vmatprep.subr.bf16.mxu0 0
  %961 = vmatpush1.bf16.msra.mxu0 0
  %962 = vmatprep.subr.bf16.mxu0 0
  %963 = vmatpush1.bf16.msra.mxu0 0
  %964 = vmatprep.subr.bf16.mxu0 0
  %965 = vmatpush1.bf16.msra.mxu0 0
  %966 = vmatprep.subr.bf16.mxu0 0
  %967 = vmatpush1.bf16.msra.mxu0 0
  %968 = vmatprep.subr.bf16.mxu0 0
  %969 = vmatpush1.bf16.msra.mxu0 0
  %970 = vmatprep.subr.bf16.mxu0 0
  %971 = vmatpush1.bf16.msra.mxu0 0
  %972 = vmatprep.subr.bf16.mxu0 0
  %973 = vmatpush1.bf16.msra.mxu0 0
  %974 = vmatprep.subr.bf16.mxu0 0
  %975 = vmatpush1.bf16.msra.mxu0 0
  %976 = vmatprep.subr.bf16.mxu0 0
  %977 = vmatpush1.bf16.msra.mxu0 0
  %978 = vmatprep.subr.bf16.mxu0 0
  %979 = vmatpush1.bf16.msra.mxu0 0
  %980 = vmatprep.subr.bf16.mxu0 0
  %981 = vmatpush1.bf16.msra.mxu0 0
  %982 = vmatprep.subr.bf16.mxu0 0
  %983 = vmatpush1.bf16.msra.mxu0 0
  %984 = vmatprep.mubr.bf16.mxu0 0
  %985 = vmatmul.mubr.bf16.gmra.mrb[0].mxu0 %v909
  %v986 = vpop.f32.mrb[0].mxu0
  %v987 = vadd.f32 0.0, %v986
  %v988 = vpop.f32.mrb[0].mxu0
  %v989 = vadd.f32 0.0, %v988
  %v990 = vpop.f32.mrb[0].mxu0
  %v991 = vpop.f32.mrb[0].mxu0
  %992 = vdwg.mxu0
  %993 = vmatprep.subr.bf16.mxu0 %v77
  %994 = vmatpush1.bf16.msra.mxu0 %v74
  %995 = vmatprep.subr.bf16.mxu0 0
  %996 = vmatpush1.bf16.msra.mxu0 0
  %997 = vmatprep.subr.bf16.mxu0 0
  %998 = vmatpush1.bf16.msra.mxu0 0
  %999 = vmatprep.subr.bf16.mxu0 0
  %1000 = vmatpush1.bf16.msra.mxu0 0
  %1001 = vmatprep.subr.bf16.mxu0 0
  %1002 = vmatpush1.bf16.msra.mxu0 0
  %1003 = vmatprep.subr.bf16.mxu0 0
  %1004 = vmatpush1.bf16.msra.mxu0 0
  %1005 = vmatprep.subr.bf16.mxu0 0
  %1006 = vmatpush1.bf16.msra.mxu0 0
  %1007 = vmatprep.subr.bf16.mxu0 0
  %1008 = vmatpush1.bf16.msra.mxu0 0
  %1009 = vmatprep.subr.bf16.mxu0 0
  %1010 = vmatpush1.bf16.msra.mxu0 0
  %1011 = vmatprep.subr.bf16.mxu0 0
  %1012 = vmatpush1.bf16.msra.mxu0 0
  %1013 = vmatprep.subr.bf16.mxu0 0
  %1014 = vmatpush1.bf16.msra.mxu0 0
  %1015 = vmatprep.subr.bf16.mxu0 0
  %1016 = vmatpush1.bf16.msra.mxu0 0
  %1017 = vmatprep.subr.bf16.mxu0 0
  %1018 = vmatpush1.bf16.msra.mxu0 0
  %1019 = vmatprep.subr.bf16.mxu0 0
  %1020 = vmatpush1.bf16.msra.mxu0 0
  %1021 = vmatprep.subr.bf16.mxu0 0
  %1022 = vmatpush1.bf16.msra.mxu0 0
  %1023 = vmatprep.subr.bf16.mxu0 0
  %1024 = vmatpush1.bf16.msra.mxu0 0
  %1025 = vmatprep.mubr.bf16.mxu0 0
  %1026 = vmatmul.mubr.bf16.gmra.mrb[0].mxu0 %v909
  %v1027 = vpop.f32.mrb[0].mxu0
  %v1028 = vadd.f32 0.0, %v1027
  %v1029 = vpop.f32.mrb[0].mxu0
  %v1030 = vadd.f32 0.0, %v1029
  %v1031 = vpop.f32.mrb[0].mxu0
  %v1032 = vpop.f32.mrb[0].mxu0
  %1033 = vdwg.mxu0
  %1034 = vmatprep.subr.bf16.mxu0 %v83
  %1035 = vmatpush1.bf16.msra.mxu0 %v80
  %1036 = vmatprep.subr.bf16.mxu0 0
  %1037 = vmatpush1.bf16.msra.mxu0 0
  %1038 = vmatprep.subr.bf16.mxu0 0
  %1039 = vmatpush1.bf16.msra.mxu0 0
  %1040 = vmatprep.subr.bf16.mxu0 0
  %1041 = vmatpush1.bf16.msra.mxu0 0
  %1042 = vmatprep.subr.bf16.mxu0 0
  %1043 = vmatpush1.bf16.msra.mxu0 0
  %1044 = vmatprep.subr.bf16.mxu0 0
  %1045 = vmatpush1.bf16.msra.mxu0 0
  %1046 = vmatprep.subr.bf16.mxu0 0
  %1047 = vmatpush1.bf16.msra.mxu0 0
  %1048 = vmatprep.subr.bf16.mxu0 0
  %1049 = vmatpush1.bf16.msra.mxu0 0
  %1050 = vmatprep.subr.bf16.mxu0 0
  %1051 = vmatpush1.bf16.msra.mxu0 0
  %1052 = vmatprep.subr.bf16.mxu0 0
  %1053 = vmatpush1.bf16.msra.mxu0 0
  %1054 = vmatprep.subr.bf16.mxu0 0
  %1055 = vmatpush1.bf16.msra.mxu0 0
  %1056 = vmatprep.subr.bf16.mxu0 0
  %1057 = vmatpush1.bf16.msra.mxu0 0
  %1058 = vmatprep.subr.bf16.mxu0 0
  %1059 = vmatpush1.bf16.msra.mxu0 0
  %1060 = vmatprep.subr.bf16.mxu0 0
  %1061 = vmatpush1.bf16.msra.mxu0 0
  %1062 = vmatprep.subr.bf16.mxu0 0
  %1063 = vmatpush1.bf16.msra.mxu0 0
  %1064 = vmatprep.subr.bf16.mxu0 0
  %1065 = vmatpush1.bf16.msra.mxu0 0
  %1066 = vmatprep.mubr.bf16.mxu0 0
  %1067 = vmatmul.mubr.bf16.gmra.mrb[0].mxu0 %v909
  %v1068 = vpop.f32.mrb[0].mxu0
  %v1069 = vadd.f32 0.0, %v1068
  %v1070 = vpop.f32.mrb[0].mxu0
  %v1071 = vadd.f32 0.0, %v1070
  %v1072 = vpop.f32.mrb[0].mxu0
  %v1073 = vpop.f32.mrb[0].mxu0
  %1074 = vdwg.mxu0
  %1075 = vmatprep.subr.bf16.mxu0 %v89
  %1076 = vmatpush1.bf16.msra.mxu0 %v86
  %1077 = vmatprep.subr.bf16.mxu0 0
  %1078 = vmatpush1.bf16.msra.mxu0 0
  %1079 = vmatprep.subr.bf16.mxu0 0
  %1080 = vmatpush1.bf16.msra.mxu0 0
  %1081 = vmatprep.subr.bf16.mxu0 0
  %1082 = vmatpush1.bf16.msra.mxu0 0
  %1083 = vmatprep.subr.bf16.mxu0 0
  %1084 = vmatpush1.bf16.msra.mxu0 0
  %1085 = vmatprep.subr.bf16.mxu0 0
  %1086 = vmatpush1.bf16.msra.mxu0 0
  %1087 = vmatprep.subr.bf16.mxu0 0
  %1088 = vmatpush1.bf16.msra.mxu0 0
  %1089 = vmatprep.subr.bf16.mxu0 0
  %1090 = vmatpush1.bf16.msra.mxu0 0
  %1091 = vmatprep.subr.bf16.mxu0 0
  %1092 = vmatpush1.bf16.msra.mxu0 0
  %1093 = vmatprep.subr.bf16.mxu0 0
  %1094 = vmatpush1.bf16.msra.mxu0 0
  %1095 = vmatprep.subr.bf16.mxu0 0
  %1096 = vmatpush1.bf16.msra.mxu0 0
  %1097 = vmatprep.subr.bf16.mxu0 0
  %1098 = vmatpush1.bf16.msra.mxu0 0
  %1099 = vmatprep.subr.bf16.mxu0 0
  %1100 = vmatpush1.bf16.msra.mxu0 0
  %1101 = vmatprep.subr.bf16.mxu0 0
  %1102 = vmatpush1.bf16.msra.mxu0 0
  %1103 = vmatprep.subr.bf16.mxu0 0
  %1104 = vmatpush1.bf16.msra.mxu0 0
  %1105 = vmatprep.subr.bf16.mxu0 0
  %1106 = vmatpush1.bf16.msra.mxu0 0
  %1107 = vmatprep.mubr.bf16.mxu0 0
  %1108 = vmatmul.mubr.bf16.gmra.mrb[0].mxu0 %v909
  %v1109 = vpop.f32.mrb[0].mxu0
  %v1110 = vadd.f32 0.0, %v1109
  %v1111 = vpop.f32.mrb[0].mxu0
  %v1112 = vadd.f32 0.0, %v1111
  %v1113 = vpop.f32.mrb[0].mxu0
  %v1114 = vpop.f32.mrb[0].mxu0
  %1115 = vdwg.mxu0
  %v1116 = vld [vmem:[#allocation2] sm:$0xff]
  %v1117 = vld [vmem:[#allocation2 + $0x8] sm:$0xff]
  %v1118 = vld [vmem:[#allocation2 + $0x10] sm:$0xff]
  %v1119 = vld [vmem:[#allocation2 + $0x18] sm:$0xff]
  %v1120 = vld [vmem:[#allocation2 + $0x20] sm:$0xff]
  %v1121 = vld [vmem:[#allocation2 + $0x28] sm:$0xff]
  %v1122 = vld [vmem:[#allocation2 + $0x30] sm:$0xff]
  %v1123 = vld [vmem:[#allocation2 + $0x38] sm:$0xff]
  %v1124 = vld [vmem:[#allocation2 + $0x40] sm:$0xff]
  %v1125 = vld [vmem:[#allocation2 + $0x48] sm:$0xff]
  %1136 = vrot.lane.b32.xlu0 %v946, 94
  %v1137 = vpop.permute.xlu0 %1136
  %1138 = vrot.lane.b32.xlu0 %v948, 94
  %v1139 = vpop.permute.xlu0 %1138
  %1140 = vrot.lane.b32.xlu0 %v987, 94
  %v1141 = vpop.permute.xlu0 %1140
  %1142 = vrot.lane.b32.xlu0 %v989, 94
  %v1143 = vpop.permute.xlu0 %1142
  %1144 = vrot.lane.b32.xlu0 %v1028, 94
  %v1145 = vpop.permute.xlu0 %1144
  %1146 = vrot.lane.b32.xlu0 %v1030, 94
  %v1147 = vpop.permute.xlu0 %1146
  %1148 = vrot.lane.b32.xlu0 %v1069, 94
  %v1149 = vpop.permute.xlu0 %1148
  %1150 = vrot.lane.b32.xlu0 %v1071, 94
  %v1151 = vpop.permute.xlu0 %1150
  %1152 = vrot.lane.b32.xlu0 %v1110, 94
  %v1153 = vpop.permute.xlu0 %1152
  %1154 = vrot.lane.b32.xlu0 %v1112, 94
  %v1155 = vpop.permute.xlu0 %1154
  %vm1156 = vcmask 769024
  %v1157 = vsel %vm1156, %v1137, %v1139
  %v1158 = vsel %vm1156, %v1139, %v1141
  %v1159 = vsel %vm1156, %v1141, %v1143
  %v1160 = vsel %vm1156, %v1143, %v1145
  %v1161 = vsel %vm1156, %v1145, %v1147
  %v1162 = vsel %vm1156, %v1147, %v1149
  %v1163 = vsel %vm1156, %v1149, %v1151
  %v1164 = vsel %vm1156, %v1151, %v1153
  %v1165 = vsel %vm1156, %v1153, %v1155
  %v1176 = vadd.f32 %v1116, %v1157
  %v1177 = vadd.f32 %v1117, %v1158
  %v1178 = vadd.f32 %v1118, %v1159
  %v1179 = vadd.f32 %v1119, %v1160
  %v1180 = vadd.f32 %v1120, %v1161
  %v1181 = vadd.f32 %v1121, %v1162
  %v1182 = vadd.f32 %v1122, %v1163
  %v1183 = vadd.f32 %v1123, %v1164
  %v1184 = vadd.f32 %v1124, %v1165
  %v1185 = vadd.f32 %v1125, %v1155
  %1186 = vst [vmem:[#allocation2] sm:$0xff] %v1176
  %1187 = vst [vmem:[#allocation2 + $0x8] sm:$0xff] %v1177
  %1188 = vst [vmem:[#allocation2 + $0x10] sm:$0xff] %v1178
  %1189 = vst [vmem:[#allocation2 + $0x18] sm:$0xff] %v1179
  %1190 = vst [vmem:[#allocation2 + $0x20] sm:$0xff] %v1180
  %1191 = vst [vmem:[#allocation2 + $0x28] sm:$0xff] %v1181
  %1192 = vst [vmem:[#allocation2 + $0x30] sm:$0xff] %v1182
  %1193 = vst [vmem:[#allocation2 + $0x38] sm:$0xff] %v1183
  %1194 = vst [vmem:[#allocation2 + $0x40] sm:$0xff] %v1184
  %1195 = vst.msk [vmem:[#allocation2 + $0x48] sm:$0xff] %vm1156, %v1185
  %s1196 = scalar_lea.vmem %s0, 16
  %v1197 = vld [vmem:[%s1196] sm:$0xf]
  %v1199 = vsel %vm56, %v1197, 0
  %1201 = vmatprep.subr.bf16.mxu0 %v65
  %1202 = vmatpush1.bf16.msra.mxu0 %v62
  %1203 = vmatprep.subr.bf16.mxu0 0
  %1204 = vmatpush1.bf16.msra.mxu0 0
  %1205 = vmatprep.subr.bf16.mxu0 0
  %1206 = vmatpush1.bf16.msra.mxu0 0
  %1207 = vmatprep.subr.bf16.mxu0 0
  %1208 = vmatpush1.bf16.msra.mxu0 0
  %1209 = vmatprep.subr.bf16.mxu0 0
  %1210 = vmatpush1.bf16.msra.mxu0 0
  %1211 = vmatprep.subr.bf16.mxu0 0
  %1212 = vmatpush1.bf16.msra.mxu0 0
  %1213 = vmatprep.subr.bf16.mxu0 0
  %1214 = vmatpush1.bf16.msra.mxu0 0
  %1215 = vmatprep.subr.bf16.mxu0 0
  %1216 = vmatpush1.bf16.msra.mxu0 0
  %1217 = vmatprep.subr.bf16.mxu0 0
  %1218 = vmatpush1.bf16.msra.mxu0 0
  %1219 = vmatprep.subr.bf16.mxu0 0
  %1220 = vmatpush1.bf16.msra.mxu0 0
  %1221 = vmatprep.subr.bf16.mxu0 0
  %1222 = vmatpush1.bf16.msra.mxu0 0
  %1223 = vmatprep.subr.bf16.mxu0 0
  %1224 = vmatpush1.bf16.msra.mxu0 0
  %1225 = vmatprep.subr.bf16.mxu0 0
  %1226 = vmatpush1.bf16.msra.mxu0 0
  %1227 = vmatprep.subr.bf16.mxu0 0
  %1228 = vmatpush1.bf16.msra.mxu0 0
  %1229 = vmatprep.subr.bf16.mxu0 0
  %1230 = vmatpush1.bf16.msra.mxu0 0
  %1231 = vmatprep.subr.bf16.mxu0 0
  %1232 = vmatpush1.bf16.msra.mxu0 0
  %1233 = vmatprep.mubr.bf16.mxu0 0
  %1234 = vmatmul.mubr.bf16.gmra.mrb[0].mxu0 %v1199
  %v1235 = vpop.f32.mrb[0].mxu0
  %v1236 = vadd.f32 0.0, %v1235
  %v1237 = vpop.f32.mrb[0].mxu0
  %v1238 = vadd.f32 0.0, %v1237
  %v1239 = vpop.f32.mrb[0].mxu0
  %v1240 = vpop.f32.mrb[0].mxu0
  %1241 = vdwg.mxu0
  %1242 = vmatprep.subr.bf16.mxu0 %v71
  %1243 = vmatpush1.bf16.msra.mxu0 %v68
  %1244 = vmatprep.subr.bf16.mxu0 0
  %1245 = vmatpush1.bf16.msra.mxu0 0
  %1246 = vmatprep.subr.bf16.mxu0 0
  %1247 = vmatpush1.bf16.msra.mxu0 0
  %1248 = vmatprep.subr.bf16.mxu0 0
  %1249 = vmatpush1.bf16.msra.mxu0 0
  %1250 = vmatprep.subr.bf16.mxu0 0
  %1251 = vmatpush1.bf16.msra.mxu0 0
  %1252 = vmatprep.subr.bf16.mxu0 0
  %1253 = vmatpush1.bf16.msra.mxu0 0
  %1254 = vmatprep.subr.bf16.mxu0 0
  %1255 = vmatpush1.bf16.msra.mxu0 0
  %1256 = vmatprep.subr.bf16.mxu0 0
  %1257 = vmatpush1.bf16.msra.mxu0 0
  %1258 = vmatprep.subr.bf16.mxu0 0
  %1259 = vmatpush1.bf16.msra.mxu0 0
  %1260 = vmatprep.subr.bf16.mxu0 0
  %1261 = vmatpush1.bf16.msra.mxu0 0
  %1262 = vmatprep.subr.bf16.mxu0 0
  %1263 = vmatpush1.bf16.msra.mxu0 0
  %1264 = vmatprep.subr.bf16.mxu0 0
  %1265 = vmatpush1.bf16.msra.mxu0 0
  %1266 = vmatprep.subr.bf16.mxu0 0
  %1267 = vmatpush1.bf16.msra.mxu0 0
  %1268 = vmatprep.subr.bf16.mxu0 0
  %1269 = vmatpush1.bf16.msra.mxu0 0
  %1270 = vmatprep.subr.bf16.mxu0 0
  %1271 = vmatpush1.bf16.msra.mxu0 0
  %1272 = vmatprep.subr.bf16.mxu0 0
  %1273 = vmatpush1.bf16.msra.mxu0 0
  %1274 = vmatprep.mubr.bf16.mxu0 0
  %1275 = vmatmul.mubr.bf16.gmra.mrb[0].mxu0 %v1199
  %v1276 = vpop.f32.mrb[0].mxu0
  %v1277 = vadd.f32 0.0, %v1276
  %v1278 = vpop.f32.mrb[0].mxu0
  %v1279 = vadd.f32 0.0, %v1278
  %v1280 = vpop.f32.mrb[0].mxu0
  %v1281 = vpop.f32.mrb[0].mxu0
  %1282 = vdwg.mxu0
  %1283 = vmatprep.subr.bf16.mxu0 %v77
  %1284 = vmatpush1.bf16.msra.mxu0 %v74
  %1285 = vmatprep.subr.bf16.mxu0 0
  %1286 = vmatpush1.bf16.msra.mxu0 0
  %1287 = vmatprep.subr.bf16.mxu0 0
  %1288 = vmatpush1.bf16.msra.mxu0 0
  %1289 = vmatprep.subr.bf16.mxu0 0
  %1290 = vmatpush1.bf16.msra.mxu0 0
  %1291 = vmatprep.subr.bf16.mxu0 0
  %1292 = vmatpush1.bf16.msra.mxu0 0
  %1293 = vmatprep.subr.bf16.mxu0 0
  %1294 = vmatpush1.bf16.msra.mxu0 0
  %1295 = vmatprep.subr.bf16.mxu0 0
  %1296 = vmatpush1.bf16.msra.mxu0 0
  %1297 = vmatprep.subr.bf16.mxu0 0
  %1298 = vmatpush1.bf16.msra.mxu0 0
  %1299 = vmatprep.subr.bf16.mxu0 0
  %1300 = vmatpush1.bf16.msra.mxu0 0
  %1301 = vmatprep.subr.bf16.mxu0 0
  %1302 = vmatpush1.bf16.msra.mxu0 0
  %1303 = vmatprep.subr.bf16.mxu0 0
  %1304 = vmatpush1.bf16.msra.mxu0 0
  %1305 = vmatprep.subr.bf16.mxu0 0
  %1306 = vmatpush1.bf16.msra.mxu0 0
  %1307 = vmatprep.subr.bf16.mxu0 0
  %1308 = vmatpush1.bf16.msra.mxu0 0
  %1309 = vmatprep.subr.bf16.mxu0 0
  %1310 = vmatpush1.bf16.msra.mxu0 0
  %1311 = vmatprep.subr.bf16.mxu0 0
  %1312 = vmatpush1.bf16.msra.mxu0 0
  %1313 = vmatprep.subr.bf16.mxu0 0
  %1314 = vmatpush1.bf16.msra.mxu0 0
  %1315 = vmatprep.mubr.bf16.mxu0 0
  %1316 = vmatmul.mubr.bf16.gmra.mrb[0].mxu0 %v1199
  %v1317 = vpop.f32.mrb[0].mxu0
  %v1318 = vadd.f32 0.0, %v1317
  %v1319 = vpop.f32.mrb[0].mxu0
  %v1320 = vadd.f32 0.0, %v1319
  %v1321 = vpop.f32.mrb[0].mxu0
  %v1322 = vpop.f32.mrb[0].mxu0
  %1323 = vdwg.mxu0
  %1324 = vmatprep.subr.bf16.mxu0 %v83
  %1325 = vmatpush1.bf16.msra.mxu0 %v80
  %1326 = vmatprep.subr.bf16.mxu0 0
  %1327 = vmatpush1.bf16.msra.mxu0 0
  %1328 = vmatprep.subr.bf16.mxu0 0
  %1329 = vmatpush1.bf16.msra.mxu0 0
  %1330 = vmatprep.subr.bf16.mxu0 0
  %1331 = vmatpush1.bf16.msra.mxu0 0
  %1332 = vmatprep.subr.bf16.mxu0 0
  %1333 = vmatpush1.bf16.msra.mxu0 0
  %1334 = vmatprep.subr.bf16.mxu0 0
  %1335 = vmatpush1.bf16.msra.mxu0 0
  %1336 = vmatprep.subr.bf16.mxu0 0
  %1337 = vmatpush1.bf16.msra.mxu0 0
  %1338 = vmatprep.subr.bf16.mxu0 0
  %1339 = vmatpush1.bf16.msra.mxu0 0
  %1340 = vmatprep.subr.bf16.mxu0 0
  %1341 = vmatpush1.bf16.msra.mxu0 0
  %1342 = vmatprep.subr.bf16.mxu0 0
  %1343 = vmatpush1.bf16.msra.mxu0 0
  %1344 = vmatprep.subr.bf16.mxu0 0
  %1345 = vmatpush1.bf16.msra.mxu0 0
  %1346 = vmatprep.subr.bf16.mxu0 0
  %1347 = vmatpush1.bf16.msra.mxu0 0
  %1348 = vmatprep.subr.bf16.mxu0 0
  %1349 = vmatpush1.bf16.msra.mxu0 0
  %1350 = vmatprep.subr.bf16.mxu0 0
  %1351 = vmatpush1.bf16.msra.mxu0 0
  %1352 = vmatprep.subr.bf16.mxu0 0
  %1353 = vmatpush1.bf16.msra.mxu0 0
  %1354 = vmatprep.subr.bf16.mxu0 0
  %1355 = vmatpush1.bf16.msra.mxu0 0
  %1356 = vmatprep.mubr.bf16.mxu0 0
  %1357 = vmatmul.mubr.bf16.gmra.mrb[0].mxu0 %v1199
  %v1358 = vpop.f32.mrb[0].mxu0
  %v1359 = vadd.f32 0.0, %v1358
  %v1360 = vpop.f32.mrb[0].mxu0
  %v1361 = vadd.f32 0.0, %v1360
  %v1362 = vpop.f32.mrb[0].mxu0
  %v1363 = vpop.f32.mrb[0].mxu0
  %1364 = vdwg.mxu0
  %1365 = vmatprep.subr.bf16.mxu0 %v89
  %1366 = vmatpush1.bf16.msra.mxu0 %v86
  %1367 = vmatprep.subr.bf16.mxu0 0
  %1368 = vmatpush1.bf16.msra.mxu0 0
  %1369 = vmatprep.subr.bf16.mxu0 0
  %1370 = vmatpush1.bf16.msra.mxu0 0
  %1371 = vmatprep.subr.bf16.mxu0 0
  %1372 = vmatpush1.bf16.msra.mxu0 0
  %1373 = vmatprep.subr.bf16.mxu0 0
  %1374 = vmatpush1.bf16.msra.mxu0 0
  %1375 = vmatprep.subr.bf16.mxu0 0
  %1376 = vmatpush1.bf16.msra.mxu0 0
  %1377 = vmatprep.subr.bf16.mxu0 0
  %1378 = vmatpush1.bf16.msra.mxu0 0
  %1379 = vmatprep.subr.bf16.mxu0 0
  %1380 = vmatpush1.bf16.msra.mxu0 0
  %1381 = vmatprep.subr.bf16.mxu0 0
  %1382 = vmatpush1.bf16.msra.mxu0 0
  %1383 = vmatprep.subr.bf16.mxu0 0
  %1384 = vmatpush1.bf16.msra.mxu0 0
  %1385 = vmatprep.subr.bf16.mxu0 0
  %1386 = vmatpush1.bf16.msra.mxu0 0
  %1387 = vmatprep.subr.bf16.mxu0 0
  %1388 = vmatpush1.bf16.msra.mxu0 0
  %1389 = vmatprep.subr.bf16.mxu0 0
  %1390 = vmatpush1.bf16.msra.mxu0 0
  %1391 = vmatprep.subr.bf16.mxu0 0
  %1392 = vmatpush1.bf16.msra.mxu0 0
  %1393 = vmatprep.subr.bf16.mxu0 0
  %1394 = vmatpush1.bf16.msra.mxu0 0
  %1395 = vmatprep.subr.bf16.mxu0 0
  %1396 = vmatpush1.bf16.msra.mxu0 0
  %1397 = vmatprep.mubr.bf16.mxu0 0
  %1398 = vmatmul.mubr.bf16.gmra.mrb[0].mxu0 %v1199
  %v1399 = vpop.f32.mrb[0].mxu0
  %v1400 = vadd.f32 0.0, %v1399
  %v1401 = vpop.f32.mrb[0].mxu0
  %v1402 = vadd.f32 0.0, %v1401
  %v1403 = vpop.f32.mrb[0].mxu0
  %v1404 = vpop.f32.mrb[0].mxu0
  %1405 = vdwg.mxu0
  %v1406 = vld [vmem:[#allocation2] sm:$0xff]
  %v1407 = vld [vmem:[#allocation2 + $0x8] sm:$0xff]
  %v1408 = vld [vmem:[#allocation2 + $0x10] sm:$0xff]
  %v1409 = vld [vmem:[#allocation2 + $0x18] sm:$0xff]
  %v1410 = vld [vmem:[#allocation2 + $0x20] sm:$0xff]
  %v1411 = vld [vmem:[#allocation2 + $0x28] sm:$0xff]
  %v1412 = vld [vmem:[#allocation2 + $0x30] sm:$0xff]
  %v1413 = vld [vmem:[#allocation2 + $0x38] sm:$0xff]
  %v1414 = vld [vmem:[#allocation2 + $0x40] sm:$0xff]
  %v1415 = vld [vmem:[#allocation2 + $0x48] sm:$0xff]
  %1426 = vrot.lane.b32.xlu0 %v1236, 93
  %v1427 = vpop.permute.xlu0 %1426
  %1428 = vrot.lane.b32.xlu0 %v1238, 93
  %v1429 = vpop.permute.xlu0 %1428
  %1430 = vrot.lane.b32.xlu0 %v1277, 93
  %v1431 = vpop.permute.xlu0 %1430
  %1432 = vrot.lane.b32.xlu0 %v1279, 93
  %v1433 = vpop.permute.xlu0 %1432
  %1434 = vrot.lane.b32.xlu0 %v1318, 93
  %v1435 = vpop.permute.xlu0 %1434
  %1436 = vrot.lane.b32.xlu0 %v1320, 93
  %v1437 = vpop.permute.xlu0 %1436
  %1438 = vrot.lane.b32.xlu0 %v1359, 93
  %v1439 = vpop.permute.xlu0 %1438
  %1440 = vrot.lane.b32.xlu0 %v1361, 93
  %v1441 = vpop.permute.xlu0 %1440
  %1442 = vrot.lane.b32.xlu0 %v1400, 93
  %v1443 = vpop.permute.xlu0 %1442
  %1444 = vrot.lane.b32.xlu0 %v1402, 93
  %v1445 = vpop.permute.xlu0 %1444
  %vm1446 = vcmask 760832
  %v1447 = vsel %vm1446, %v1427, %v1429
  %v1448 = vsel %vm1446, %v1429, %v1431
  %v1449 = vsel %vm1446, %v1431, %v1433
  %v1450 = vsel %vm1446, %v1433, %v1435
  %v1451 = vsel %vm1446, %v1435, %v1437
  %v1452 = vsel %vm1446, %v1437, %v1439
  %v1453 = vsel %vm1446, %v1439, %v1441
  %v1454 = vsel %vm1446, %v1441, %v1443
  %v1455 = vsel %vm1446, %v1443, %v1445
  %v1466 = vadd.f32 %v1406, %v1447
  %v1467 = vadd.f32 %v1407, %v1448
  %v1468 = vadd.f32 %v1408, %v1449
  %v1469 = vadd.f32 %v1409, %v1450
  %v1470 = vadd.f32 %v1410, %v1451
  %v1471 = vadd.f32 %v1411, %v1452
  %v1472 = vadd.f32 %v1412, %v1453
  %v1473 = vadd.f32 %v1413, %v1454
  %v1474 = vadd.f32 %v1414, %v1455
  %v1475 = vadd.f32 %v1415, %v1445
  %1476 = vst [vmem:[#allocation2] sm:$0xff] %v1466
  %1477 = vst [vmem:[#allocation2 + $0x8] sm:$0xff] %v1467
  %1478 = vst [vmem:[#allocation2 + $0x10] sm:$0xff] %v1468
  %1479 = vst [vmem:[#allocation2 + $0x18] sm:$0xff] %v1469
  %1480 = vst [vmem:[#allocation2 + $0x20] sm:$0xff] %v1470
  %1481 = vst [vmem:[#allocation2 + $0x28] sm:$0xff] %v1471
  %1482 = vst [vmem:[#allocation2 + $0x30] sm:$0xff] %v1472
  %1483 = vst [vmem:[#allocation2 + $0x38] sm:$0xff] %v1473
  %1484 = vst [vmem:[#allocation2 + $0x40] sm:$0xff] %v1474
  %1485 = vst.msk [vmem:[#allocation2 + $0x48] sm:$0xff] %vm1446, %v1475
  %s1486 = scalar_lea.vmem %s0, 20
  %v1487 = vld [vmem:[%s1486] sm:$0xf]
  %v1489 = vsel %vm56, %v1487, 0
  %1491 = vmatprep.subr.bf16.mxu0 %v65
  %1492 = vmatpush1.bf16.msra.mxu0 %v62
  %1493 = vmatprep.subr.bf16.mxu0 0
  %1494 = vmatpush1.bf16.msra.mxu0 0
  %1495 = vmatprep.subr.bf16.mxu0 0
  %1496 = vmatpush1.bf16.msra.mxu0 0
  %1497 = vmatprep.subr.bf16.mxu0 0
  %1498 = vmatpush1.bf16.msra.mxu0 0
  %1499 = vmatprep.subr.bf16.mxu0 0
  %1500 = vmatpush1.bf16.msra.mxu0 0
  %1501 = vmatprep.subr.bf16.mxu0 0
  %1502 = vmatpush1.bf16.msra.mxu0 0
  %1503 = vmatprep.subr.bf16.mxu0 0
  %1504 = vmatpush1.bf16.msra.mxu0 0
  %1505 = vmatprep.subr.bf16.mxu0 0
  %1506 = vmatpush1.bf16.msra.mxu0 0
  %1507 = vmatprep.subr.bf16.mxu0 0
  %1508 = vmatpush1.bf16.msra.mxu0 0
  %1509 = vmatprep.subr.bf16.mxu0 0
  %1510 = vmatpush1.bf16.msra.mxu0 0
  %1511 = vmatprep.subr.bf16.mxu0 0
  %1512 = vmatpush1.bf16.msra.mxu0 0
  %1513 = vmatprep.subr.bf16.mxu0 0
  %1514 = vmatpush1.bf16.msra.mxu0 0
  %1515 = vmatprep.subr.bf16.mxu0 0
  %1516 = vmatpush1.bf16.msra.mxu0 0
  %1517 = vmatprep.subr.bf16.mxu0 0
  %1518 = vmatpush1.bf16.msra.mxu0 0
  %1519 = vmatprep.subr.bf16.mxu0 0
  %1520 = vmatpush1.bf16.msra.mxu0 0
  %1521 = vmatprep.subr.bf16.mxu0 0
  %1522 = vmatpush1.bf16.msra.mxu0 0
  %1523 = vmatprep.mubr.bf16.mxu0 0
  %1524 = vmatmul.mubr.bf16.gmra.mrb[0].mxu0 %v1489
  %v1525 = vpop.f32.mrb[0].mxu0
  %v1526 = vadd.f32 0.0, %v1525
  %v1527 = vpop.f32.mrb[0].mxu0
  %v1528 = vadd.f32 0.0, %v1527
  %v1529 = vpop.f32.mrb[0].mxu0
  %v1530 = vpop.f32.mrb[0].mxu0
  %1531 = vdwg.mxu0
  %1532 = vmatprep.subr.bf16.mxu0 %v71
  %1533 = vmatpush1.bf16.msra.mxu0 %v68
  %1534 = vmatprep.subr.bf16.mxu0 0
  %1535 = vmatpush1.bf16.msra.mxu0 0
  %1536 = vmatprep.subr.bf16.mxu0 0
  %1537 = vmatpush1.bf16.msra.mxu0 0
  %1538 = vmatprep.subr.bf16.mxu0 0
  %1539 = vmatpush1.bf16.msra.mxu0 0
  %1540 = vmatprep.subr.bf16.mxu0 0
  %1541 = vmatpush1.bf16.msra.mxu0 0
  %1542 = vmatprep.subr.bf16.mxu0 0
  %1543 = vmatpush1.bf16.msra.mxu0 0
  %1544 = vmatprep.subr.bf16.mxu0 0
  %1545 = vmatpush1.bf16.msra.mxu0 0
  %1546 = vmatprep.subr.bf16.mxu0 0
  %1547 = vmatpush1.bf16.msra.mxu0 0
  %1548 = vmatprep.subr.bf16.mxu0 0
  %1549 = vmatpush1.bf16.msra.mxu0 0
  %1550 = vmatprep.subr.bf16.mxu0 0
  %1551 = vmatpush1.bf16.msra.mxu0 0
  %1552 = vmatprep.subr.bf16.mxu0 0
  %1553 = vmatpush1.bf16.msra.mxu0 0
  %1554 = vmatprep.subr.bf16.mxu0 0
  %1555 = vmatpush1.bf16.msra.mxu0 0
  %1556 = vmatprep.subr.bf16.mxu0 0
  %1557 = vmatpush1.bf16.msra.mxu0 0
  %1558 = vmatprep.subr.bf16.mxu0 0
  %1559 = vmatpush1.bf16.msra.mxu0 0
  %1560 = vmatprep.subr.bf16.mxu0 0
  %1561 = vmatpush1.bf16.msra.mxu0 0
  %1562 = vmatprep.subr.bf16.mxu0 0
  %1563 = vmatpush1.bf16.msra.mxu0 0
  %1564 = vmatprep.mubr.bf16.mxu0 0
  %1565 = vmatmul.mubr.bf16.gmra.mrb[0].mxu0 %v1489
  %v1566 = vpop.f32.mrb[0].mxu0
  %v1567 = vadd.f32 0.0, %v1566
  %v1568 = vpop.f32.mrb[0].mxu0
  %v1569 = vadd.f32 0.0, %v1568
  %v1570 = vpop.f32.mrb[0].mxu0
  %v1571 = vpop.f32.mrb[0].mxu0
  %1572 = vdwg.mxu0
  %1573 = vmatprep.subr.bf16.mxu0 %v77
  %1574 = vmatpush1.bf16.msra.mxu0 %v74
  %1575 = vmatprep.subr.bf16.mxu0 0
  %1576 = vmatpush1.bf16.msra.mxu0 0
  %1577 = vmatprep.subr.bf16.mxu0 0
  %1578 = vmatpush1.bf16.msra.mxu0 0
  %1579 = vmatprep.subr.bf16.mxu0 0
  %1580 = vmatpush1.bf16.msra.mxu0 0
  %1581 = vmatprep.subr.bf16.mxu0 0
  %1582 = vmatpush1.bf16.msra.mxu0 0
  %1583 = vmatprep.subr.bf16.mxu0 0
  %1584 = vmatpush1.bf16.msra.mxu0 0
  %1585 = vmatprep.subr.bf16.mxu0 0
  %1586 = vmatpush1.bf16.msra.mxu0 0
  %1587 = vmatprep.subr.bf16.mxu0 0
  %1588 = vmatpush1.bf16.msra.mxu0 0
  %1589 = vmatprep.subr.bf16.mxu0 0
  %1590 = vmatpush1.bf16.msra.mxu0 0
  %1591 = vmatprep.subr.bf16.mxu0 0
  %1592 = vmatpush1.bf16.msra.mxu0 0
  %1593 = vmatprep.subr.bf16.mxu0 0
  %1594 = vmatpush1.bf16.msra.mxu0 0
  %1595 = vmatprep.subr.bf16.mxu0 0
  %1596 = vmatpush1.bf16.msra.mxu0 0
  %1597 = vmatprep.subr.bf16.mxu0 0
  %1598 = vmatpush1.bf16.msra.mxu0 0
  %1599 = vmatprep.subr.bf16.mxu0 0
  %1600 = vmatpush1.bf16.msra.mxu0 0
  %1601 = vmatprep.subr.bf16.mxu0 0
  %1602 = vmatpush1.bf16.msra.mxu0 0
  %1603 = vmatprep.subr.bf16.mxu0 0
  %1604 = vmatpush1.bf16.msra.mxu0 0
  %1605 = vmatprep.mubr.bf16.mxu0 0
  %1606 = vmatmul.mubr.bf16.gmra.mrb[0].mxu0 %v1489
  %v1607 = vpop.f32.mrb[0].mxu0
  %v1608 = vadd.f32 0.0, %v1607
  %v1609 = vpop.f32.mrb[0].mxu0
  %v1610 = vadd.f32 0.0, %v1609
  %v1611 = vpop.f32.mrb[0].mxu0
  %v1612 = vpop.f32.mrb[0].mxu0
  %1613 = vdwg.mxu0
  %1614 = vmatprep.subr.bf16.mxu0 %v83
  %1615 = vmatpush1.bf16.msra.mxu0 %v80
  %1616 = vmatprep.subr.bf16.mxu0 0
  %1617 = vmatpush1.bf16.msra.mxu0 0
  %1618 = vmatprep.subr.bf16.mxu0 0
  %1619 = vmatpush1.bf16.msra.mxu0 0
  %1620 = vmatprep.subr.bf16.mxu0 0
  %1621 = vmatpush1.bf16.msra.mxu0 0
  %1622 = vmatprep.subr.bf16.mxu0 0
  %1623 = vmatpush1.bf16.msra.mxu0 0
  %1624 = vmatprep.subr.bf16.mxu0 0
  %1625 = vmatpush1.bf16.msra.mxu0 0
  %1626 = vmatprep.subr.bf16.mxu0 0
  %1627 = vmatpush1.bf16.msra.mxu0 0
  %1628 = vmatprep.subr.bf16.mxu0 0
  %1629 = vmatpush1.bf16.msra.mxu0 0
  %1630 = vmatprep.subr.bf16.mxu0 0
  %1631 = vmatpush1.bf16.msra.mxu0 0
  %1632 = vmatprep.subr.bf16.mxu0 0
  %1633 = vmatpush1.bf16.msra.mxu0 0
  %1634 = vmatprep.subr.bf16.mxu0 0
  %1635 = vmatpush1.bf16.msra.mxu0 0
  %1636 = vmatprep.subr.bf16.mxu0 0
  %1637 = vmatpush1.bf16.msra.mxu0 0
  %1638 = vmatprep.subr.bf16.mxu0 0
  %1639 = vmatpush1.bf16.msra.mxu0 0
  %1640 = vmatprep.subr.bf16.mxu0 0
  %1641 = vmatpush1.bf16.msra.mxu0 0
  %1642 = vmatprep.subr.bf16.mxu0 0
  %1643 = vmatpush1.bf16.msra.mxu0 0
  %1644 = vmatprep.subr.bf16.mxu0 0
  %1645 = vmatpush1.bf16.msra.mxu0 0
  %1646 = vmatprep.mubr.bf16.mxu0 0
  %1647 = vmatmul.mubr.bf16.gmra.mrb[0].mxu0 %v1489
  %v1648 = vpop.f32.mrb[0].mxu0
  %v1649 = vadd.f32 0.0, %v1648
  %v1650 = vpop.f32.mrb[0].mxu0
  %v1651 = vadd.f32 0.0, %v1650
  %v1652 = vpop.f32.mrb[0].mxu0
  %v1653 = vpop.f32.mrb[0].mxu0
  %1654 = vdwg.mxu0
  %1655 = vmatprep.subr.bf16.mxu0 %v89
  %1656 = vmatpush1.bf16.msra.mxu0 %v86
  %1657 = vmatprep.subr.bf16.mxu0 0
  %1658 = vmatpush1.bf16.msra.mxu0 0
  %1659 = vmatprep.subr.bf16.mxu0 0
  %1660 = vmatpush1.bf16.msra.mxu0 0
  %1661 = vmatprep.subr.bf16.mxu0 0
  %1662 = vmatpush1.bf16.msra.mxu0 0
  %1663 = vmatprep.subr.bf16.mxu0 0
  %1664 = vmatpush1.bf16.msra.mxu0 0
  %1665 = vmatprep.subr.bf16.mxu0 0
  %1666 = vmatpush1.bf16.msra.mxu0 0
  %1667 = vmatprep.subr.bf16.mxu0 0
  %1668 = vmatpush1.bf16.msra.mxu0 0
  %1669 = vmatprep.subr.bf16.mxu0 0
  %1670 = vmatpush1.bf16.msra.mxu0 0
  %1671 = vmatprep.subr.bf16.mxu0 0
  %1672 = vmatpush1.bf16.msra.mxu0 0
  %1673 = vmatprep.subr.bf16.mxu0 0
  %1674 = vmatpush1.bf16.msra.mxu0 0
  %1675 = vmatprep.subr.bf16.mxu0 0
  %1676 = vmatpush1.bf16.msra.mxu0 0
  %1677 = vmatprep.subr.bf16.mxu0 0
  %1678 = vmatpush1.bf16.msra.mxu0 0
  %1679 = vmatprep.subr.bf16.mxu0 0
  %1680 = vmatpush1.bf16.msra.mxu0 0
  %1681 = vmatprep.subr.bf16.mxu0 0
  %1682 = vmatpush1.bf16.msra.mxu0 0
  %1683 = vmatprep.subr.bf16.mxu0 0
  %1684 = vmatpush1.bf16.msra.mxu0 0
  %1685 = vmatprep.subr.bf16.mxu0 0
  %1686 = vmatpush1.bf16.msra.mxu0 0
  %1687 = vmatprep.mubr.bf16.mxu0 0
  %1688 = vmatmul.mubr.bf16.gmra.mrb[0].mxu0 %v1489
  %v1689 = vpop.f32.mrb[0].mxu0
  %v1690 = vadd.f32 0.0, %v1689
  %v1691 = vpop.f32.mrb[0].mxu0
  %v1692 = vadd.f32 0.0, %v1691
  %v1693 = vpop.f32.mrb[0].mxu0
  %v1694 = vpop.f32.mrb[0].mxu0
  %1695 = vdwg.mxu0
  %v1696 = vld [vmem:[#allocation2] sm:$0xff]
  %v1697 = vld [vmem:[#allocation2 + $0x8] sm:$0xff]
  %v1698 = vld [vmem:[#allocation2 + $0x10] sm:$0xff]
  %v1699 = vld [vmem:[#allocation2 + $0x18] sm:$0xff]
  %v1700 = vld [vmem:[#allocation2 + $0x20] sm:$0xff]
  %v1701 = vld [vmem:[#allocation2 + $0x28] sm:$0xff]
  %v1702 = vld [vmem:[#allocation2 + $0x30] sm:$0xff]
  %v1703 = vld [vmem:[#allocation2 + $0x38] sm:$0xff]
  %v1704 = vld [vmem:[#allocation2 + $0x40] sm:$0xff]
  %v1705 = vld [vmem:[#allocation2 + $0x48] sm:$0xff]
  %1716 = vrot.lane.b32.xlu0 %v1526, 92
  %v1717 = vpop.permute.xlu0 %1716
  %1718 = vrot.lane.b32.xlu0 %v1528, 92
  %v1719 = vpop.permute.xlu0 %1718
  %1720 = vrot.lane.b32.xlu0 %v1567, 92
  %v1721 = vpop.permute.xlu0 %1720
  %1722 = vrot.lane.b32.xlu0 %v1569, 92
  %v1723 = vpop.permute.xlu0 %1722
  %1724 = vrot.lane.b32.xlu0 %v1608, 92
  %v1725 = vpop.permute.xlu0 %1724
  %1726 = vrot.lane.b32.xlu0 %v1610, 92
  %v1727 = vpop.permute.xlu0 %1726
  %1728 = vrot.lane.b32.xlu0 %v1649, 92
  %v1729 = vpop.permute.xlu0 %1728
  %1730 = vrot.lane.b32.xlu0 %v1651, 92
  %v1731 = vpop.permute.xlu0 %1730
  %1732 = vrot.lane.b32.xlu0 %v1690, 92
  %v1733 = vpop.permute.xlu0 %1732
  %1734 = vrot.lane.b32.xlu0 %v1692, 92
  %v1735 = vpop.permute.xlu0 %1734
  %vm1736 = vcmask 752640
  %v1737 = vsel %vm1736, %v1717, %v1719
  %v1738 = vsel %vm1736, %v1719, %v1721
  %v1739 = vsel %vm1736, %v1721, %v1723
  %v1740 = vsel %vm1736, %v1723, %v1725
  %v1741 = vsel %vm1736, %v1725, %v1727
  %v1742 = vsel %vm1736, %v1727, %v1729
  %v1743 = vsel %vm1736, %v1729, %v1731
  %v1744 = vsel %vm1736, %v1731, %v1733
  %v1745 = vsel %vm1736, %v1733, %v1735
  %v1756 = vadd.f32 %v1696, %v1737
  %v1757 = vadd.f32 %v1697, %v1738
  %v1758 = vadd.f32 %v1698, %v1739
  %v1759 = vadd.f32 %v1699, %v1740
  %v1760 = vadd.f32 %v1700, %v1741
  %v1761 = vadd.f32 %v1701, %v1742
  %v1762 = vadd.f32 %v1702, %v1743
  %v1763 = vadd.f32 %v1703, %v1744
  %v1764 = vadd.f32 %v1704, %v1745
  %v1765 = vadd.f32 %v1705, %v1735
  %1766 = vst [vmem:[#allocation2] sm:$0xff] %v1756
  %1767 = vst [vmem:[#allocation2 + $0x8] sm:$0xff] %v1757
  %1768 = vst [vmem:[#allocation2 + $0x10] sm:$0xff] %v1758
  %1769 = vst [vmem:[#allocation2 + $0x18] sm:$0xff] %v1759
  %1770 = vst [vmem:[#allocation2 + $0x20] sm:$0xff] %v1760
  %1771 = vst [vmem:[#allocation2 + $0x28] sm:$0xff] %v1761
  %1772 = vst [vmem:[#allocation2 + $0x30] sm:$0xff] %v1762
  %1773 = vst [vmem:[#allocation2 + $0x38] sm:$0xff] %v1763
  %1774 = vst [vmem:[#allocation2 + $0x40] sm:$0xff] %v1764
  %1775 = vst.msk [vmem:[#allocation2 + $0x48] sm:$0xff] %vm1736, %v1765
  %s1776 = scalar_lea.vmem %s0, 24
  %v1777 = vld [vmem:[%s1776] sm:$0xf]
  %v1779 = vsel %vm56, %v1777, 0
  %1781 = vmatprep.subr.bf16.mxu0 %v65
  %1782 = vmatpush1.bf16.msra.mxu0 %v62
  %1783 = vmatprep.subr.bf16.mxu0 0
  %1784 = vmatpush1.bf16.msra.mxu0 0
  %1785 = vmatprep.subr.bf16.mxu0 0
  %1786 = vmatpush1.bf16.msra.mxu0 0
  %1787 = vmatprep.subr.bf16.mxu0 0
  %1788 = vmatpush1.bf16.msra.mxu0 0
  %1789 = vmatprep.subr.bf16.mxu0 0
  %1790 = vmatpush1.bf16.msra.mxu0 0
  %1791 = vmatprep.subr.bf16.mxu0 0
  %1792 = vmatpush1.bf16.msra.mxu0 0
  %1793 = vmatprep.subr.bf16.mxu0 0
  %1794 = vmatpush1.bf16.msra.mxu0 0
  %1795 = vmatprep.subr.bf16.mxu0 0
  %1796 = vmatpush1.bf16.msra.mxu0 0
  %1797 = vmatprep.subr.bf16.mxu0 0
  %1798 = vmatpush1.bf16.msra.mxu0 0
  %1799 = vmatprep.subr.bf16.mxu0 0
  %1800 = vmatpush1.bf16.msra.mxu0 0
  %1801 = vmatprep.subr.bf16.mxu0 0
  %1802 = vmatpush1.bf16.msra.mxu0 0
  %1803 = vmatprep.subr.bf16.mxu0 0
  %1804 = vmatpush1.bf16.msra.mxu0 0
  %1805 = vmatprep.subr.bf16.mxu0 0
  %1806 = vmatpush1.bf16.msra.mxu0 0
  %1807 = vmatprep.subr.bf16.mxu0 0
  %1808 = vmatpush1.bf16.msra.mxu0 0
  %1809 = vmatprep.subr.bf16.mxu0 0
  %1810 = vmatpush1.bf16.msra.mxu0 0
  %1811 = vmatprep.subr.bf16.mxu0 0
  %1812 = vmatpush1.bf16.msra.mxu0 0
  %1813 = vmatprep.mubr.bf16.mxu0 0
  %1814 = vmatmul.mubr.bf16.gmra.mrb[0].mxu0 %v1779
  %v1815 = vpop.f32.mrb[0].mxu0
  %v1816 = vadd.f32 0.0, %v1815
  %v1817 = vpop.f32.mrb[0].mxu0
  %v1818 = vadd.f32 0.0, %v1817
  %v1819 = vpop.f32.mrb[0].mxu0
  %v1820 = vpop.f32.mrb[0].mxu0
  %1821 = vdwg.mxu0
  %1822 = vmatprep.subr.bf16.mxu0 %v71
  %1823 = vmatpush1.bf16.msra.mxu0 %v68
  %1824 = vmatprep.subr.bf16.mxu0 0
  %1825 = vmatpush1.bf16.msra.mxu0 0
  %1826 = vmatprep.subr.bf16.mxu0 0
  %1827 = vmatpush1.bf16.msra.mxu0 0
  %1828 = vmatprep.subr.bf16.mxu0 0
  %1829 = vmatpush1.bf16.msra.mxu0 0
  %1830 = vmatprep.subr.bf16.mxu0 0
  %1831 = vmatpush1.bf16.msra.mxu0 0
  %1832 = vmatprep.subr.bf16.mxu0 0
  %1833 = vmatpush1.bf16.msra.mxu0 0
  %1834 = vmatprep.subr.bf16.mxu0 0
  %1835 = vmatpush1.bf16.msra.mxu0 0
  %1836 = vmatprep.subr.bf16.mxu0 0
  %1837 = vmatpush1.bf16.msra.mxu0 0
  %1838 = vmatprep.subr.bf16.mxu0 0
  %1839 = vmatpush1.bf16.msra.mxu0 0
  %1840 = vmatprep.subr.bf16.mxu0 0
  %1841 = vmatpush1.bf16.msra.mxu0 0
  %1842 = vmatprep.subr.bf16.mxu0 0
  %1843 = vmatpush1.bf16.msra.mxu0 0
  %1844 = vmatprep.subr.bf16.mxu0 0
  %1845 = vmatpush1.bf16.msra.mxu0 0
  %1846 = vmatprep.subr.bf16.mxu0 0
  %1847 = vmatpush1.bf16.msra.mxu0 0
  %1848 = vmatprep.subr.bf16.mxu0 0
  %1849 = vmatpush1.bf16.msra.mxu0 0
  %1850 = vmatprep.subr.bf16.mxu0 0
  %1851 = vmatpush1.bf16.msra.mxu0 0
  %1852 = vmatprep.subr.bf16.mxu0 0
  %1853 = vmatpush1.bf16.msra.mxu0 0
  %1854 = vmatprep.mubr.bf16.mxu0 0
  %1855 = vmatmul.mubr.bf16.gmra.mrb[0].mxu0 %v1779
  %v1856 = vpop.f32.mrb[0].mxu0
  %v1857 = vadd.f32 0.0, %v1856
  %v1858 = vpop.f32.mrb[0].mxu0
  %v1859 = vadd.f32 0.0, %v1858
  %v1860 = vpop.f32.mrb[0].mxu0
  %v1861 = vpop.f32.mrb[0].mxu0
  %1862 = vdwg.mxu0
  %1863 = vmatprep.subr.bf16.mxu0 %v77
  %1864 = vmatpush1.bf16.msra.mxu0 %v74
  %1865 = vmatprep.subr.bf16.mxu0 0
  %1866 = vmatpush1.bf16.msra.mxu0 0
  %1867 = vmatprep.subr.bf16.mxu0 0
  %1868 = vmatpush1.bf16.msra.mxu0 0
  %1869 = vmatprep.subr.bf16.mxu0 0
  %1870 = vmatpush1.bf16.msra.mxu0 0
  %1871 = vmatprep.subr.bf16.mxu0 0
  %1872 = vmatpush1.bf16.msra.mxu0 0
  %1873 = vmatprep.subr.bf16.mxu0 0
  %1874 = vmatpush1.bf16.msra.mxu0 0
  %1875 = vmatprep.subr.bf16.mxu0 0
  %1876 = vmatpush1.bf16.msra.mxu0 0
  %1877 = vmatprep.subr.bf16.mxu0 0
  %1878 = vmatpush1.bf16.msra.mxu0 0
  %1879 = vmatprep.subr.bf16.mxu0 0
  %1880 = vmatpush1.bf16.msra.mxu0 0
  %1881 = vmatprep.subr.bf16.mxu0 0
  %1882 = vmatpush1.bf16.msra.mxu0 0
  %1883 = vmatprep.subr.bf16.mxu0 0
  %1884 = vmatpush1.bf16.msra.mxu0 0
  %1885 = vmatprep.subr.bf16.mxu0 0
  %1886 = vmatpush1.bf16.msra.mxu0 0
  %1887 = vmatprep.subr.bf16.mxu0 0
  %1888 = vmatpush1.bf16.msra.mxu0 0
  %1889 = vmatprep.subr.bf16.mxu0 0
  %1890 = vmatpush1.bf16.msra.mxu0 0
  %1891 = vmatprep.subr.bf16.mxu0 0
  %1892 = vmatpush1.bf16.msra.mxu0 0
  %1893 = vmatprep.subr.bf16.mxu0 0
  %1894 = vmatpush1.bf16.msra.mxu0 0
  %1895 = vmatprep.mubr.bf16.mxu0 0
  %1896 = vmatmul.mubr.bf16.gmra.mrb[0].mxu0 %v1779
  %v1897 = vpop.f32.mrb[0].mxu0
  %v1898 = vadd.f32 0.0, %v1897
  %v1899 = vpop.f32.mrb[0].mxu0
  %v1900 = vadd.f32 0.0, %v1899
  %v1901 = vpop.f32.mrb[0].mxu0
  %v1902 = vpop.f32.mrb[0].mxu0
  %1903 = vdwg.mxu0
  %1904 = vmatprep.subr.bf16.mxu0 %v83
  %1905 = vmatpush1.bf16.msra.mxu0 %v80
  %1906 = vmatprep.subr.bf16.mxu0 0
  %1907 = vmatpush1.bf16.msra.mxu0 0
  %1908 = vmatprep.subr.bf16.mxu0 0
  %1909 = vmatpush1.bf16.msra.mxu0 0
  %1910 = vmatprep.subr.bf16.mxu0 0
  %1911 = vmatpush1.bf16.msra.mxu0 0
  %1912 = vmatprep.subr.bf16.mxu0 0
  %1913 = vmatpush1.bf16.msra.mxu0 0
  %1914 = vmatprep.subr.bf16.mxu0 0
  %1915 = vmatpush1.bf16.msra.mxu0 0
  %1916 = vmatprep.subr.bf16.mxu0 0
  %1917 = vmatpush1.bf16.msra.mxu0 0
  %1918 = vmatprep.subr.bf16.mxu0 0
  %1919 = vmatpush1.bf16.msra.mxu0 0
  %1920 = vmatprep.subr.bf16.mxu0 0
  %1921 = vmatpush1.bf16.msra.mxu0 0
  %1922 = vmatprep.subr.bf16.mxu0 0
  %1923 = vmatpush1.bf16.msra.mxu0 0
  %1924 = vmatprep.subr.bf16.mxu0 0
  %1925 = vmatpush1.bf16.msra.mxu0 0
  %1926 = vmatprep.subr.bf16.mxu0 0
  %1927 = vmatpush1.bf16.msra.mxu0 0
  %1928 = vmatprep.subr.bf16.mxu0 0
  %1929 = vmatpush1.bf16.msra.mxu0 0
  %1930 = vmatprep.subr.bf16.mxu0 0
  %1931 = vmatpush1.bf16.msra.mxu0 0
  %1932 = vmatprep.subr.bf16.mxu0 0
  %1933 = vmatpush1.bf16.msra.mxu0 0
  %1934 = vmatprep.subr.bf16.mxu0 0
  %1935 = vmatpush1.bf16.msra.mxu0 0
  %1936 = vmatprep.mubr.bf16.mxu0 0
  %1937 = vmatmul.mubr.bf16.gmra.mrb[0].mxu0 %v1779
  %v1938 = vpop.f32.mrb[0].mxu0
  %v1939 = vadd.f32 0.0, %v1938
  %v1940 = vpop.f32.mrb[0].mxu0
  %v1941 = vadd.f32 0.0, %v1940
  %v1942 = vpop.f32.mrb[0].mxu0
  %v1943 = vpop.f32.mrb[0].mxu0
  %1944 = vdwg.mxu0
  %1945 = vmatprep.subr.bf16.mxu0 %v89
  %1946 = vmatpush1.bf16.msra.mxu0 %v86
  %1947 = vmatprep.subr.bf16.mxu0 0
  %1948 = vmatpush1.bf16.msra.mxu0 0
  %1949 = vmatprep.subr.bf16.mxu0 0
  %1950 = vmatpush1.bf16.msra.mxu0 0
  %1951 = vmatprep.subr.bf16.mxu0 0
  %1952 = vmatpush1.bf16.msra.mxu0 0
  %1953 = vmatprep.subr.bf16.mxu0 0
  %1954 = vmatpush1.bf16.msra.mxu0 0
  %1955 = vmatprep.subr.bf16.mxu0 0
  %1956 = vmatpush1.bf16.msra.mxu0 0
  %1957 = vmatprep.subr.bf16.mxu0 0
  %1958 = vmatpush1.bf16.msra.mxu0 0
  %1959 = vmatprep.subr.bf16.mxu0 0
  %1960 = vmatpush1.bf16.msra.mxu0 0
  %1961 = vmatprep.subr.bf16.mxu0 0
  %1962 = vmatpush1.bf16.msra.mxu0 0
  %1963 = vmatprep.subr.bf16.mxu0 0
  %1964 = vmatpush1.bf16.msra.mxu0 0
  %1965 = vmatprep.subr.bf16.mxu0 0
  %1966 = vmatpush1.bf16.msra.mxu0 0
  %1967 = vmatprep.subr.bf16.mxu0 0
  %1968 = vmatpush1.bf16.msra.mxu0 0
  %1969 = vmatprep.subr.bf16.mxu0 0
  %1970 = vmatpush1.bf16.msra.mxu0 0
  %1971 = vmatprep.subr.bf16.mxu0 0
  %1972 = vmatpush1.bf16.msra.mxu0 0
  %1973 = vmatprep.subr.bf16.mxu0 0
  %1974 = vmatpush1.bf16.msra.mxu0 0
  %1975 = vmatprep.subr.bf16.mxu0 0
  %1976 = vmatpush1.bf16.msra.mxu0 0
  %1977 = vmatprep.mubr.bf16.mxu0 0
  %1978 = vmatmul.mubr.bf16.gmra.mrb[0].mxu0 %v1779
  %v1979 = vpop.f32.mrb[0].mxu0
  %v1980 = vadd.f32 0.0, %v1979
  %v1981 = vpop.f32.mrb[0].mxu0
  %v1982 = vadd.f32 0.0, %v1981
  %v1983 = vpop.f32.mrb[0].mxu0
  %v1984 = vpop.f32.mrb[0].mxu0
  %1985 = vdwg.mxu0
  %v1986 = vld [vmem:[#allocation2] sm:$0xff]
  %v1987 = vld [vmem:[#allocation2 + $0x8] sm:$0xff]
  %v1988 = vld [vmem:[#allocation2 + $0x10] sm:$0xff]
  %v1989 = vld [vmem:[#allocation2 + $0x18] sm:$0xff]
  %v1990 = vld [vmem:[#allocation2 + $0x20] sm:$0xff]
  %v1991 = vld [vmem:[#allocation2 + $0x28] sm:$0xff]
  %v1992 = vld [vmem:[#allocation2 + $0x30] sm:$0xff]
  %v1993 = vld [vmem:[#allocation2 + $0x38] sm:$0xff]
  %v1994 = vld [vmem:[#allocation2 + $0x40] sm:$0xff]
  %v1995 = vld [vmem:[#allocation2 + $0x48] sm:$0xff]
  %2006 = vrot.lane.b32.xlu0 %v1816, 60
  %v2007 = vpop.permute.xlu0 %2006
  %2008 = vrot.lane.b32.xlu0 %v1818, 60
  %v2009 = vpop.permute.xlu0 %2008
  %2010 = vrot.lane.b32.xlu0 %v1857, 60
  %v2011 = vpop.permute.xlu0 %2010
  %2012 = vrot.lane.b32.xlu0 %v1859, 60
  %v2013 = vpop.permute.xlu0 %2012
  %2014 = vrot.lane.b32.xlu0 %v1898, 60
  %v2015 = vpop.permute.xlu0 %2014
  %2016 = vrot.lane.b32.xlu0 %v1900, 60
  %v2017 = vpop.permute.xlu0 %2016
  %2018 = vrot.lane.b32.xlu0 %v1939, 60
  %v2019 = vpop.permute.xlu0 %2018
  %2020 = vrot.lane.b32.xlu0 %v1941, 60
  %v2021 = vpop.permute.xlu0 %2020
  %2022 = vrot.lane.b32.xlu0 %v1980, 60
  %v2023 = vpop.permute.xlu0 %2022
  %2024 = vrot.lane.b32.xlu0 %v1982, 60
  %v2025 = vpop.permute.xlu0 %2024
  %vm2026 = vcmask 490496
  %v2027 = vsel %vm2026, %v2007, %v2009
  %v2028 = vsel %vm2026, %v2009, %v2011
  %v2029 = vsel %vm2026, %v2011, %v2013
  %v2030 = vsel %vm2026, %v2013, %v2015
  %v2031 = vsel %vm2026, %v2015, %v2017
  %v2032 = vsel %vm2026, %v2017, %v2019
  %v2033 = vsel %vm2026, %v2019, %v2021
  %v2034 = vsel %vm2026, %v2021, %v2023
  %v2035 = vsel %vm2026, %v2023, %v2025
  %v2046 = vadd.f32 %v1986, %v2027
  %v2047 = vadd.f32 %v1987, %v2028
  %v2048 = vadd.f32 %v1988, %v2029
  %v2049 = vadd.f32 %v1989, %v2030
  %v2050 = vadd.f32 %v1990, %v2031
  %v2051 = vadd.f32 %v1991, %v2032
  %v2052 = vadd.f32 %v1992, %v2033
  %v2053 = vadd.f32 %v1993, %v2034
  %v2054 = vadd.f32 %v1994, %v2035
  %v2055 = vadd.f32 %v1995, %v2025
  %2056 = vst [vmem:[#allocation2] sm:$0xff] %v2046
  %2057 = vst [vmem:[#allocation2 + $0x8] sm:$0xff] %v2047
  %2058 = vst [vmem:[#allocation2 + $0x10] sm:$0xff] %v2048
  %2059 = vst [vmem:[#allocation2 + $0x18] sm:$0xff] %v2049
  %2060 = vst [vmem:[#allocation2 + $0x20] sm:$0xff] %v2050
  %2061 = vst [vmem:[#allocation2 + $0x28] sm:$0xff] %v2051
  %2062 = vst [vmem:[#allocation2 + $0x30] sm:$0xff] %v2052
  %2063 = vst [vmem:[#allocation2 + $0x38] sm:$0xff] %v2053
  %2064 = vst [vmem:[#allocation2 + $0x40] sm:$0xff] %v2054
  %2065 = vst.msk [vmem:[#allocation2 + $0x48] sm:$0xff] %vm2026, %v2055
  %s2066 = scalar_lea.vmem %s0, 28
  %v2067 = vld [vmem:[%s2066] sm:$0xf]
  %v2069 = vsel %vm56, %v2067, 0
  %2071 = vmatprep.subr.bf16.mxu0 %v65
  %2072 = vmatpush1.bf16.msra.mxu0 %v62
  %2073 = vmatprep.subr.bf16.mxu0 0
  %2074 = vmatpush1.bf16.msra.mxu0 0
  %2075 = vmatprep.subr.bf16.mxu0 0
  %2076 = vmatpush1.bf16.msra.mxu0 0
  %2077 = vmatprep.subr.bf16.mxu0 0
  %2078 = vmatpush1.bf16.msra.mxu0 0
  %2079 = vmatprep.subr.bf16.mxu0 0
  %2080 = vmatpush1.bf16.msra.mxu0 0
  %2081 = vmatprep.subr.bf16.mxu0 0
  %2082 = vmatpush1.bf16.msra.mxu0 0
  %2083 = vmatprep.subr.bf16.mxu0 0
  %2084 = vmatpush1.bf16.msra.mxu0 0
  %2085 = vmatprep.subr.bf16.mxu0 0
  %2086 = vmatpush1.bf16.msra.mxu0 0
  %2087 = vmatprep.subr.bf16.mxu0 0
  %2088 = vmatpush1.bf16.msra.mxu0 0
  %2089 = vmatprep.subr.bf16.mxu0 0
  %2090 = vmatpush1.bf16.msra.mxu0 0
  %2091 = vmatprep.subr.bf16.mxu0 0
  %2092 = vmatpush1.bf16.msra.mxu0 0
  %2093 = vmatprep.subr.bf16.mxu0 0
  %2094 = vmatpush1.bf16.msra.mxu0 0
  %2095 = vmatprep.subr.bf16.mxu0 0
  %2096 = vmatpush1.bf16.msra.mxu0 0
  %2097 = vmatprep.subr.bf16.mxu0 0
  %2098 = vmatpush1.bf16.msra.mxu0 0
  %2099 = vmatprep.subr.bf16.mxu0 0
  %2100 = vmatpush1.bf16.msra.mxu0 0
  %2101 = vmatprep.subr.bf16.mxu0 0
  %2102 = vmatpush1.bf16.msra.mxu0 0
  %2103 = vmatprep.mubr.bf16.mxu0 0
  %2104 = vmatmul.mubr.bf16.gmra.mrb[0].mxu0 %v2069
  %v2105 = vpop.f32.mrb[0].mxu0
  %v2106 = vadd.f32 0.0, %v2105
  %v2107 = vpop.f32.mrb[0].mxu0
  %v2108 = vadd.f32 0.0, %v2107
  %v2109 = vpop.f32.mrb[0].mxu0
  %v2110 = vpop.f32.mrb[0].mxu0
  %2111 = vdwg.mxu0
  %2112 = vmatprep.subr.bf16.mxu0 %v71
  %2113 = vmatpush1.bf16.msra.mxu0 %v68
  %2114 = vmatprep.subr.bf16.mxu0 0
  %2115 = vmatpush1.bf16.msra.mxu0 0
  %2116 = vmatprep.subr.bf16.mxu0 0
  %2117 = vmatpush1.bf16.msra.mxu0 0
  %2118 = vmatprep.subr.bf16.mxu0 0
  %2119 = vmatpush1.bf16.msra.mxu0 0
  %2120 = vmatprep.subr.bf16.mxu0 0
  %2121 = vmatpush1.bf16.msra.mxu0 0
  %2122 = vmatprep.subr.bf16.mxu0 0
  %2123 = vmatpush1.bf16.msra.mxu0 0
  %2124 = vmatprep.subr.bf16.mxu0 0
  %2125 = vmatpush1.bf16.msra.mxu0 0
  %2126 = vmatprep.subr.bf16.mxu0 0
  %2127 = vmatpush1.bf16.msra.mxu0 0
  %2128 = vmatprep.subr.bf16.mxu0 0
  %2129 = vmatpush1.bf16.msra.mxu0 0
  %2130 = vmatprep.subr.bf16.mxu0 0
  %2131 = vmatpush1.bf16.msra.mxu0 0
  %2132 = vmatprep.subr.bf16.mxu0 0
  %2133 = vmatpush1.bf16.msra.mxu0 0
  %2134 = vmatprep.subr.bf16.mxu0 0
  %2135 = vmatpush1.bf16.msra.mxu0 0
  %2136 = vmatprep.subr.bf16.mxu0 0
  %2137 = vmatpush1.bf16.msra.mxu0 0
  %2138 = vmatprep.subr.bf16.mxu0 0
  %2139 = vmatpush1.bf16.msra.mxu0 0
  %2140 = vmatprep.subr.bf16.mxu0 0
  %2141 = vmatpush1.bf16.msra.mxu0 0
  %2142 = vmatprep.subr.bf16.mxu0 0
  %2143 = vmatpush1.bf16.msra.mxu0 0
  %2144 = vmatprep.mubr.bf16.mxu0 0
  %2145 = vmatmul.mubr.bf16.gmra.mrb[0].mxu0 %v2069
  %v2146 = vpop.f32.mrb[0].mxu0
  %v2147 = vadd.f32 0.0, %v2146
  %v2148 = vpop.f32.mrb[0].mxu0
  %v2149 = vadd.f32 0.0, %v2148
  %v2150 = vpop.f32.mrb[0].mxu0
  %v2151 = vpop.f32.mrb[0].mxu0
  %2152 = vdwg.mxu0
  %2153 = vmatprep.subr.bf16.mxu0 %v77
  %2154 = vmatpush1.bf16.msra.mxu0 %v74
  %2155 = vmatprep.subr.bf16.mxu0 0
  %2156 = vmatpush1.bf16.msra.mxu0 0
  %2157 = vmatprep.subr.bf16.mxu0 0
  %2158 = vmatpush1.bf16.msra.mxu0 0
  %2159 = vmatprep.subr.bf16.mxu0 0
  %2160 = vmatpush1.bf16.msra.mxu0 0
  %2161 = vmatprep.subr.bf16.mxu0 0
  %2162 = vmatpush1.bf16.msra.mxu0 0
  %2163 = vmatprep.subr.bf16.mxu0 0
  %2164 = vmatpush1.bf16.msra.mxu0 0
  %2165 = vmatprep.subr.bf16.mxu0 0
  %2166 = vmatpush1.bf16.msra.mxu0 0
  %2167 = vmatprep.subr.bf16.mxu0 0
  %2168 = vmatpush1.bf16.msra.mxu0 0
  %2169 = vmatprep.subr.bf16.mxu0 0
  %2170 = vmatpush1.bf16.msra.mxu0 0
  %2171 = vmatprep.subr.bf16.mxu0 0
  %2172 = vmatpush1.bf16.msra.mxu0 0
  %2173 = vmatprep.subr.bf16.mxu0 0
  %2174 = vmatpush1.bf16.msra.mxu0 0
  %2175 = vmatprep.subr.bf16.mxu0 0
  %2176 = vmatpush1.bf16.msra.mxu0 0
  %2177 = vmatprep.subr.bf16.mxu0 0
  %2178 = vmatpush1.bf16.msra.mxu0 0
  %2179 = vmatprep.subr.bf16.mxu0 0
  %2180 = vmatpush1.bf16.msra.mxu0 0
  %2181 = vmatprep.subr.bf16.mxu0 0
  %2182 = vmatpush1.bf16.msra.mxu0 0
  %2183 = vmatprep.subr.bf16.mxu0 0
  %2184 = vmatpush1.bf16.msra.mxu0 0
  %2185 = vmatprep.mubr.bf16.mxu0 0
  %2186 = vmatmul.mubr.bf16.gmra.mrb[0].mxu0 %v2069
  %v2187 = vpop.f32.mrb[0].mxu0
  %v2188 = vadd.f32 0.0, %v2187
  %v2189 = vpop.f32.mrb[0].mxu0
  %v2190 = vadd.f32 0.0, %v2189
  %v2191 = vpop.f32.mrb[0].mxu0
  %v2192 = vpop.f32.mrb[0].mxu0
  %2193 = vdwg.mxu0
  %2194 = vmatprep.subr.bf16.mxu0 %v83
  %2195 = vmatpush1.bf16.msra.mxu0 %v80
  %2196 = vmatprep.subr.bf16.mxu0 0
  %2197 = vmatpush1.bf16.msra.mxu0 0
  %2198 = vmatprep.subr.bf16.mxu0 0
  %2199 = vmatpush1.bf16.msra.mxu0 0
  %2200 = vmatprep.subr.bf16.mxu0 0
  %2201 = vmatpush1.bf16.msra.mxu0 0
  %2202 = vmatprep.subr.bf16.mxu0 0
  %2203 = vmatpush1.bf16.msra.mxu0 0
  %2204 = vmatprep.subr.bf16.mxu0 0
  %2205 = vmatpush1.bf16.msra.mxu0 0
  %2206 = vmatprep.subr.bf16.mxu0 0
  %2207 = vmatpush1.bf16.msra.mxu0 0
  %2208 = vmatprep.subr.bf16.mxu0 0
  %2209 = vmatpush1.bf16.msra.mxu0 0
  %2210 = vmatprep.subr.bf16.mxu0 0
  %2211 = vmatpush1.bf16.msra.mxu0 0
  %2212 = vmatprep.subr.bf16.mxu0 0
  %2213 = vmatpush1.bf16.msra.mxu0 0
  %2214 = vmatprep.subr.bf16.mxu0 0
  %2215 = vmatpush1.bf16.msra.mxu0 0
  %2216 = vmatprep.subr.bf16.mxu0 0
  %2217 = vmatpush1.bf16.msra.mxu0 0
  %2218 = vmatprep.subr.bf16.mxu0 0
  %2219 = vmatpush1.bf16.msra.mxu0 0
  %2220 = vmatprep.subr.bf16.mxu0 0
  %2221 = vmatpush1.bf16.msra.mxu0 0
  %2222 = vmatprep.subr.bf16.mxu0 0
  %2223 = vmatpush1.bf16.msra.mxu0 0
  %2224 = vmatprep.subr.bf16.mxu0 0
  %2225 = vmatpush1.bf16.msra.mxu0 0
  %2226 = vmatprep.mubr.bf16.mxu0 0
  %2227 = vmatmul.mubr.bf16.gmra.mrb[0].mxu0 %v2069
  %v2228 = vpop.f32.mrb[0].mxu0
  %v2229 = vadd.f32 0.0, %v2228
  %v2230 = vpop.f32.mrb[0].mxu0
  %v2231 = vadd.f32 0.0, %v2230
  %v2232 = vpop.f32.mrb[0].mxu0
  %v2233 = vpop.f32.mrb[0].mxu0
  %2234 = vdwg.mxu0
  %2235 = vmatprep.subr.bf16.mxu0 %v89
  %2236 = vmatpush1.bf16.msra.mxu0 %v86
  %2237 = vmatprep.subr.bf16.mxu0 0
  %2238 = vmatpush1.bf16.msra.mxu0 0
  %2239 = vmatprep.subr.bf16.mxu0 0
  %2240 = vmatpush1.bf16.msra.mxu0 0
  %2241 = vmatprep.subr.bf16.mxu0 0
  %2242 = vmatpush1.bf16.msra.mxu0 0
  %2243 = vmatprep.subr.bf16.mxu0 0
  %2244 = vmatpush1.bf16.msra.mxu0 0
  %2245 = vmatprep.subr.bf16.mxu0 0
  %2246 = vmatpush1.bf16.msra.mxu0 0
  %2247 = vmatprep.subr.bf16.mxu0 0
  %2248 = vmatpush1.bf16.msra.mxu0 0
  %2249 = vmatprep.subr.bf16.mxu0 0
  %2250 = vmatpush1.bf16.msra.mxu0 0
  %2251 = vmatprep.subr.bf16.mxu0 0
  %2252 = vmatpush1.bf16.msra.mxu0 0
  %2253 = vmatprep.subr.bf16.mxu0 0
  %2254 = vmatpush1.bf16.msra.mxu0 0
  %2255 = vmatprep.subr.bf16.mxu0 0
  %2256 = vmatpush1.bf16.msra.mxu0 0
  %2257 = vmatprep.subr.bf16.mxu0 0
  %2258 = vmatpush1.bf16.msra.mxu0 0
  %2259 = vmatprep.subr.bf16.mxu0 0
  %2260 = vmatpush1.bf16.msra.mxu0 0
  %2261 = vmatprep.subr.bf16.mxu0 0
  %2262 = vmatpush1.bf16.msra.mxu0 0
  %2263 = vmatprep.subr.bf16.mxu0 0
  %2264 = vmatpush1.bf16.msra.mxu0 0
  %2265 = vmatprep.subr.bf16.mxu0 0
  %2266 = vmatpush1.bf16.msra.mxu0 0
  %2267 = vmatprep.mubr.bf16.mxu0 0
  %2268 = vmatmul.mubr.bf16.gmra.mrb[0].mxu0 %v2069
  %v2269 = vpop.f32.mrb[0].mxu0
  %v2270 = vadd.f32 0.0, %v2269
  %v2271 = vpop.f32.mrb[0].mxu0
  %v2272 = vadd.f32 0.0, %v2271
  %v2273 = vpop.f32.mrb[0].mxu0
  %v2274 = vpop.f32.mrb[0].mxu0
  %2275 = vdwg.mxu0
  %v2276 = vld [vmem:[#allocation2] sm:$0xff]
  %v2277 = vld [vmem:[#allocation2 + $0x8] sm:$0xff]
  %v2278 = vld [vmem:[#allocation2 + $0x10] sm:$0xff]
  %v2279 = vld [vmem:[#allocation2 + $0x18] sm:$0xff]
  %v2280 = vld [vmem:[#allocation2 + $0x20] sm:$0xff]
  %v2281 = vld [vmem:[#allocation2 + $0x28] sm:$0xff]
  %v2282 = vld [vmem:[#allocation2 + $0x30] sm:$0xff]
  %v2283 = vld [vmem:[#allocation2 + $0x38] sm:$0xff]
  %v2284 = vld [vmem:[#allocation2 + $0x40] sm:$0xff]
  %v2285 = vld [vmem:[#allocation2 + $0x48] sm:$0xff]
  %2296 = vrot.lane.b32.xlu0 %v2106, 59
  %v2297 = vpop.permute.xlu0 %2296
  %2298 = vrot.lane.b32.xlu0 %v2108, 59
  %v2299 = vpop.permute.xlu0 %2298
  %2300 = vrot.lane.b32.xlu0 %v2147, 59
  %v2301 = vpop.permute.xlu0 %2300
  %2302 = vrot.lane.b32.xlu0 %v2149, 59
  %v2303 = vpop.permute.xlu0 %2302
  %2304 = vrot.lane.b32.xlu0 %v2188, 59
  %v2305 = vpop.permute.xlu0 %2304
  %2306 = vrot.lane.b32.xlu0 %v2190, 59
  %v2307 = vpop.permute.xlu0 %2306
  %2308 = vrot.lane.b32.xlu0 %v2229, 59
  %v2309 = vpop.permute.xlu0 %2308
  %2310 = vrot.lane.b32.xlu0 %v2231, 59
  %v2311 = vpop.permute.xlu0 %2310
  %2312 = vrot.lane.b32.xlu0 %v2270, 59
  %v2313 = vpop.permute.xlu0 %2312
  %2314 = vrot.lane.b32.xlu0 %v2272, 59
  %v2315 = vpop.permute.xlu0 %2314
  %vm2316 = vcmask 482304
  %v2317 = vsel %vm2316, %v2297, %v2299
  %v2318 = vsel %vm2316, %v2299, %v2301
  %v2319 = vsel %vm2316, %v2301, %v2303
  %v2320 = vsel %vm2316, %v2303, %v2305
  %v2321 = vsel %vm2316, %v2305, %v2307
  %v2322 = vsel %vm2316, %v2307, %v2309
  %v2323 = vsel %vm2316, %v2309, %v2311
  %v2324 = vsel %vm2316, %v2311, %v2313
  %v2325 = vsel %vm2316, %v2313, %v2315
  %v2336 = vadd.f32 %v2276, %v2317
  %v2337 = vadd.f32 %v2277, %v2318
  %v2338 = vadd.f32 %v2278, %v2319
  %v2339 = vadd.f32 %v2279, %v2320
  %v2340 = vadd.f32 %v2280, %v2321
  %v2341 = vadd.f32 %v2281, %v2322
  %v2342 = vadd.f32 %v2282, %v2323
  %v2343 = vadd.f32 %v2283, %v2324
  %v2344 = vadd.f32 %v2284, %v2325
  %v2345 = vadd.f32 %v2285, %v2315
  %2346 = vst [vmem:[#allocation2] sm:$0xff] %v2336
  %2347 = vst [vmem:[#allocation2 + $0x8] sm:$0xff] %v2337
  %2348 = vst [vmem:[#allocation2 + $0x10] sm:$0xff] %v2338
  %2349 = vst [vmem:[#allocation2 + $0x18] sm:$0xff] %v2339
  %2350 = vst [vmem:[#allocation2 + $0x20] sm:$0xff] %v2340
  %2351 = vst [vmem:[#allocation2 + $0x28] sm:$0xff] %v2341
  %2352 = vst [vmem:[#allocation2 + $0x30] sm:$0xff] %v2342
  %2353 = vst [vmem:[#allocation2 + $0x38] sm:$0xff] %v2343
  %2354 = vst [vmem:[#allocation2 + $0x40] sm:$0xff] %v2344
  %2355 = vst.msk [vmem:[#allocation2 + $0x48] sm:$0xff] %vm2316, %v2345
  %s2356 = scalar_lea.vmem %s0, 32
  %v2357 = vld [vmem:[%s2356] sm:$0xf]
  %v2359 = vsel %vm56, %v2357, 0
  %2361 = vmatprep.subr.bf16.mxu0 %v65
  %2362 = vmatpush1.bf16.msra.mxu0 %v62
  %2363 = vmatprep.subr.bf16.mxu0 0
  %2364 = vmatpush1.bf16.msra.mxu0 0
  %2365 = vmatprep.subr.bf16.mxu0 0
  %2366 = vmatpush1.bf16.msra.mxu0 0
  %2367 = vmatprep.subr.bf16.mxu0 0
  %2368 = vmatpush1.bf16.msra.mxu0 0
  %2369 = vmatprep.subr.bf16.mxu0 0
  %2370 = vmatpush1.bf16.msra.mxu0 0
  %2371 = vmatprep.subr.bf16.mxu0 0
  %2372 = vmatpush1.bf16.msra.mxu0 0
  %2373 = vmatprep.subr.bf16.mxu0 0
  %2374 = vmatpush1.bf16.msra.mxu0 0
  %2375 = vmatprep.subr.bf16.mxu0 0
  %2376 = vmatpush1.bf16.msra.mxu0 0
  %2377 = vmatprep.subr.bf16.mxu0 0
  %2378 = vmatpush1.bf16.msra.mxu0 0
  %2379 = vmatprep.subr.bf16.mxu0 0
  %2380 = vmatpush1.bf16.msra.mxu0 0
  %2381 = vmatprep.subr.bf16.mxu0 0
  %2382 = vmatpush1.bf16.msra.mxu0 0
  %2383 = vmatprep.subr.bf16.mxu0 0
  %2384 = vmatpush1.bf16.msra.mxu0 0
  %2385 = vmatprep.subr.bf16.mxu0 0
  %2386 = vmatpush1.bf16.msra.mxu0 0
  %2387 = vmatprep.subr.bf16.mxu0 0
  %2388 = vmatpush1.bf16.msra.mxu0 0
  %2389 = vmatprep.subr.bf16.mxu0 0
  %2390 = vmatpush1.bf16.msra.mxu0 0
  %2391 = vmatprep.subr.bf16.mxu0 0
  %2392 = vmatpush1.bf16.msra.mxu0 0
  %2393 = vmatprep.mubr.bf16.mxu0 0
  %2394 = vmatmul.mubr.bf16.gmra.mrb[0].mxu0 %v2359
  %v2395 = vpop.f32.mrb[0].mxu0
  %v2396 = vadd.f32 0.0, %v2395
  %v2397 = vpop.f32.mrb[0].mxu0
  %v2398 = vadd.f32 0.0, %v2397
  %v2399 = vpop.f32.mrb[0].mxu0
  %v2400 = vpop.f32.mrb[0].mxu0
  %2401 = vdwg.mxu0
  %2402 = vmatprep.subr.bf16.mxu0 %v71
  %2403 = vmatpush1.bf16.msra.mxu0 %v68
  %2404 = vmatprep.subr.bf16.mxu0 0
  %2405 = vmatpush1.bf16.msra.mxu0 0
  %2406 = vmatprep.subr.bf16.mxu0 0
  %2407 = vmatpush1.bf16.msra.mxu0 0
  %2408 = vmatprep.subr.bf16.mxu0 0
  %2409 = vmatpush1.bf16.msra.mxu0 0
  %2410 = vmatprep.subr.bf16.mxu0 0
  %2411 = vmatpush1.bf16.msra.mxu0 0
  %2412 = vmatprep.subr.bf16.mxu0 0
  %2413 = vmatpush1.bf16.msra.mxu0 0
  %2414 = vmatprep.subr.bf16.mxu0 0
  %2415 = vmatpush1.bf16.msra.mxu0 0
  %2416 = vmatprep.subr.bf16.mxu0 0
  %2417 = vmatpush1.bf16.msra.mxu0 0
  %2418 = vmatprep.subr.bf16.mxu0 0
  %2419 = vmatpush1.bf16.msra.mxu0 0
  %2420 = vmatprep.subr.bf16.mxu0 0
  %2421 = vmatpush1.bf16.msra.mxu0 0
  %2422 = vmatprep.subr.bf16.mxu0 0
  %2423 = vmatpush1.bf16.msra.mxu0 0
  %2424 = vmatprep.subr.bf16.mxu0 0
  %2425 = vmatpush1.bf16.msra.mxu0 0
  %2426 = vmatprep.subr.bf16.mxu0 0
  %2427 = vmatpush1.bf16.msra.mxu0 0
  %2428 = vmatprep.subr.bf16.mxu0 0
  %2429 = vmatpush1.bf16.msra.mxu0 0
  %2430 = vmatprep.subr.bf16.mxu0 0
  %2431 = vmatpush1.bf16.msra.mxu0 0
  %2432 = vmatprep.subr.bf16.mxu0 0
  %2433 = vmatpush1.bf16.msra.mxu0 0
  %2434 = vmatprep.mubr.bf16.mxu0 0
  %2435 = vmatmul.mubr.bf16.gmra.mrb[0].mxu0 %v2359
  %v2436 = vpop.f32.mrb[0].mxu0
  %v2437 = vadd.f32 0.0, %v2436
  %v2438 = vpop.f32.mrb[0].mxu0
  %v2439 = vadd.f32 0.0, %v2438
  %v2440 = vpop.f32.mrb[0].mxu0
  %v2441 = vpop.f32.mrb[0].mxu0
  %2442 = vdwg.mxu0
  %2443 = vmatprep.subr.bf16.mxu0 %v77
  %2444 = vmatpush1.bf16.msra.mxu0 %v74
  %2445 = vmatprep.subr.bf16.mxu0 0
  %2446 = vmatpush1.bf16.msra.mxu0 0
  %2447 = vmatprep.subr.bf16.mxu0 0
  %2448 = vmatpush1.bf16.msra.mxu0 0
  %2449 = vmatprep.subr.bf16.mxu0 0
  %2450 = vmatpush1.bf16.msra.mxu0 0
  %2451 = vmatprep.subr.bf16.mxu0 0
  %2452 = vmatpush1.bf16.msra.mxu0 0
  %2453 = vmatprep.subr.bf16.mxu0 0
  %2454 = vmatpush1.bf16.msra.mxu0 0
  %2455 = vmatprep.subr.bf16.mxu0 0
  %2456 = vmatpush1.bf16.msra.mxu0 0
  %2457 = vmatprep.subr.bf16.mxu0 0
  %2458 = vmatpush1.bf16.msra.mxu0 0
  %2459 = vmatprep.subr.bf16.mxu0 0
  %2460 = vmatpush1.bf16.msra.mxu0 0
  %2461 = vmatprep.subr.bf16.mxu0 0
  %2462 = vmatpush1.bf16.msra.mxu0 0
  %2463 = vmatprep.subr.bf16.mxu0 0
  %2464 = vmatpush1.bf16.msra.mxu0 0
  %2465 = vmatprep.subr.bf16.mxu0 0
  %2466 = vmatpush1.bf16.msra.mxu0 0
  %2467 = vmatprep.subr.bf16.mxu0 0
  %2468 = vmatpush1.bf16.msra.mxu0 0
  %2469 = vmatprep.subr.bf16.mxu0 0
  %2470 = vmatpush1.bf16.msra.mxu0 0
  %2471 = vmatprep.subr.bf16.mxu0 0
  %2472 = vmatpush1.bf16.msra.mxu0 0
  %2473 = vmatprep.subr.bf16.mxu0 0
  %2474 = vmatpush1.bf16.msra.mxu0 0
  %2475 = vmatprep.mubr.bf16.mxu0 0
  %2476 = vmatmul.mubr.bf16.gmra.mrb[0].mxu0 %v2359
  %v2477 = vpop.f32.mrb[0].mxu0
  %v2478 = vadd.f32 0.0, %v2477
  %v2479 = vpop.f32.mrb[0].mxu0
  %v2480 = vadd.f32 0.0, %v2479
  %v2481 = vpop.f32.mrb[0].mxu0
  %v2482 = vpop.f32.mrb[0].mxu0
  %2483 = vdwg.mxu0
  %2484 = vmatprep.subr.bf16.mxu0 %v83
  %2485 = vmatpush1.bf16.msra.mxu0 %v80
  %2486 = vmatprep.subr.bf16.mxu0 0
  %2487 = vmatpush1.bf16.msra.mxu0 0
  %2488 = vmatprep.subr.bf16.mxu0 0
  %2489 = vmatpush1.bf16.msra.mxu0 0
  %2490 = vmatprep.subr.bf16.mxu0 0
  %2491 = vmatpush1.bf16.msra.mxu0 0
  %2492 = vmatprep.subr.bf16.mxu0 0
  %2493 = vmatpush1.bf16.msra.mxu0 0
  %2494 = vmatprep.subr.bf16.mxu0 0
  %2495 = vmatpush1.bf16.msra.mxu0 0
  %2496 = vmatprep.subr.bf16.mxu0 0
  %2497 = vmatpush1.bf16.msra.mxu0 0
  %2498 = vmatprep.subr.bf16.mxu0 0
  %2499 = vmatpush1.bf16.msra.mxu0 0
  %2500 = vmatprep.subr.bf16.mxu0 0
  %2501 = vmatpush1.bf16.msra.mxu0 0
  %2502 = vmatprep.subr.bf16.mxu0 0
  %2503 = vmatpush1.bf16.msra.mxu0 0
  %2504 = vmatprep.subr.bf16.mxu0 0
  %2505 = vmatpush1.bf16.msra.mxu0 0
  %2506 = vmatprep.subr.bf16.mxu0 0
  %2507 = vmatpush1.bf16.msra.mxu0 0
  %2508 = vmatprep.subr.bf16.mxu0 0
  %2509 = vmatpush1.bf16.msra.mxu0 0
  %2510 = vmatprep.subr.bf16.mxu0 0
  %2511 = vmatpush1.bf16.msra.mxu0 0
  %2512 = vmatprep.subr.bf16.mxu0 0
  %2513 = vmatpush1.bf16.msra.mxu0 0
  %2514 = vmatprep.subr.bf16.mxu0 0
  %2515 = vmatpush1.bf16.msra.mxu0 0
  %2516 = vmatprep.mubr.bf16.mxu0 0
  %2517 = vmatmul.mubr.bf16.gmra.mrb[0].mxu0 %v2359
  %v2518 = vpop.f32.mrb[0].mxu0
  %v2519 = vadd.f32 0.0, %v2518
  %v2520 = vpop.f32.mrb[0].mxu0
  %v2521 = vadd.f32 0.0, %v2520
  %v2522 = vpop.f32.mrb[0].mxu0
  %v2523 = vpop.f32.mrb[0].mxu0
  %2524 = vdwg.mxu0
  %2525 = vmatprep.subr.bf16.mxu0 %v89
  %2526 = vmatpush1.bf16.msra.mxu0 %v86
  %2527 = vmatprep.subr.bf16.mxu0 0
  %2528 = vmatpush1.bf16.msra.mxu0 0
  %2529 = vmatprep.subr.bf16.mxu0 0
  %2530 = vmatpush1.bf16.msra.mxu0 0
  %2531 = vmatprep.subr.bf16.mxu0 0
  %2532 = vmatpush1.bf16.msra.mxu0 0
  %2533 = vmatprep.subr.bf16.mxu0 0
  %2534 = vmatpush1.bf16.msra.mxu0 0
  %2535 = vmatprep.subr.bf16.mxu0 0
  %2536 = vmatpush1.bf16.msra.mxu0 0
  %2537 = vmatprep.subr.bf16.mxu0 0
  %2538 = vmatpush1.bf16.msra.mxu0 0
  %2539 = vmatprep.subr.bf16.mxu0 0
  %2540 = vmatpush1.bf16.msra.mxu0 0
  %2541 = vmatprep.subr.bf16.mxu0 0
  %2542 = vmatpush1.bf16.msra.mxu0 0
  %2543 = vmatprep.subr.bf16.mxu0 0
  %2544 = vmatpush1.bf16.msra.mxu0 0
  %2545 = vmatprep.subr.bf16.mxu0 0
  %2546 = vmatpush1.bf16.msra.mxu0 0
  %2547 = vmatprep.subr.bf16.mxu0 0
  %2548 = vmatpush1.bf16.msra.mxu0 0
  %2549 = vmatprep.subr.bf16.mxu0 0
  %2550 = vmatpush1.bf16.msra.mxu0 0
  %2551 = vmatprep.subr.bf16.mxu0 0
  %2552 = vmatpush1.bf16.msra.mxu0 0
  %2553 = vmatprep.subr.bf16.mxu0 0
  %2554 = vmatpush1.bf16.msra.mxu0 0
  %2555 = vmatprep.subr.bf16.mxu0 0
  %2556 = vmatpush1.bf16.msra.mxu0 0
  %2557 = vmatprep.mubr.bf16.mxu0 0
  %2558 = vmatmul.mubr.bf16.gmra.mrb[0].mxu0 %v2359
  %v2559 = vpop.f32.mrb[0].mxu0
  %v2560 = vadd.f32 0.0, %v2559
  %v2561 = vpop.f32.mrb[0].mxu0
  %v2562 = vadd.f32 0.0, %v2561
  %v2563 = vpop.f32.mrb[0].mxu0
  %v2564 = vpop.f32.mrb[0].mxu0
  %2565 = vdwg.mxu0
  %v2566 = vld [vmem:[#allocation2] sm:$0xff]
  %v2567 = vld [vmem:[#allocation2 + $0x8] sm:$0xff]
  %v2568 = vld [vmem:[#allocation2 + $0x10] sm:$0xff]
  %v2569 = vld [vmem:[#allocation2 + $0x18] sm:$0xff]
  %v2570 = vld [vmem:[#allocation2 + $0x20] sm:$0xff]
  %v2571 = vld [vmem:[#allocation2 + $0x28] sm:$0xff]
  %v2572 = vld [vmem:[#allocation2 + $0x30] sm:$0xff]
  %v2573 = vld [vmem:[#allocation2 + $0x38] sm:$0xff]
  %v2574 = vld [vmem:[#allocation2 + $0x40] sm:$0xff]
  %v2575 = vld [vmem:[#allocation2 + $0x48] sm:$0xff]
  %2586 = vrot.lane.b32.xlu0 %v2396, 58
  %v2587 = vpop.permute.xlu0 %2586
  %2588 = vrot.lane.b32.xlu0 %v2398, 58
  %v2589 = vpop.permute.xlu0 %2588
  %2590 = vrot.lane.b32.xlu0 %v2437, 58
  %v2591 = vpop.permute.xlu0 %2590
  %2592 = vrot.lane.b32.xlu0 %v2439, 58
  %v2593 = vpop.permute.xlu0 %2592
  %2594 = vrot.lane.b32.xlu0 %v2478, 58
  %v2595 = vpop.permute.xlu0 %2594
  %2596 = vrot.lane.b32.xlu0 %v2480, 58
  %v2597 = vpop.permute.xlu0 %2596
  %2598 = vrot.lane.b32.xlu0 %v2519, 58
  %v2599 = vpop.permute.xlu0 %2598
  %2600 = vrot.lane.b32.xlu0 %v2521, 58
  %v2601 = vpop.permute.xlu0 %2600
  %2602 = vrot.lane.b32.xlu0 %v2560, 58
  %v2603 = vpop.permute.xlu0 %2602
  %2604 = vrot.lane.b32.xlu0 %v2562, 58
  %v2605 = vpop.permute.xlu0 %2604
  %vm2606 = vcmask 474112
  %v2607 = vsel %vm2606, %v2587, %v2589
  %v2608 = vsel %vm2606, %v2589, %v2591
  %v2609 = vsel %vm2606, %v2591, %v2593
  %v2610 = vsel %vm2606, %v2593, %v2595
  %v2611 = vsel %vm2606, %v2595, %v2597
  %v2612 = vsel %vm2606, %v2597, %v2599
  %v2613 = vsel %vm2606, %v2599, %v2601
  %v2614 = vsel %vm2606, %v2601, %v2603
  %v2615 = vsel %vm2606, %v2603, %v2605
  %v2626 = vadd.f32 %v2566, %v2607
  %v2627 = vadd.f32 %v2567, %v2608
  %v2628 = vadd.f32 %v2568, %v2609
  %v2629 = vadd.f32 %v2569, %v2610
  %v2630 = vadd.f32 %v2570, %v2611
  %v2631 = vadd.f32 %v2571, %v2612
  %v2632 = vadd.f32 %v2572, %v2613
  %v2633 = vadd.f32 %v2573, %v2614
  %v2634 = vadd.f32 %v2574, %v2615
  %v2635 = vadd.f32 %v2575, %v2605
  %2636 = vst [vmem:[#allocation2] sm:$0xff] %v2626
  %2637 = vst [vmem:[#allocation2 + $0x8] sm:$0xff] %v2627
  %2638 = vst [vmem:[#allocation2 + $0x10] sm:$0xff] %v2628
  %2639 = vst [vmem:[#allocation2 + $0x18] sm:$0xff] %v2629
  %2640 = vst [vmem:[#allocation2 + $0x20] sm:$0xff] %v2630
  %2641 = vst [vmem:[#allocation2 + $0x28] sm:$0xff] %v2631
  %2642 = vst [vmem:[#allocation2 + $0x30] sm:$0xff] %v2632
  %2643 = vst [vmem:[#allocation2 + $0x38] sm:$0xff] %v2633
  %2644 = vst [vmem:[#allocation2 + $0x40] sm:$0xff] %v2634
  %2645 = vst.msk [vmem:[#allocation2 + $0x48] sm:$0xff] %vm2606, %v2635
  %v2646 = vld [vmem:[#allocation2] sm:$0xff]
  %v2647 = vld [vmem:[#allocation2 + $0x8] sm:$0xff]
  %v2648 = vld [vmem:[#allocation2 + $0x10] sm:$0xff]
  %v2649 = vld [vmem:[#allocation2 + $0x18] sm:$0xff]
  %v2650 = vld [vmem:[#allocation2 + $0x20] sm:$0xff]
  %v2651 = vld [vmem:[#allocation2 + $0x28] sm:$0xff]
  %v2652 = vld [vmem:[#allocation2 + $0x30] sm:$0xff]
  %v2653 = vld [vmem:[#allocation2 + $0x38] sm:$0xff]
  %v2654 = vld [vmem:[#allocation2 + $0x40] sm:$0xff]
  %v2655 = vld [vmem:[#allocation2 + $0x48] sm:$0xff]
  %v2656 = vld [vmem:[%s1] sm:$0xff]
  %2658 = vset.pattern.permute.xlu0 0
  %2659 = vperm.xlu0 %2658, %v2656
  %v2660 = vpop.permute.xlu0 %2659
  %v2662 = vadd.f32 %v2646, %v2660
  %v2663 = vadd.f32 %v2647, %v2660
  %v2664 = vadd.f32 %v2648, %v2660
  %v2665 = vadd.f32 %v2649, %v2660
  %v2666 = vadd.f32 %v2650, %v2660
  %v2667 = vadd.f32 %v2651, %v2660
  %v2668 = vadd.f32 %v2652, %v2660
  %v2669 = vadd.f32 %v2653, %v2660
  %v2670 = vadd.f32 %v2654, %v2660
  %v2671 = vadd.f32 %v2655, %v2660
  %vm2672 = vcmp.gt.f32.partialorder %v2662, 0.0
  %vm2673 = vcmp.gt.f32.partialorder %v2663, 0.0
  %vm2674 = vcmp.gt.f32.partialorder %v2664, 0.0
  %vm2675 = vcmp.gt.f32.partialorder %v2665, 0.0
  %vm2676 = vcmp.gt.f32.partialorder %v2666, 0.0
  %vm2677 = vcmp.gt.f32.partialorder %v2667, 0.0
  %vm2678 = vcmp.gt.f32.partialorder %v2668, 0.0
  %vm2679 = vcmp.gt.f32.partialorder %v2669, 0.0
  %vm2680 = vcmp.gt.f32.partialorder %v2670, 0.0
  %vm2681 = vcmp.gt.f32.partialorder %v2671, 0.0
  %v2682 = vmul.f32 %v2662, 0.01
  %v2683 = vmul.f32 %v2663, 0.01
  %v2684 = vmul.f32 %v2664, 0.01
  %v2685 = vmul.f32 %v2665, 0.01
  %v2686 = vmul.f32 %v2666, 0.01
  %v2687 = vmul.f32 %v2667, 0.01
  %v2688 = vmul.f32 %v2668, 0.01
  %v2689 = vmul.f32 %v2669, 0.01
  %v2690 = vmul.f32 %v2670, 0.01
  %v2691 = vmul.f32 %v2671, 0.01
  %v2692 = vsel %vm2672, %v2662, %v2682
  %v2693 = vsel %vm2673, %v2663, %v2683
  %v2694 = vsel %vm2674, %v2664, %v2684
  %v2695 = vsel %vm2675, %v2665, %v2685
  %v2696 = vsel %vm2676, %v2666, %v2686
  %v2697 = vsel %vm2677, %v2667, %v2687
  %v2698 = vsel %vm2678, %v2668, %v2688
  %v2699 = vsel %vm2679, %v2669, %v2689
  %v2700 = vsel %vm2680, %v2670, %v2690
  %v2701 = vsel %vm2681, %v2671, %v2691
  %2702 = vst [vmem:[%s3] sm:$0xff] %v2692
  %2703 = vst [vmem:[%s3 + $0x8] sm:$0xff] %v2693
  %2704 = vst [vmem:[%s3 + $0x10] sm:$0xff] %v2694
  %2705 = vst [vmem:[%s3 + $0x18] sm:$0xff] %v2695
  %2706 = vst [vmem:[%s3 + $0x20] sm:$0xff] %v2696
  %2707 = vst [vmem:[%s3 + $0x28] sm:$0xff] %v2697
  %2708 = vst [vmem:[%s3 + $0x30] sm:$0xff] %v2698
  %2709 = vst [vmem:[%s3 + $0x38] sm:$0xff] %v2699
  %2710 = vst [vmem:[%s3 + $0x40] sm:$0xff] %v2700
  %2711 = vst [vmem:[%s3 + $0x48] sm:$0xff] %v2701
  %s2712 = scalar_lea.vmem %s2, 40
  %v2713 = vld [vmem:[%s2712] sm:$0xff]
  %v2714 = vld [vmem:[%s2712 + $0x8] sm:$0xff]
  %v2715 = vld [vmem:[%s2712 + $0x10] sm:$0xff]
  %v2716 = vld [vmem:[%s2712 + $0x18] sm:$0xff]
  %v2717 = vld [vmem:[%s2712 + $0x20] sm:$0xff]
  %2718 = vst [vmem:[#allocation2] sm:$0xff] 0.0
  %2719 = vst [vmem:[#allocation2 + $0x8] sm:$0xff] 0.0
  %2720 = vst [vmem:[#allocation2 + $0x10] sm:$0xff] 0.0
  %2721 = vst [vmem:[#allocation2 + $0x18] sm:$0xff] 0.0
  %2722 = vst [vmem:[#allocation2 + $0x20] sm:$0xff] 0.0
  %2723 = vst [vmem:[#allocation2 + $0x28] sm:$0xff] 0.0
  %2724 = vst [vmem:[#allocation2 + $0x30] sm:$0xff] 0.0
  %2725 = vst [vmem:[#allocation2 + $0x38] sm:$0xff] 0.0
  %2726 = vst [vmem:[#allocation2 + $0x40] sm:$0xff] 0.0
  %2727 = vst [vmem:[#allocation2 + $0x48] sm:$0xff] 0.0
  %v2728 = vld [vmem:[%s0] sm:$0xf]
  %v2734 = vunpack.c.l.b16 %v2713
  %v2735 = vunpack.c.h.b16 %v2713
  %v2736 = vunpack.c.l.b16 %v2714
  %v2737 = vunpack.c.h.b16 %v2714
  %v2738 = vunpack.c.l.b16 %v2715
  %v2739 = vunpack.c.h.b16 %v2715
  %v2740 = vunpack.c.l.b16 %v2716
  %v2741 = vunpack.c.h.b16 %v2716
  %v2742 = vunpack.c.l.b16 %v2717
  %v2743 = vunpack.c.h.b16 %v2717
  %v2744 = vpack.c.b16 %v2734, %v2734
  %v2745 = vpack.c.b16 %v2735, %v2735
  %v2746 = vpack.c.b16 %v2736, %v2736
  %v2747 = vpack.c.b16 %v2737, %v2737
  %v2748 = vpack.c.b16 %v2738, %v2738
  %v2749 = vpack.c.b16 %v2739, %v2739
  %v2750 = vpack.c.b16 %v2740, %v2740
  %v2751 = vpack.c.b16 %v2741, %v2741
  %v2752 = vpack.c.b16 %v2742, %v2742
  %v2753 = vpack.c.b16 %v2743, %v2743
  %v2755 = vsel %vm56, %v2728, 0
  %v2758 = vsel %vm60, %v2744, 0
  %v2761 = vsel %vm60, %v2745, 0
  %v2764 = vsel %vm60, %v2746, 0
  %v2767 = vsel %vm60, %v2747, 0
  %v2770 = vsel %vm60, %v2748, 0
  %v2773 = vsel %vm60, %v2749, 0
  %v2776 = vsel %vm60, %v2750, 0
  %v2779 = vsel %vm60, %v2751, 0
  %v2782 = vsel %vm60, %v2752, 0
  %v2785 = vsel %vm60, %v2753, 0
  %2787 = vmatprep.subr.bf16.mxu0 %v2761
  %2788 = vmatpush1.bf16.msra.mxu0 %v2758
  %2789 = vmatprep.subr.bf16.mxu0 0
  %2790 = vmatpush1.bf16.msra.mxu0 0
  %2791 = vmatprep.subr.bf16.mxu0 0
  %2792 = vmatpush1.bf16.msra.mxu0 0
  %2793 = vmatprep.subr.bf16.mxu0 0
  %2794 = vmatpush1.bf16.msra.mxu0 0
  %2795 = vmatprep.subr.bf16.mxu0 0
  %2796 = vmatpush1.bf16.msra.mxu0 0
  %2797 = vmatprep.subr.bf16.mxu0 0
  %2798 = vmatpush1.bf16.msra.mxu0 0
  %2799 = vmatprep.subr.bf16.mxu0 0
  %2800 = vmatpush1.bf16.msra.mxu0 0
  %2801 = vmatprep.subr.bf16.mxu0 0
  %2802 = vmatpush1.bf16.msra.mxu0 0
  %2803 = vmatprep.subr.bf16.mxu0 0
  %2804 = vmatpush1.bf16.msra.mxu0 0
  %2805 = vmatprep.subr.bf16.mxu0 0
  %2806 = vmatpush1.bf16.msra.mxu0 0
  %2807 = vmatprep.subr.bf16.mxu0 0
  %2808 = vmatpush1.bf16.msra.mxu0 0
  %2809 = vmatprep.subr.bf16.mxu0 0
  %2810 = vmatpush1.bf16.msra.mxu0 0
  %2811 = vmatprep.subr.bf16.mxu0 0
  %2812 = vmatpush1.bf16.msra.mxu0 0
  %2813 = vmatprep.subr.bf16.mxu0 0
  %2814 = vmatpush1.bf16.msra.mxu0 0
  %2815 = vmatprep.subr.bf16.mxu0 0
  %2816 = vmatpush1.bf16.msra.mxu0 0
  %2817 = vmatprep.subr.bf16.mxu0 0
  %2818 = vmatpush1.bf16.msra.mxu0 0
  %2819 = vmatprep.mubr.bf16.mxu0 0
  %2820 = vmatmul.mubr.bf16.gmra.mrb[0].mxu0 %v2755
  %v2821 = vpop.f32.mrb[0].mxu0
  %v2822 = vadd.f32 0.0, %v2821
  %v2823 = vpop.f32.mrb[0].mxu0
  %v2824 = vadd.f32 0.0, %v2823
  %v2825 = vpop.f32.mrb[0].mxu0
  %v2826 = vpop.f32.mrb[0].mxu0
  %2827 = vdwg.mxu0
  %2828 = vmatprep.subr.bf16.mxu0 %v2767
  %2829 = vmatpush1.bf16.msra.mxu0 %v2764
  %2830 = vmatprep.subr.bf16.mxu0 0
  %2831 = vmatpush1.bf16.msra.mxu0 0
  %2832 = vmatprep.subr.bf16.mxu0 0
  %2833 = vmatpush1.bf16.msra.mxu0 0
  %2834 = vmatprep.subr.bf16.mxu0 0
  %2835 = vmatpush1.bf16.msra.mxu0 0
  %2836 = vmatprep.subr.bf16.mxu0 0
  %2837 = vmatpush1.bf16.msra.mxu0 0
  %2838 = vmatprep.subr.bf16.mxu0 0
  %2839 = vmatpush1.bf16.msra.mxu0 0
  %2840 = vmatprep.subr.bf16.mxu0 0
  %2841 = vmatpush1.bf16.msra.mxu0 0
  %2842 = vmatprep.subr.bf16.mxu0 0
  %2843 = vmatpush1.bf16.msra.mxu0 0
  %2844 = vmatprep.subr.bf16.mxu0 0
  %2845 = vmatpush1.bf16.msra.mxu0 0
  %2846 = vmatprep.subr.bf16.mxu0 0
  %2847 = vmatpush1.bf16.msra.mxu0 0
  %2848 = vmatprep.subr.bf16.mxu0 0
  %2849 = vmatpush1.bf16.msra.mxu0 0
  %2850 = vmatprep.subr.bf16.mxu0 0
  %2851 = vmatpush1.bf16.msra.mxu0 0
  %2852 = vmatprep.subr.bf16.mxu0 0
  %2853 = vmatpush1.bf16.msra.mxu0 0
  %2854 = vmatprep.subr.bf16.mxu0 0
  %2855 = vmatpush1.bf16.msra.mxu0 0
  %2856 = vmatprep.subr.bf16.mxu0 0
  %2857 = vmatpush1.bf16.msra.mxu0 0
  %2858 = vmatprep.subr.bf16.mxu0 0
  %2859 = vmatpush1.bf16.msra.mxu0 0
  %2860 = vmatprep.mubr.bf16.mxu0 0
  %2861 = vmatmul.mubr.bf16.gmra.mrb[0].mxu0 %v2755
  %v2862 = vpop.f32.mrb[0].mxu0
  %v2863 = vadd.f32 0.0, %v2862
  %v2864 = vpop.f32.mrb[0].mxu0
  %v2865 = vadd.f32 0.0, %v2864
  %v2866 = vpop.f32.mrb[0].mxu0
  %v2867 = vpop.f32.mrb[0].mxu0
  %2868 = vdwg.mxu0
  %2869 = vmatprep.subr.bf16.mxu0 %v2773
  %2870 = vmatpush1.bf16.msra.mxu0 %v2770
  %2871 = vmatprep.subr.bf16.mxu0 0
  %2872 = vmatpush1.bf16.msra.mxu0 0
  %2873 = vmatprep.subr.bf16.mxu0 0
  %2874 = vmatpush1.bf16.msra.mxu0 0
  %2875 = vmatprep.subr.bf16.mxu0 0
  %2876 = vmatpush1.bf16.msra.mxu0 0
  %2877 = vmatprep.subr.bf16.mxu0 0
  %2878 = vmatpush1.bf16.msra.mxu0 0
  %2879 = vmatprep.subr.bf16.mxu0 0
  %2880 = vmatpush1.bf16.msra.mxu0 0
  %2881 = vmatprep.subr.bf16.mxu0 0
  %2882 = vmatpush1.bf16.msra.mxu0 0
  %2883 = vmatprep.subr.bf16.mxu0 0
  %2884 = vmatpush1.bf16.msra.mxu0 0
  %2885 = vmatprep.subr.bf16.mxu0 0
  %2886 = vmatpush1.bf16.msra.mxu0 0
  %2887 = vmatprep.subr.bf16.mxu0 0
  %2888 = vmatpush1.bf16.msra.mxu0 0
  %2889 = vmatprep.subr.bf16.mxu0 0
  %2890 = vmatpush1.bf16.msra.mxu0 0
  %2891 = vmatprep.subr.bf16.mxu0 0
  %2892 = vmatpush1.bf16.msra.mxu0 0
  %2893 = vmatprep.subr.bf16.mxu0 0
  %2894 = vmatpush1.bf16.msra.mxu0 0
  %2895 = vmatprep.subr.bf16.mxu0 0
  %2896 = vmatpush1.bf16.msra.mxu0 0
  %2897 = vmatprep.subr.bf16.mxu0 0
  %2898 = vmatpush1.bf16.msra.mxu0 0
  %2899 = vmatprep.subr.bf16.mxu0 0
  %2900 = vmatpush1.bf16.msra.mxu0 0
  %2901 = vmatprep.mubr.bf16.mxu0 0
  %2902 = vmatmul.mubr.bf16.gmra.mrb[0].mxu0 %v2755
  %v2903 = vpop.f32.mrb[0].mxu0
  %v2904 = vadd.f32 0.0, %v2903
  %v2905 = vpop.f32.mrb[0].mxu0
  %v2906 = vadd.f32 0.0, %v2905
  %v2907 = vpop.f32.mrb[0].mxu0
  %v2908 = vpop.f32.mrb[0].mxu0
  %2909 = vdwg.mxu0
  %2910 = vmatprep.subr.bf16.mxu0 %v2779
  %2911 = vmatpush1.bf16.msra.mxu0 %v2776
  %2912 = vmatprep.subr.bf16.mxu0 0
  %2913 = vmatpush1.bf16.msra.mxu0 0
  %2914 = vmatprep.subr.bf16.mxu0 0
  %2915 = vmatpush1.bf16.msra.mxu0 0
  %2916 = vmatprep.subr.bf16.mxu0 0
  %2917 = vmatpush1.bf16.msra.mxu0 0
  %2918 = vmatprep.subr.bf16.mxu0 0
  %2919 = vmatpush1.bf16.msra.mxu0 0
  %2920 = vmatprep.subr.bf16.mxu0 0
  %2921 = vmatpush1.bf16.msra.mxu0 0
  %2922 = vmatprep.subr.bf16.mxu0 0
  %2923 = vmatpush1.bf16.msra.mxu0 0
  %2924 = vmatprep.subr.bf16.mxu0 0
  %2925 = vmatpush1.bf16.msra.mxu0 0
  %2926 = vmatprep.subr.bf16.mxu0 0
  %2927 = vmatpush1.bf16.msra.mxu0 0
  %2928 = vmatprep.subr.bf16.mxu0 0
  %2929 = vmatpush1.bf16.msra.mxu0 0
  %2930 = vmatprep.subr.bf16.mxu0 0
  %2931 = vmatpush1.bf16.msra.mxu0 0
  %2932 = vmatprep.subr.bf16.mxu0 0
  %2933 = vmatpush1.bf16.msra.mxu0 0
  %2934 = vmatprep.subr.bf16.mxu0 0
  %2935 = vmatpush1.bf16.msra.mxu0 0
  %2936 = vmatprep.subr.bf16.mxu0 0
  %2937 = vmatpush1.bf16.msra.mxu0 0
  %2938 = vmatprep.subr.bf16.mxu0 0
  %2939 = vmatpush1.bf16.msra.mxu0 0
  %2940 = vmatprep.subr.bf16.mxu0 0
  %2941 = vmatpush1.bf16.msra.mxu0 0
  %2942 = vmatprep.mubr.bf16.mxu0 0
  %2943 = vmatmul.mubr.bf16.gmra.mrb[0].mxu0 %v2755
  %v2944 = vpop.f32.mrb[0].mxu0
  %v2945 = vadd.f32 0.0, %v2944
  %v2946 = vpop.f32.mrb[0].mxu0
  %v2947 = vadd.f32 0.0, %v2946
  %v2948 = vpop.f32.mrb[0].mxu0
  %v2949 = vpop.f32.mrb[0].mxu0
  %2950 = vdwg.mxu0
  %2951 = vmatprep.subr.bf16.mxu0 %v2785
  %2952 = vmatpush1.bf16.msra.mxu0 %v2782
  %2953 = vmatprep.subr.bf16.mxu0 0
  %2954 = vmatpush1.bf16.msra.mxu0 0
  %2955 = vmatprep.subr.bf16.mxu0 0
  %2956 = vmatpush1.bf16.msra.mxu0 0
  %2957 = vmatprep.subr.bf16.mxu0 0
  %2958 = vmatpush1.bf16.msra.mxu0 0
  %2959 = vmatprep.subr.bf16.mxu0 0
  %2960 = vmatpush1.bf16.msra.mxu0 0
  %2961 = vmatprep.subr.bf16.mxu0 0
  %2962 = vmatpush1.bf16.msra.mxu0 0
  %2963 = vmatprep.subr.bf16.mxu0 0
  %2964 = vmatpush1.bf16.msra.mxu0 0
  %2965 = vmatprep.subr.bf16.mxu0 0
  %2966 = vmatpush1.bf16.msra.mxu0 0
  %2967 = vmatprep.subr.bf16.mxu0 0
  %2968 = vmatpush1.bf16.msra.mxu0 0
  %2969 = vmatprep.subr.bf16.mxu0 0
  %2970 = vmatpush1.bf16.msra.mxu0 0
  %2971 = vmatprep.subr.bf16.mxu0 0
  %2972 = vmatpush1.bf16.msra.mxu0 0
  %2973 = vmatprep.subr.bf16.mxu0 0
  %2974 = vmatpush1.bf16.msra.mxu0 0
  %2975 = vmatprep.subr.bf16.mxu0 0
  %2976 = vmatpush1.bf16.msra.mxu0 0
  %2977 = vmatprep.subr.bf16.mxu0 0
  %2978 = vmatpush1.bf16.msra.mxu0 0
  %2979 = vmatprep.subr.bf16.mxu0 0
  %2980 = vmatpush1.bf16.msra.mxu0 0
  %2981 = vmatprep.subr.bf16.mxu0 0
  %2982 = vmatpush1.bf16.msra.mxu0 0
  %2983 = vmatprep.mubr.bf16.mxu0 0
  %2984 = vmatmul.mubr.bf16.gmra.mrb[0].mxu0 %v2755
  %v2985 = vpop.f32.mrb[0].mxu0
  %v2986 = vadd.f32 0.0, %v2985
  %v2987 = vpop.f32.mrb[0].mxu0
  %v2988 = vadd.f32 0.0, %v2987
  %v2989 = vpop.f32.mrb[0].mxu0
  %v2990 = vpop.f32.mrb[0].mxu0
  %2991 = vdwg.mxu0
  %v2992 = vld [vmem:[#allocation2] sm:$0xff]
  %v2993 = vld [vmem:[#allocation2 + $0x8] sm:$0xff]
  %v2994 = vld [vmem:[#allocation2 + $0x10] sm:$0xff]
  %v2995 = vld [vmem:[#allocation2 + $0x18] sm:$0xff]
  %v2996 = vld [vmem:[#allocation2 + $0x20] sm:$0xff]
  %v2997 = vld [vmem:[#allocation2 + $0x28] sm:$0xff]
  %v2998 = vld [vmem:[#allocation2 + $0x30] sm:$0xff]
  %v2999 = vld [vmem:[#allocation2 + $0x38] sm:$0xff]
  %v3000 = vld [vmem:[#allocation2 + $0x40] sm:$0xff]
  %v3001 = vld [vmem:[#allocation2 + $0x48] sm:$0xff]
  %v3002 = vadd.f32 %v2992, %v2822
  %v3003 = vadd.f32 %v2993, %v2824
  %v3004 = vadd.f32 %v2994, %v2863
  %v3005 = vadd.f32 %v2995, %v2865
  %v3006 = vadd.f32 %v2996, %v2904
  %v3007 = vadd.f32 %v2997, %v2906
  %v3008 = vadd.f32 %v2998, %v2945
  %v3009 = vadd.f32 %v2999, %v2947
  %v3010 = vadd.f32 %v3000, %v2986
  %v3011 = vadd.f32 %v3001, %v2988
  %3012 = vst [vmem:[#allocation2] sm:$0xff] %v3002
  %3013 = vst [vmem:[#allocation2 + $0x8] sm:$0xff] %v3003
  %3014 = vst [vmem:[#allocation2 + $0x10] sm:$0xff] %v3004
  %3015 = vst [vmem:[#allocation2 + $0x18] sm:$0xff] %v3005
  %3016 = vst [vmem:[#allocation2 + $0x20] sm:$0xff] %v3006
  %3017 = vst [vmem:[#allocation2 + $0x28] sm:$0xff] %v3007
  %3018 = vst [vmem:[#allocation2 + $0x30] sm:$0xff] %v3008
  %3019 = vst [vmem:[#allocation2 + $0x38] sm:$0xff] %v3009
  %3020 = vst [vmem:[#allocation2 + $0x40] sm:$0xff] %v3010
  %3021 = vst [vmem:[#allocation2 + $0x48] sm:$0xff] %v3011
  %v3022 = vld [vmem:[%s326] sm:$0xf]
  %v3024 = vsel %vm56, %v3022, 0
  %3026 = vmatprep.subr.bf16.mxu0 %v2761
  %3027 = vmatpush1.bf16.msra.mxu0 %v2758
  %3028 = vmatprep.subr.bf16.mxu0 0
  %3029 = vmatpush1.bf16.msra.mxu0 0
  %3030 = vmatprep.subr.bf16.mxu0 0
  %3031 = vmatpush1.bf16.msra.mxu0 0
  %3032 = vmatprep.subr.bf16.mxu0 0
  %3033 = vmatpush1.bf16.msra.mxu0 0
  %3034 = vmatprep.subr.bf16.mxu0 0
  %3035 = vmatpush1.bf16.msra.mxu0 0
  %3036 = vmatprep.subr.bf16.mxu0 0
  %3037 = vmatpush1.bf16.msra.mxu0 0
  %3038 = vmatprep.subr.bf16.mxu0 0
  %3039 = vmatpush1.bf16.msra.mxu0 0
  %3040 = vmatprep.subr.bf16.mxu0 0
  %3041 = vmatpush1.bf16.msra.mxu0 0
  %3042 = vmatprep.subr.bf16.mxu0 0
  %3043 = vmatpush1.bf16.msra.mxu0 0
  %3044 = vmatprep.subr.bf16.mxu0 0
  %3045 = vmatpush1.bf16.msra.mxu0 0
  %3046 = vmatprep.subr.bf16.mxu0 0
  %3047 = vmatpush1.bf16.msra.mxu0 0
  %3048 = vmatprep.subr.bf16.mxu0 0
  %3049 = vmatpush1.bf16.msra.mxu0 0
  %3050 = vmatprep.subr.bf16.mxu0 0
  %3051 = vmatpush1.bf16.msra.mxu0 0
  %3052 = vmatprep.subr.bf16.mxu0 0
  %3053 = vmatpush1.bf16.msra.mxu0 0
  %3054 = vmatprep.subr.bf16.mxu0 0
  %3055 = vmatpush1.bf16.msra.mxu0 0
  %3056 = vmatprep.subr.bf16.mxu0 0
  %3057 = vmatpush1.bf16.msra.mxu0 0
  %3058 = vmatprep.mubr.bf16.mxu0 0
  %3059 = vmatmul.mubr.bf16.gmra.mrb[0].mxu0 %v3024
  %v3060 = vpop.f32.mrb[0].mxu0
  %v3061 = vadd.f32 0.0, %v3060
  %v3062 = vpop.f32.mrb[0].mxu0
  %v3063 = vadd.f32 0.0, %v3062
  %v3064 = vpop.f32.mrb[0].mxu0
  %v3065 = vpop.f32.mrb[0].mxu0
  %3066 = vdwg.mxu0
  %3067 = vmatprep.subr.bf16.mxu0 %v2767
  %3068 = vmatpush1.bf16.msra.mxu0 %v2764
  %3069 = vmatprep.subr.bf16.mxu0 0
  %3070 = vmatpush1.bf16.msra.mxu0 0
  %3071 = vmatprep.subr.bf16.mxu0 0
  %3072 = vmatpush1.bf16.msra.mxu0 0
  %3073 = vmatprep.subr.bf16.mxu0 0
  %3074 = vmatpush1.bf16.msra.mxu0 0
  %3075 = vmatprep.subr.bf16.mxu0 0
  %3076 = vmatpush1.bf16.msra.mxu0 0
  %3077 = vmatprep.subr.bf16.mxu0 0
  %3078 = vmatpush1.bf16.msra.mxu0 0
  %3079 = vmatprep.subr.bf16.mxu0 0
  %3080 = vmatpush1.bf16.msra.mxu0 0
  %3081 = vmatprep.subr.bf16.mxu0 0
  %3082 = vmatpush1.bf16.msra.mxu0 0
  %3083 = vmatprep.subr.bf16.mxu0 0
  %3084 = vmatpush1.bf16.msra.mxu0 0
  %3085 = vmatprep.subr.bf16.mxu0 0
  %3086 = vmatpush1.bf16.msra.mxu0 0
  %3087 = vmatprep.subr.bf16.mxu0 0
  %3088 = vmatpush1.bf16.msra.mxu0 0
  %3089 = vmatprep.subr.bf16.mxu0 0
  %3090 = vmatpush1.bf16.msra.mxu0 0
  %3091 = vmatprep.subr.bf16.mxu0 0
  %3092 = vmatpush1.bf16.msra.mxu0 0
  %3093 = vmatprep.subr.bf16.mxu0 0
  %3094 = vmatpush1.bf16.msra.mxu0 0
  %3095 = vmatprep.subr.bf16.mxu0 0
  %3096 = vmatpush1.bf16.msra.mxu0 0
  %3097 = vmatprep.subr.bf16.mxu0 0
  %3098 = vmatpush1.bf16.msra.mxu0 0
  %3099 = vmatprep.mubr.bf16.mxu0 0
  %3100 = vmatmul.mubr.bf16.gmra.mrb[0].mxu0 %v3024
  %v3101 = vpop.f32.mrb[0].mxu0
  %v3102 = vadd.f32 0.0, %v3101
  %v3103 = vpop.f32.mrb[0].mxu0
  %v3104 = vadd.f32 0.0, %v3103
  %v3105 = vpop.f32.mrb[0].mxu0
  %v3106 = vpop.f32.mrb[0].mxu0
  %3107 = vdwg.mxu0
  %3108 = vmatprep.subr.bf16.mxu0 %v2773
  %3109 = vmatpush1.bf16.msra.mxu0 %v2770
  %3110 = vmatprep.subr.bf16.mxu0 0
  %3111 = vmatpush1.bf16.msra.mxu0 0
  %3112 = vmatprep.subr.bf16.mxu0 0
  %3113 = vmatpush1.bf16.msra.mxu0 0
  %3114 = vmatprep.subr.bf16.mxu0 0
  %3115 = vmatpush1.bf16.msra.mxu0 0
  %3116 = vmatprep.subr.bf16.mxu0 0
  %3117 = vmatpush1.bf16.msra.mxu0 0
  %3118 = vmatprep.subr.bf16.mxu0 0
  %3119 = vmatpush1.bf16.msra.mxu0 0
  %3120 = vmatprep.subr.bf16.mxu0 0
  %3121 = vmatpush1.bf16.msra.mxu0 0
  %3122 = vmatprep.subr.bf16.mxu0 0
  %3123 = vmatpush1.bf16.msra.mxu0 0
  %3124 = vmatprep.subr.bf16.mxu0 0
  %3125 = vmatpush1.bf16.msra.mxu0 0
  %3126 = vmatprep.subr.bf16.mxu0 0
  %3127 = vmatpush1.bf16.msra.mxu0 0
  %3128 = vmatprep.subr.bf16.mxu0 0
  %3129 = vmatpush1.bf16.msra.mxu0 0
  %3130 = vmatprep.subr.bf16.mxu0 0
  %3131 = vmatpush1.bf16.msra.mxu0 0
  %3132 = vmatprep.subr.bf16.mxu0 0
  %3133 = vmatpush1.bf16.msra.mxu0 0
  %3134 = vmatprep.subr.bf16.mxu0 0
  %3135 = vmatpush1.bf16.msra.mxu0 0
  %3136 = vmatprep.subr.bf16.mxu0 0
  %3137 = vmatpush1.bf16.msra.mxu0 0
  %3138 = vmatprep.subr.bf16.mxu0 0
  %3139 = vmatpush1.bf16.msra.mxu0 0
  %3140 = vmatprep.mubr.bf16.mxu0 0
  %3141 = vmatmul.mubr.bf16.gmra.mrb[0].mxu0 %v3024
  %v3142 = vpop.f32.mrb[0].mxu0
  %v3143 = vadd.f32 0.0, %v3142
  %v3144 = vpop.f32.mrb[0].mxu0
  %v3145 = vadd.f32 0.0, %v3144
  %v3146 = vpop.f32.mrb[0].mxu0
  %v3147 = vpop.f32.mrb[0].mxu0
  %3148 = vdwg.mxu0
  %3149 = vmatprep.subr.bf16.mxu0 %v2779
  %3150 = vmatpush1.bf16.msra.mxu0 %v2776
  %3151 = vmatprep.subr.bf16.mxu0 0
  %3152 = vmatpush1.bf16.msra.mxu0 0
  %3153 = vmatprep.subr.bf16.mxu0 0
  %3154 = vmatpush1.bf16.msra.mxu0 0
  %3155 = vmatprep.subr.bf16.mxu0 0
  %3156 = vmatpush1.bf16.msra.mxu0 0
  %3157 = vmatprep.subr.bf16.mxu0 0
  %3158 = vmatpush1.bf16.msra.mxu0 0
  %3159 = vmatprep.subr.bf16.mxu0 0
  %3160 = vmatpush1.bf16.msra.mxu0 0
  %3161 = vmatprep.subr.bf16.mxu0 0
  %3162 = vmatpush1.bf16.msra.mxu0 0
  %3163 = vmatprep.subr.bf16.mxu0 0
  %3164 = vmatpush1.bf16.msra.mxu0 0
  %3165 = vmatprep.subr.bf16.mxu0 0
  %3166 = vmatpush1.bf16.msra.mxu0 0
  %3167 = vmatprep.subr.bf16.mxu0 0
  %3168 = vmatpush1.bf16.msra.mxu0 0
  %3169 = vmatprep.subr.bf16.mxu0 0
  %3170 = vmatpush1.bf16.msra.mxu0 0
  %3171 = vmatprep.subr.bf16.mxu0 0
  %3172 = vmatpush1.bf16.msra.mxu0 0
  %3173 = vmatprep.subr.bf16.mxu0 0
  %3174 = vmatpush1.bf16.msra.mxu0 0
  %3175 = vmatprep.subr.bf16.mxu0 0
  %3176 = vmatpush1.bf16.msra.mxu0 0
  %3177 = vmatprep.subr.bf16.mxu0 0
  %3178 = vmatpush1.bf16.msra.mxu0 0
  %3179 = vmatprep.subr.bf16.mxu0 0
  %3180 = vmatpush1.bf16.msra.mxu0 0
  %3181 = vmatprep.mubr.bf16.mxu0 0
  %3182 = vmatmul.mubr.bf16.gmra.mrb[0].mxu0 %v3024
  %v3183 = vpop.f32.mrb[0].mxu0
  %v3184 = vadd.f32 0.0, %v3183
  %v3185 = vpop.f32.mrb[0].mxu0
  %v3186 = vadd.f32 0.0, %v3185
  %v3187 = vpop.f32.mrb[0].mxu0
  %v3188 = vpop.f32.mrb[0].mxu0
  %3189 = vdwg.mxu0
  %3190 = vmatprep.subr.bf16.mxu0 %v2785
  %3191 = vmatpush1.bf16.msra.mxu0 %v2782
  %3192 = vmatprep.subr.bf16.mxu0 0
  %3193 = vmatpush1.bf16.msra.mxu0 0
  %3194 = vmatprep.subr.bf16.mxu0 0
  %3195 = vmatpush1.bf16.msra.mxu0 0
  %3196 = vmatprep.subr.bf16.mxu0 0
  %3197 = vmatpush1.bf16.msra.mxu0 0
  %3198 = vmatprep.subr.bf16.mxu0 0
  %3199 = vmatpush1.bf16.msra.mxu0 0
  %3200 = vmatprep.subr.bf16.mxu0 0
  %3201 = vmatpush1.bf16.msra.mxu0 0
  %3202 = vmatprep.subr.bf16.mxu0 0
  %3203 = vmatpush1.bf16.msra.mxu0 0
  %3204 = vmatprep.subr.bf16.mxu0 0
  %3205 = vmatpush1.bf16.msra.mxu0 0
  %3206 = vmatprep.subr.bf16.mxu0 0
  %3207 = vmatpush1.bf16.msra.mxu0 0
  %3208 = vmatprep.subr.bf16.mxu0 0
  %3209 = vmatpush1.bf16.msra.mxu0 0
  %3210 = vmatprep.subr.bf16.mxu0 0
  %3211 = vmatpush1.bf16.msra.mxu0 0
  %3212 = vmatprep.subr.bf16.mxu0 0
  %3213 = vmatpush1.bf16.msra.mxu0 0
  %3214 = vmatprep.subr.bf16.mxu0 0
  %3215 = vmatpush1.bf16.msra.mxu0 0
  %3216 = vmatprep.subr.bf16.mxu0 0
  %3217 = vmatpush1.bf16.msra.mxu0 0
  %3218 = vmatprep.subr.bf16.mxu0 0
  %3219 = vmatpush1.bf16.msra.mxu0 0
  %3220 = vmatprep.subr.bf16.mxu0 0
  %3221 = vmatpush1.bf16.msra.mxu0 0
  %3222 = vmatprep.mubr.bf16.mxu0 0
  %3223 = vmatmul.mubr.bf16.gmra.mrb[0].mxu0 %v3024
  %v3224 = vpop.f32.mrb[0].mxu0
  %v3225 = vadd.f32 0.0, %v3224
  %v3226 = vpop.f32.mrb[0].mxu0
  %v3227 = vadd.f32 0.0, %v3226
  %v3228 = vpop.f32.mrb[0].mxu0
  %v3229 = vpop.f32.mrb[0].mxu0
  %3230 = vdwg.mxu0
  %v3231 = vld [vmem:[#allocation2] sm:$0xff]
  %v3232 = vld [vmem:[#allocation2 + $0x8] sm:$0xff]
  %v3233 = vld [vmem:[#allocation2 + $0x10] sm:$0xff]
  %v3234 = vld [vmem:[#allocation2 + $0x18] sm:$0xff]
  %v3235 = vld [vmem:[#allocation2 + $0x20] sm:$0xff]
  %v3236 = vld [vmem:[#allocation2 + $0x28] sm:$0xff]
  %v3237 = vld [vmem:[#allocation2 + $0x30] sm:$0xff]
  %v3238 = vld [vmem:[#allocation2 + $0x38] sm:$0xff]
  %v3239 = vld [vmem:[#allocation2 + $0x40] sm:$0xff]
  %v3240 = vld [vmem:[#allocation2 + $0x48] sm:$0xff]
  %3251 = vrot.lane.b32.xlu0 %v3061, 127
  %v3252 = vpop.permute.xlu0 %3251
  %3253 = vrot.lane.b32.xlu0 %v3063, 127
  %v3254 = vpop.permute.xlu0 %3253
  %3255 = vrot.lane.b32.xlu0 %v3102, 127
  %v3256 = vpop.permute.xlu0 %3255
  %3257 = vrot.lane.b32.xlu0 %v3104, 127
  %v3258 = vpop.permute.xlu0 %3257
  %3259 = vrot.lane.b32.xlu0 %v3143, 127
  %v3260 = vpop.permute.xlu0 %3259
  %3261 = vrot.lane.b32.xlu0 %v3145, 127
  %v3262 = vpop.permute.xlu0 %3261
  %3263 = vrot.lane.b32.xlu0 %v3184, 127
  %v3264 = vpop.permute.xlu0 %3263
  %3265 = vrot.lane.b32.xlu0 %v3186, 127
  %v3266 = vpop.permute.xlu0 %3265
  %3267 = vrot.lane.b32.xlu0 %v3225, 127
  %v3268 = vpop.permute.xlu0 %3267
  %3269 = vrot.lane.b32.xlu0 %v3227, 127
  %v3270 = vpop.permute.xlu0 %3269
  %v3271 = vsel %vm576, %v3252, %v3254
  %v3272 = vsel %vm576, %v3254, %v3256
  %v3273 = vsel %vm576, %v3256, %v3258
  %v3274 = vsel %vm576, %v3258, %v3260
  %v3275 = vsel %vm576, %v3260, %v3262
  %v3276 = vsel %vm576, %v3262, %v3264
  %v3277 = vsel %vm576, %v3264, %v3266
  %v3278 = vsel %vm576, %v3266, %v3268
  %v3279 = vsel %vm576, %v3268, %v3270
  %v3290 = vadd.f32 %v3231, %v3271
  %v3291 = vadd.f32 %v3232, %v3272
  %v3292 = vadd.f32 %v3233, %v3273
  %v3293 = vadd.f32 %v3234, %v3274
  %v3294 = vadd.f32 %v3235, %v3275
  %v3295 = vadd.f32 %v3236, %v3276
  %v3296 = vadd.f32 %v3237, %v3277
  %v3297 = vadd.f32 %v3238, %v3278
  %v3298 = vadd.f32 %v3239, %v3279
  %v3299 = vadd.f32 %v3240, %v3270
  %3300 = vst [vmem:[#allocation2] sm:$0xff] %v3290
  %3301 = vst [vmem:[#allocation2 + $0x8] sm:$0xff] %v3291
  %3302 = vst [vmem:[#allocation2 + $0x10] sm:$0xff] %v3292
  %3303 = vst [vmem:[#allocation2 + $0x18] sm:$0xff] %v3293
  %3304 = vst [vmem:[#allocation2 + $0x20] sm:$0xff] %v3294
  %3305 = vst [vmem:[#allocation2 + $0x28] sm:$0xff] %v3295
  %3306 = vst [vmem:[#allocation2 + $0x30] sm:$0xff] %v3296
  %3307 = vst [vmem:[#allocation2 + $0x38] sm:$0xff] %v3297
  %3308 = vst [vmem:[#allocation2 + $0x40] sm:$0xff] %v3298
  %3309 = vst.msk [vmem:[#allocation2 + $0x48] sm:$0xff] %vm576, %v3299
  %v3310 = vld [vmem:[%s616] sm:$0xf]
  %v3312 = vsel %vm56, %v3310, 0
  %3314 = vmatprep.subr.bf16.mxu0 %v2761
  %3315 = vmatpush1.bf16.msra.mxu0 %v2758
  %3316 = vmatprep.subr.bf16.mxu0 0
  %3317 = vmatpush1.bf16.msra.mxu0 0
  %3318 = vmatprep.subr.bf16.mxu0 0
  %3319 = vmatpush1.bf16.msra.mxu0 0
  %3320 = vmatprep.subr.bf16.mxu0 0
  %3321 = vmatpush1.bf16.msra.mxu0 0
  %3322 = vmatprep.subr.bf16.mxu0 0
  %3323 = vmatpush1.bf16.msra.mxu0 0
  %3324 = vmatprep.subr.bf16.mxu0 0
  %3325 = vmatpush1.bf16.msra.mxu0 0
  %3326 = vmatprep.subr.bf16.mxu0 0
  %3327 = vmatpush1.bf16.msra.mxu0 0
  %3328 = vmatprep.subr.bf16.mxu0 0
  %3329 = vmatpush1.bf16.msra.mxu0 0
  %3330 = vmatprep.subr.bf16.mxu0 0
  %3331 = vmatpush1.bf16.msra.mxu0 0
  %3332 = vmatprep.subr.bf16.mxu0 0
  %3333 = vmatpush1.bf16.msra.mxu0 0
  %3334 = vmatprep.subr.bf16.mxu0 0
  %3335 = vmatpush1.bf16.msra.mxu0 0
  %3336 = vmatprep.subr.bf16.mxu0 0
  %3337 = vmatpush1.bf16.msra.mxu0 0
  %3338 = vmatprep.subr.bf16.mxu0 0
  %3339 = vmatpush1.bf16.msra.mxu0 0
  %3340 = vmatprep.subr.bf16.mxu0 0
  %3341 = vmatpush1.bf16.msra.mxu0 0
  %3342 = vmatprep.subr.bf16.mxu0 0
  %3343 = vmatpush1.bf16.msra.mxu0 0
  %3344 = vmatprep.subr.bf16.mxu0 0
  %3345 = vmatpush1.bf16.msra.mxu0 0
  %3346 = vmatprep.mubr.bf16.mxu0 0
  %3347 = vmatmul.mubr.bf16.gmra.mrb[0].mxu0 %v3312
  %v3348 = vpop.f32.mrb[0].mxu0
  %v3349 = vadd.f32 0.0, %v3348
  %v3350 = vpop.f32.mrb[0].mxu0
  %v3351 = vadd.f32 0.0, %v3350
  %v3352 = vpop.f32.mrb[0].mxu0
  %v3353 = vpop.f32.mrb[0].mxu0
  %3354 = vdwg.mxu0
  %3355 = vmatprep.subr.bf16.mxu0 %v2767
  %3356 = vmatpush1.bf16.msra.mxu0 %v2764
  %3357 = vmatprep.subr.bf16.mxu0 0
  %3358 = vmatpush1.bf16.msra.mxu0 0
  %3359 = vmatprep.subr.bf16.mxu0 0
  %3360 = vmatpush1.bf16.msra.mxu0 0
  %3361 = vmatprep.subr.bf16.mxu0 0
  %3362 = vmatpush1.bf16.msra.mxu0 0
  %3363 = vmatprep.subr.bf16.mxu0 0
  %3364 = vmatpush1.bf16.msra.mxu0 0
  %3365 = vmatprep.subr.bf16.mxu0 0
  %3366 = vmatpush1.bf16.msra.mxu0 0
  %3367 = vmatprep.subr.bf16.mxu0 0
  %3368 = vmatpush1.bf16.msra.mxu0 0
  %3369 = vmatprep.subr.bf16.mxu0 0
  %3370 = vmatpush1.bf16.msra.mxu0 0
  %3371 = vmatprep.subr.bf16.mxu0 0
  %3372 = vmatpush1.bf16.msra.mxu0 0
  %3373 = vmatprep.subr.bf16.mxu0 0
  %3374 = vmatpush1.bf16.msra.mxu0 0
  %3375 = vmatprep.subr.bf16.mxu0 0
  %3376 = vmatpush1.bf16.msra.mxu0 0
  %3377 = vmatprep.subr.bf16.mxu0 0
  %3378 = vmatpush1.bf16.msra.mxu0 0
  %3379 = vmatprep.subr.bf16.mxu0 0
  %3380 = vmatpush1.bf16.msra.mxu0 0
  %3381 = vmatprep.subr.bf16.mxu0 0
  %3382 = vmatpush1.bf16.msra.mxu0 0
  %3383 = vmatprep.subr.bf16.mxu0 0
  %3384 = vmatpush1.bf16.msra.mxu0 0
  %3385 = vmatprep.subr.bf16.mxu0 0
  %3386 = vmatpush1.bf16.msra.mxu0 0
  %3387 = vmatprep.mubr.bf16.mxu0 0
  %3388 = vmatmul.mubr.bf16.gmra.mrb[0].mxu0 %v3312
  %v3389 = vpop.f32.mrb[0].mxu0
  %v3390 = vadd.f32 0.0, %v3389
  %v3391 = vpop.f32.mrb[0].mxu0
  %v3392 = vadd.f32 0.0, %v3391
  %v3393 = vpop.f32.mrb[0].mxu0
  %v3394 = vpop.f32.mrb[0].mxu0
  %3395 = vdwg.mxu0
  %3396 = vmatprep.subr.bf16.mxu0 %v2773
  %3397 = vmatpush1.bf16.msra.mxu0 %v2770
  %3398 = vmatprep.subr.bf16.mxu0 0
  %3399 = vmatpush1.bf16.msra.mxu0 0
  %3400 = vmatprep.subr.bf16.mxu0 0
  %3401 = vmatpush1.bf16.msra.mxu0 0
  %3402 = vmatprep.subr.bf16.mxu0 0
  %3403 = vmatpush1.bf16.msra.mxu0 0
  %3404 = vmatprep.subr.bf16.mxu0 0
  %3405 = vmatpush1.bf16.msra.mxu0 0
  %3406 = vmatprep.subr.bf16.mxu0 0
  %3407 = vmatpush1.bf16.msra.mxu0 0
  %3408 = vmatprep.subr.bf16.mxu0 0
  %3409 = vmatpush1.bf16.msra.mxu0 0
  %3410 = vmatprep.subr.bf16.mxu0 0
  %3411 = vmatpush1.bf16.msra.mxu0 0
  %3412 = vmatprep.subr.bf16.mxu0 0
  %3413 = vmatpush1.bf16.msra.mxu0 0
  %3414 = vmatprep.subr.bf16.mxu0 0
  %3415 = vmatpush1.bf16.msra.mxu0 0
  %3416 = vmatprep.subr.bf16.mxu0 0
  %3417 = vmatpush1.bf16.msra.mxu0 0
  %3418 = vmatprep.subr.bf16.mxu0 0
  %3419 = vmatpush1.bf16.msra.mxu0 0
  %3420 = vmatprep.subr.bf16.mxu0 0
  %3421 = vmatpush1.bf16.msra.mxu0 0
  %3422 = vmatprep.subr.bf16.mxu0 0
  %3423 = vmatpush1.bf16.msra.mxu0 0
  %3424 = vmatprep.subr.bf16.mxu0 0
  %3425 = vmatpush1.bf16.msra.mxu0 0
  %3426 = vmatprep.subr.bf16.mxu0 0
  %3427 = vmatpush1.bf16.msra.mxu0 0
  %3428 = vmatprep.mubr.bf16.mxu0 0
  %3429 = vmatmul.mubr.bf16.gmra.mrb[0].mxu0 %v3312
  %v3430 = vpop.f32.mrb[0].mxu0
  %v3431 = vadd.f32 0.0, %v3430
  %v3432 = vpop.f32.mrb[0].mxu0
  %v3433 = vadd.f32 0.0, %v3432
  %v3434 = vpop.f32.mrb[0].mxu0
  %v3435 = vpop.f32.mrb[0].mxu0
  %3436 = vdwg.mxu0
  %3437 = vmatprep.subr.bf16.mxu0 %v2779
  %3438 = vmatpush1.bf16.msra.mxu0 %v2776
  %3439 = vmatprep.subr.bf16.mxu0 0
  %3440 = vmatpush1.bf16.msra.mxu0 0
  %3441 = vmatprep.subr.bf16.mxu0 0
  %3442 = vmatpush1.bf16.msra.mxu0 0
  %3443 = vmatprep.subr.bf16.mxu0 0
  %3444 = vmatpush1.bf16.msra.mxu0 0
  %3445 = vmatprep.subr.bf16.mxu0 0
  %3446 = vmatpush1.bf16.msra.mxu0 0
  %3447 = vmatprep.subr.bf16.mxu0 0
  %3448 = vmatpush1.bf16.msra.mxu0 0
  %3449 = vmatprep.subr.bf16.mxu0 0
  %3450 = vmatpush1.bf16.msra.mxu0 0
  %3451 = vmatprep.subr.bf16.mxu0 0
  %3452 = vmatpush1.bf16.msra.mxu0 0
  %3453 = vmatprep.subr.bf16.mxu0 0
  %3454 = vmatpush1.bf16.msra.mxu0 0
  %3455 = vmatprep.subr.bf16.mxu0 0
  %3456 = vmatpush1.bf16.msra.mxu0 0
  %3457 = vmatprep.subr.bf16.mxu0 0
  %3458 = vmatpush1.bf16.msra.mxu0 0
  %3459 = vmatprep.subr.bf16.mxu0 0
  %3460 = vmatpush1.bf16.msra.mxu0 0
  %3461 = vmatprep.subr.bf16.mxu0 0
  %3462 = vmatpush1.bf16.msra.mxu0 0
  %3463 = vmatprep.subr.bf16.mxu0 0
  %3464 = vmatpush1.bf16.msra.mxu0 0
  %3465 = vmatprep.subr.bf16.mxu0 0
  %3466 = vmatpush1.bf16.msra.mxu0 0
  %3467 = vmatprep.subr.bf16.mxu0 0
  %3468 = vmatpush1.bf16.msra.mxu0 0
  %3469 = vmatprep.mubr.bf16.mxu0 0
  %3470 = vmatmul.mubr.bf16.gmra.mrb[0].mxu0 %v3312
  %v3471 = vpop.f32.mrb[0].mxu0
  %v3472 = vadd.f32 0.0, %v3471
  %v3473 = vpop.f32.mrb[0].mxu0
  %v3474 = vadd.f32 0.0, %v3473
  %v3475 = vpop.f32.mrb[0].mxu0
  %v3476 = vpop.f32.mrb[0].mxu0
  %3477 = vdwg.mxu0
  %3478 = vmatprep.subr.bf16.mxu0 %v2785
  %3479 = vmatpush1.bf16.msra.mxu0 %v2782
  %3480 = vmatprep.subr.bf16.mxu0 0
  %3481 = vmatpush1.bf16.msra.mxu0 0
  %3482 = vmatprep.subr.bf16.mxu0 0
  %3483 = vmatpush1.bf16.msra.mxu0 0
  %3484 = vmatprep.subr.bf16.mxu0 0
  %3485 = vmatpush1.bf16.msra.mxu0 0
  %3486 = vmatprep.subr.bf16.mxu0 0
  %3487 = vmatpush1.bf16.msra.mxu0 0
  %3488 = vmatprep.subr.bf16.mxu0 0
  %3489 = vmatpush1.bf16.msra.mxu0 0
  %3490 = vmatprep.subr.bf16.mxu0 0
  %3491 = vmatpush1.bf16.msra.mxu0 0
  %3492 = vmatprep.subr.bf16.mxu0 0
  %3493 = vmatpush1.bf16.msra.mxu0 0
  %3494 = vmatprep.subr.bf16.mxu0 0
  %3495 = vmatpush1.bf16.msra.mxu0 0
  %3496 = vmatprep.subr.bf16.mxu0 0
  %3497 = vmatpush1.bf16.msra.mxu0 0
  %3498 = vmatprep.subr.bf16.mxu0 0
  %3499 = vmatpush1.bf16.msra.mxu0 0
  %3500 = vmatprep.subr.bf16.mxu0 0
  %3501 = vmatpush1.bf16.msra.mxu0 0
  %3502 = vmatprep.subr.bf16.mxu0 0
  %3503 = vmatpush1.bf16.msra.mxu0 0
  %3504 = vmatprep.subr.bf16.mxu0 0
  %3505 = vmatpush1.bf16.msra.mxu0 0
  %3506 = vmatprep.subr.bf16.mxu0 0
  %3507 = vmatpush1.bf16.msra.mxu0 0
  %3508 = vmatprep.subr.bf16.mxu0 0
  %3509 = vmatpush1.bf16.msra.mxu0 0
  %3510 = vmatprep.mubr.bf16.mxu0 0
  %3511 = vmatmul.mubr.bf16.gmra.mrb[0].mxu0 %v3312
  %v3512 = vpop.f32.mrb[0].mxu0
  %v3513 = vadd.f32 0.0, %v3512
  %v3514 = vpop.f32.mrb[0].mxu0
  %v3515 = vadd.f32 0.0, %v3514
  %v3516 = vpop.f32.mrb[0].mxu0
  %v3517 = vpop.f32.mrb[0].mxu0
  %3518 = vdwg.mxu0
  %v3519 = vld [vmem:[#allocation2] sm:$0xff]
  %v3520 = vld [vmem:[#allocation2 + $0x8] sm:$0xff]
  %v3521 = vld [vmem:[#allocation2 + $0x10] sm:$0xff]
  %v3522 = vld [vmem:[#allocation2 + $0x18] sm:$0xff]
  %v3523 = vld [vmem:[#allocation2 + $0x20] sm:$0xff]
  %v3524 = vld [vmem:[#allocation2 + $0x28] sm:$0xff]
  %v3525 = vld [vmem:[#allocation2 + $0x30] sm:$0xff]
  %v3526 = vld [vmem:[#allocation2 + $0x38] sm:$0xff]
  %v3527 = vld [vmem:[#allocation2 + $0x40] sm:$0xff]
  %v3528 = vld [vmem:[#allocation2 + $0x48] sm:$0xff]
  %3539 = vrot.lane.b32.xlu0 %v3349, 126
  %v3540 = vpop.permute.xlu0 %3539
  %3541 = vrot.lane.b32.xlu0 %v3351, 126
  %v3542 = vpop.permute.xlu0 %3541
  %3543 = vrot.lane.b32.xlu0 %v3390, 126
  %v3544 = vpop.permute.xlu0 %3543
  %3545 = vrot.lane.b32.xlu0 %v3392, 126
  %v3546 = vpop.permute.xlu0 %3545
  %3547 = vrot.lane.b32.xlu0 %v3431, 126
  %v3548 = vpop.permute.xlu0 %3547
  %3549 = vrot.lane.b32.xlu0 %v3433, 126
  %v3550 = vpop.permute.xlu0 %3549
  %3551 = vrot.lane.b32.xlu0 %v3472, 126
  %v3552 = vpop.permute.xlu0 %3551
  %3553 = vrot.lane.b32.xlu0 %v3474, 126
  %v3554 = vpop.permute.xlu0 %3553
  %3555 = vrot.lane.b32.xlu0 %v3513, 126
  %v3556 = vpop.permute.xlu0 %3555
  %3557 = vrot.lane.b32.xlu0 %v3515, 126
  %v3558 = vpop.permute.xlu0 %3557
  %v3559 = vsel %vm866, %v3540, %v3542
  %v3560 = vsel %vm866, %v3542, %v3544
  %v3561 = vsel %vm866, %v3544, %v3546
  %v3562 = vsel %vm866, %v3546, %v3548
  %v3563 = vsel %vm866, %v3548, %v3550
  %v3564 = vsel %vm866, %v3550, %v3552
  %v3565 = vsel %vm866, %v3552, %v3554
  %v3566 = vsel %vm866, %v3554, %v3556
  %v3567 = vsel %vm866, %v3556, %v3558
  %v3578 = vadd.f32 %v3519, %v3559
  %v3579 = vadd.f32 %v3520, %v3560
  %v3580 = vadd.f32 %v3521, %v3561
  %v3581 = vadd.f32 %v3522, %v3562
  %v3582 = vadd.f32 %v3523, %v3563
  %v3583 = vadd.f32 %v3524, %v3564
  %v3584 = vadd.f32 %v3525, %v3565
  %v3585 = vadd.f32 %v3526, %v3566
  %v3586 = vadd.f32 %v3527, %v3567
  %v3587 = vadd.f32 %v3528, %v3558
  %3588 = vst [vmem:[#allocation2] sm:$0xff] %v3578
  %3589 = vst [vmem:[#allocation2 + $0x8] sm:$0xff] %v3579
  %3590 = vst [vmem:[#allocation2 + $0x10] sm:$0xff] %v3580
  %3591 = vst [vmem:[#allocation2 + $0x18] sm:$0xff] %v3581
  %3592 = vst [vmem:[#allocation2 + $0x20] sm:$0xff] %v3582
  %3593 = vst [vmem:[#allocation2 + $0x28] sm:$0xff] %v3583
  %3594 = vst [vmem:[#allocation2 + $0x30] sm:$0xff] %v3584
  %3595 = vst [vmem:[#allocation2 + $0x38] sm:$0xff] %v3585
  %3596 = vst [vmem:[#allocation2 + $0x40] sm:$0xff] %v3586
  %3597 = vst.msk [vmem:[#allocation2 + $0x48] sm:$0xff] %vm866, %v3587
  %v3598 = vld [vmem:[%s906] sm:$0xf]
  %v3600 = vsel %vm56, %v3598, 0
  %3602 = vmatprep.subr.bf16.mxu0 %v2761
  %3603 = vmatpush1.bf16.msra.mxu0 %v2758
  %3604 = vmatprep.subr.bf16.mxu0 0
  %3605 = vmatpush1.bf16.msra.mxu0 0
  %3606 = vmatprep.subr.bf16.mxu0 0
  %3607 = vmatpush1.bf16.msra.mxu0 0
  %3608 = vmatprep.subr.bf16.mxu0 0
  %3609 = vmatpush1.bf16.msra.mxu0 0
  %3610 = vmatprep.subr.bf16.mxu0 0
  %3611 = vmatpush1.bf16.msra.mxu0 0
  %3612 = vmatprep.subr.bf16.mxu0 0
  %3613 = vmatpush1.bf16.msra.mxu0 0
  %3614 = vmatprep.subr.bf16.mxu0 0
  %3615 = vmatpush1.bf16.msra.mxu0 0
  %3616 = vmatprep.subr.bf16.mxu0 0
  %3617 = vmatpush1.bf16.msra.mxu0 0
  %3618 = vmatprep.subr.bf16.mxu0 0
  %3619 = vmatpush1.bf16.msra.mxu0 0
  %3620 = vmatprep.subr.bf16.mxu0 0
  %3621 = vmatpush1.bf16.msra.mxu0 0
  %3622 = vmatprep.subr.bf16.mxu0 0
  %3623 = vmatpush1.bf16.msra.mxu0 0
  %3624 = vmatprep.subr.bf16.mxu0 0
  %3625 = vmatpush1.bf16.msra.mxu0 0
  %3626 = vmatprep.subr.bf16.mxu0 0
  %3627 = vmatpush1.bf16.msra.mxu0 0
  %3628 = vmatprep.subr.bf16.mxu0 0
  %3629 = vmatpush1.bf16.msra.mxu0 0
  %3630 = vmatprep.subr.bf16.mxu0 0
  %3631 = vmatpush1.bf16.msra.mxu0 0
  %3632 = vmatprep.subr.bf16.mxu0 0
  %3633 = vmatpush1.bf16.msra.mxu0 0
  %3634 = vmatprep.mubr.bf16.mxu0 0
  %3635 = vmatmul.mubr.bf16.gmra.mrb[0].mxu0 %v3600
  %v3636 = vpop.f32.mrb[0].mxu0
  %v3637 = vadd.f32 0.0, %v3636
  %v3638 = vpop.f32.mrb[0].mxu0
  %v3639 = vadd.f32 0.0, %v3638
  %v3640 = vpop.f32.mrb[0].mxu0
  %v3641 = vpop.f32.mrb[0].mxu0
  %3642 = vdwg.mxu0
  %3643 = vmatprep.subr.bf16.mxu0 %v2767
  %3644 = vmatpush1.bf16.msra.mxu0 %v2764
  %3645 = vmatprep.subr.bf16.mxu0 0
  %3646 = vmatpush1.bf16.msra.mxu0 0
  %3647 = vmatprep.subr.bf16.mxu0 0
  %3648 = vmatpush1.bf16.msra.mxu0 0
  %3649 = vmatprep.subr.bf16.mxu0 0
  %3650 = vmatpush1.bf16.msra.mxu0 0
  %3651 = vmatprep.subr.bf16.mxu0 0
  %3652 = vmatpush1.bf16.msra.mxu0 0
  %3653 = vmatprep.subr.bf16.mxu0 0
  %3654 = vmatpush1.bf16.msra.mxu0 0
  %3655 = vmatprep.subr.bf16.mxu0 0
  %3656 = vmatpush1.bf16.msra.mxu0 0
  %3657 = vmatprep.subr.bf16.mxu0 0
  %3658 = vmatpush1.bf16.msra.mxu0 0
  %3659 = vmatprep.subr.bf16.mxu0 0
  %3660 = vmatpush1.bf16.msra.mxu0 0
  %3661 = vmatprep.subr.bf16.mxu0 0
  %3662 = vmatpush1.bf16.msra.mxu0 0
  %3663 = vmatprep.subr.bf16.mxu0 0
  %3664 = vmatpush1.bf16.msra.mxu0 0
  %3665 = vmatprep.subr.bf16.mxu0 0
  %3666 = vmatpush1.bf16.msra.mxu0 0
  %3667 = vmatprep.subr.bf16.mxu0 0
  %3668 = vmatpush1.bf16.msra.mxu0 0
  %3669 = vmatprep.subr.bf16.mxu0 0
  %3670 = vmatpush1.bf16.msra.mxu0 0
  %3671 = vmatprep.subr.bf16.mxu0 0
  %3672 = vmatpush1.bf16.msra.mxu0 0
  %3673 = vmatprep.subr.bf16.mxu0 0
  %3674 = vmatpush1.bf16.msra.mxu0 0
  %3675 = vmatprep.mubr.bf16.mxu0 0
  %3676 = vmatmul.mubr.bf16.gmra.mrb[0].mxu0 %v3600
  %v3677 = vpop.f32.mrb[0].mxu0
  %v3678 = vadd.f32 0.0, %v3677
  %v3679 = vpop.f32.mrb[0].mxu0
  %v3680 = vadd.f32 0.0, %v3679
  %v3681 = vpop.f32.mrb[0].mxu0
  %v3682 = vpop.f32.mrb[0].mxu0
  %3683 = vdwg.mxu0
  %3684 = vmatprep.subr.bf16.mxu0 %v2773
  %3685 = vmatpush1.bf16.msra.mxu0 %v2770
  %3686 = vmatprep.subr.bf16.mxu0 0
  %3687 = vmatpush1.bf16.msra.mxu0 0
  %3688 = vmatprep.subr.bf16.mxu0 0
  %3689 = vmatpush1.bf16.msra.mxu0 0
  %3690 = vmatprep.subr.bf16.mxu0 0
  %3691 = vmatpush1.bf16.msra.mxu0 0
  %3692 = vmatprep.subr.bf16.mxu0 0
  %3693 = vmatpush1.bf16.msra.mxu0 0
  %3694 = vmatprep.subr.bf16.mxu0 0
  %3695 = vmatpush1.bf16.msra.mxu0 0
  %3696 = vmatprep.subr.bf16.mxu0 0
  %3697 = vmatpush1.bf16.msra.mxu0 0
  %3698 = vmatprep.subr.bf16.mxu0 0
  %3699 = vmatpush1.bf16.msra.mxu0 0
  %3700 = vmatprep.subr.bf16.mxu0 0
  %3701 = vmatpush1.bf16.msra.mxu0 0
  %3702 = vmatprep.subr.bf16.mxu0 0
  %3703 = vmatpush1.bf16.msra.mxu0 0
  %3704 = vmatprep.subr.bf16.mxu0 0
  %3705 = vmatpush1.bf16.msra.mxu0 0
  %3706 = vmatprep.subr.bf16.mxu0 0
  %3707 = vmatpush1.bf16.msra.mxu0 0
  %3708 = vmatprep.subr.bf16.mxu0 0
  %3709 = vmatpush1.bf16.msra.mxu0 0
  %3710 = vmatprep.subr.bf16.mxu0 0
  %3711 = vmatpush1.bf16.msra.mxu0 0
  %3712 = vmatprep.subr.bf16.mxu0 0
  %3713 = vmatpush1.bf16.msra.mxu0 0
  %3714 = vmatprep.subr.bf16.mxu0 0
  %3715 = vmatpush1.bf16.msra.mxu0 0
  %3716 = vmatprep.mubr.bf16.mxu0 0
  %3717 = vmatmul.mubr.bf16.gmra.mrb[0].mxu0 %v3600
  %v3718 = vpop.f32.mrb[0].mxu0
  %v3719 = vadd.f32 0.0, %v3718
  %v3720 = vpop.f32.mrb[0].mxu0
  %v3721 = vadd.f32 0.0, %v3720
  %v3722 = vpop.f32.mrb[0].mxu0
  %v3723 = vpop.f32.mrb[0].mxu0
  %3724 = vdwg.mxu0
  %3725 = vmatprep.subr.bf16.mxu0 %v2779
  %3726 = vmatpush1.bf16.msra.mxu0 %v2776
  %3727 = vmatprep.subr.bf16.mxu0 0
  %3728 = vmatpush1.bf16.msra.mxu0 0
  %3729 = vmatprep.subr.bf16.mxu0 0
  %3730 = vmatpush1.bf16.msra.mxu0 0
  %3731 = vmatprep.subr.bf16.mxu0 0
  %3732 = vmatpush1.bf16.msra.mxu0 0
  %3733 = vmatprep.subr.bf16.mxu0 0
  %3734 = vmatpush1.bf16.msra.mxu0 0
  %3735 = vmatprep.subr.bf16.mxu0 0
  %3736 = vmatpush1.bf16.msra.mxu0 0
  %3737 = vmatprep.subr.bf16.mxu0 0
  %3738 = vmatpush1.bf16.msra.mxu0 0
  %3739 = vmatprep.subr.bf16.mxu0 0
  %3740 = vmatpush1.bf16.msra.mxu0 0
  %3741 = vmatprep.subr.bf16.mxu0 0
  %3742 = vmatpush1.bf16.msra.mxu0 0
  %3743 = vmatprep.subr.bf16.mxu0 0
  %3744 = vmatpush1.bf16.msra.mxu0 0
  %3745 = vmatprep.subr.bf16.mxu0 0
  %3746 = vmatpush1.bf16.msra.mxu0 0
  %3747 = vmatprep.subr.bf16.mxu0 0
  %3748 = vmatpush1.bf16.msra.mxu0 0
  %3749 = vmatprep.subr.bf16.mxu0 0
  %3750 = vmatpush1.bf16.msra.mxu0 0
  %3751 = vmatprep.subr.bf16.mxu0 0
  %3752 = vmatpush1.bf16.msra.mxu0 0
  %3753 = vmatprep.subr.bf16.mxu0 0
  %3754 = vmatpush1.bf16.msra.mxu0 0
  %3755 = vmatprep.subr.bf16.mxu0 0
  %3756 = vmatpush1.bf16.msra.mxu0 0
  %3757 = vmatprep.mubr.bf16.mxu0 0
  %3758 = vmatmul.mubr.bf16.gmra.mrb[0].mxu0 %v3600
  %v3759 = vpop.f32.mrb[0].mxu0
  %v3760 = vadd.f32 0.0, %v3759
  %v3761 = vpop.f32.mrb[0].mxu0
  %v3762 = vadd.f32 0.0, %v3761
  %v3763 = vpop.f32.mrb[0].mxu0
  %v3764 = vpop.f32.mrb[0].mxu0
  %3765 = vdwg.mxu0
  %3766 = vmatprep.subr.bf16.mxu0 %v2785
  %3767 = vmatpush1.bf16.msra.mxu0 %v2782
  %3768 = vmatprep.subr.bf16.mxu0 0
  %3769 = vmatpush1.bf16.msra.mxu0 0
  %3770 = vmatprep.subr.bf16.mxu0 0
  %3771 = vmatpush1.bf16.msra.mxu0 0
  %3772 = vmatprep.subr.bf16.mxu0 0
  %3773 = vmatpush1.bf16.msra.mxu0 0
  %3774 = vmatprep.subr.bf16.mxu0 0
  %3775 = vmatpush1.bf16.msra.mxu0 0
  %3776 = vmatprep.subr.bf16.mxu0 0
  %3777 = vmatpush1.bf16.msra.mxu0 0
  %3778 = vmatprep.subr.bf16.mxu0 0
  %3779 = vmatpush1.bf16.msra.mxu0 0
  %3780 = vmatprep.subr.bf16.mxu0 0
  %3781 = vmatpush1.bf16.msra.mxu0 0
  %3782 = vmatprep.subr.bf16.mxu0 0
  %3783 = vmatpush1.bf16.msra.mxu0 0
  %3784 = vmatprep.subr.bf16.mxu0 0
  %3785 = vmatpush1.bf16.msra.mxu0 0
  %3786 = vmatprep.subr.bf16.mxu0 0
  %3787 = vmatpush1.bf16.msra.mxu0 0
  %3788 = vmatprep.subr.bf16.mxu0 0
  %3789 = vmatpush1.bf16.msra.mxu0 0
  %3790 = vmatprep.subr.bf16.mxu0 0
  %3791 = vmatpush1.bf16.msra.mxu0 0
  %3792 = vmatprep.subr.bf16.mxu0 0
  %3793 = vmatpush1.bf16.msra.mxu0 0
  %3794 = vmatprep.subr.bf16.mxu0 0
  %3795 = vmatpush1.bf16.msra.mxu0 0
  %3796 = vmatprep.subr.bf16.mxu0 0
  %3797 = vmatpush1.bf16.msra.mxu0 0
  %3798 = vmatprep.mubr.bf16.mxu0 0
  %3799 = vmatmul.mubr.bf16.gmra.mrb[0].mxu0 %v3600
  %v3800 = vpop.f32.mrb[0].mxu0
  %v3801 = vadd.f32 0.0, %v3800
  %v3802 = vpop.f32.mrb[0].mxu0
  %v3803 = vadd.f32 0.0, %v3802
  %v3804 = vpop.f32.mrb[0].mxu0
  %v3805 = vpop.f32.mrb[0].mxu0
  %3806 = vdwg.mxu0
  %v3807 = vld [vmem:[#allocation2] sm:$0xff]
  %v3808 = vld [vmem:[#allocation2 + $0x8] sm:$0xff]
  %v3809 = vld [vmem:[#allocation2 + $0x10] sm:$0xff]
  %v3810 = vld [vmem:[#allocation2 + $0x18] sm:$0xff]
  %v3811 = vld [vmem:[#allocation2 + $0x20] sm:$0xff]
  %v3812 = vld [vmem:[#allocation2 + $0x28] sm:$0xff]
  %v3813 = vld [vmem:[#allocation2 + $0x30] sm:$0xff]
  %v3814 = vld [vmem:[#allocation2 + $0x38] sm:$0xff]
  %v3815 = vld [vmem:[#allocation2 + $0x40] sm:$0xff]
  %v3816 = vld [vmem:[#allocation2 + $0x48] sm:$0xff]
  %3827 = vrot.lane.b32.xlu0 %v3637, 94
  %v3828 = vpop.permute.xlu0 %3827
  %3829 = vrot.lane.b32.xlu0 %v3639, 94
  %v3830 = vpop.permute.xlu0 %3829
  %3831 = vrot.lane.b32.xlu0 %v3678, 94
  %v3832 = vpop.permute.xlu0 %3831
  %3833 = vrot.lane.b32.xlu0 %v3680, 94
  %v3834 = vpop.permute.xlu0 %3833
  %3835 = vrot.lane.b32.xlu0 %v3719, 94
  %v3836 = vpop.permute.xlu0 %3835
  %3837 = vrot.lane.b32.xlu0 %v3721, 94
  %v3838 = vpop.permute.xlu0 %3837
  %3839 = vrot.lane.b32.xlu0 %v3760, 94
  %v3840 = vpop.permute.xlu0 %3839
  %3841 = vrot.lane.b32.xlu0 %v3762, 94
  %v3842 = vpop.permute.xlu0 %3841
  %3843 = vrot.lane.b32.xlu0 %v3801, 94
  %v3844 = vpop.permute.xlu0 %3843
  %3845 = vrot.lane.b32.xlu0 %v3803, 94
  %v3846 = vpop.permute.xlu0 %3845
  %v3847 = vsel %vm1156, %v3828, %v3830
  %v3848 = vsel %vm1156, %v3830, %v3832
  %v3849 = vsel %vm1156, %v3832, %v3834
  %v3850 = vsel %vm1156, %v3834, %v3836
  %v3851 = vsel %vm1156, %v3836, %v3838
  %v3852 = vsel %vm1156, %v3838, %v3840
  %v3853 = vsel %vm1156, %v3840, %v3842
  %v3854 = vsel %vm1156, %v3842, %v3844
  %v3855 = vsel %vm1156, %v3844, %v3846
  %v3866 = vadd.f32 %v3807, %v3847
  %v3867 = vadd.f32 %v3808, %v3848
  %v3868 = vadd.f32 %v3809, %v3849
  %v3869 = vadd.f32 %v3810, %v3850
  %v3870 = vadd.f32 %v3811, %v3851
  %v3871 = vadd.f32 %v3812, %v3852
  %v3872 = vadd.f32 %v3813, %v3853
  %v3873 = vadd.f32 %v3814, %v3854
  %v3874 = vadd.f32 %v3815, %v3855
  %v3875 = vadd.f32 %v3816, %v3846
  %3876 = vst [vmem:[#allocation2] sm:$0xff] %v3866
  %3877 = vst [vmem:[#allocation2 + $0x8] sm:$0xff] %v3867
  %3878 = vst [vmem:[#allocation2 + $0x10] sm:$0xff] %v3868
  %3879 = vst [vmem:[#allocation2 + $0x18] sm:$0xff] %v3869
  %3880 = vst [vmem:[#allocation2 + $0x20] sm:$0xff] %v3870
  %3881 = vst [vmem:[#allocation2 + $0x28] sm:$0xff] %v3871
  %3882 = vst [vmem:[#allocation2 + $0x30] sm:$0xff] %v3872
  %3883 = vst [vmem:[#allocation2 + $0x38] sm:$0xff] %v3873
  %3884 = vst [vmem:[#allocation2 + $0x40] sm:$0xff] %v3874
  %3885 = vst.msk [vmem:[#allocation2 + $0x48] sm:$0xff] %vm1156, %v3875
  %v3886 = vld [vmem:[%s1196] sm:$0xf]
  %v3888 = vsel %vm56, %v3886, 0
  %3890 = vmatprep.subr.bf16.mxu0 %v2761
  %3891 = vmatpush1.bf16.msra.mxu0 %v2758
  %3892 = vmatprep.subr.bf16.mxu0 0
  %3893 = vmatpush1.bf16.msra.mxu0 0
  %3894 = vmatprep.subr.bf16.mxu0 0
  %3895 = vmatpush1.bf16.msra.mxu0 0
  %3896 = vmatprep.subr.bf16.mxu0 0
  %3897 = vmatpush1.bf16.msra.mxu0 0
  %3898 = vmatprep.subr.bf16.mxu0 0
  %3899 = vmatpush1.bf16.msra.mxu0 0
  %3900 = vmatprep.subr.bf16.mxu0 0
  %3901 = vmatpush1.bf16.msra.mxu0 0
  %3902 = vmatprep.subr.bf16.mxu0 0
  %3903 = vmatpush1.bf16.msra.mxu0 0
  %3904 = vmatprep.subr.bf16.mxu0 0
  %3905 = vmatpush1.bf16.msra.mxu0 0
  %3906 = vmatprep.subr.bf16.mxu0 0
  %3907 = vmatpush1.bf16.msra.mxu0 0
  %3908 = vmatprep.subr.bf16.mxu0 0
  %3909 = vmatpush1.bf16.msra.mxu0 0
  %3910 = vmatprep.subr.bf16.mxu0 0
  %3911 = vmatpush1.bf16.msra.mxu0 0
  %3912 = vmatprep.subr.bf16.mxu0 0
  %3913 = vmatpush1.bf16.msra.mxu0 0
  %3914 = vmatprep.subr.bf16.mxu0 0
  %3915 = vmatpush1.bf16.msra.mxu0 0
  %3916 = vmatprep.subr.bf16.mxu0 0
  %3917 = vmatpush1.bf16.msra.mxu0 0
  %3918 = vmatprep.subr.bf16.mxu0 0
  %3919 = vmatpush1.bf16.msra.mxu0 0
  %3920 = vmatprep.subr.bf16.mxu0 0
  %3921 = vmatpush1.bf16.msra.mxu0 0
  %3922 = vmatprep.mubr.bf16.mxu0 0
  %3923 = vmatmul.mubr.bf16.gmra.mrb[0].mxu0 %v3888
  %v3924 = vpop.f32.mrb[0].mxu0
  %v3925 = vadd.f32 0.0, %v3924
  %v3926 = vpop.f32.mrb[0].mxu0
  %v3927 = vadd.f32 0.0, %v3926
  %v3928 = vpop.f32.mrb[0].mxu0
  %v3929 = vpop.f32.mrb[0].mxu0
  %3930 = vdwg.mxu0
  %3931 = vmatprep.subr.bf16.mxu0 %v2767
  %3932 = vmatpush1.bf16.msra.mxu0 %v2764
  %3933 = vmatprep.subr.bf16.mxu0 0
  %3934 = vmatpush1.bf16.msra.mxu0 0
  %3935 = vmatprep.subr.bf16.mxu0 0
  %3936 = vmatpush1.bf16.msra.mxu0 0
  %3937 = vmatprep.subr.bf16.mxu0 0
  %3938 = vmatpush1.bf16.msra.mxu0 0
  %3939 = vmatprep.subr.bf16.mxu0 0
  %3940 = vmatpush1.bf16.msra.mxu0 0
  %3941 = vmatprep.subr.bf16.mxu0 0
  %3942 = vmatpush1.bf16.msra.mxu0 0
  %3943 = vmatprep.subr.bf16.mxu0 0
  %3944 = vmatpush1.bf16.msra.mxu0 0
  %3945 = vmatprep.subr.bf16.mxu0 0
  %3946 = vmatpush1.bf16.msra.mxu0 0
  %3947 = vmatprep.subr.bf16.mxu0 0
  %3948 = vmatpush1.bf16.msra.mxu0 0
  %3949 = vmatprep.subr.bf16.mxu0 0
  %3950 = vmatpush1.bf16.msra.mxu0 0
  %3951 = vmatprep.subr.bf16.mxu0 0
  %3952 = vmatpush1.bf16.msra.mxu0 0
  %3953 = vmatprep.subr.bf16.mxu0 0
  %3954 = vmatpush1.bf16.msra.mxu0 0
  %3955 = vmatprep.subr.bf16.mxu0 0
  %3956 = vmatpush1.bf16.msra.mxu0 0
  %3957 = vmatprep.subr.bf16.mxu0 0
  %3958 = vmatpush1.bf16.msra.mxu0 0
  %3959 = vmatprep.subr.bf16.mxu0 0
  %3960 = vmatpush1.bf16.msra.mxu0 0
  %3961 = vmatprep.subr.bf16.mxu0 0
  %3962 = vmatpush1.bf16.msra.mxu0 0
  %3963 = vmatprep.mubr.bf16.mxu0 0
  %3964 = vmatmul.mubr.bf16.gmra.mrb[0].mxu0 %v3888
  %v3965 = vpop.f32.mrb[0].mxu0
  %v3966 = vadd.f32 0.0, %v3965
  %v3967 = vpop.f32.mrb[0].mxu0
  %v3968 = vadd.f32 0.0, %v3967
  %v3969 = vpop.f32.mrb[0].mxu0
  %v3970 = vpop.f32.mrb[0].mxu0
  %3971 = vdwg.mxu0
  %3972 = vmatprep.subr.bf16.mxu0 %v2773
  %3973 = vmatpush1.bf16.msra.mxu0 %v2770
  %3974 = vmatprep.subr.bf16.mxu0 0
  %3975 = vmatpush1.bf16.msra.mxu0 0
  %3976 = vmatprep.subr.bf16.mxu0 0
  %3977 = vmatpush1.bf16.msra.mxu0 0
  %3978 = vmatprep.subr.bf16.mxu0 0
  %3979 = vmatpush1.bf16.msra.mxu0 0
  %3980 = vmatprep.subr.bf16.mxu0 0
  %3981 = vmatpush1.bf16.msra.mxu0 0
  %3982 = vmatprep.subr.bf16.mxu0 0
  %3983 = vmatpush1.bf16.msra.mxu0 0
  %3984 = vmatprep.subr.bf16.mxu0 0
  %3985 = vmatpush1.bf16.msra.mxu0 0
  %3986 = vmatprep.subr.bf16.mxu0 0
  %3987 = vmatpush1.bf16.msra.mxu0 0
  %3988 = vmatprep.subr.bf16.mxu0 0
  %3989 = vmatpush1.bf16.msra.mxu0 0
  %3990 = vmatprep.subr.bf16.mxu0 0
  %3991 = vmatpush1.bf16.msra.mxu0 0
  %3992 = vmatprep.subr.bf16.mxu0 0
  %3993 = vmatpush1.bf16.msra.mxu0 0
  %3994 = vmatprep.subr.bf16.mxu0 0
  %3995 = vmatpush1.bf16.msra.mxu0 0
  %3996 = vmatprep.subr.bf16.mxu0 0
  %3997 = vmatpush1.bf16.msra.mxu0 0
  %3998 = vmatprep.subr.bf16.mxu0 0
  %3999 = vmatpush1.bf16.msra.mxu0 0
  %4000 = vmatprep.subr.bf16.mxu0 0
  %4001 = vmatpush1.bf16.msra.mxu0 0
  %4002 = vmatprep.subr.bf16.mxu0 0
  %4003 = vmatpush1.bf16.msra.mxu0 0
  %4004 = vmatprep.mubr.bf16.mxu0 0
  %4005 = vmatmul.mubr.bf16.gmra.mrb[0].mxu0 %v3888
  %v4006 = vpop.f32.mrb[0].mxu0
  %v4007 = vadd.f32 0.0, %v4006
  %v4008 = vpop.f32.mrb[0].mxu0
  %v4009 = vadd.f32 0.0, %v4008
  %v4010 = vpop.f32.mrb[0].mxu0
  %v4011 = vpop.f32.mrb[0].mxu0
  %4012 = vdwg.mxu0
  %4013 = vmatprep.subr.bf16.mxu0 %v2779
  %4014 = vmatpush1.bf16.msra.mxu0 %v2776
  %4015 = vmatprep.subr.bf16.mxu0 0
  %4016 = vmatpush1.bf16.msra.mxu0 0
  %4017 = vmatprep.subr.bf16.mxu0 0
  %4018 = vmatpush1.bf16.msra.mxu0 0
  %4019 = vmatprep.subr.bf16.mxu0 0
  %4020 = vmatpush1.bf16.msra.mxu0 0
  %4021 = vmatprep.subr.bf16.mxu0 0
  %4022 = vmatpush1.bf16.msra.mxu0 0
  %4023 = vmatprep.subr.bf16.mxu0 0
  %4024 = vmatpush1.bf16.msra.mxu0 0
  %4025 = vmatprep.subr.bf16.mxu0 0
  %4026 = vmatpush1.bf16.msra.mxu0 0
  %4027 = vmatprep.subr.bf16.mxu0 0
  %4028 = vmatpush1.bf16.msra.mxu0 0
  %4029 = vmatprep.subr.bf16.mxu0 0
  %4030 = vmatpush1.bf16.msra.mxu0 0
  %4031 = vmatprep.subr.bf16.mxu0 0
  %4032 = vmatpush1.bf16.msra.mxu0 0
  %4033 = vmatprep.subr.bf16.mxu0 0
  %4034 = vmatpush1.bf16.msra.mxu0 0
  %4035 = vmatprep.subr.bf16.mxu0 0
  %4036 = vmatpush1.bf16.msra.mxu0 0
  %4037 = vmatprep.subr.bf16.mxu0 0
  %4038 = vmatpush1.bf16.msra.mxu0 0
  %4039 = vmatprep.subr.bf16.mxu0 0
  %4040 = vmatpush1.bf16.msra.mxu0 0
  %4041 = vmatprep.subr.bf16.mxu0 0
  %4042 = vmatpush1.bf16.msra.mxu0 0
  %4043 = vmatprep.subr.bf16.mxu0 0
  %4044 = vmatpush1.bf16.msra.mxu0 0
  %4045 = vmatprep.mubr.bf16.mxu0 0
  %4046 = vmatmul.mubr.bf16.gmra.mrb[0].mxu0 %v3888
  %v4047 = vpop.f32.mrb[0].mxu0
  %v4048 = vadd.f32 0.0, %v4047
  %v4049 = vpop.f32.mrb[0].mxu0
  %v4050 = vadd.f32 0.0, %v4049
  %v4051 = vpop.f32.mrb[0].mxu0
  %v4052 = vpop.f32.mrb[0].mxu0
  %4053 = vdwg.mxu0
  %4054 = vmatprep.subr.bf16.mxu0 %v2785
  %4055 = vmatpush1.bf16.msra.mxu0 %v2782
  %4056 = vmatprep.subr.bf16.mxu0 0
  %4057 = vmatpush1.bf16.msra.mxu0 0
  %4058 = vmatprep.subr.bf16.mxu0 0
  %4059 = vmatpush1.bf16.msra.mxu0 0
  %4060 = vmatprep.subr.bf16.mxu0 0
  %4061 = vmatpush1.bf16.msra.mxu0 0
  %4062 = vmatprep.subr.bf16.mxu0 0
  %4063 = vmatpush1.bf16.msra.mxu0 0
  %4064 = vmatprep.subr.bf16.mxu0 0
  %4065 = vmatpush1.bf16.msra.mxu0 0
  %4066 = vmatprep.subr.bf16.mxu0 0
  %4067 = vmatpush1.bf16.msra.mxu0 0
  %4068 = vmatprep.subr.bf16.mxu0 0
  %4069 = vmatpush1.bf16.msra.mxu0 0
  %4070 = vmatprep.subr.bf16.mxu0 0
  %4071 = vmatpush1.bf16.msra.mxu0 0
  %4072 = vmatprep.subr.bf16.mxu0 0
  %4073 = vmatpush1.bf16.msra.mxu0 0
  %4074 = vmatprep.subr.bf16.mxu0 0
  %4075 = vmatpush1.bf16.msra.mxu0 0
  %4076 = vmatprep.subr.bf16.mxu0 0
  %4077 = vmatpush1.bf16.msra.mxu0 0
  %4078 = vmatprep.subr.bf16.mxu0 0
  %4079 = vmatpush1.bf16.msra.mxu0 0
  %4080 = vmatprep.subr.bf16.mxu0 0
  %4081 = vmatpush1.bf16.msra.mxu0 0
  %4082 = vmatprep.subr.bf16.mxu0 0
  %4083 = vmatpush1.bf16.msra.mxu0 0
  %4084 = vmatprep.subr.bf16.mxu0 0
  %4085 = vmatpush1.bf16.msra.mxu0 0
  %4086 = vmatprep.mubr.bf16.mxu0 0
  %4087 = vmatmul.mubr.bf16.gmra.mrb[0].mxu0 %v3888
  %v4088 = vpop.f32.mrb[0].mxu0
  %v4089 = vadd.f32 0.0, %v4088
  %v4090 = vpop.f32.mrb[0].mxu0
  %v4091 = vadd.f32 0.0, %v4090
  %v4092 = vpop.f32.mrb[0].mxu0
  %v4093 = vpop.f32.mrb[0].mxu0
  %4094 = vdwg.mxu0
  %v4095 = vld [vmem:[#allocation2] sm:$0xff]
  %v4096 = vld [vmem:[#allocation2 + $0x8] sm:$0xff]
  %v4097 = vld [vmem:[#allocation2 + $0x10] sm:$0xff]
  %v4098 = vld [vmem:[#allocation2 + $0x18] sm:$0xff]
  %v4099 = vld [vmem:[#allocation2 + $0x20] sm:$0xff]
  %v4100 = vld [vmem:[#allocation2 + $0x28] sm:$0xff]
  %v4101 = vld [vmem:[#allocation2 + $0x30] sm:$0xff]
  %v4102 = vld [vmem:[#allocation2 + $0x38] sm:$0xff]
  %v4103 = vld [vmem:[#allocation2 + $0x40] sm:$0xff]
  %v4104 = vld [vmem:[#allocation2 + $0x48] sm:$0xff]
  %4115 = vrot.lane.b32.xlu0 %v3925, 93
  %v4116 = vpop.permute.xlu0 %4115
  %4117 = vrot.lane.b32.xlu0 %v3927, 93
  %v4118 = vpop.permute.xlu0 %4117
  %4119 = vrot.lane.b32.xlu0 %v3966, 93
  %v4120 = vpop.permute.xlu0 %4119
  %4121 = vrot.lane.b32.xlu0 %v3968, 93
  %v4122 = vpop.permute.xlu0 %4121
  %4123 = vrot.lane.b32.xlu0 %v4007, 93
  %v4124 = vpop.permute.xlu0 %4123
  %4125 = vrot.lane.b32.xlu0 %v4009, 93
  %v4126 = vpop.permute.xlu0 %4125
  %4127 = vrot.lane.b32.xlu0 %v4048, 93
  %v4128 = vpop.permute.xlu0 %4127
  %4129 = vrot.lane.b32.xlu0 %v4050, 93
  %v4130 = vpop.permute.xlu0 %4129
  %4131 = vrot.lane.b32.xlu0 %v4089, 93
  %v4132 = vpop.permute.xlu0 %4131
  %4133 = vrot.lane.b32.xlu0 %v4091, 93
  %v4134 = vpop.permute.xlu0 %4133
  %v4135 = vsel %vm1446, %v4116, %v4118
  %v4136 = vsel %vm1446, %v4118, %v4120
  %v4137 = vsel %vm1446, %v4120, %v4122
  %v4138 = vsel %vm1446, %v4122, %v4124
  %v4139 = vsel %vm1446, %v4124, %v4126
  %v4140 = vsel %vm1446, %v4126, %v4128
  %v4141 = vsel %vm1446, %v4128, %v4130
  %v4142 = vsel %vm1446, %v4130, %v4132
  %v4143 = vsel %vm1446, %v4132, %v4134
  %v4154 = vadd.f32 %v4095, %v4135
  %v4155 = vadd.f32 %v4096, %v4136
  %v4156 = vadd.f32 %v4097, %v4137
  %v4157 = vadd.f32 %v4098, %v4138
  %v4158 = vadd.f32 %v4099, %v4139
  %v4159 = vadd.f32 %v4100, %v4140
  %v4160 = vadd.f32 %v4101, %v4141
  %v4161 = vadd.f32 %v4102, %v4142
  %v4162 = vadd.f32 %v4103, %v4143
  %v4163 = vadd.f32 %v4104, %v4134
  %4164 = vst [vmem:[#allocation2] sm:$0xff] %v4154
  %4165 = vst [vmem:[#allocation2 + $0x8] sm:$0xff] %v4155
  %4166 = vst [vmem:[#allocation2 + $0x10] sm:$0xff] %v4156
  %4167 = vst [vmem:[#allocation2 + $0x18] sm:$0xff] %v4157
  %4168 = vst [vmem:[#allocation2 + $0x20] sm:$0xff] %v4158
  %4169 = vst [vmem:[#allocation2 + $0x28] sm:$0xff] %v4159
  %4170 = vst [vmem:[#allocation2 + $0x30] sm:$0xff] %v4160
  %4171 = vst [vmem:[#allocation2 + $0x38] sm:$0xff] %v4161
  %4172 = vst [vmem:[#allocation2 + $0x40] sm:$0xff] %v4162
  %4173 = vst.msk [vmem:[#allocation2 + $0x48] sm:$0xff] %vm1446, %v4163
  %v4174 = vld [vmem:[%s1486] sm:$0xf]
  %v4176 = vsel %vm56, %v4174, 0
  %4178 = vmatprep.subr.bf16.mxu0 %v2761
  %4179 = vmatpush1.bf16.msra.mxu0 %v2758
  %4180 = vmatprep.subr.bf16.mxu0 0
  %4181 = vmatpush1.bf16.msra.mxu0 0
  %4182 = vmatprep.subr.bf16.mxu0 0
  %4183 = vmatpush1.bf16.msra.mxu0 0
  %4184 = vmatprep.subr.bf16.mxu0 0
  %4185 = vmatpush1.bf16.msra.mxu0 0
  %4186 = vmatprep.subr.bf16.mxu0 0
  %4187 = vmatpush1.bf16.msra.mxu0 0
  %4188 = vmatprep.subr.bf16.mxu0 0
  %4189 = vmatpush1.bf16.msra.mxu0 0
  %4190 = vmatprep.subr.bf16.mxu0 0
  %4191 = vmatpush1.bf16.msra.mxu0 0
  %4192 = vmatprep.subr.bf16.mxu0 0
  %4193 = vmatpush1.bf16.msra.mxu0 0
  %4194 = vmatprep.subr.bf16.mxu0 0
  %4195 = vmatpush1.bf16.msra.mxu0 0
  %4196 = vmatprep.subr.bf16.mxu0 0
  %4197 = vmatpush1.bf16.msra.mxu0 0
  %4198 = vmatprep.subr.bf16.mxu0 0
  %4199 = vmatpush1.bf16.msra.mxu0 0
  %4200 = vmatprep.subr.bf16.mxu0 0
  %4201 = vmatpush1.bf16.msra.mxu0 0
  %4202 = vmatprep.subr.bf16.mxu0 0
  %4203 = vmatpush1.bf16.msra.mxu0 0
  %4204 = vmatprep.subr.bf16.mxu0 0
  %4205 = vmatpush1.bf16.msra.mxu0 0
  %4206 = vmatprep.subr.bf16.mxu0 0
  %4207 = vmatpush1.bf16.msra.mxu0 0
  %4208 = vmatprep.subr.bf16.mxu0 0
  %4209 = vmatpush1.bf16.msra.mxu0 0
  %4210 = vmatprep.mubr.bf16.mxu0 0
  %4211 = vmatmul.mubr.bf16.gmra.mrb[0].mxu0 %v4176
  %v4212 = vpop.f32.mrb[0].mxu0
  %v4213 = vadd.f32 0.0, %v4212
  %v4214 = vpop.f32.mrb[0].mxu0
  %v4215 = vadd.f32 0.0, %v4214
  %v4216 = vpop.f32.mrb[0].mxu0
  %v4217 = vpop.f32.mrb[0].mxu0
  %4218 = vdwg.mxu0
  %4219 = vmatprep.subr.bf16.mxu0 %v2767
  %4220 = vmatpush1.bf16.msra.mxu0 %v2764
  %4221 = vmatprep.subr.bf16.mxu0 0
  %4222 = vmatpush1.bf16.msra.mxu0 0
  %4223 = vmatprep.subr.bf16.mxu0 0
  %4224 = vmatpush1.bf16.msra.mxu0 0
  %4225 = vmatprep.subr.bf16.mxu0 0
  %4226 = vmatpush1.bf16.msra.mxu0 0
  %4227 = vmatprep.subr.bf16.mxu0 0
  %4228 = vmatpush1.bf16.msra.mxu0 0
  %4229 = vmatprep.subr.bf16.mxu0 0
  %4230 = vmatpush1.bf16.msra.mxu0 0
  %4231 = vmatprep.subr.bf16.mxu0 0
  %4232 = vmatpush1.bf16.msra.mxu0 0
  %4233 = vmatprep.subr.bf16.mxu0 0
  %4234 = vmatpush1.bf16.msra.mxu0 0
  %4235 = vmatprep.subr.bf16.mxu0 0
  %4236 = vmatpush1.bf16.msra.mxu0 0
  %4237 = vmatprep.subr.bf16.mxu0 0
  %4238 = vmatpush1.bf16.msra.mxu0 0
  %4239 = vmatprep.subr.bf16.mxu0 0
  %4240 = vmatpush1.bf16.msra.mxu0 0
  %4241 = vmatprep.subr.bf16.mxu0 0
  %4242 = vmatpush1.bf16.msra.mxu0 0
  %4243 = vmatprep.subr.bf16.mxu0 0
  %4244 = vmatpush1.bf16.msra.mxu0 0
  %4245 = vmatprep.subr.bf16.mxu0 0
  %4246 = vmatpush1.bf16.msra.mxu0 0
  %4247 = vmatprep.subr.bf16.mxu0 0
  %4248 = vmatpush1.bf16.msra.mxu0 0
  %4249 = vmatprep.subr.bf16.mxu0 0
  %4250 = vmatpush1.bf16.msra.mxu0 0
  %4251 = vmatprep.mubr.bf16.mxu0 0
  %4252 = vmatmul.mubr.bf16.gmra.mrb[0].mxu0 %v4176
  %v4253 = vpop.f32.mrb[0].mxu0
  %v4254 = vadd.f32 0.0, %v4253
  %v4255 = vpop.f32.mrb[0].mxu0
  %v4256 = vadd.f32 0.0, %v4255
  %v4257 = vpop.f32.mrb[0].mxu0
  %v4258 = vpop.f32.mrb[0].mxu0
  %4259 = vdwg.mxu0
  %4260 = vmatprep.subr.bf16.mxu0 %v2773
  %4261 = vmatpush1.bf16.msra.mxu0 %v2770
  %4262 = vmatprep.subr.bf16.mxu0 0
  %4263 = vmatpush1.bf16.msra.mxu0 0
  %4264 = vmatprep.subr.bf16.mxu0 0
  %4265 = vmatpush1.bf16.msra.mxu0 0
  %4266 = vmatprep.subr.bf16.mxu0 0
  %4267 = vmatpush1.bf16.msra.mxu0 0
  %4268 = vmatprep.subr.bf16.mxu0 0
  %4269 = vmatpush1.bf16.msra.mxu0 0
  %4270 = vmatprep.subr.bf16.mxu0 0
  %4271 = vmatpush1.bf16.msra.mxu0 0
  %4272 = vmatprep.subr.bf16.mxu0 0
  %4273 = vmatpush1.bf16.msra.mxu0 0
  %4274 = vmatprep.subr.bf16.mxu0 0
  %4275 = vmatpush1.bf16.msra.mxu0 0
  %4276 = vmatprep.subr.bf16.mxu0 0
  %4277 = vmatpush1.bf16.msra.mxu0 0
  %4278 = vmatprep.subr.bf16.mxu0 0
  %4279 = vmatpush1.bf16.msra.mxu0 0
  %4280 = vmatprep.subr.bf16.mxu0 0
  %4281 = vmatpush1.bf16.msra.mxu0 0
  %4282 = vmatprep.subr.bf16.mxu0 0
  %4283 = vmatpush1.bf16.msra.mxu0 0
  %4284 = vmatprep.subr.bf16.mxu0 0
  %4285 = vmatpush1.bf16.msra.mxu0 0
  %4286 = vmatprep.subr.bf16.mxu0 0
  %4287 = vmatpush1.bf16.msra.mxu0 0
  %4288 = vmatprep.subr.bf16.mxu0 0
  %4289 = vmatpush1.bf16.msra.mxu0 0
  %4290 = vmatprep.subr.bf16.mxu0 0
  %4291 = vmatpush1.bf16.msra.mxu0 0
  %4292 = vmatprep.mubr.bf16.mxu0 0
  %4293 = vmatmul.mubr.bf16.gmra.mrb[0].mxu0 %v4176
  %v4294 = vpop.f32.mrb[0].mxu0
  %v4295 = vadd.f32 0.0, %v4294
  %v4296 = vpop.f32.mrb[0].mxu0
  %v4297 = vadd.f32 0.0, %v4296
  %v4298 = vpop.f32.mrb[0].mxu0
  %v4299 = vpop.f32.mrb[0].mxu0
  %4300 = vdwg.mxu0
  %4301 = vmatprep.subr.bf16.mxu0 %v2779
  %4302 = vmatpush1.bf16.msra.mxu0 %v2776
  %4303 = vmatprep.subr.bf16.mxu0 0
  %4304 = vmatpush1.bf16.msra.mxu0 0
  %4305 = vmatprep.subr.bf16.mxu0 0
  %4306 = vmatpush1.bf16.msra.mxu0 0
  %4307 = vmatprep.subr.bf16.mxu0 0
  %4308 = vmatpush1.bf16.msra.mxu0 0
  %4309 = vmatprep.subr.bf16.mxu0 0
  %4310 = vmatpush1.bf16.msra.mxu0 0
  %4311 = vmatprep.subr.bf16.mxu0 0
  %4312 = vmatpush1.bf16.msra.mxu0 0
  %4313 = vmatprep.subr.bf16.mxu0 0
  %4314 = vmatpush1.bf16.msra.mxu0 0
  %4315 = vmatprep.subr.bf16.mxu0 0
  %4316 = vmatpush1.bf16.msra.mxu0 0
  %4317 = vmatprep.subr.bf16.mxu0 0
  %4318 = vmatpush1.bf16.msra.mxu0 0
  %4319 = vmatprep.subr.bf16.mxu0 0
  %4320 = vmatpush1.bf16.msra.mxu0 0
  %4321 = vmatprep.subr.bf16.mxu0 0
  %4322 = vmatpush1.bf16.msra.mxu0 0
  %4323 = vmatprep.subr.bf16.mxu0 0
  %4324 = vmatpush1.bf16.msra.mxu0 0
  %4325 = vmatprep.subr.bf16.mxu0 0
  %4326 = vmatpush1.bf16.msra.mxu0 0
  %4327 = vmatprep.subr.bf16.mxu0 0
  %4328 = vmatpush1.bf16.msra.mxu0 0
  %4329 = vmatprep.subr.bf16.mxu0 0
  %4330 = vmatpush1.bf16.msra.mxu0 0
  %4331 = vmatprep.subr.bf16.mxu0 0
  %4332 = vmatpush1.bf16.msra.mxu0 0
  %4333 = vmatprep.mubr.bf16.mxu0 0
  %4334 = vmatmul.mubr.bf16.gmra.mrb[0].mxu0 %v4176
  %v4335 = vpop.f32.mrb[0].mxu0
  %v4336 = vadd.f32 0.0, %v4335
  %v4337 = vpop.f32.mrb[0].mxu0
  %v4338 = vadd.f32 0.0, %v4337
  %v4339 = vpop.f32.mrb[0].mxu0
  %v4340 = vpop.f32.mrb[0].mxu0
  %4341 = vdwg.mxu0
  %4342 = vmatprep.subr.bf16.mxu0 %v2785
  %4343 = vmatpush1.bf16.msra.mxu0 %v2782
  %4344 = vmatprep.subr.bf16.mxu0 0
  %4345 = vmatpush1.bf16.msra.mxu0 0
  %4346 = vmatprep.subr.bf16.mxu0 0
  %4347 = vmatpush1.bf16.msra.mxu0 0
  %4348 = vmatprep.subr.bf16.mxu0 0
  %4349 = vmatpush1.bf16.msra.mxu0 0
  %4350 = vmatprep.subr.bf16.mxu0 0
  %4351 = vmatpush1.bf16.msra.mxu0 0
  %4352 = vmatprep.subr.bf16.mxu0 0
  %4353 = vmatpush1.bf16.msra.mxu0 0
  %4354 = vmatprep.subr.bf16.mxu0 0
  %4355 = vmatpush1.bf16.msra.mxu0 0
  %4356 = vmatprep.subr.bf16.mxu0 0
  %4357 = vmatpush1.bf16.msra.mxu0 0
  %4358 = vmatprep.subr.bf16.mxu0 0
  %4359 = vmatpush1.bf16.msra.mxu0 0
  %4360 = vmatprep.subr.bf16.mxu0 0
  %4361 = vmatpush1.bf16.msra.mxu0 0
  %4362 = vmatprep.subr.bf16.mxu0 0
  %4363 = vmatpush1.bf16.msra.mxu0 0
  %4364 = vmatprep.subr.bf16.mxu0 0
  %4365 = vmatpush1.bf16.msra.mxu0 0
  %4366 = vmatprep.subr.bf16.mxu0 0
  %4367 = vmatpush1.bf16.msra.mxu0 0
  %4368 = vmatprep.subr.bf16.mxu0 0
  %4369 = vmatpush1.bf16.msra.mxu0 0
  %4370 = vmatprep.subr.bf16.mxu0 0
  %4371 = vmatpush1.bf16.msra.mxu0 0
  %4372 = vmatprep.subr.bf16.mxu0 0
  %4373 = vmatpush1.bf16.msra.mxu0 0
  %4374 = vmatprep.mubr.bf16.mxu0 0
  %4375 = vmatmul.mubr.bf16.gmra.mrb[0].mxu0 %v4176
  %v4376 = vpop.f32.mrb[0].mxu0
  %v4377 = vadd.f32 0.0, %v4376
  %v4378 = vpop.f32.mrb[0].mxu0
  %v4379 = vadd.f32 0.0, %v4378
  %v4380 = vpop.f32.mrb[0].mxu0
  %v4381 = vpop.f32.mrb[0].mxu0
  %4382 = vdwg.mxu0
  %v4383 = vld [vmem:[#allocation2] sm:$0xff]
  %v4384 = vld [vmem:[#allocation2 + $0x8] sm:$0xff]
  %v4385 = vld [vmem:[#allocation2 + $0x10] sm:$0xff]
  %v4386 = vld [vmem:[#allocation2 + $0x18] sm:$0xff]
  %v4387 = vld [vmem:[#allocation2 + $0x20] sm:$0xff]
  %v4388 = vld [vmem:[#allocation2 + $0x28] sm:$0xff]
  %v4389 = vld [vmem:[#allocation2 + $0x30] sm:$0xff]
  %v4390 = vld [vmem:[#allocation2 + $0x38] sm:$0xff]
  %v4391 = vld [vmem:[#allocation2 + $0x40] sm:$0xff]
  %v4392 = vld [vmem:[#allocation2 + $0x48] sm:$0xff]
  %4403 = vrot.lane.b32.xlu0 %v4213, 92
  %v4404 = vpop.permute.xlu0 %4403
  %4405 = vrot.lane.b32.xlu0 %v4215, 92
  %v4406 = vpop.permute.xlu0 %4405
  %4407 = vrot.lane.b32.xlu0 %v4254, 92
  %v4408 = vpop.permute.xlu0 %4407
  %4409 = vrot.lane.b32.xlu0 %v4256, 92
  %v4410 = vpop.permute.xlu0 %4409
  %4411 = vrot.lane.b32.xlu0 %v4295, 92
  %v4412 = vpop.permute.xlu0 %4411
  %4413 = vrot.lane.b32.xlu0 %v4297, 92
  %v4414 = vpop.permute.xlu0 %4413
  %4415 = vrot.lane.b32.xlu0 %v4336, 92
  %v4416 = vpop.permute.xlu0 %4415
  %4417 = vrot.lane.b32.xlu0 %v4338, 92
  %v4418 = vpop.permute.xlu0 %4417
  %4419 = vrot.lane.b32.xlu0 %v4377, 92
  %v4420 = vpop.permute.xlu0 %4419
  %4421 = vrot.lane.b32.xlu0 %v4379, 92
  %v4422 = vpop.permute.xlu0 %4421
  %v4423 = vsel %vm1736, %v4404, %v4406
  %v4424 = vsel %vm1736, %v4406, %v4408
  %v4425 = vsel %vm1736, %v4408, %v4410
  %v4426 = vsel %vm1736, %v4410, %v4412
  %v4427 = vsel %vm1736, %v4412, %v4414
  %v4428 = vsel %vm1736, %v4414, %v4416
  %v4429 = vsel %vm1736, %v4416, %v4418
  %v4430 = vsel %vm1736, %v4418, %v4420
  %v4431 = vsel %vm1736, %v4420, %v4422
  %v4442 = vadd.f32 %v4383, %v4423
  %v4443 = vadd.f32 %v4384, %v4424
  %v4444 = vadd.f32 %v4385, %v4425
  %v4445 = vadd.f32 %v4386, %v4426
  %v4446 = vadd.f32 %v4387, %v4427
  %v4447 = vadd.f32 %v4388, %v4428
  %v4448 = vadd.f32 %v4389, %v4429
  %v4449 = vadd.f32 %v4390, %v4430
  %v4450 = vadd.f32 %v4391, %v4431
  %v4451 = vadd.f32 %v4392, %v4422
  %4452 = vst [vmem:[#allocation2] sm:$0xff] %v4442
  %4453 = vst [vmem:[#allocation2 + $0x8] sm:$0xff] %v4443
  %4454 = vst [vmem:[#allocation2 + $0x10] sm:$0xff] %v4444
  %4455 = vst [vmem:[#allocation2 + $0x18] sm:$0xff] %v4445
  %4456 = vst [vmem:[#allocation2 + $0x20] sm:$0xff] %v4446
  %4457 = vst [vmem:[#allocation2 + $0x28] sm:$0xff] %v4447
  %4458 = vst [vmem:[#allocation2 + $0x30] sm:$0xff] %v4448
  %4459 = vst [vmem:[#allocation2 + $0x38] sm:$0xff] %v4449
  %4460 = vst [vmem:[#allocation2 + $0x40] sm:$0xff] %v4450
  %4461 = vst.msk [vmem:[#allocation2 + $0x48] sm:$0xff] %vm1736, %v4451
  %v4462 = vld [vmem:[%s1776] sm:$0xf]
  %v4464 = vsel %vm56, %v4462, 0
  %4466 = vmatprep.subr.bf16.mxu0 %v2761
  %4467 = vmatpush1.bf16.msra.mxu0 %v2758
  %4468 = vmatprep.subr.bf16.mxu0 0
  %4469 = vmatpush1.bf16.msra.mxu0 0
  %4470 = vmatprep.subr.bf16.mxu0 0
  %4471 = vmatpush1.bf16.msra.mxu0 0
  %4472 = vmatprep.subr.bf16.mxu0 0
  %4473 = vmatpush1.bf16.msra.mxu0 0
  %4474 = vmatprep.subr.bf16.mxu0 0
  %4475 = vmatpush1.bf16.msra.mxu0 0
  %4476 = vmatprep.subr.bf16.mxu0 0
  %4477 = vmatpush1.bf16.msra.mxu0 0
  %4478 = vmatprep.subr.bf16.mxu0 0
  %4479 = vmatpush1.bf16.msra.mxu0 0
  %4480 = vmatprep.subr.bf16.mxu0 0
  %4481 = vmatpush1.bf16.msra.mxu0 0
  %4482 = vmatprep.subr.bf16.mxu0 0
  %4483 = vmatpush1.bf16.msra.mxu0 0
  %4484 = vmatprep.subr.bf16.mxu0 0
  %4485 = vmatpush1.bf16.msra.mxu0 0
  %4486 = vmatprep.subr.bf16.mxu0 0
  %4487 = vmatpush1.bf16.msra.mxu0 0
  %4488 = vmatprep.subr.bf16.mxu0 0
  %4489 = vmatpush1.bf16.msra.mxu0 0
  %4490 = vmatprep.subr.bf16.mxu0 0
  %4491 = vmatpush1.bf16.msra.mxu0 0
  %4492 = vmatprep.subr.bf16.mxu0 0
  %4493 = vmatpush1.bf16.msra.mxu0 0
  %4494 = vmatprep.subr.bf16.mxu0 0
  %4495 = vmatpush1.bf16.msra.mxu0 0
  %4496 = vmatprep.subr.bf16.mxu0 0
  %4497 = vmatpush1.bf16.msra.mxu0 0
  %4498 = vmatprep.mubr.bf16.mxu0 0
  %4499 = vmatmul.mubr.bf16.gmra.mrb[0].mxu0 %v4464
  %v4500 = vpop.f32.mrb[0].mxu0
  %v4501 = vadd.f32 0.0, %v4500
  %v4502 = vpop.f32.mrb[0].mxu0
  %v4503 = vadd.f32 0.0, %v4502
  %v4504 = vpop.f32.mrb[0].mxu0
  %v4505 = vpop.f32.mrb[0].mxu0
  %4506 = vdwg.mxu0
  %4507 = vmatprep.subr.bf16.mxu0 %v2767
  %4508 = vmatpush1.bf16.msra.mxu0 %v2764
  %4509 = vmatprep.subr.bf16.mxu0 0
  %4510 = vmatpush1.bf16.msra.mxu0 0
  %4511 = vmatprep.subr.bf16.mxu0 0
  %4512 = vmatpush1.bf16.msra.mxu0 0
  %4513 = vmatprep.subr.bf16.mxu0 0
  %4514 = vmatpush1.bf16.msra.mxu0 0
  %4515 = vmatprep.subr.bf16.mxu0 0
  %4516 = vmatpush1.bf16.msra.mxu0 0
  %4517 = vmatprep.subr.bf16.mxu0 0
  %4518 = vmatpush1.bf16.msra.mxu0 0
  %4519 = vmatprep.subr.bf16.mxu0 0
  %4520 = vmatpush1.bf16.msra.mxu0 0
  %4521 = vmatprep.subr.bf16.mxu0 0
  %4522 = vmatpush1.bf16.msra.mxu0 0
  %4523 = vmatprep.subr.bf16.mxu0 0
  %4524 = vmatpush1.bf16.msra.mxu0 0
  %4525 = vmatprep.subr.bf16.mxu0 0
  %4526 = vmatpush1.bf16.msra.mxu0 0
  %4527 = vmatprep.subr.bf16.mxu0 0
  %4528 = vmatpush1.bf16.msra.mxu0 0
  %4529 = vmatprep.subr.bf16.mxu0 0
  %4530 = vmatpush1.bf16.msra.mxu0 0
  %4531 = vmatprep.subr.bf16.mxu0 0
  %4532 = vmatpush1.bf16.msra.mxu0 0
  %4533 = vmatprep.subr.bf16.mxu0 0
  %4534 = vmatpush1.bf16.msra.mxu0 0
  %4535 = vmatprep.subr.bf16.mxu0 0
  %4536 = vmatpush1.bf16.msra.mxu0 0
  %4537 = vmatprep.subr.bf16.mxu0 0
  %4538 = vmatpush1.bf16.msra.mxu0 0
  %4539 = vmatprep.mubr.bf16.mxu0 0
  %4540 = vmatmul.mubr.bf16.gmra.mrb[0].mxu0 %v4464
  %v4541 = vpop.f32.mrb[0].mxu0
  %v4542 = vadd.f32 0.0, %v4541
  %v4543 = vpop.f32.mrb[0].mxu0
  %v4544 = vadd.f32 0.0, %v4543
  %v4545 = vpop.f32.mrb[0].mxu0
  %v4546 = vpop.f32.mrb[0].mxu0
  %4547 = vdwg.mxu0
  %4548 = vmatprep.subr.bf16.mxu0 %v2773
  %4549 = vmatpush1.bf16.msra.mxu0 %v2770
  %4550 = vmatprep.subr.bf16.mxu0 0
  %4551 = vmatpush1.bf16.msra.mxu0 0
  %4552 = vmatprep.subr.bf16.mxu0 0
  %4553 = vmatpush1.bf16.msra.mxu0 0
  %4554 = vmatprep.subr.bf16.mxu0 0
  %4555 = vmatpush1.bf16.msra.mxu0 0
  %4556 = vmatprep.subr.bf16.mxu0 0
  %4557 = vmatpush1.bf16.msra.mxu0 0
  %4558 = vmatprep.subr.bf16.mxu0 0
  %4559 = vmatpush1.bf16.msra.mxu0 0
  %4560 = vmatprep.subr.bf16.mxu0 0
  %4561 = vmatpush1.bf16.msra.mxu0 0
  %4562 = vmatprep.subr.bf16.mxu0 0
  %4563 = vmatpush1.bf16.msra.mxu0 0
  %4564 = vmatprep.subr.bf16.mxu0 0
  %4565 = vmatpush1.bf16.msra.mxu0 0
  %4566 = vmatprep.subr.bf16.mxu0 0
  %4567 = vmatpush1.bf16.msra.mxu0 0
  %4568 = vmatprep.subr.bf16.mxu0 0
  %4569 = vmatpush1.bf16.msra.mxu0 0
  %4570 = vmatprep.subr.bf16.mxu0 0
  %4571 = vmatpush1.bf16.msra.mxu0 0
  %4572 = vmatprep.subr.bf16.mxu0 0
  %4573 = vmatpush1.bf16.msra.mxu0 0
  %4574 = vmatprep.subr.bf16.mxu0 0
  %4575 = vmatpush1.bf16.msra.mxu0 0
  %4576 = vmatprep.subr.bf16.mxu0 0
  %4577 = vmatpush1.bf16.msra.mxu0 0
  %4578 = vmatprep.subr.bf16.mxu0 0
  %4579 = vmatpush1.bf16.msra.mxu0 0
  %4580 = vmatprep.mubr.bf16.mxu0 0
  %4581 = vmatmul.mubr.bf16.gmra.mrb[0].mxu0 %v4464
  %v4582 = vpop.f32.mrb[0].mxu0
  %v4583 = vadd.f32 0.0, %v4582
  %v4584 = vpop.f32.mrb[0].mxu0
  %v4585 = vadd.f32 0.0, %v4584
  %v4586 = vpop.f32.mrb[0].mxu0
  %v4587 = vpop.f32.mrb[0].mxu0
  %4588 = vdwg.mxu0
  %4589 = vmatprep.subr.bf16.mxu0 %v2779
  %4590 = vmatpush1.bf16.msra.mxu0 %v2776
  %4591 = vmatprep.subr.bf16.mxu0 0
  %4592 = vmatpush1.bf16.msra.mxu0 0
  %4593 = vmatprep.subr.bf16.mxu0 0
  %4594 = vmatpush1.bf16.msra.mxu0 0
  %4595 = vmatprep.subr.bf16.mxu0 0
  %4596 = vmatpush1.bf16.msra.mxu0 0
  %4597 = vmatprep.subr.bf16.mxu0 0
  %4598 = vmatpush1.bf16.msra.mxu0 0
  %4599 = vmatprep.subr.bf16.mxu0 0
  %4600 = vmatpush1.bf16.msra.mxu0 0
  %4601 = vmatprep.subr.bf16.mxu0 0
  %4602 = vmatpush1.bf16.msra.mxu0 0
  %4603 = vmatprep.subr.bf16.mxu0 0
  %4604 = vmatpush1.bf16.msra.mxu0 0
  %4605 = vmatprep.subr.bf16.mxu0 0
  %4606 = vmatpush1.bf16.msra.mxu0 0
  %4607 = vmatprep.subr.bf16.mxu0 0
  %4608 = vmatpush1.bf16.msra.mxu0 0
  %4609 = vmatprep.subr.bf16.mxu0 0
  %4610 = vmatpush1.bf16.msra.mxu0 0
  %4611 = vmatprep.subr.bf16.mxu0 0
  %4612 = vmatpush1.bf16.msra.mxu0 0
  %4613 = vmatprep.subr.bf16.mxu0 0
  %4614 = vmatpush1.bf16.msra.mxu0 0
  %4615 = vmatprep.subr.bf16.mxu0 0
  %4616 = vmatpush1.bf16.msra.mxu0 0
  %4617 = vmatprep.subr.bf16.mxu0 0
  %4618 = vmatpush1.bf16.msra.mxu0 0
  %4619 = vmatprep.subr.bf16.mxu0 0
  %4620 = vmatpush1.bf16.msra.mxu0 0
  %4621 = vmatprep.mubr.bf16.mxu0 0
  %4622 = vmatmul.mubr.bf16.gmra.mrb[0].mxu0 %v4464
  %v4623 = vpop.f32.mrb[0].mxu0
  %v4624 = vadd.f32 0.0, %v4623
  %v4625 = vpop.f32.mrb[0].mxu0
  %v4626 = vadd.f32 0.0, %v4625
  %v4627 = vpop.f32.mrb[0].mxu0
  %v4628 = vpop.f32.mrb[0].mxu0
  %4629 = vdwg.mxu0
  %4630 = vmatprep.subr.bf16.mxu0 %v2785
  %4631 = vmatpush1.bf16.msra.mxu0 %v2782
  %4632 = vmatprep.subr.bf16.mxu0 0
  %4633 = vmatpush1.bf16.msra.mxu0 0
  %4634 = vmatprep.subr.bf16.mxu0 0
  %4635 = vmatpush1.bf16.msra.mxu0 0
  %4636 = vmatprep.subr.bf16.mxu0 0
  %4637 = vmatpush1.bf16.msra.mxu0 0
  %4638 = vmatprep.subr.bf16.mxu0 0
  %4639 = vmatpush1.bf16.msra.mxu0 0
  %4640 = vmatprep.subr.bf16.mxu0 0
  %4641 = vmatpush1.bf16.msra.mxu0 0
  %4642 = vmatprep.subr.bf16.mxu0 0
  %4643 = vmatpush1.bf16.msra.mxu0 0
  %4644 = vmatprep.subr.bf16.mxu0 0
  %4645 = vmatpush1.bf16.msra.mxu0 0
  %4646 = vmatprep.subr.bf16.mxu0 0
  %4647 = vmatpush1.bf16.msra.mxu0 0
  %4648 = vmatprep.subr.bf16.mxu0 0
  %4649 = vmatpush1.bf16.msra.mxu0 0
  %4650 = vmatprep.subr.bf16.mxu0 0
  %4651 = vmatpush1.bf16.msra.mxu0 0
  %4652 = vmatprep.subr.bf16.mxu0 0
  %4653 = vmatpush1.bf16.msra.mxu0 0
  %4654 = vmatprep.subr.bf16.mxu0 0
  %4655 = vmatpush1.bf16.msra.mxu0 0
  %4656 = vmatprep.subr.bf16.mxu0 0
  %4657 = vmatpush1.bf16.msra.mxu0 0
  %4658 = vmatprep.subr.bf16.mxu0 0
  %4659 = vmatpush1.bf16.msra.mxu0 0
  %4660 = vmatprep.subr.bf16.mxu0 0
  %4661 = vmatpush1.bf16.msra.mxu0 0
  %4662 = vmatprep.mubr.bf16.mxu0 0
  %4663 = vmatmul.mubr.bf16.gmra.mrb[0].mxu0 %v4464
  %v4664 = vpop.f32.mrb[0].mxu0
  %v4665 = vadd.f32 0.0, %v4664
  %v4666 = vpop.f32.mrb[0].mxu0
  %v4667 = vadd.f32 0.0, %v4666
  %v4668 = vpop.f32.mrb[0].mxu0
  %v4669 = vpop.f32.mrb[0].mxu0
  %4670 = vdwg.mxu0
  %v4671 = vld [vmem:[#allocation2] sm:$0xff]
  %v4672 = vld [vmem:[#allocation2 + $0x8] sm:$0xff]
  %v4673 = vld [vmem:[#allocation2 + $0x10] sm:$0xff]
  %v4674 = vld [vmem:[#allocation2 + $0x18] sm:$0xff]
  %v4675 = vld [vmem:[#allocation2 + $0x20] sm:$0xff]
  %v4676 = vld [vmem:[#allocation2 + $0x28] sm:$0xff]
  %v4677 = vld [vmem:[#allocation2 + $0x30] sm:$0xff]
  %v4678 = vld [vmem:[#allocation2 + $0x38] sm:$0xff]
  %v4679 = vld [vmem:[#allocation2 + $0x40] sm:$0xff]
  %v4680 = vld [vmem:[#allocation2 + $0x48] sm:$0xff]
  %4691 = vrot.lane.b32.xlu0 %v4501, 60
  %v4692 = vpop.permute.xlu0 %4691
  %4693 = vrot.lane.b32.xlu0 %v4503, 60
  %v4694 = vpop.permute.xlu0 %4693
  %4695 = vrot.lane.b32.xlu0 %v4542, 60
  %v4696 = vpop.permute.xlu0 %4695
  %4697 = vrot.lane.b32.xlu0 %v4544, 60
  %v4698 = vpop.permute.xlu0 %4697
  %4699 = vrot.lane.b32.xlu0 %v4583, 60
  %v4700 = vpop.permute.xlu0 %4699
  %4701 = vrot.lane.b32.xlu0 %v4585, 60
  %v4702 = vpop.permute.xlu0 %4701
  %4703 = vrot.lane.b32.xlu0 %v4624, 60
  %v4704 = vpop.permute.xlu0 %4703
  %4705 = vrot.lane.b32.xlu0 %v4626, 60
  %v4706 = vpop.permute.xlu0 %4705
  %4707 = vrot.lane.b32.xlu0 %v4665, 60
  %v4708 = vpop.permute.xlu0 %4707
  %4709 = vrot.lane.b32.xlu0 %v4667, 60
  %v4710 = vpop.permute.xlu0 %4709
  %v4711 = vsel %vm2026, %v4692, %v4694
  %v4712 = vsel %vm2026, %v4694, %v4696
  %v4713 = vsel %vm2026, %v4696, %v4698
  %v4714 = vsel %vm2026, %v4698, %v4700
  %v4715 = vsel %vm2026, %v4700, %v4702
  %v4716 = vsel %vm2026, %v4702, %v4704
  %v4717 = vsel %vm2026, %v4704, %v4706
  %v4718 = vsel %vm2026, %v4706, %v4708
  %v4719 = vsel %vm2026, %v4708, %v4710
  %v4730 = vadd.f32 %v4671, %v4711
  %v4731 = vadd.f32 %v4672, %v4712
  %v4732 = vadd.f32 %v4673, %v4713
  %v4733 = vadd.f32 %v4674, %v4714
  %v4734 = vadd.f32 %v4675, %v4715
  %v4735 = vadd.f32 %v4676, %v4716
  %v4736 = vadd.f32 %v4677, %v4717
  %v4737 = vadd.f32 %v4678, %v4718
  %v4738 = vadd.f32 %v4679, %v4719
  %v4739 = vadd.f32 %v4680, %v4710
  %4740 = vst [vmem:[#allocation2] sm:$0xff] %v4730
  %4741 = vst [vmem:[#allocation2 + $0x8] sm:$0xff] %v4731
  %4742 = vst [vmem:[#allocation2 + $0x10] sm:$0xff] %v4732
  %4743 = vst [vmem:[#allocation2 + $0x18] sm:$0xff] %v4733
  %4744 = vst [vmem:[#allocation2 + $0x20] sm:$0xff] %v4734
  %4745 = vst [vmem:[#allocation2 + $0x28] sm:$0xff] %v4735
  %4746 = vst [vmem:[#allocation2 + $0x30] sm:$0xff] %v4736
  %4747 = vst [vmem:[#allocation2 + $0x38] sm:$0xff] %v4737
  %4748 = vst [vmem:[#allocation2 + $0x40] sm:$0xff] %v4738
  %4749 = vst.msk [vmem:[#allocation2 + $0x48] sm:$0xff] %vm2026, %v4739
  %v4750 = vld [vmem:[%s2066] sm:$0xf]
  %v4752 = vsel %vm56, %v4750, 0
  %4754 = vmatprep.subr.bf16.mxu0 %v2761
  %4755 = vmatpush1.bf16.msra.mxu0 %v2758
  %4756 = vmatprep.subr.bf16.mxu0 0
  %4757 = vmatpush1.bf16.msra.mxu0 0
  %4758 = vmatprep.subr.bf16.mxu0 0
  %4759 = vmatpush1.bf16.msra.mxu0 0
  %4760 = vmatprep.subr.bf16.mxu0 0
  %4761 = vmatpush1.bf16.msra.mxu0 0
  %4762 = vmatprep.subr.bf16.mxu0 0
  %4763 = vmatpush1.bf16.msra.mxu0 0
  %4764 = vmatprep.subr.bf16.mxu0 0
  %4765 = vmatpush1.bf16.msra.mxu0 0
  %4766 = vmatprep.subr.bf16.mxu0 0
  %4767 = vmatpush1.bf16.msra.mxu0 0
  %4768 = vmatprep.subr.bf16.mxu0 0
  %4769 = vmatpush1.bf16.msra.mxu0 0
  %4770 = vmatprep.subr.bf16.mxu0 0
  %4771 = vmatpush1.bf16.msra.mxu0 0
  %4772 = vmatprep.subr.bf16.mxu0 0
  %4773 = vmatpush1.bf16.msra.mxu0 0
  %4774 = vmatprep.subr.bf16.mxu0 0
  %4775 = vmatpush1.bf16.msra.mxu0 0
  %4776 = vmatprep.subr.bf16.mxu0 0
  %4777 = vmatpush1.bf16.msra.mxu0 0
  %4778 = vmatprep.subr.bf16.mxu0 0
  %4779 = vmatpush1.bf16.msra.mxu0 0
  %4780 = vmatprep.subr.bf16.mxu0 0
  %4781 = vmatpush1.bf16.msra.mxu0 0
  %4782 = vmatprep.subr.bf16.mxu0 0
  %4783 = vmatpush1.bf16.msra.mxu0 0
  %4784 = vmatprep.subr.bf16.mxu0 0
  %4785 = vmatpush1.bf16.msra.mxu0 0
  %4786 = vmatprep.mubr.bf16.mxu0 0
  %4787 = vmatmul.mubr.bf16.gmra.mrb[0].mxu0 %v4752
  %v4788 = vpop.f32.mrb[0].mxu0
  %v4789 = vadd.f32 0.0, %v4788
  %v4790 = vpop.f32.mrb[0].mxu0
  %v4791 = vadd.f32 0.0, %v4790
  %v4792 = vpop.f32.mrb[0].mxu0
  %v4793 = vpop.f32.mrb[0].mxu0
  %4794 = vdwg.mxu0
  %4795 = vmatprep.subr.bf16.mxu0 %v2767
  %4796 = vmatpush1.bf16.msra.mxu0 %v2764
  %4797 = vmatprep.subr.bf16.mxu0 0
  %4798 = vmatpush1.bf16.msra.mxu0 0
  %4799 = vmatprep.subr.bf16.mxu0 0
  %4800 = vmatpush1.bf16.msra.mxu0 0
  %4801 = vmatprep.subr.bf16.mxu0 0
  %4802 = vmatpush1.bf16.msra.mxu0 0
  %4803 = vmatprep.subr.bf16.mxu0 0
  %4804 = vmatpush1.bf16.msra.mxu0 0
  %4805 = vmatprep.subr.bf16.mxu0 0
  %4806 = vmatpush1.bf16.msra.mxu0 0
  %4807 = vmatprep.subr.bf16.mxu0 0
  %4808 = vmatpush1.bf16.msra.mxu0 0
  %4809 = vmatprep.subr.bf16.mxu0 0
  %4810 = vmatpush1.bf16.msra.mxu0 0
  %4811 = vmatprep.subr.bf16.mxu0 0
  %4812 = vmatpush1.bf16.msra.mxu0 0
  %4813 = vmatprep.subr.bf16.mxu0 0
  %4814 = vmatpush1.bf16.msra.mxu0 0
  %4815 = vmatprep.subr.bf16.mxu0 0
  %4816 = vmatpush1.bf16.msra.mxu0 0
  %4817 = vmatprep.subr.bf16.mxu0 0
  %4818 = vmatpush1.bf16.msra.mxu0 0
  %4819 = vmatprep.subr.bf16.mxu0 0
  %4820 = vmatpush1.bf16.msra.mxu0 0
  %4821 = vmatprep.subr.bf16.mxu0 0
  %4822 = vmatpush1.bf16.msra.mxu0 0
  %4823 = vmatprep.subr.bf16.mxu0 0
  %4824 = vmatpush1.bf16.msra.mxu0 0
  %4825 = vmatprep.subr.bf16.mxu0 0
  %4826 = vmatpush1.bf16.msra.mxu0 0
  %4827 = vmatprep.mubr.bf16.mxu0 0
  %4828 = vmatmul.mubr.bf16.gmra.mrb[0].mxu0 %v4752
  %v4829 = vpop.f32.mrb[0].mxu0
  %v4830 = vadd.f32 0.0, %v4829
  %v4831 = vpop.f32.mrb[0].mxu0
  %v4832 = vadd.f32 0.0, %v4831
  %v4833 = vpop.f32.mrb[0].mxu0
  %v4834 = vpop.f32.mrb[0].mxu0
  %4835 = vdwg.mxu0
  %4836 = vmatprep.subr.bf16.mxu0 %v2773
  %4837 = vmatpush1.bf16.msra.mxu0 %v2770
  %4838 = vmatprep.subr.bf16.mxu0 0
  %4839 = vmatpush1.bf16.msra.mxu0 0
  %4840 = vmatprep.subr.bf16.mxu0 0
  %4841 = vmatpush1.bf16.msra.mxu0 0
  %4842 = vmatprep.subr.bf16.mxu0 0
  %4843 = vmatpush1.bf16.msra.mxu0 0
  %4844 = vmatprep.subr.bf16.mxu0 0
  %4845 = vmatpush1.bf16.msra.mxu0 0
  %4846 = vmatprep.subr.bf16.mxu0 0
  %4847 = vmatpush1.bf16.msra.mxu0 0
  %4848 = vmatprep.subr.bf16.mxu0 0
  %4849 = vmatpush1.bf16.msra.mxu0 0
  %4850 = vmatprep.subr.bf16.mxu0 0
  %4851 = vmatpush1.bf16.msra.mxu0 0
  %4852 = vmatprep.subr.bf16.mxu0 0
  %4853 = vmatpush1.bf16.msra.mxu0 0
  %4854 = vmatprep.subr.bf16.mxu0 0
  %4855 = vmatpush1.bf16.msra.mxu0 0
  %4856 = vmatprep.subr.bf16.mxu0 0
  %4857 = vmatpush1.bf16.msra.mxu0 0
  %4858 = vmatprep.subr.bf16.mxu0 0
  %4859 = vmatpush1.bf16.msra.mxu0 0
  %4860 = vmatprep.subr.bf16.mxu0 0
  %4861 = vmatpush1.bf16.msra.mxu0 0
  %4862 = vmatprep.subr.bf16.mxu0 0
  %4863 = vmatpush1.bf16.msra.mxu0 0
  %4864 = vmatprep.subr.bf16.mxu0 0
  %4865 = vmatpush1.bf16.msra.mxu0 0
  %4866 = vmatprep.subr.bf16.mxu0 0
  %4867 = vmatpush1.bf16.msra.mxu0 0
  %4868 = vmatprep.mubr.bf16.mxu0 0
  %4869 = vmatmul.mubr.bf16.gmra.mrb[0].mxu0 %v4752
  %v4870 = vpop.f32.mrb[0].mxu0
  %v4871 = vadd.f32 0.0, %v4870
  %v4872 = vpop.f32.mrb[0].mxu0
  %v4873 = vadd.f32 0.0, %v4872
  %v4874 = vpop.f32.mrb[0].mxu0
  %v4875 = vpop.f32.mrb[0].mxu0
  %4876 = vdwg.mxu0
  %4877 = vmatprep.subr.bf16.mxu0 %v2779
  %4878 = vmatpush1.bf16.msra.mxu0 %v2776
  %4879 = vmatprep.subr.bf16.mxu0 0
  %4880 = vmatpush1.bf16.msra.mxu0 0
  %4881 = vmatprep.subr.bf16.mxu0 0
  %4882 = vmatpush1.bf16.msra.mxu0 0
  %4883 = vmatprep.subr.bf16.mxu0 0
  %4884 = vmatpush1.bf16.msra.mxu0 0
  %4885 = vmatprep.subr.bf16.mxu0 0
  %4886 = vmatpush1.bf16.msra.mxu0 0
  %4887 = vmatprep.subr.bf16.mxu0 0
  %4888 = vmatpush1.bf16.msra.mxu0 0
  %4889 = vmatprep.subr.bf16.mxu0 0
  %4890 = vmatpush1.bf16.msra.mxu0 0
  %4891 = vmatprep.subr.bf16.mxu0 0
  %4892 = vmatpush1.bf16.msra.mxu0 0
  %4893 = vmatprep.subr.bf16.mxu0 0
  %4894 = vmatpush1.bf16.msra.mxu0 0
  %4895 = vmatprep.subr.bf16.mxu0 0
  %4896 = vmatpush1.bf16.msra.mxu0 0
  %4897 = vmatprep.subr.bf16.mxu0 0
  %4898 = vmatpush1.bf16.msra.mxu0 0
  %4899 = vmatprep.subr.bf16.mxu0 0
  %4900 = vmatpush1.bf16.msra.mxu0 0
  %4901 = vmatprep.subr.bf16.mxu0 0
  %4902 = vmatpush1.bf16.msra.mxu0 0
  %4903 = vmatprep.subr.bf16.mxu0 0
  %4904 = vmatpush1.bf16.msra.mxu0 0
  %4905 = vmatprep.subr.bf16.mxu0 0
  %4906 = vmatpush1.bf16.msra.mxu0 0
  %4907 = vmatprep.subr.bf16.mxu0 0
  %4908 = vmatpush1.bf16.msra.mxu0 0
  %4909 = vmatprep.mubr.bf16.mxu0 0
  %4910 = vmatmul.mubr.bf16.gmra.mrb[0].mxu0 %v4752
  %v4911 = vpop.f32.mrb[0].mxu0
  %v4912 = vadd.f32 0.0, %v4911
  %v4913 = vpop.f32.mrb[0].mxu0
  %v4914 = vadd.f32 0.0, %v4913
  %v4915 = vpop.f32.mrb[0].mxu0
  %v4916 = vpop.f32.mrb[0].mxu0
  %4917 = vdwg.mxu0
  %4918 = vmatprep.subr.bf16.mxu0 %v2785
  %4919 = vmatpush1.bf16.msra.mxu0 %v2782
  %4920 = vmatprep.subr.bf16.mxu0 0
  %4921 = vmatpush1.bf16.msra.mxu0 0
  %4922 = vmatprep.subr.bf16.mxu0 0
  %4923 = vmatpush1.bf16.msra.mxu0 0
  %4924 = vmatprep.subr.bf16.mxu0 0
  %4925 = vmatpush1.bf16.msra.mxu0 0
  %4926 = vmatprep.subr.bf16.mxu0 0
  %4927 = vmatpush1.bf16.msra.mxu0 0
  %4928 = vmatprep.subr.bf16.mxu0 0
  %4929 = vmatpush1.bf16.msra.mxu0 0
  %4930 = vmatprep.subr.bf16.mxu0 0
  %4931 = vmatpush1.bf16.msra.mxu0 0
  %4932 = vmatprep.subr.bf16.mxu0 0
  %4933 = vmatpush1.bf16.msra.mxu0 0
  %4934 = vmatprep.subr.bf16.mxu0 0
  %4935 = vmatpush1.bf16.msra.mxu0 0
  %4936 = vmatprep.subr.bf16.mxu0 0
  %4937 = vmatpush1.bf16.msra.mxu0 0
  %4938 = vmatprep.subr.bf16.mxu0 0
  %4939 = vmatpush1.bf16.msra.mxu0 0
  %4940 = vmatprep.subr.bf16.mxu0 0
  %4941 = vmatpush1.bf16.msra.mxu0 0
  %4942 = vmatprep.subr.bf16.mxu0 0
  %4943 = vmatpush1.bf16.msra.mxu0 0
  %4944 = vmatprep.subr.bf16.mxu0 0
  %4945 = vmatpush1.bf16.msra.mxu0 0
  %4946 = vmatprep.subr.bf16.mxu0 0
  %4947 = vmatpush1.bf16.msra.mxu0 0
  %4948 = vmatprep.subr.bf16.mxu0 0
  %4949 = vmatpush1.bf16.msra.mxu0 0
  %4950 = vmatprep.mubr.bf16.mxu0 0
  %4951 = vmatmul.mubr.bf16.gmra.mrb[0].mxu0 %v4752
  %v4952 = vpop.f32.mrb[0].mxu0
  %v4953 = vadd.f32 0.0, %v4952
  %v4954 = vpop.f32.mrb[0].mxu0
  %v4955 = vadd.f32 0.0, %v4954
  %v4956 = vpop.f32.mrb[0].mxu0
  %v4957 = vpop.f32.mrb[0].mxu0
  %4958 = vdwg.mxu0
  %v4959 = vld [vmem:[#allocation2] sm:$0xff]
  %v4960 = vld [vmem:[#allocation2 + $0x8] sm:$0xff]
  %v4961 = vld [vmem:[#allocation2 + $0x10] sm:$0xff]
  %v4962 = vld [vmem:[#allocation2 + $0x18] sm:$0xff]
  %v4963 = vld [vmem:[#allocation2 + $0x20] sm:$0xff]
  %v4964 = vld [vmem:[#allocation2 + $0x28] sm:$0xff]
  %v4965 = vld [vmem:[#allocation2 + $0x30] sm:$0xff]
  %v4966 = vld [vmem:[#allocation2 + $0x38] sm:$0xff]
  %v4967 = vld [vmem:[#allocation2 + $0x40] sm:$0xff]
  %v4968 = vld [vmem:[#allocation2 + $0x48] sm:$0xff]
  %4979 = vrot.lane.b32.xlu0 %v4789, 59
  %v4980 = vpop.permute.xlu0 %4979
  %4981 = vrot.lane.b32.xlu0 %v4791, 59
  %v4982 = vpop.permute.xlu0 %4981
  %4983 = vrot.lane.b32.xlu0 %v4830, 59
  %v4984 = vpop.permute.xlu0 %4983
  %4985 = vrot.lane.b32.xlu0 %v4832, 59
  %v4986 = vpop.permute.xlu0 %4985
  %4987 = vrot.lane.b32.xlu0 %v4871, 59
  %v4988 = vpop.permute.xlu0 %4987
  %4989 = vrot.lane.b32.xlu0 %v4873, 59
  %v4990 = vpop.permute.xlu0 %4989
  %4991 = vrot.lane.b32.xlu0 %v4912, 59
  %v4992 = vpop.permute.xlu0 %4991
  %4993 = vrot.lane.b32.xlu0 %v4914, 59
  %v4994 = vpop.permute.xlu0 %4993
  %4995 = vrot.lane.b32.xlu0 %v4953, 59
  %v4996 = vpop.permute.xlu0 %4995
  %4997 = vrot.lane.b32.xlu0 %v4955, 59
  %v4998 = vpop.permute.xlu0 %4997
  %v4999 = vsel %vm2316, %v4980, %v4982
  %v5000 = vsel %vm2316, %v4982, %v4984
  %v5001 = vsel %vm2316, %v4984, %v4986
  %v5002 = vsel %vm2316, %v4986, %v4988
  %v5003 = vsel %vm2316, %v4988, %v4990
  %v5004 = vsel %vm2316, %v4990, %v4992
  %v5005 = vsel %vm2316, %v4992, %v4994
  %v5006 = vsel %vm2316, %v4994, %v4996
  %v5007 = vsel %vm2316, %v4996, %v4998
  %v5018 = vadd.f32 %v4959, %v4999
  %v5019 = vadd.f32 %v4960, %v5000
  %v5020 = vadd.f32 %v4961, %v5001
  %v5021 = vadd.f32 %v4962, %v5002
  %v5022 = vadd.f32 %v4963, %v5003
  %v5023 = vadd.f32 %v4964, %v5004
  %v5024 = vadd.f32 %v4965, %v5005
  %v5025 = vadd.f32 %v4966, %v5006
  %v5026 = vadd.f32 %v4967, %v5007
  %v5027 = vadd.f32 %v4968, %v4998
  %5028 = vst [vmem:[#allocation2] sm:$0xff] %v5018
  %5029 = vst [vmem:[#allocation2 + $0x8] sm:$0xff] %v5019
  %5030 = vst [vmem:[#allocation2 + $0x10] sm:$0xff] %v5020
  %5031 = vst [vmem:[#allocation2 + $0x18] sm:$0xff] %v5021
  %5032 = vst [vmem:[#allocation2 + $0x20] sm:$0xff] %v5022
  %5033 = vst [vmem:[#allocation2 + $0x28] sm:$0xff] %v5023
  %5034 = vst [vmem:[#allocation2 + $0x30] sm:$0xff] %v5024
  %5035 = vst [vmem:[#allocation2 + $0x38] sm:$0xff] %v5025
  %5036 = vst [vmem:[#allocation2 + $0x40] sm:$0xff] %v5026
  %5037 = vst.msk [vmem:[#allocation2 + $0x48] sm:$0xff] %vm2316, %v5027
  %v5038 = vld [vmem:[%s2356] sm:$0xf]
  %v5040 = vsel %vm56, %v5038, 0
  %5042 = vmatprep.subr.bf16.mxu0 %v2761
  %5043 = vmatpush1.bf16.msra.mxu0 %v2758
  %5044 = vmatprep.subr.bf16.mxu0 0
  %5045 = vmatpush1.bf16.msra.mxu0 0
  %5046 = vmatprep.subr.bf16.mxu0 0
  %5047 = vmatpush1.bf16.msra.mxu0 0
  %5048 = vmatprep.subr.bf16.mxu0 0
  %5049 = vmatpush1.bf16.msra.mxu0 0
  %5050 = vmatprep.subr.bf16.mxu0 0
  %5051 = vmatpush1.bf16.msra.mxu0 0
  %5052 = vmatprep.subr.bf16.mxu0 0
  %5053 = vmatpush1.bf16.msra.mxu0 0
  %5054 = vmatprep.subr.bf16.mxu0 0
  %5055 = vmatpush1.bf16.msra.mxu0 0
  %5056 = vmatprep.subr.bf16.mxu0 0
  %5057 = vmatpush1.bf16.msra.mxu0 0
  %5058 = vmatprep.subr.bf16.mxu0 0
  %5059 = vmatpush1.bf16.msra.mxu0 0
  %5060 = vmatprep.subr.bf16.mxu0 0
  %5061 = vmatpush1.bf16.msra.mxu0 0
  %5062 = vmatprep.subr.bf16.mxu0 0
  %5063 = vmatpush1.bf16.msra.mxu0 0
  %5064 = vmatprep.subr.bf16.mxu0 0
  %5065 = vmatpush1.bf16.msra.mxu0 0
  %5066 = vmatprep.subr.bf16.mxu0 0
  %5067 = vmatpush1.bf16.msra.mxu0 0
  %5068 = vmatprep.subr.bf16.mxu0 0
  %5069 = vmatpush1.bf16.msra.mxu0 0
  %5070 = vmatprep.subr.bf16.mxu0 0
  %5071 = vmatpush1.bf16.msra.mxu0 0
  %5072 = vmatprep.subr.bf16.mxu0 0
  %5073 = vmatpush1.bf16.msra.mxu0 0
  %5074 = vmatprep.mubr.bf16.mxu0 0
  %5075 = vmatmul.mubr.bf16.gmra.mrb[0].mxu0 %v5040
  %v5076 = vpop.f32.mrb[0].mxu0
  %v5077 = vadd.f32 0.0, %v5076
  %v5078 = vpop.f32.mrb[0].mxu0
  %v5079 = vadd.f32 0.0, %v5078
  %v5080 = vpop.f32.mrb[0].mxu0
  %v5081 = vpop.f32.mrb[0].mxu0
  %5082 = vdwg.mxu0
  %5083 = vmatprep.subr.bf16.mxu0 %v2767
  %5084 = vmatpush1.bf16.msra.mxu0 %v2764
  %5085 = vmatprep.subr.bf16.mxu0 0
  %5086 = vmatpush1.bf16.msra.mxu0 0
  %5087 = vmatprep.subr.bf16.mxu0 0
  %5088 = vmatpush1.bf16.msra.mxu0 0
  %5089 = vmatprep.subr.bf16.mxu0 0
  %5090 = vmatpush1.bf16.msra.mxu0 0
  %5091 = vmatprep.subr.bf16.mxu0 0
  %5092 = vmatpush1.bf16.msra.mxu0 0
  %5093 = vmatprep.subr.bf16.mxu0 0
  %5094 = vmatpush1.bf16.msra.mxu0 0
  %5095 = vmatprep.subr.bf16.mxu0 0
  %5096 = vmatpush1.bf16.msra.mxu0 0
  %5097 = vmatprep.subr.bf16.mxu0 0
  %5098 = vmatpush1.bf16.msra.mxu0 0
  %5099 = vmatprep.subr.bf16.mxu0 0
  %5100 = vmatpush1.bf16.msra.mxu0 0
  %5101 = vmatprep.subr.bf16.mxu0 0
  %5102 = vmatpush1.bf16.msra.mxu0 0
  %5103 = vmatprep.subr.bf16.mxu0 0
  %5104 = vmatpush1.bf16.msra.mxu0 0
  %5105 = vmatprep.subr.bf16.mxu0 0
  %5106 = vmatpush1.bf16.msra.mxu0 0
  %5107 = vmatprep.subr.bf16.mxu0 0
  %5108 = vmatpush1.bf16.msra.mxu0 0
  %5109 = vmatprep.subr.bf16.mxu0 0
  %5110 = vmatpush1.bf16.msra.mxu0 0
  %5111 = vmatprep.subr.bf16.mxu0 0
  %5112 = vmatpush1.bf16.msra.mxu0 0
  %5113 = vmatprep.subr.bf16.mxu0 0
  %5114 = vmatpush1.bf16.msra.mxu0 0
  %5115 = vmatprep.mubr.bf16.mxu0 0
  %5116 = vmatmul.mubr.bf16.gmra.mrb[0].mxu0 %v5040
  %v5117 = vpop.f32.mrb[0].mxu0
  %v5118 = vadd.f32 0.0, %v5117
  %v5119 = vpop.f32.mrb[0].mxu0
  %v5120 = vadd.f32 0.0, %v5119
  %v5121 = vpop.f32.mrb[0].mxu0
  %v5122 = vpop.f32.mrb[0].mxu0
  %5123 = vdwg.mxu0
  %5124 = vmatprep.subr.bf16.mxu0 %v2773
  %5125 = vmatpush1.bf16.msra.mxu0 %v2770
  %5126 = vmatprep.subr.bf16.mxu0 0
  %5127 = vmatpush1.bf16.msra.mxu0 0
  %5128 = vmatprep.subr.bf16.mxu0 0
  %5129 = vmatpush1.bf16.msra.mxu0 0
  %5130 = vmatprep.subr.bf16.mxu0 0
  %5131 = vmatpush1.bf16.msra.mxu0 0
  %5132 = vmatprep.subr.bf16.mxu0 0
  %5133 = vmatpush1.bf16.msra.mxu0 0
  %5134 = vmatprep.subr.bf16.mxu0 0
  %5135 = vmatpush1.bf16.msra.mxu0 0
  %5136 = vmatprep.subr.bf16.mxu0 0
  %5137 = vmatpush1.bf16.msra.mxu0 0
  %5138 = vmatprep.subr.bf16.mxu0 0
  %5139 = vmatpush1.bf16.msra.mxu0 0
  %5140 = vmatprep.subr.bf16.mxu0 0
  %5141 = vmatpush1.bf16.msra.mxu0 0
  %5142 = vmatprep.subr.bf16.mxu0 0
  %5143 = vmatpush1.bf16.msra.mxu0 0
  %5144 = vmatprep.subr.bf16.mxu0 0
  %5145 = vmatpush1.bf16.msra.mxu0 0
  %5146 = vmatprep.subr.bf16.mxu0 0
  %5147 = vmatpush1.bf16.msra.mxu0 0
  %5148 = vmatprep.subr.bf16.mxu0 0
  %5149 = vmatpush1.bf16.msra.mxu0 0
  %5150 = vmatprep.subr.bf16.mxu0 0
  %5151 = vmatpush1.bf16.msra.mxu0 0
  %5152 = vmatprep.subr.bf16.mxu0 0
  %5153 = vmatpush1.bf16.msra.mxu0 0
  %5154 = vmatprep.subr.bf16.mxu0 0
  %5155 = vmatpush1.bf16.msra.mxu0 0
  %5156 = vmatprep.mubr.bf16.mxu0 0
  %5157 = vmatmul.mubr.bf16.gmra.mrb[0].mxu0 %v5040
  %v5158 = vpop.f32.mrb[0].mxu0
  %v5159 = vadd.f32 0.0, %v5158
  %v5160 = vpop.f32.mrb[0].mxu0
  %v5161 = vadd.f32 0.0, %v5160
  %v5162 = vpop.f32.mrb[0].mxu0
  %v5163 = vpop.f32.mrb[0].mxu0
  %5164 = vdwg.mxu0
  %5165 = vmatprep.subr.bf16.mxu0 %v2779
  %5166 = vmatpush1.bf16.msra.mxu0 %v2776
  %5167 = vmatprep.subr.bf16.mxu0 0
  %5168 = vmatpush1.bf16.msra.mxu0 0
  %5169 = vmatprep.subr.bf16.mxu0 0
  %5170 = vmatpush1.bf16.msra.mxu0 0
  %5171 = vmatprep.subr.bf16.mxu0 0
  %5172 = vmatpush1.bf16.msra.mxu0 0
  %5173 = vmatprep.subr.bf16.mxu0 0
  %5174 = vmatpush1.bf16.msra.mxu0 0
  %5175 = vmatprep.subr.bf16.mxu0 0
  %5176 = vmatpush1.bf16.msra.mxu0 0
  %5177 = vmatprep.subr.bf16.mxu0 0
  %5178 = vmatpush1.bf16.msra.mxu0 0
  %5179 = vmatprep.subr.bf16.mxu0 0
  %5180 = vmatpush1.bf16.msra.mxu0 0
  %5181 = vmatprep.subr.bf16.mxu0 0
  %5182 = vmatpush1.bf16.msra.mxu0 0
  %5183 = vmatprep.subr.bf16.mxu0 0
  %5184 = vmatpush1.bf16.msra.mxu0 0
  %5185 = vmatprep.subr.bf16.mxu0 0
  %5186 = vmatpush1.bf16.msra.mxu0 0
  %5187 = vmatprep.subr.bf16.mxu0 0
  %5188 = vmatpush1.bf16.msra.mxu0 0
  %5189 = vmatprep.subr.bf16.mxu0 0
  %5190 = vmatpush1.bf16.msra.mxu0 0
  %5191 = vmatprep.subr.bf16.mxu0 0
  %5192 = vmatpush1.bf16.msra.mxu0 0
  %5193 = vmatprep.subr.bf16.mxu0 0
  %5194 = vmatpush1.bf16.msra.mxu0 0
  %5195 = vmatprep.subr.bf16.mxu0 0
  %5196 = vmatpush1.bf16.msra.mxu0 0
  %5197 = vmatprep.mubr.bf16.mxu0 0
  %5198 = vmatmul.mubr.bf16.gmra.mrb[0].mxu0 %v5040
  %v5199 = vpop.f32.mrb[0].mxu0
  %v5200 = vadd.f32 0.0, %v5199
  %v5201 = vpop.f32.mrb[0].mxu0
  %v5202 = vadd.f32 0.0, %v5201
  %v5203 = vpop.f32.mrb[0].mxu0
  %v5204 = vpop.f32.mrb[0].mxu0
  %5205 = vdwg.mxu0
  %5206 = vmatprep.subr.bf16.mxu0 %v2785
  %5207 = vmatpush1.bf16.msra.mxu0 %v2782
  %5208 = vmatprep.subr.bf16.mxu0 0
  %5209 = vmatpush1.bf16.msra.mxu0 0
  %5210 = vmatprep.subr.bf16.mxu0 0
  %5211 = vmatpush1.bf16.msra.mxu0 0
  %5212 = vmatprep.subr.bf16.mxu0 0
  %5213 = vmatpush1.bf16.msra.mxu0 0
  %5214 = vmatprep.subr.bf16.mxu0 0
  %5215 = vmatpush1.bf16.msra.mxu0 0
  %5216 = vmatprep.subr.bf16.mxu0 0
  %5217 = vmatpush1.bf16.msra.mxu0 0
  %5218 = vmatprep.subr.bf16.mxu0 0
  %5219 = vmatpush1.bf16.msra.mxu0 0
  %5220 = vmatprep.subr.bf16.mxu0 0
  %5221 = vmatpush1.bf16.msra.mxu0 0
  %5222 = vmatprep.subr.bf16.mxu0 0
  %5223 = vmatpush1.bf16.msra.mxu0 0
  %5224 = vmatprep.subr.bf16.mxu0 0
  %5225 = vmatpush1.bf16.msra.mxu0 0
  %5226 = vmatprep.subr.bf16.mxu0 0
  %5227 = vmatpush1.bf16.msra.mxu0 0
  %5228 = vmatprep.subr.bf16.mxu0 0
  %5229 = vmatpush1.bf16.msra.mxu0 0
  %5230 = vmatprep.subr.bf16.mxu0 0
  %5231 = vmatpush1.bf16.msra.mxu0 0
  %5232 = vmatprep.subr.bf16.mxu0 0
  %5233 = vmatpush1.bf16.msra.mxu0 0
  %5234 = vmatprep.subr.bf16.mxu0 0
  %5235 = vmatpush1.bf16.msra.mxu0 0
  %5236 = vmatprep.subr.bf16.mxu0 0
  %5237 = vmatpush1.bf16.msra.mxu0 0
  %5238 = vmatprep.mubr.bf16.mxu0 0
  %5239 = vmatmul.mubr.bf16.gmra.mrb[0].mxu0 %v5040
  %v5240 = vpop.f32.mrb[0].mxu0
  %v5241 = vadd.f32 0.0, %v5240
  %v5242 = vpop.f32.mrb[0].mxu0
  %v5243 = vadd.f32 0.0, %v5242
  %v5244 = vpop.f32.mrb[0].mxu0
  %v5245 = vpop.f32.mrb[0].mxu0
  %5246 = vdwg.mxu0
  %v5247 = vld [vmem:[#allocation2] sm:$0xff]
  %v5248 = vld [vmem:[#allocation2 + $0x8] sm:$0xff]
  %v5249 = vld [vmem:[#allocation2 + $0x10] sm:$0xff]
  %v5250 = vld [vmem:[#allocation2 + $0x18] sm:$0xff]
  %v5251 = vld [vmem:[#allocation2 + $0x20] sm:$0xff]
  %v5252 = vld [vmem:[#allocation2 + $0x28] sm:$0xff]
  %v5253 = vld [vmem:[#allocation2 + $0x30] sm:$0xff]
  %v5254 = vld [vmem:[#allocation2 + $0x38] sm:$0xff]
  %v5255 = vld [vmem:[#allocation2 + $0x40] sm:$0xff]
  %v5256 = vld [vmem:[#allocation2 + $0x48] sm:$0xff]
  %5267 = vrot.lane.b32.xlu0 %v5077, 58
  %v5268 = vpop.permute.xlu0 %5267
  %5269 = vrot.lane.b32.xlu0 %v5079, 58
  %v5270 = vpop.permute.xlu0 %5269
  %5271 = vrot.lane.b32.xlu0 %v5118, 58
  %v5272 = vpop.permute.xlu0 %5271
  %5273 = vrot.lane.b32.xlu0 %v5120, 58
  %v5274 = vpop.permute.xlu0 %5273
  %5275 = vrot.lane.b32.xlu0 %v5159, 58
  %v5276 = vpop.permute.xlu0 %5275
  %5277 = vrot.lane.b32.xlu0 %v5161, 58
  %v5278 = vpop.permute.xlu0 %5277
  %5279 = vrot.lane.b32.xlu0 %v5200, 58
  %v5280 = vpop.permute.xlu0 %5279
  %5281 = vrot.lane.b32.xlu0 %v5202, 58
  %v5282 = vpop.permute.xlu0 %5281
  %5283 = vrot.lane.b32.xlu0 %v5241, 58
  %v5284 = vpop.permute.xlu0 %5283
  %5285 = vrot.lane.b32.xlu0 %v5243, 58
  %v5286 = vpop.permute.xlu0 %5285
  %v5287 = vsel %vm2606, %v5268, %v5270
  %v5288 = vsel %vm2606, %v5270, %v5272
  %v5289 = vsel %vm2606, %v5272, %v5274
  %v5290 = vsel %vm2606, %v5274, %v5276
  %v5291 = vsel %vm2606, %v5276, %v5278
  %v5292 = vsel %vm2606, %v5278, %v5280
  %v5293 = vsel %vm2606, %v5280, %v5282
  %v5294 = vsel %vm2606, %v5282, %v5284
  %v5295 = vsel %vm2606, %v5284, %v5286
  %v5306 = vadd.f32 %v5247, %v5287
  %v5307 = vadd.f32 %v5248, %v5288
  %v5308 = vadd.f32 %v5249, %v5289
  %v5309 = vadd.f32 %v5250, %v5290
  %v5310 = vadd.f32 %v5251, %v5291
  %v5311 = vadd.f32 %v5252, %v5292
  %v5312 = vadd.f32 %v5253, %v5293
  %v5313 = vadd.f32 %v5254, %v5294
  %v5314 = vadd.f32 %v5255, %v5295
  %v5315 = vadd.f32 %v5256, %v5286
  %5316 = vst [vmem:[#allocation2] sm:$0xff] %v5306
  %5317 = vst [vmem:[#allocation2 + $0x8] sm:$0xff] %v5307
  %5318 = vst [vmem:[#allocation2 + $0x10] sm:$0xff] %v5308
  %5319 = vst [vmem:[#allocation2 + $0x18] sm:$0xff] %v5309
  %5320 = vst [vmem:[#allocation2 + $0x20] sm:$0xff] %v5310
  %5321 = vst [vmem:[#allocation2 + $0x28] sm:$0xff] %v5311
  %5322 = vst [vmem:[#allocation2 + $0x30] sm:$0xff] %v5312
  %5323 = vst [vmem:[#allocation2 + $0x38] sm:$0xff] %v5313
  %5324 = vst [vmem:[#allocation2 + $0x40] sm:$0xff] %v5314
  %5325 = vst.msk [vmem:[#allocation2 + $0x48] sm:$0xff] %vm2606, %v5315
  %v5326 = vld [vmem:[#allocation2] sm:$0xff]
  %v5327 = vld [vmem:[#allocation2 + $0x8] sm:$0xff]
  %v5328 = vld [vmem:[#allocation2 + $0x10] sm:$0xff]
  %v5329 = vld [vmem:[#allocation2 + $0x18] sm:$0xff]
  %v5330 = vld [vmem:[#allocation2 + $0x20] sm:$0xff]
  %v5331 = vld [vmem:[#allocation2 + $0x28] sm:$0xff]
  %v5332 = vld [vmem:[#allocation2 + $0x30] sm:$0xff]
  %v5333 = vld [vmem:[#allocation2 + $0x38] sm:$0xff]
  %v5334 = vld [vmem:[#allocation2 + $0x40] sm:$0xff]
  %v5335 = vld [vmem:[#allocation2 + $0x48] sm:$0xff]
  %v5336 = vld [vmem:[%s1] sm:$0xff]
  %5338 = vset.pattern.permute.xlu0 0
  %5339 = vperm.xlu0 %5338, %v5336
  %v5340 = vpop.permute.xlu0 %5339
  %v5342 = vadd.f32 %v5326, %v5340
  %v5343 = vadd.f32 %v5327, %v5340
  %v5344 = vadd.f32 %v5328, %v5340
  %v5345 = vadd.f32 %v5329, %v5340
  %v5346 = vadd.f32 %v5330, %v5340
  %v5347 = vadd.f32 %v5331, %v5340
  %v5348 = vadd.f32 %v5332, %v5340
  %v5349 = vadd.f32 %v5333, %v5340
  %v5350 = vadd.f32 %v5334, %v5340
  %v5351 = vadd.f32 %v5335, %v5340
  %vm5352 = vcmp.gt.f32.partialorder %v5342, 0.0
  %vm5353 = vcmp.gt.f32.partialorder %v5343, 0.0
  %vm5354 = vcmp.gt.f32.partialorder %v5344, 0.0
  %vm5355 = vcmp.gt.f32.partialorder %v5345, 0.0
  %vm5356 = vcmp.gt.f32.partialorder %v5346, 0.0
  %vm5357 = vcmp.gt.f32.partialorder %v5347, 0.0
  %vm5358 = vcmp.gt.f32.partialorder %v5348, 0.0
  %vm5359 = vcmp.gt.f32.partialorder %v5349, 0.0
  %vm5360 = vcmp.gt.f32.partialorder %v5350, 0.0
  %vm5361 = vcmp.gt.f32.partialorder %v5351, 0.0
  %v5362 = vmul.f32 %v5342, 0.01
  %v5363 = vmul.f32 %v5343, 0.01
  %v5364 = vmul.f32 %v5344, 0.01
  %v5365 = vmul.f32 %v5345, 0.01
  %v5366 = vmul.f32 %v5346, 0.01
  %v5367 = vmul.f32 %v5347, 0.01
  %v5368 = vmul.f32 %v5348, 0.01
  %v5369 = vmul.f32 %v5349, 0.01
  %v5370 = vmul.f32 %v5350, 0.01
  %v5371 = vmul.f32 %v5351, 0.01
  %v5372 = vsel %vm5352, %v5342, %v5362
  %v5373 = vsel %vm5353, %v5343, %v5363
  %v5374 = vsel %vm5354, %v5344, %v5364
  %v5375 = vsel %vm5355, %v5345, %v5365
  %v5376 = vsel %vm5356, %v5346, %v5366
  %v5377 = vsel %vm5357, %v5347, %v5367
  %v5378 = vsel %vm5358, %v5348, %v5368
  %v5379 = vsel %vm5359, %v5349, %v5369
  %v5380 = vsel %vm5360, %v5350, %v5370
  %v5381 = vsel %vm5361, %v5351, %v5371
  %s5382 = scalar_lea.vmem %s3, 80
  %5383 = vst [vmem:[%s5382] sm:$0xff] %v5372
  %5384 = vst [vmem:[%s5382 + $0x8] sm:$0xff] %v5373
  %5385 = vst [vmem:[%s5382 + $0x10] sm:$0xff] %v5374
  %5386 = vst [vmem:[%s5382 + $0x18] sm:$0xff] %v5375
  %5387 = vst [vmem:[%s5382 + $0x20] sm:$0xff] %v5376
  %5388 = vst [vmem:[%s5382 + $0x28] sm:$0xff] %v5377
  %5389 = vst [vmem:[%s5382 + $0x30] sm:$0xff] %v5378
  %5390 = vst [vmem:[%s5382 + $0x38] sm:$0xff] %v5379
  %5391 = vst [vmem:[%s5382 + $0x40] sm:$0xff] %v5380
  %5392 = vst [vmem:[%s5382 + $0x48] sm:$0xff] %v5381
  // Predicated region
  $region14: #{_lambda_.3} parent=0 // pred_check
    _
  $region15: #{_lambda_.3} parent=0 // pred_check_branch
    %5394 = sbr.rel (0) target = $region17
  $region16: #{_lambda_.3} parent=0 // pred_region
    _
  $region17: #{_lambda_.3} parent=0 // pred_fallthru
    _
  // Predicated region
  $region18: #{_lambda_.3} parent=0 // pred_check
    _
  $region19: #{_lambda_.3} parent=0 // pred_check_branch
    %5396 = sbr.rel (0) target = $region21
  $region20: #{_lambda_.3} parent=0 // pred_region
    _
  $region21: #{_lambda_.3} parent=0 // pred_fallthru
    _

</llo_original>
